<compile_context>
chip_gen: v6e
topology: v6e:2x2x1
jax: 0.10.0
libtpu: 0.0.40
codegen_flags: <defaults>
</compile_context>

<pallas_src>
import numpy as np
import jax
import jax.numpy as jnp
from jax.experimental import pallas as pl
from jax.experimental.pallas import tpu as pltpu


def _round_up(x, m):
    return (x + m - 1) // m * m


def _pad_gate_cols(w, H, H_pad):
    """(rows, 4H) -> (rows, 4*H_pad), zero-padding each i/f/g/o gate block."""
    if H_pad == H:
        return w
    parts = []
    for g in range(4):
        parts.append(jnp.pad(w[:, g * H:(g + 1) * H], ((0, 0), (0, H_pad - H))))
    return jnp.concatenate(parts, axis=1)


# ---------------------------------------------------------------------------
# Fused multi-layer LSTM kernel: all layers + the full time loop in ONE
# pallas_call (no grid -> single invocation, single-buffered full-array VMEM
# inputs).  Gate order matches PyTorch nn.LSTM (i, f, g, o), each gate padded
# to H_pad lanes (padded gate lanes stay exactly zero: zero weight columns +
# zero bias with c=0 gives h_pad = 0.5 * tanh(0) = 0).
# ---------------------------------------------------------------------------
def make_crnn_lstm_kernel(num_layers, T, B_pad, H_pad):
    n_in = 6 + 3 * (num_layers - 1)

    def kernel(*refs):
        (emb_ref, feat_ref, wfeat_ref, wrnn_ref, b0_ref, whh0_ref) = refs[:6]
        extra = refs[6:n_in]
        out_ref = refs[n_in]                 # (T*B_pad, H_pad)   bf16 top-layer h
        xp_scr = refs[n_in + 1]              # (T*B_pad, 4*H_pad) f32 x-side preacts
        hseq_scr = refs[n_in + 2] if num_layers > 1 else None  # (T*B_pad, H_pad) bf16

        def run_layer(whh_ref, dst_ref):
            # Serial recurrence: per step only h @ W_hh (one MXU matmul) plus
            # f32 gate math; all x-side work was hoisted into xp_scr.
            def body(t, carry):
                h, c = carry                 # h: bf16, c: f32
                row = pl.multiple_of(t * B_pad, B_pad)
                gates = (xp_scr[pl.ds(row, B_pad), :]
                         + jnp.dot(h, whh_ref[...],
                                   preferred_element_type=jnp.float32))
                i = jax.nn.sigmoid(gates[:, 0 * H_pad:1 * H_pad])
                f = jax.nn.sigmoid(gates[:, 1 * H_pad:2 * H_pad])
                g = jnp.tanh(gates[:, 2 * H_pad:3 * H_pad])
                o = jax.nn.sigmoid(gates[:, 3 * H_pad:4 * H_pad])
                c = f * c + i * g
                h = (o * jnp.tanh(c)).astype(jnp.bfloat16)
                dst_ref[pl.ds(row, B_pad), :] = h    # lane-dense full-tile store
                return (h, c)

            h0 = jnp.zeros((B_pad, H_pad), jnp.bfloat16)
            c0 = jnp.zeros((B_pad, H_pad), jnp.float32)
            jax.lax.fori_loop(0, T, body, (h0, c0),
                              unroll=(True if T <= 16 else 4))

        # ----- layer 0 -----
        # x-side projections for ALL time steps in one MXU matmul.
        xp_scr[...] = jnp.dot(emb_ref[...], wrnn_ref[...],
                              preferred_element_type=jnp.float32)
        # Time-invariant feature half + bias: computed once and folded into
        # xp_scr up-front (off the serial per-step critical path).
        fp = (jnp.dot(feat_ref[...], wfeat_ref[...],
                      preferred_element_type=jnp.float32) + b0_ref[...])

        @pl.loop(0, T)
        def _(t):
            row = pl.multiple_of(t * B_pad, B_pad)
            xp_scr[pl.ds(row, B_pad), :] = xp_scr[pl.ds(row, B_pad), :] + fp

        dst0 = out_ref if num_layers == 1 else hseq_scr
        run_layer(whh0_ref, dst0)

        # ----- layers 1 .. num_layers-1 -----
        for l in range(1, num_layers):
            wih_ref, whh_ref, b_ref = extra[3 * (l - 1):3 * l]
            xp_scr[...] = (jnp.dot(hseq_scr[...], wih_ref[...],
                                   preferred_element_type=jnp.float32)
                           + b_ref[...])
            dst = out_ref if l == num_layers - 1 else hseq_scr
            run_layer(whh_ref, dst)

    return kernel, n_in


def crnn_lstm_pallas(emb_flat, feat_p, layer_params, T, B_pad, H_pad):
    """layer_params[0] = (w_feat, w_rnn, b, w_hh); layer_params[l>0] = (w_ih, w_hh, b).
    All already padded to H_pad; weights bf16, biases f32.
    Returns the top-layer hidden sequence, shape (T*B_pad, H_pad) bf16."""
    num_layers = len(layer_params)
    w_feat, w_rnn, b0, whh0 = layer_params[0]
    args = [emb_flat, feat_p, w_feat, w_rnn, b0, whh0]
    for (w_ih, w_hh, b) in layer_params[1:]:
        args += [w_ih, w_hh, b]

    kernel, n_in = make_crnn_lstm_kernel(num_layers, T, B_pad, H_pad)
    assert len(args) == n_in

    scratch = [pltpu.VMEM((T * B_pad, 4 * H_pad), jnp.float32)]
    if num_layers > 1:
        scratch.append(pltpu.VMEM((T * B_pad, H_pad), jnp.bfloat16))

    # No grid: single invocation, whole-array single-buffered VMEM refs
    # (avoids the useless 2-deep pipeline of full-array inputs).
    return pl.pallas_call(
        kernel,
        out_shape=jax.ShapeDtypeStruct((T * B_pad, H_pad), jnp.bfloat16),
        scratch_shapes=scratch,
        compiler_params=pltpu.CompilerParams(
            vmem_limit_bytes=64 * 1024 * 1024),
    )(*args)


# ---------------------------------------------------------------------------
# Final vocab projection: lane-dense tiled matmul.  Vocab axis is the OUTER
# grid axis, rows the inner one, so the (H_pad, tv) weight block index is
# unchanged across the inner row sweep and W streams from HBM exactly once.
# ---------------------------------------------------------------------------
def _tile_and_pad(n, cap, unit):
    """Pick tile size (multiple of `unit`, <= cap) and padded total (multiple of tile)."""
    n_u = _round_up(n, unit)
    if n_u <= cap:
        return n_u, n_u
    return cap, _round_up(n_u, cap)


def linear_kernel(x_ref, w_ref, b_ref, o_ref):
    o_ref[...] = (jnp.dot(x_ref[...], w_ref[...],
                          preferred_element_type=jnp.float32) + b_ref[...])


def linear_pallas(x, w, b, tr, tv):
    """x: (N_pad, H_pad) bf16; w: (H_pad, V_pad) bf16; b: (1, V_pad) f32."""
    N, H = x.shape
    V = w.shape[1]
    return pl.pallas_call(
        linear_kernel,
        out_shape=jax.ShapeDtypeStruct((N, V), jnp.float32),
        grid=(V // tv, N // tr),                              # vocab OUTER, rows inner
        in_specs=[pl.BlockSpec((tr, H), lambda j, i: (i, 0)),
                  pl.BlockSpec((H, tv), lambda j, i: (0, j)),  # fixed across inner sweep
                  pl.BlockSpec((1, tv), lambda j, i: (0, j))],
        out_specs=pl.BlockSpec((tr, tv), lambda j, i: (i, j)),
        compiler_params=pltpu.CompilerParams(
            dimension_semantics=("parallel", "parallel")),
    )(x, w, b)


# ---------------------------------------------------------------------------
# Full CRNNv2.forward
# ---------------------------------------------------------------------------
def crnnv2_forward(params, features, labels, lengths):
    """features: (B, E) f32; labels: (B, T) int32; lengths: python list, sorted desc."""
    bf = jnp.bfloat16
    B, E = features.shape
    T = int(lengths[0])                         # packed max length
    H = params["lstm"][0][1].shape[0]           # w_hh: (H, 4H)
    V = params["linear_w"].shape[1]

    B_pad = max(_round_up(B, 8), 16)            # >=16 rows per W_hh pass (full bf16 vreg)
    H_pad = _round_up(H, 128)

    # --- glue: embedding gather + <start>=zero shift (time-major, batch-padded) ---
    lab_emb = params["embed"][labels]                                     # (B, T, E)
    emb_rnn = jnp.concatenate(
        [jnp.zeros((B, 1, E), jnp.float32), lab_emb[:, :T - 1]], axis=1)  # (B, T, E)
    emb_tm = jnp.transpose(emb_rnn, (1, 0, 2))                            # (T, B, E)
    emb_tm = jnp.pad(emb_tm, ((0, 0), (0, B_pad - B), (0, 0)))
    emb_flat = emb_tm.reshape(T * B_pad, E).astype(bf)

    feat_p = jnp.pad(features, ((0, B_pad - B), (0, 0))).astype(bf)

    # --- weights: per-gate pad H -> H_pad, bf16 matmul operands ---
    layer_params = []
    for l, (w_ih, w_hh, b) in enumerate(params["lstm"]):
        whh = _pad_gate_cols(jnp.pad(w_hh, ((0, H_pad - H), (0, 0))), H, H_pad).astype(bf)
        bp = _pad_gate_cols(b, H, H_pad)                                  # (1, 4Hp) f32
        if l == 0:
            w_feat = _pad_gate_cols(w_ih[:E], H, H_pad).astype(bf)        # feature half
            w_rnn = _pad_gate_cols(w_ih[E:], H, H_pad).astype(bf)         # embedding half
            layer_params.append((w_feat, w_rnn, bp, whh))
        else:
            wih = _pad_gate_cols(jnp.pad(w_ih, ((0, H_pad - H), (0, 0))), H, H_pad).astype(bf)
            layer_params.append((wih, whh, bp))

    hseq = crnn_lstm_pallas(emb_flat, feat_p, layer_params, T, B_pad, H_pad)  # bf16

    # --- pack_padded_sequence(batch_first=True): time-major packed gather (glue) ---
    idx = [t * B_pad + b_i for t in range(T) for b_i in range(B) if lengths[b_i] > t]
    N = len(idx)
    tr, N_pad = _tile_and_pad(N, 512, 8)          # row tile / padded row count
    tv, V_pad = _tile_and_pad(V, 1024, 128)       # lane-dense vocab tile / padded vocab

    packed_h = hseq[jnp.array(idx, jnp.int32)]                            # (N, H_pad) bf16
    packed_h = jnp.pad(packed_h, ((0, N_pad - N), (0, 0)))

    # --- vocab projection, weight streamed from HBM exactly once ---
    w_lin = jnp.pad(params["linear_w"], ((0, H_pad - H), (0, V_pad - V))).astype(bf)
    b_lin = jnp.pad(params["linear_b"], ((0, 0), (0, V_pad - V)))
    out = linear_pallas(packed_h, w_lin, b_lin, tr, tv)                   # (N_pad, V_pad)
    return out[:N, :V]


# ---------------------------------------------------------------------------
# Pure-JAX reference (lax.scan LSTM) with the SAME matmul numerics as the
# kernels: bf16 operands, f32 accumulation, f32 gate/cell-state math.
# ---------------------------------------------------------------------------
def crnnv2_reference(params, features, labels, lengths):
    bf = jnp.bfloat16
    B, E = features.shape
    T = int(lengths[0])
    lab_emb = params["embed"][labels]
    emb_rnn = jnp.concatenate(
        [jnp.zeros((B, 1, E), jnp.float32), lab_emb[:, :T - 1]], axis=1)
    emb_cnn = jnp.repeat(features[:, None, :], T, axis=1)
    x = jnp.transpose(jnp.concatenate([emb_cnn, emb_rnn], axis=2), (1, 0, 2))  # (T,B,2E)

    for (w_ih, w_hh, b) in params["lstm"]:
        H = w_hh.shape[0]
        wih_b, whh_b = w_ih.astype(bf), w_hh.astype(bf)

        def step(carry, x_t, wih_b=wih_b, whh_b=whh_b, b=b, H=H):
            h, c = carry
            gates = (jnp.dot(x_t.astype(bf), wih_b, preferred_element_type=jnp.float32)
                     + jnp.dot(h.astype(bf), whh_b, preferred_element_type=jnp.float32)
                     + b)
            i = jax.nn.sigmoid(gates[:, 0 * H:1 * H])
            f = jax.nn.sigmoid(gates[:, 1 * H:2 * H])
            g = jnp.tanh(gates[:, 2 * H:3 * H])
            o = jax.nn.sigmoid(gates[:, 3 * H:4 * H])
            c = f * c + i * g
            h = o * jnp.tanh(c)
            return (h, c), h

        init = (jnp.zeros((B, H), jnp.float32), jnp.zeros((B, H), jnp.float32))
        _, x = jax.lax.scan(step, init, x)

    Hh = x.shape[-1]
    idx = [t * B + b_i for t in range(T) for b_i in range(B) if lengths[b_i] > t]
    packed = x.reshape(T * B, Hh)[jnp.array(idx, jnp.int32)]
    return (jnp.dot(packed.astype(bf), params["linear_w"].astype(bf),
                    preferred_element_type=jnp.float32) + params["linear_b"])


# ---------------------------------------------------------------------------
# Deterministic parameter init (synthetic — shapes from CRNNv2.__init__).
# Weights are stored transposed, (D_in, 4H), with a single combined bias.
# ---------------------------------------------------------------------------
def init_params(key, lexicon_size, embed_size, hidden_size, num_layers):
    n_keys = 3 + 3 * num_layers
    ks = jax.random.split(key, n_keys)
    params = {"embed": jax.random.normal(ks[0], (lexicon_size, embed_size),
                                         jnp.float32) * 0.1}
    lstm, d_in = [], 2 * embed_size
    for l in range(num_layers):
        w_ih = jax.random.normal(ks[1 + 3 * l], (d_in, 4 * hidden_size),
                                 jnp.float32) * 0.1
        w_hh = jax.random.normal(ks[2 + 3 * l], (hidden_size, 4 * hidden_size),
                                 jnp.float32) * 0.1
        b = jax.random.normal(ks[3 + 3 * l], (1, 4 * hidden_size),
                              jnp.float32) * 0.1          # b_ih + b_hh combined
        lstm.append((w_ih, w_hh, b))
        d_in = hidden_size
    params["lstm"] = lstm
    params["linear_w"] = jax.random.normal(ks[-2], (hidden_size, lexicon_size),
                                           jnp.float32) * 0.1
    params["linear_b"] = jax.random.normal(ks[-1], (1, lexicon_size),
                                           jnp.float32) * 0.1
    return params


if __name__ == "__main__":
    # Small shapes consistent with the module:
    B, embed_size, hidden_size, num_layers, lexicon_size = 4, 16, 32, 2, 24
    lengths = [7, 6, 4, 3]            # sorted descending (pack_padded contract)
    T = lengths[0]                    # labels length

    key = jax.random.PRNGKey(0)
    kf, kl, kp = jax.random.split(key, 3)
    features = jax.random.normal(kf, (B, embed_size), jnp.float32)
    labels = jax.random.randint(kl, (B, T), 0, lexicon_size, jnp.int32)
    params = init_params(kp, lexicon_size, embed_size, hidden_size, num_layers)

    out = crnnv2_forward(params, features, labels, lengths)
    out = jax.block_until_ready(out)

    ref = crnnv2_reference(params, features, labels, lengths)
    ref = jax.block_until_ready(ref)

    assert out.shape == (sum(lengths), lexicon_size)
    # Kernel and reference share bf16-operand / f32-accumulate matmul numerics;
    # remaining deltas are f32 summation-order + rare bf16 rounding-boundary flips.
    np.testing.assert_allclose(np.asarray(out), np.asarray(ref),
                               rtol=5e-3, atol=5e-3)
    print("KERNEL_OK")
</pallas_src>

<mosaic_0001>
module attributes {stable_mosaic.version = 11 : i64} {
  func.func @kernel(%arg0: memref<112x16xbf16, #tpu.memory_space<vmem>>, %arg1: memref<16x16xbf16, #tpu.memory_space<vmem>>, %arg2: memref<16x512xbf16, #tpu.memory_space<vmem>>, %arg3: memref<16x512xbf16, #tpu.memory_space<vmem>>, %arg4: memref<1x512xf32, #tpu.memory_space<vmem>>, %arg5: memref<128x512xbf16, #tpu.memory_space<vmem>>, %arg6: memref<128x512xbf16, #tpu.memory_space<vmem>>, %arg7: memref<128x512xbf16, #tpu.memory_space<vmem>>, %arg8: memref<1x512xf32, #tpu.memory_space<vmem>>, %arg9: memref<112x128xbf16, #tpu.memory_space<vmem>>, %arg10: memref<112x512xf32, #tpu.memory_space<vmem>>, %arg11: memref<112x128xbf16, #tpu.memory_space<vmem>>) attributes {dimension_semantics = [], scalar_prefetch = 0 : i64, scratch_operands = 2 : i64, tpu.core_type = #tpu.core_type<tc>} {
    %c0 = arith.constant 0 : index
    %c0_0 = arith.constant 0 : index
    %0 = vector.load %arg0[%c0, %c0_0] : memref<112x16xbf16, #tpu.memory_space<vmem>>, vector<112x16xbf16>
    %c0_1 = arith.constant 0 : index
    %c0_2 = arith.constant 0 : index
    %1 = vector.load %arg3[%c0_1, %c0_2] : memref<16x512xbf16, #tpu.memory_space<vmem>>, vector<16x512xbf16>
    %cst = arith.constant dense<0.000000e+00> : vector<112x512xf32>
    %2 = tpu.matmul %0, %1, %cst {dimension_numbers = #tpu.dot_dimension_numbers<[1], [0], [0], [1], [0, 0, 1, 1], [], []>} : vector<112x16xbf16>, vector<16x512xbf16>, vector<112x512xf32> -> vector<112x512xf32>
    %c0_3 = arith.constant 0 : index
    %c0_4 = arith.constant 0 : index
    %3 = vector.load %arg10[%c0_3, %c0_4] : memref<112x512xf32, #tpu.memory_space<vmem>>, vector<112x512xf32>
    tpu.vector_store %arg10[%c0_3, %c0_4], %2 {strides = array<i32>} : memref<112x512xf32, #tpu.memory_space<vmem>>, vector<112x512xf32>,
    %c0_5 = arith.constant 0 : index
    %c0_6 = arith.constant 0 : index
    %4 = vector.load %arg1[%c0_5, %c0_6] : memref<16x16xbf16, #tpu.memory_space<vmem>>, vector<16x16xbf16>
    %c0_7 = arith.constant 0 : index
    %c0_8 = arith.constant 0 : index
    %5 = vector.load %arg2[%c0_7, %c0_8] : memref<16x512xbf16, #tpu.memory_space<vmem>>, vector<16x512xbf16>
    %cst_9 = arith.constant dense<0.000000e+00> : vector<16x512xf32>
    %6 = tpu.matmul %4, %5, %cst_9 {dimension_numbers = #tpu.dot_dimension_numbers<[1], [0], [0], [1], [0, 0, 1, 1], [], []>} : vector<16x16xbf16>, vector<16x512xbf16>, vector<16x512xf32> -> vector<16x512xf32>
    %c0_10 = arith.constant 0 : index
    %c0_11 = arith.constant 0 : index
    %7 = vector.load %arg4[%c0_10, %c0_11] : memref<1x512xf32, #tpu.memory_space<vmem>>, vector<1x512xf32>
    %8 = vector.broadcast %7 : vector<1x512xf32> to vector<16x512xf32>
    %9 = arith.addf %6, %8 : vector<16x512xf32>
    %c0_i32 = arith.constant 0 : i32
    %c7_i32 = arith.constant 7 : i32
    %10 = arith.addi %c0_i32, %c7_i32 : i32
    %c1_i32 = arith.constant 1 : i32
    scf.for %arg12 = %c0_i32 to %10 step %c1_i32  : i32 {
      %c1_i32_162 = arith.constant 1 : i32
      %512 = arith.muli %arg12, %c1_i32_162 : i32
      %c0_i32_163 = arith.constant 0 : i32
      %513 = arith.addi %c0_i32_163, %512 : i32
      %c16_i32_164 = arith.constant 16 : i32
      %514 = arith.muli %513, %c16_i32_164 : i32
      %515 = tpu.assume_multiple %514, 16 : i32
      %516 = arith.index_cast %515 : i32 to index
      %c0_165 = arith.constant 0 : index
      %517 = vector.load %arg10[%516, %c0_165] : memref<112x512xf32, #tpu.memory_space<vmem>>, vector<16x512xf32>
      %518 = arith.addf %517, %9 : vector<16x512xf32>
      %519 = arith.index_cast %515 : i32 to index
      %c0_166 = arith.constant 0 : index
      %520 = vector.load %arg10[%519, %c0_166] : memref<112x512xf32, #tpu.memory_space<vmem>>, vector<16x512xf32>
      tpu.vector_store %arg10[%519, %c0_166], %518 {strides = array<i32>} : memref<112x512xf32, #tpu.memory_space<vmem>>, vector<16x512xf32>,
    }
    %c7_i32_12 = arith.constant 7 : i32
    %cst_13 = arith.constant 0.000000e+00 : bf16
    %11 = vector.broadcast %cst_13 : bf16 to vector<16x128xbf16>
    %cst_14 = arith.constant 0.000000e+00 : f32
    %12 = vector.broadcast %cst_14 : f32 to vector<16x128xf32>
    %c0_i32_15 = arith.constant 0 : i32
    %c16_i32 = arith.constant 16 : i32
    %13 = arith.muli %c0_i32_15, %c16_i32 : i32
    %14 = tpu.assume_multiple %13, 16 : i32
    %15 = arith.index_cast %14 : i32 to index
    %c0_16 = arith.constant 0 : index
    %16 = vector.load %arg10[%15, %c0_16] : memref<112x512xf32, #tpu.memory_space<vmem>>, vector<16x512xf32>
    %c0_17 = arith.constant 0 : index
    %c0_18 = arith.constant 0 : index
    %17 = vector.load %arg5[%c0_17, %c0_18] : memref<128x512xbf16, #tpu.memory_space<vmem>>, vector<128x512xbf16>
    %cst_19 = arith.constant dense<0.000000e+00> : vector<16x512xf32>
    %18 = tpu.matmul %11, %17, %cst_19 {dimension_numbers = #tpu.dot_dimension_numbers<[1], [0], [0], [1], [0, 0, 1, 1], [], []>} : vector<16x128xbf16>, vector<128x512xbf16>, vector<16x512xf32> -> vector<16x512xf32>
    %19 = arith.addf %16, %18 : vector<16x512xf32>
    %20 = vector.extract_strided_slice %19 {offsets = [0, 0], sizes = [16, 128], strides = [1, 1]} : vector<16x512xf32> to vector<16x128xf32>
    %21 = arith.negf %20 : vector<16x128xf32>
    %22 = math.exp %21 : vector<16x128xf32>
    %cst_20 = arith.constant 1.000000e+00 : f32
    %23 = vector.broadcast %cst_20 : f32 to vector<16x128xf32>
    %24 = arith.addf %23, %22 : vector<16x128xf32>
    %25 = arith.divf %23, %24 : vector<16x128xf32>
    %26 = vector.extract_strided_slice %19 {offsets = [0, 128], sizes = [16, 128], strides = [1, 1]} : vector<16x512xf32> to vector<16x128xf32>
    %27 = arith.negf %26 : vector<16x128xf32>
    %28 = math.exp %27 : vector<16x128xf32>
    %cst_21 = arith.constant 1.000000e+00 : f32
    %29 = vector.broadcast %cst_21 : f32 to vector<16x128xf32>
    %30 = arith.addf %29, %28 : vector<16x128xf32>
    %31 = arith.divf %29, %30 : vector<16x128xf32>
    %32 = vector.extract_strided_slice %19 {offsets = [0, 256], sizes = [16, 128], strides = [1, 1]} : vector<16x512xf32> to vector<16x128xf32>
    %33 = math.tanh %32 : vector<16x128xf32>
    %34 = vector.extract_strided_slice %19 {offsets = [0, 384], sizes = [16, 128], strides = [1, 1]} : vector<16x512xf32> to vector<16x128xf32>
    %35 = arith.negf %34 : vector<16x128xf32>
    %36 = math.exp %35 : vector<16x128xf32>
    %cst_22 = arith.constant 1.000000e+00 : f32
    %37 = vector.broadcast %cst_22 : f32 to vector<16x128xf32>
    %38 = arith.addf %37, %36 : vector<16x128xf32>
    %39 = arith.divf %37, %38 : vector<16x128xf32>
    %40 = arith.mulf %31, %12 : vector<16x128xf32>
    %41 = arith.mulf %25, %33 : vector<16x128xf32>
    %42 = arith.addf %40, %41 : vector<16x128xf32>
    %43 = math.tanh %42 : vector<16x128xf32>
    %44 = arith.mulf %39, %43 : vector<16x128xf32>
    %45 = arith.truncf %44 : vector<16x128xf32> to vector<16x128xbf16>
    %46 = arith.index_cast %14 : i32 to index
    %c0_23 = arith.constant 0 : index
    %47 = vector.load %arg11[%46, %c0_23] : memref<112x128xbf16, #tpu.memory_space<vmem>>, vector<16x128xbf16>
    tpu.vector_store %arg11[%46, %c0_23], %45 {strides = array<i32>} : memref<112x128xbf16, #tpu.memory_space<vmem>>, vector<16x128xbf16>,
    %c1_i32_24 = arith.constant 1 : i32
    %c16_i32_25 = arith.constant 16 : i32
    %48 = arith.muli %c1_i32_24, %c16_i32_25 : i32
    %49 = tpu.assume_multiple %48, 16 : i32
    %50 = arith.index_cast %49 : i32 to index
    %c0_26 = arith.constant 0 : index
    %51 = vector.load %arg10[%50, %c0_26] : memref<112x512xf32, #tpu.memory_space<vmem>>, vector<16x512xf32>
    %c0_27 = arith.constant 0 : index
    %c0_28 = arith.constant 0 : index
    %52 = vector.load %arg5[%c0_27, %c0_28] : memref<128x512xbf16, #tpu.memory_space<vmem>>, vector<128x512xbf16>
    %cst_29 = arith.constant dense<0.000000e+00> : vector<16x512xf32>
    %53 = tpu.matmul %45, %52, %cst_29 {dimension_numbers = #tpu.dot_dimension_numbers<[1], [0], [0], [1], [0, 0, 1, 1], [], []>} : vector<16x128xbf16>, vector<128x512xbf16>, vector<16x512xf32> -> vector<16x512xf32>
    %54 = arith.addf %51, %53 : vector<16x512xf32>
    %55 = vector.extract_strided_slice %54 {offsets = [0, 0], sizes = [16, 128], strides = [1, 1]} : vector<16x512xf32> to vector<16x128xf32>
    %56 = arith.negf %55 : vector<16x128xf32>
    %57 = math.exp %56 : vector<16x128xf32>
    %cst_30 = arith.constant 1.000000e+00 : f32
    %58 = vector.broadcast %cst_30 : f32 to vector<16x128xf32>
    %59 = arith.addf %58, %57 : vector<16x128xf32>
    %60 = arith.divf %58, %59 : vector<16x128xf32>
    %61 = vector.extract_strided_slice %54 {offsets = [0, 128], sizes = [16, 128], strides = [1, 1]} : vector<16x512xf32> to vector<16x128xf32>
    %62 = arith.negf %61 : vector<16x128xf32>
    %63 = math.exp %62 : vector<16x128xf32>
    %cst_31 = arith.constant 1.000000e+00 : f32
    %64 = vector.broadcast %cst_31 : f32 to vector<16x128xf32>
    %65 = arith.addf %64, %63 : vector<16x128xf32>
    %66 = arith.divf %64, %65 : vector<16x128xf32>
    %67 = vector.extract_strided_slice %54 {offsets = [0, 256], sizes = [16, 128], strides = [1, 1]} : vector<16x512xf32> to vector<16x128xf32>
    %68 = math.tanh %67 : vector<16x128xf32>
    %69 = vector.extract_strided_slice %54 {offsets = [0, 384], sizes = [16, 128], strides = [1, 1]} : vector<16x512xf32> to vector<16x128xf32>
    %70 = arith.negf %69 : vector<16x128xf32>
    %71 = math.exp %70 : vector<16x128xf32>
    %cst_32 = arith.constant 1.000000e+00 : f32
    %72 = vector.broadcast %cst_32 : f32 to vector<16x128xf32>
    %73 = arith.addf %72, %71 : vector<16x128xf32>
    %74 = arith.divf %72, %73 : vector<16x128xf32>
    %75 = arith.mulf %66, %42 : vector<16x128xf32>
    %76 = arith.mulf %60, %68 : vector<16x128xf32>
    %77 = arith.addf %75, %76 : vector<16x128xf32>
    %78 = math.tanh %77 : vector<16x128xf32>
    %79 = arith.mulf %74, %78 : vector<16x128xf32>
    %80 = arith.truncf %79 : vector<16x128xf32> to vector<16x128xbf16>
    %81 = arith.index_cast %49 : i32 to index
    %c0_33 = arith.constant 0 : index
    %82 = vector.load %arg11[%81, %c0_33] : memref<112x128xbf16, #tpu.memory_space<vmem>>, vector<16x128xbf16>
    tpu.vector_store %arg11[%81, %c0_33], %80 {strides = array<i32>} : memref<112x128xbf16, #tpu.memory_space<vmem>>, vector<16x128xbf16>,
    %c2_i32 = arith.constant 2 : i32
    %c16_i32_34 = arith.constant 16 : i32
    %83 = arith.muli %c2_i32, %c16_i32_34 : i32
    %84 = tpu.assume_multiple %83, 16 : i32
    %85 = arith.index_cast %84 : i32 to index
    %c0_35 = arith.constant 0 : index
    %86 = vector.load %arg10[%85, %c0_35] : memref<112x512xf32, #tpu.memory_space<vmem>>, vector<16x512xf32>
    %c0_36 = arith.constant 0 : index
    %c0_37 = arith.constant 0 : index
    %87 = vector.load %arg5[%c0_36, %c0_37] : memref<128x512xbf16, #tpu.memory_space<vmem>>, vector<128x512xbf16>
    %cst_38 = arith.constant dense<0.000000e+00> : vector<16x512xf32>
    %88 = tpu.matmul %80, %87, %cst_38 {dimension_numbers = #tpu.dot_dimension_numbers<[1], [0], [0], [1], [0, 0, 1, 1], [], []>} : vector<16x128xbf16>, vector<128x512xbf16>, vector<16x512xf32> -> vector<16x512xf32>
    %89 = arith.addf %86, %88 : vector<16x512xf32>
    %90 = vector.extract_strided_slice %89 {offsets = [0, 0], sizes = [16, 128], strides = [1, 1]} : vector<16x512xf32> to vector<16x128xf32>
    %91 = arith.negf %90 : vector<16x128xf32>
    %92 = math.exp %91 : vector<16x128xf32>
    %cst_39 = arith.constant 1.000000e+00 : f32
    %93 = vector.broadcast %cst_39 : f32 to vector<16x128xf32>
    %94 = arith.addf %93, %92 : vector<16x128xf32>
    %95 = arith.divf %93, %94 : vector<16x128xf32>
    %96 = vector.extract_strided_slice %89 {offsets = [0, 128], sizes = [16, 128], strides = [1, 1]} : vector<16x512xf32> to vector<16x128xf32>
    %97 = arith.negf %96 : vector<16x128xf32>
    %98 = math.exp %97 : vector<16x128xf32>
    %cst_40 = arith.constant 1.000000e+00 : f32
    %99 = vector.broadcast %cst_40 : f32 to vector<16x128xf32>
    %100 = arith.addf %99, %98 : vector<16x128xf32>
    %101 = arith.divf %99, %100 : vector<16x128xf32>
    %102 = vector.extract_strided_slice %89 {offsets = [0, 256], sizes = [16, 128], strides = [1, 1]} : vector<16x512xf32> to vector<16x128xf32>
    %103 = math.tanh %102 : vector<16x128xf32>
    %104 = vector.extract_strided_slice %89 {offsets = [0, 384], sizes = [16, 128], strides = [1, 1]} : vector<16x512xf32> to vector<16x128xf32>
    %105 = arith.negf %104 : vector<16x128xf32>
    %106 = math.exp %105 : vector<16x128xf32>
    %cst_41 = arith.constant 1.000000e+00 : f32
    %107 = vector.broadcast %cst_41 : f32 to vector<16x128xf32>
    %108 = arith.addf %107, %106 : vector<16x128xf32>
    %109 = arith.divf %107, %108 : vector<16x128xf32>
    %110 = arith.mulf %101, %77 : vector<16x128xf32>
    %111 = arith.mulf %95, %103 : vector<16x128xf32>
    %112 = arith.addf %110, %111 : vector<16x128xf32>
    %113 = math.tanh %112 : vector<16x128xf32>
    %114 = arith.mulf %109, %113 : vector<16x128xf32>
    %115 = arith.truncf %114 : vector<16x128xf32> to vector<16x128xbf16>
    %116 = arith.index_cast %84 : i32 to index
    %c0_42 = arith.constant 0 : index
    %117 = vector.load %arg11[%116, %c0_42] : memref<112x128xbf16, #tpu.memory_space<vmem>>, vector<16x128xbf16>
    tpu.vector_store %arg11[%116, %c0_42], %115 {strides = array<i32>} : memref<112x128xbf16, #tpu.memory_space<vmem>>, vector<16x128xbf16>,
    %c3_i32 = arith.constant 3 : i32
    %c16_i32_43 = arith.constant 16 : i32
    %118 = arith.muli %c3_i32, %c16_i32_43 : i32
    %119 = tpu.assume_multiple %118, 16 : i32
    %120 = arith.index_cast %119 : i32 to index
    %c0_44 = arith.constant 0 : index
    %121 = vector.load %arg10[%120, %c0_44] : memref<112x512xf32, #tpu.memory_space<vmem>>, vector<16x512xf32>
    %c0_45 = arith.constant 0 : index
    %c0_46 = arith.constant 0 : index
    %122 = vector.load %arg5[%c0_45, %c0_46] : memref<128x512xbf16, #tpu.memory_space<vmem>>, vector<128x512xbf16>
    %cst_47 = arith.constant dense<0.000000e+00> : vector<16x512xf32>
    %123 = tpu.matmul %115, %122, %cst_47 {dimension_numbers = #tpu.dot_dimension_numbers<[1], [0], [0], [1], [0, 0, 1, 1], [], []>} : vector<16x128xbf16>, vector<128x512xbf16>, vector<16x512xf32> -> vector<16x512xf32>
    %124 = arith.addf %121, %123 : vector<16x512xf32>
    %125 = vector.extract_strided_slice %124 {offsets = [0, 0], sizes = [16, 128], strides = [1, 1]} : vector<16x512xf32> to vector<16x128xf32>
    %126 = arith.negf %125 : vector<16x128xf32>
    %127 = math.exp %126 : vector<16x128xf32>
    %cst_48 = arith.constant 1.000000e+00 : f32
    %128 = vector.broadcast %cst_48 : f32 to vector<16x128xf32>
    %129 = arith.addf %128, %127 : vector<16x128xf32>
    %130 = arith.divf %128, %129 : vector<16x128xf32>
    %131 = vector.extract_strided_slice %124 {offsets = [0, 128], sizes = [16, 128], strides = [1, 1]} : vector<16x512xf32> to vector<16x128xf32>
    %132 = arith.negf %131 : vector<16x128xf32>
    %133 = math.exp %132 : vector<16x128xf32>
    %cst_49 = arith.constant 1.000000e+00 : f32
    %134 = vector.broadcast %cst_49 : f32 to vector<16x128xf32>
    %135 = arith.addf %134, %133 : vector<16x128xf32>
    %136 = arith.divf %134, %135 : vector<16x128xf32>
    %137 = vector.extract_strided_slice %124 {offsets = [0, 256], sizes = [16, 128], strides = [1, 1]} : vector<16x512xf32> to vector<16x128xf32>
    %138 = math.tanh %137 : vector<16x128xf32>
    %139 = vector.extract_strided_slice %124 {offsets = [0, 384], sizes = [16, 128], strides = [1, 1]} : vector<16x512xf32> to vector<16x128xf32>
    %140 = arith.negf %139 : vector<16x128xf32>
    %141 = math.exp %140 : vector<16x128xf32>
    %cst_50 = arith.constant 1.000000e+00 : f32
    %142 = vector.broadcast %cst_50 : f32 to vector<16x128xf32>
    %143 = arith.addf %142, %141 : vector<16x128xf32>
    %144 = arith.divf %142, %143 : vector<16x128xf32>
    %145 = arith.mulf %136, %112 : vector<16x128xf32>
    %146 = arith.mulf %130, %138 : vector<16x128xf32>
    %147 = arith.addf %145, %146 : vector<16x128xf32>
    %148 = math.tanh %147 : vector<16x128xf32>
    %149 = arith.mulf %144, %148 : vector<16x128xf32>
    %150 = arith.truncf %149 : vector<16x128xf32> to vector<16x128xbf16>
    %151 = arith.index_cast %119 : i32 to index
    %c0_51 = arith.constant 0 : index
    %152 = vector.load %arg11[%151, %c0_51] : memref<112x128xbf16, #tpu.memory_space<vmem>>, vector<16x128xbf16>
    tpu.vector_store %arg11[%151, %c0_51], %150 {strides = array<i32>} : memref<112x128xbf16, #tpu.memory_space<vmem>>, vector<16x128xbf16>,
    %c4_i32 = arith.constant 4 : i32
    %c16_i32_52 = arith.constant 16 : i32
    %153 = arith.muli %c4_i32, %c16_i32_52 : i32
    %154 = tpu.assume_multiple %153, 16 : i32
    %155 = arith.index_cast %154 : i32 to index
    %c0_53 = arith.constant 0 : index
    %156 = vector.load %arg10[%155, %c0_53] : memref<112x512xf32, #tpu.memory_space<vmem>>, vector<16x512xf32>
    %c0_54 = arith.constant 0 : index
    %c0_55 = arith.constant 0 : index
    %157 = vector.load %arg5[%c0_54, %c0_55] : memref<128x512xbf16, #tpu.memory_space<vmem>>, vector<128x512xbf16>
    %cst_56 = arith.constant dense<0.000000e+00> : vector<16x512xf32>
    %158 = tpu.matmul %150, %157, %cst_56 {dimension_numbers = #tpu.dot_dimension_numbers<[1], [0], [0], [1], [0, 0, 1, 1], [], []>} : vector<16x128xbf16>, vector<128x512xbf16>, vector<16x512xf32> -> vector<16x512xf32>
    %159 = arith.addf %156, %158 : vector<16x512xf32>
    %160 = vector.extract_strided_slice %159 {offsets = [0, 0], sizes = [16, 128], strides = [1, 1]} : vector<16x512xf32> to vector<16x128xf32>
    %161 = arith.negf %160 : vector<16x128xf32>
    %162 = math.exp %161 : vector<16x128xf32>
    %cst_57 = arith.constant 1.000000e+00 : f32
    %163 = vector.broadcast %cst_57 : f32 to vector<16x128xf32>
    %164 = arith.addf %163, %162 : vector<16x128xf32>
    %165 = arith.divf %163, %164 : vector<16x128xf32>
    %166 = vector.extract_strided_slice %159 {offsets = [0, 128], sizes = [16, 128], strides = [1, 1]} : vector<16x512xf32> to vector<16x128xf32>
    %167 = arith.negf %166 : vector<16x128xf32>
    %168 = math.exp %167 : vector<16x128xf32>
    %cst_58 = arith.constant 1.000000e+00 : f32
    %169 = vector.broadcast %cst_58 : f32 to vector<16x128xf32>
    %170 = arith.addf %169, %168 : vector<16x128xf32>
    %171 = arith.divf %169, %170 : vector<16x128xf32>
    %172 = vector.extract_strided_slice %159 {offsets = [0, 256], sizes = [16, 128], strides = [1, 1]} : vector<16x512xf32> to vector<16x128xf32>
    %173 = math.tanh %172 : vector<16x128xf32>
    %174 = vector.extract_strided_slice %159 {offsets = [0, 384], sizes = [16, 128], strides = [1, 1]} : vector<16x512xf32> to vector<16x128xf32>
    %175 = arith.negf %174 : vector<16x128xf32>
    %176 = math.exp %175 : vector<16x128xf32>
    %cst_59 = arith.constant 1.000000e+00 : f32
    %177 = vector.broadcast %cst_59 : f32 to vector<16x128xf32>
    %178 = arith.addf %177, %176 : vector<16x128xf32>
    %179 = arith.divf %177, %178 : vector<16x128xf32>
    %180 = arith.mulf %171, %147 : vector<16x128xf32>
    %181 = arith.mulf %165, %173 : vector<16x128xf32>
    %182 = arith.addf %180, %181 : vector<16x128xf32>
    %183 = math.tanh %182 : vector<16x128xf32>
    %184 = arith.mulf %179, %183 : vector<16x128xf32>
    %185 = arith.truncf %184 : vector<16x128xf32> to vector<16x128xbf16>
    %186 = arith.index_cast %154 : i32 to index
    %c0_60 = arith.constant 0 : index
    %187 = vector.load %arg11[%186, %c0_60] : memref<112x128xbf16, #tpu.memory_space<vmem>>, vector<16x128xbf16>
    tpu.vector_store %arg11[%186, %c0_60], %185 {strides = array<i32>} : memref<112x128xbf16, #tpu.memory_space<vmem>>, vector<16x128xbf16>,
    %c5_i32 = arith.constant 5 : i32
    %c16_i32_61 = arith.constant 16 : i32
    %188 = arith.muli %c5_i32, %c16_i32_61 : i32
    %189 = tpu.assume_multiple %188, 16 : i32
    %190 = arith.index_cast %189 : i32 to index
    %c0_62 = arith.constant 0 : index
    %191 = vector.load %arg10[%190, %c0_62] : memref<112x512xf32, #tpu.memory_space<vmem>>, vector<16x512xf32>
    %c0_63 = arith.constant 0 : index
    %c0_64 = arith.constant 0 : index
    %192 = vector.load %arg5[%c0_63, %c0_64] : memref<128x512xbf16, #tpu.memory_space<vmem>>, vector<128x512xbf16>
    %cst_65 = arith.constant dense<0.000000e+00> : vector<16x512xf32>
    %193 = tpu.matmul %185, %192, %cst_65 {dimension_numbers = #tpu.dot_dimension_numbers<[1], [0], [0], [1], [0, 0, 1, 1], [], []>} : vector<16x128xbf16>, vector<128x512xbf16>, vector<16x512xf32> -> vector<16x512xf32>
    %194 = arith.addf %191, %193 : vector<16x512xf32>
    %195 = vector.extract_strided_slice %194 {offsets = [0, 0], sizes = [16, 128], strides = [1, 1]} : vector<16x512xf32> to vector<16x128xf32>
    %196 = arith.negf %195 : vector<16x128xf32>
    %197 = math.exp %196 : vector<16x128xf32>
    %cst_66 = arith.constant 1.000000e+00 : f32
    %198 = vector.broadcast %cst_66 : f32 to vector<16x128xf32>
    %199 = arith.addf %198, %197 : vector<16x128xf32>
    %200 = arith.divf %198, %199 : vector<16x128xf32>
    %201 = vector.extract_strided_slice %194 {offsets = [0, 128], sizes = [16, 128], strides = [1, 1]} : vector<16x512xf32> to vector<16x128xf32>
    %202 = arith.negf %201 : vector<16x128xf32>
    %203 = math.exp %202 : vector<16x128xf32>
    %cst_67 = arith.constant 1.000000e+00 : f32
    %204 = vector.broadcast %cst_67 : f32 to vector<16x128xf32>
    %205 = arith.addf %204, %203 : vector<16x128xf32>
    %206 = arith.divf %204, %205 : vector<16x128xf32>
    %207 = vector.extract_strided_slice %194 {offsets = [0, 256], sizes = [16, 128], strides = [1, 1]} : vector<16x512xf32> to vector<16x128xf32>
    %208 = math.tanh %207 : vector<16x128xf32>
    %209 = vector.extract_strided_slice %194 {offsets = [0, 384], sizes = [16, 128], strides = [1, 1]} : vector<16x512xf32> to vector<16x128xf32>
    %210 = arith.negf %209 : vector<16x128xf32>
    %211 = math.exp %210 : vector<16x128xf32>
    %cst_68 = arith.constant 1.000000e+00 : f32
    %212 = vector.broadcast %cst_68 : f32 to vector<16x128xf32>
    %213 = arith.addf %212, %211 : vector<16x128xf32>
    %214 = arith.divf %212, %213 : vector<16x128xf32>
    %215 = arith.mulf %206, %182 : vector<16x128xf32>
    %216 = arith.mulf %200, %208 : vector<16x128xf32>
    %217 = arith.addf %215, %216 : vector<16x128xf32>
    %218 = math.tanh %217 : vector<16x128xf32>
    %219 = arith.mulf %214, %218 : vector<16x128xf32>
    %220 = arith.truncf %219 : vector<16x128xf32> to vector<16x128xbf16>
    %221 = arith.index_cast %189 : i32 to index
    %c0_69 = arith.constant 0 : index
    %222 = vector.load %arg11[%221, %c0_69] : memref<112x128xbf16, #tpu.memory_space<vmem>>, vector<16x128xbf16>
    tpu.vector_store %arg11[%221, %c0_69], %220 {strides = array<i32>} : memref<112x128xbf16, #tpu.memory_space<vmem>>, vector<16x128xbf16>,
    %c6_i32 = arith.constant 6 : i32
    %c16_i32_70 = arith.constant 16 : i32
    %223 = arith.muli %c6_i32, %c16_i32_70 : i32
    %224 = tpu.assume_multiple %223, 16 : i32
    %225 = arith.index_cast %224 : i32 to index
    %c0_71 = arith.constant 0 : index
    %226 = vector.load %arg10[%225, %c0_71] : memref<112x512xf32, #tpu.memory_space<vmem>>, vector<16x512xf32>
    %c0_72 = arith.constant 0 : index
    %c0_73 = arith.constant 0 : index
    %227 = vector.load %arg5[%c0_72, %c0_73] : memref<128x512xbf16, #tpu.memory_space<vmem>>, vector<128x512xbf16>
    %cst_74 = arith.constant dense<0.000000e+00> : vector<16x512xf32>
    %228 = tpu.matmul %220, %227, %cst_74 {dimension_numbers = #tpu.dot_dimension_numbers<[1], [0], [0], [1], [0, 0, 1, 1], [], []>} : vector<16x128xbf16>, vector<128x512xbf16>, vector<16x512xf32> -> vector<16x512xf32>
    %229 = arith.addf %226, %228 : vector<16x512xf32>
    %230 = vector.extract_strided_slice %229 {offsets = [0, 0], sizes = [16, 128], strides = [1, 1]} : vector<16x512xf32> to vector<16x128xf32>
    %231 = arith.negf %230 : vector<16x128xf32>
    %232 = math.exp %231 : vector<16x128xf32>
    %cst_75 = arith.constant 1.000000e+00 : f32
    %233 = vector.broadcast %cst_75 : f32 to vector<16x128xf32>
    %234 = arith.addf %233, %232 : vector<16x128xf32>
    %235 = arith.divf %233, %234 : vector<16x128xf32>
    %236 = vector.extract_strided_slice %229 {offsets = [0, 128], sizes = [16, 128], strides = [1, 1]} : vector<16x512xf32> to vector<16x128xf32>
    %237 = arith.negf %236 : vector<16x128xf32>
    %238 = math.exp %237 : vector<16x128xf32>
    %cst_76 = arith.constant 1.000000e+00 : f32
    %239 = vector.broadcast %cst_76 : f32 to vector<16x128xf32>
    %240 = arith.addf %239, %238 : vector<16x128xf32>
    %241 = arith.divf %239, %240 : vector<16x128xf32>
    %242 = vector.extract_strided_slice %229 {offsets = [0, 256], sizes = [16, 128], strides = [1, 1]} : vector<16x512xf32> to vector<16x128xf32>
    %243 = math.tanh %242 : vector<16x128xf32>
    %244 = vector.extract_strided_slice %229 {offsets = [0, 384], sizes = [16, 128], strides = [1, 1]} : vector<16x512xf32> to vector<16x128xf32>
    %245 = arith.negf %244 : vector<16x128xf32>
    %246 = math.exp %245 : vector<16x128xf32>
    %cst_77 = arith.constant 1.000000e+00 : f32
    %247 = vector.broadcast %cst_77 : f32 to vector<16x128xf32>
    %248 = arith.addf %247, %246 : vector<16x128xf32>
    %249 = arith.divf %247, %248 : vector<16x128xf32>
    %250 = arith.mulf %241, %217 : vector<16x128xf32>
    %251 = arith.mulf %235, %243 : vector<16x128xf32>
    %252 = arith.addf %250, %251 : vector<16x128xf32>
    %253 = math.tanh %252 : vector<16x128xf32>
    %254 = arith.mulf %249, %253 : vector<16x128xf32>
    %255 = arith.truncf %254 : vector<16x128xf32> to vector<16x128xbf16>
    %256 = arith.index_cast %224 : i32 to index
    %c0_78 = arith.constant 0 : index
    %257 = vector.load %arg11[%256, %c0_78] : memref<112x128xbf16, #tpu.memory_space<vmem>>, vector<16x128xbf16>
    tpu.vector_store %arg11[%256, %c0_78], %255 {strides = array<i32>} : memref<112x128xbf16, #tpu.memory_space<vmem>>, vector<16x128xbf16>,
    %c7_i32_79 = arith.constant 7 : i32
    %c0_80 = arith.constant 0 : index
    %c0_81 = arith.constant 0 : index
    %258 = vector.load %arg11[%c0_80, %c0_81] : memref<112x128xbf16, #tpu.memory_space<vmem>>, vector<112x128xbf16>
    %c0_82 = arith.constant 0 : index
    %c0_83 = arith.constant 0 : index
    %259 = vector.load %arg6[%c0_82, %c0_83] : memref<128x512xbf16, #tpu.memory_space<vmem>>, vector<128x512xbf16>
    %cst_84 = arith.constant dense<0.000000e+00> : vector<112x512xf32>
    %260 = tpu.matmul %258, %259, %cst_84 {dimension_numbers = #tpu.dot_dimension_numbers<[1], [0], [0], [1], [0, 0, 1, 1], [], []>} : vector<112x128xbf16>, vector<128x512xbf16>, vector<112x512xf32> -> vector<112x512xf32>
    %c0_85 = arith.constant 0 : index
    %c0_86 = arith.constant 0 : index
    %261 = vector.load %arg8[%c0_85, %c0_86] : memref<1x512xf32, #tpu.memory_space<vmem>>, vector<1x512xf32>
    %262 = vector.broadcast %261 : vector<1x512xf32> to vector<112x512xf32>
    %263 = arith.addf %260, %262 : vector<112x512xf32>
    %c0_87 = arith.constant 0 : index
    %c0_88 = arith.constant 0 : index
    %264 = vector.load %arg10[%c0_87, %c0_88] : memref<112x512xf32, #tpu.memory_space<vmem>>, vector<112x512xf32>
    tpu.vector_store %arg10[%c0_87, %c0_88], %263 {strides = array<i32>} : memref<112x512xf32, #tpu.memory_space<vmem>>, vector<112x512xf32>,
    %cst_89 = arith.constant 0.000000e+00 : bf16
    %265 = vector.broadcast %cst_89 : bf16 to vector<16x128xbf16>
    %cst_90 = arith.constant 0.000000e+00 : f32
    %266 = vector.broadcast %cst_90 : f32 to vector<16x128xf32>
    %c0_i32_91 = arith.constant 0 : i32
    %c16_i32_92 = arith.constant 16 : i32
    %267 = arith.muli %c0_i32_91, %c16_i32_92 : i32
    %268 = tpu.assume_multiple %267, 16 : i32
    %269 = arith.index_cast %268 : i32 to index
    %c0_93 = arith.constant 0 : index
    %270 = vector.load %arg10[%269, %c0_93] : memref<112x512xf32, #tpu.memory_space<vmem>>, vector<16x512xf32>
    %c0_94 = arith.constant 0 : index
    %c0_95 = arith.constant 0 : index
    %271 = vector.load %arg7[%c0_94, %c0_95] : memref<128x512xbf16, #tpu.memory_space<vmem>>, vector<128x512xbf16>
    %cst_96 = arith.constant dense<0.000000e+00> : vector<16x512xf32>
    %272 = tpu.matmul %265, %271, %cst_96 {dimension_numbers = #tpu.dot_dimension_numbers<[1], [0], [0], [1], [0, 0, 1, 1], [], []>} : vector<16x128xbf16>, vector<128x512xbf16>, vector<16x512xf32> -> vector<16x512xf32>
    %273 = arith.addf %270, %272 : vector<16x512xf32>
    %274 = vector.extract_strided_slice %273 {offsets = [0, 0], sizes = [16, 128], strides = [1, 1]} : vector<16x512xf32> to vector<16x128xf32>
    %275 = arith.negf %274 : vector<16x128xf32>
    %276 = math.exp %275 : vector<16x128xf32>
    %cst_97 = arith.constant 1.000000e+00 : f32
    %277 = vector.broadcast %cst_97 : f32 to vector<16x128xf32>
    %278 = arith.addf %277, %276 : vector<16x128xf32>
    %279 = arith.divf %277, %278 : vector<16x128xf32>
    %280 = vector.extract_strided_slice %273 {offsets = [0, 128], sizes = [16, 128], strides = [1, 1]} : vector<16x512xf32> to vector<16x128xf32>
    %281 = arith.negf %280 : vector<16x128xf32>
    %282 = math.exp %281 : vector<16x128xf32>
    %cst_98 = arith.constant 1.000000e+00 : f32
    %283 = vector.broadcast %cst_98 : f32 to vector<16x128xf32>
    %284 = arith.addf %283, %282 : vector<16x128xf32>
    %285 = arith.divf %283, %284 : vector<16x128xf32>
    %286 = vector.extract_strided_slice %273 {offsets = [0, 256], sizes = [16, 128], strides = [1, 1]} : vector<16x512xf32> to vector<16x128xf32>
    %287 = math.tanh %286 : vector<16x128xf32>
    %288 = vector.extract_strided_slice %273 {offsets = [0, 384], sizes = [16, 128], strides = [1, 1]} : vector<16x512xf32> to vector<16x128xf32>
    %289 = arith.negf %288 : vector<16x128xf32>
    %290 = math.exp %289 : vector<16x128xf32>
    %cst_99 = arith.constant 1.000000e+00 : f32
    %291 = vector.broadcast %cst_99 : f32 to vector<16x128xf32>
    %292 = arith.addf %291, %290 : vector<16x128xf32>
    %293 = arith.divf %291, %292 : vector<16x128xf32>
    %294 = arith.mulf %285, %266 : vector<16x128xf32>
    %295 = arith.mulf %279, %287 : vector<16x128xf32>
    %296 = arith.addf %294, %295 : vector<16x128xf32>
    %297 = math.tanh %296 : vector<16x128xf32>
    %298 = arith.mulf %293, %297 : vector<16x128xf32>
    %299 = arith.truncf %298 : vector<16x128xf32> to vector<16x128xbf16>
    %300 = arith.index_cast %268 : i32 to index
    %c0_100 = arith.constant 0 : index
    %301 = vector.load %arg9[%300, %c0_100] : memref<112x128xbf16, #tpu.memory_space<vmem>>, vector<16x128xbf16>
    tpu.vector_store %arg9[%300, %c0_100], %299 {strides = array<i32>} : memref<112x128xbf16, #tpu.memory_space<vmem>>, vector<16x128xbf16>,
    %c1_i32_101 = arith.constant 1 : i32
    %c16_i32_102 = arith.constant 16 : i32
    %302 = arith.muli %c1_i32_101, %c16_i32_102 : i32
    %303 = tpu.assume_multiple %302, 16 : i32
    %304 = arith.index_cast %303 : i32 to index
    %c0_103 = arith.constant 0 : index
    %305 = vector.load %arg10[%304, %c0_103] : memref<112x512xf32, #tpu.memory_space<vmem>>, vector<16x512xf32>
    %c0_104 = arith.constant 0 : index
    %c0_105 = arith.constant 0 : index
    %306 = vector.load %arg7[%c0_104, %c0_105] : memref<128x512xbf16, #tpu.memory_space<vmem>>, vector<128x512xbf16>
    %cst_106 = arith.constant dense<0.000000e+00> : vector<16x512xf32>
    %307 = tpu.matmul %299, %306, %cst_106 {dimension_numbers = #tpu.dot_dimension_numbers<[1], [0], [0], [1], [0, 0, 1, 1], [], []>} : vector<16x128xbf16>, vector<128x512xbf16>, vector<16x512xf32> -> vector<16x512xf32>
    %308 = arith.addf %305, %307 : vector<16x512xf32>
    %309 = vector.extract_strided_slice %308 {offsets = [0, 0], sizes = [16, 128], strides = [1, 1]} : vector<16x512xf32> to vector<16x128xf32>
    %310 = arith.negf %309 : vector<16x128xf32>
    %311 = math.exp %310 : vector<16x128xf32>
    %cst_107 = arith.constant 1.000000e+00 : f32
    %312 = vector.broadcast %cst_107 : f32 to vector<16x128xf32>
    %313 = arith.addf %312, %311 : vector<16x128xf32>
    %314 = arith.divf %312, %313 : vector<16x128xf32>
    %315 = vector.extract_strided_slice %308 {offsets = [0, 128], sizes = [16, 128], strides = [1, 1]} : vector<16x512xf32> to vector<16x128xf32>
    %316 = arith.negf %315 : vector<16x128xf32>
    %317 = math.exp %316 : vector<16x128xf32>
    %cst_108 = arith.constant 1.000000e+00 : f32
    %318 = vector.broadcast %cst_108 : f32 to vector<16x128xf32>
    %319 = arith.addf %318, %317 : vector<16x128xf32>
    %320 = arith.divf %318, %319 : vector<16x128xf32>
    %321 = vector.extract_strided_slice %308 {offsets = [0, 256], sizes = [16, 128], strides = [1, 1]} : vector<16x512xf32> to vector<16x128xf32>
    %322 = math.tanh %321 : vector<16x128xf32>
    %323 = vector.extract_strided_slice %308 {offsets = [0, 384], sizes = [16, 128], strides = [1, 1]} : vector<16x512xf32> to vector<16x128xf32>
    %324 = arith.negf %323 : vector<16x128xf32>
    %325 = math.exp %324 : vector<16x128xf32>
    %cst_109 = arith.constant 1.000000e+00 : f32
    %326 = vector.broadcast %cst_109 : f32 to vector<16x128xf32>
    %327 = arith.addf %326, %325 : vector<16x128xf32>
    %328 = arith.divf %326, %327 : vector<16x128xf32>
    %329 = arith.mulf %320, %296 : vector<16x128xf32>
    %330 = arith.mulf %314, %322 : vector<16x128xf32>
    %331 = arith.addf %329, %330 : vector<16x128xf32>
    %332 = math.tanh %331 : vector<16x128xf32>
    %333 = arith.mulf %328, %332 : vector<16x128xf32>
    %334 = arith.truncf %333 : vector<16x128xf32> to vector<16x128xbf16>
    %335 = arith.index_cast %303 : i32 to index
    %c0_110 = arith.constant 0 : index
    %336 = vector.load %arg9[%335, %c0_110] : memref<112x128xbf16, #tpu.memory_space<vmem>>, vector<16x128xbf16>
    tpu.vector_store %arg9[%335, %c0_110], %334 {strides = array<i32>} : memref<112x128xbf16, #tpu.memory_space<vmem>>, vector<16x128xbf16>,
    %c2_i32_111 = arith.constant 2 : i32
    %c16_i32_112 = arith.constant 16 : i32
    %337 = arith.muli %c2_i32_111, %c16_i32_112 : i32
    %338 = tpu.assume_multiple %337, 16 : i32
    %339 = arith.index_cast %338 : i32 to index
    %c0_113 = arith.constant 0 : index
    %340 = vector.load %arg10[%339, %c0_113] : memref<112x512xf32, #tpu.memory_space<vmem>>, vector<16x512xf32>
    %c0_114 = arith.constant 0 : index
    %c0_115 = arith.constant 0 : index
    %341 = vector.load %arg7[%c0_114, %c0_115] : memref<128x512xbf16, #tpu.memory_space<vmem>>, vector<128x512xbf16>
    %cst_116 = arith.constant dense<0.000000e+00> : vector<16x512xf32>
    %342 = tpu.matmul %334, %341, %cst_116 {dimension_numbers = #tpu.dot_dimension_numbers<[1], [0], [0], [1], [0, 0, 1, 1], [], []>} : vector<16x128xbf16>, vector<128x512xbf16>, vector<16x512xf32> -> vector<16x512xf32>
    %343 = arith.addf %340, %342 : vector<16x512xf32>
    %344 = vector.extract_strided_slice %343 {offsets = [0, 0], sizes = [16, 128], strides = [1, 1]} : vector<16x512xf32> to vector<16x128xf32>
    %345 = arith.negf %344 : vector<16x128xf32>
    %346 = math.exp %345 : vector<16x128xf32>
    %cst_117 = arith.constant 1.000000e+00 : f32
    %347 = vector.broadcast %cst_117 : f32 to vector<16x128xf32>
    %348 = arith.addf %347, %346 : vector<16x128xf32>
    %349 = arith.divf %347, %348 : vector<16x128xf32>
    %350 = vector.extract_strided_slice %343 {offsets = [0, 128], sizes = [16, 128], strides = [1, 1]} : vector<16x512xf32> to vector<16x128xf32>
    %351 = arith.negf %350 : vector<16x128xf32>
    %352 = math.exp %351 : vector<16x128xf32>
    %cst_118 = arith.constant 1.000000e+00 : f32
    %353 = vector.broadcast %cst_118 : f32 to vector<16x128xf32>
    %354 = arith.addf %353, %352 : vector<16x128xf32>
    %355 = arith.divf %353, %354 : vector<16x128xf32>
    %356 = vector.extract_strided_slice %343 {offsets = [0, 256], sizes = [16, 128], strides = [1, 1]} : vector<16x512xf32> to vector<16x128xf32>
    %357 = math.tanh %356 : vector<16x128xf32>
    %358 = vector.extract_strided_slice %343 {offsets = [0, 384], sizes = [16, 128], strides = [1, 1]} : vector<16x512xf32> to vector<16x128xf32>
    %359 = arith.negf %358 : vector<16x128xf32>
    %360 = math.exp %359 : vector<16x128xf32>
    %cst_119 = arith.constant 1.000000e+00 : f32
    %361 = vector.broadcast %cst_119 : f32 to vector<16x128xf32>
    %362 = arith.addf %361, %360 : vector<16x128xf32>
    %363 = arith.divf %361, %362 : vector<16x128xf32>
    %364 = arith.mulf %355, %331 : vector<16x128xf32>
    %365 = arith.mulf %349, %357 : vector<16x128xf32>
    %366 = arith.addf %364, %365 : vector<16x128xf32>
    %367 = math.tanh %366 : vector<16x128xf32>
    %368 = arith.mulf %363, %367 : vector<16x128xf32>
    %369 = arith.truncf %368 : vector<16x128xf32> to vector<16x128xbf16>
    %370 = arith.index_cast %338 : i32 to index
    %c0_120 = arith.constant 0 : index
    %371 = vector.load %arg9[%370, %c0_120] : memref<112x128xbf16, #tpu.memory_space<vmem>>, vector<16x128xbf16>
    tpu.vector_store %arg9[%370, %c0_120], %369 {strides = array<i32>} : memref<112x128xbf16, #tpu.memory_space<vmem>>, vector<16x128xbf16>,
    %c3_i32_121 = arith.constant 3 : i32
    %c16_i32_122 = arith.constant 16 : i32
    %372 = arith.muli %c3_i32_121, %c16_i32_122 : i32
    %373 = tpu.assume_multiple %372, 16 : i32
    %374 = arith.index_cast %373 : i32 to index
    %c0_123 = arith.constant 0 : index
    %375 = vector.load %arg10[%374, %c0_123] : memref<112x512xf32, #tpu.memory_space<vmem>>, vector<16x512xf32>
    %c0_124 = arith.constant 0 : index
    %c0_125 = arith.constant 0 : index
    %376 = vector.load %arg7[%c0_124, %c0_125] : memref<128x512xbf16, #tpu.memory_space<vmem>>, vector<128x512xbf16>
    %cst_126 = arith.constant dense<0.000000e+00> : vector<16x512xf32>
    %377 = tpu.matmul %369, %376, %cst_126 {dimension_numbers = #tpu.dot_dimension_numbers<[1], [0], [0], [1], [0, 0, 1, 1], [], []>} : vector<16x128xbf16>, vector<128x512xbf16>, vector<16x512xf32> -> vector<16x512xf32>
    %378 = arith.addf %375, %377 : vector<16x512xf32>
    %379 = vector.extract_strided_slice %378 {offsets = [0, 0], sizes = [16, 128], strides = [1, 1]} : vector<16x512xf32> to vector<16x128xf32>
    %380 = arith.negf %379 : vector<16x128xf32>
    %381 = math.exp %380 : vector<16x128xf32>
    %cst_127 = arith.constant 1.000000e+00 : f32
    %382 = vector.broadcast %cst_127 : f32 to vector<16x128xf32>
    %383 = arith.addf %382, %381 : vector<16x128xf32>
    %384 = arith.divf %382, %383 : vector<16x128xf32>
    %385 = vector.extract_strided_slice %378 {offsets = [0, 128], sizes = [16, 128], strides = [1, 1]} : vector<16x512xf32> to vector<16x128xf32>
    %386 = arith.negf %385 : vector<16x128xf32>
    %387 = math.exp %386 : vector<16x128xf32>
    %cst_128 = arith.constant 1.000000e+00 : f32
    %388 = vector.broadcast %cst_128 : f32 to vector<16x128xf32>
    %389 = arith.addf %388, %387 : vector<16x128xf32>
    %390 = arith.divf %388, %389 : vector<16x128xf32>
    %391 = vector.extract_strided_slice %378 {offsets = [0, 256], sizes = [16, 128], strides = [1, 1]} : vector<16x512xf32> to vector<16x128xf32>
    %392 = math.tanh %391 : vector<16x128xf32>
    %393 = vector.extract_strided_slice %378 {offsets = [0, 384], sizes = [16, 128], strides = [1, 1]} : vector<16x512xf32> to vector<16x128xf32>
    %394 = arith.negf %393 : vector<16x128xf32>
    %395 = math.exp %394 : vector<16x128xf32>
    %cst_129 = arith.constant 1.000000e+00 : f32
    %396 = vector.broadcast %cst_129 : f32 to vector<16x128xf32>
    %397 = arith.addf %396, %395 : vector<16x128xf32>
    %398 = arith.divf %396, %397 : vector<16x128xf32>
    %399 = arith.mulf %390, %366 : vector<16x128xf32>
    %400 = arith.mulf %384, %392 : vector<16x128xf32>
    %401 = arith.addf %399, %400 : vector<16x128xf32>
    %402 = math.tanh %401 : vector<16x128xf32>
    %403 = arith.mulf %398, %402 : vector<16x128xf32>
    %404 = arith.truncf %403 : vector<16x128xf32> to vector<16x128xbf16>
    %405 = arith.index_cast %373 : i32 to index
    %c0_130 = arith.constant 0 : index
    %406 = vector.load %arg9[%405, %c0_130] : memref<112x128xbf16, #tpu.memory_space<vmem>>, vector<16x128xbf16>
    tpu.vector_store %arg9[%405, %c0_130], %404 {strides = array<i32>} : memref<112x128xbf16, #tpu.memory_space<vmem>>, vector<16x128xbf16>,
    %c4_i32_131 = arith.constant 4 : i32
    %c16_i32_132 = arith.constant 16 : i32
    %407 = arith.muli %c4_i32_131, %c16_i32_132 : i32
    %408 = tpu.assume_multiple %407, 16 : i32
    %409 = arith.index_cast %408 : i32 to index
    %c0_133 = arith.constant 0 : index
    %410 = vector.load %arg10[%409, %c0_133] : memref<112x512xf32, #tpu.memory_space<vmem>>, vector<16x512xf32>
    %c0_134 = arith.constant 0 : index
    %c0_135 = arith.constant 0 : index
    %411 = vector.load %arg7[%c0_134, %c0_135] : memref<128x512xbf16, #tpu.memory_space<vmem>>, vector<128x512xbf16>
    %cst_136 = arith.constant dense<0.000000e+00> : vector<16x512xf32>
    %412 = tpu.matmul %404, %411, %cst_136 {dimension_numbers = #tpu.dot_dimension_numbers<[1], [0], [0], [1], [0, 0, 1, 1], [], []>} : vector<16x128xbf16>, vector<128x512xbf16>, vector<16x512xf32> -> vector<16x512xf32>
    %413 = arith.addf %410, %412 : vector<16x512xf32>
    %414 = vector.extract_strided_slice %413 {offsets = [0, 0], sizes = [16, 128], strides = [1, 1]} : vector<16x512xf32> to vector<16x128xf32>
    %415 = arith.negf %414 : vector<16x128xf32>
    %416 = math.exp %415 : vector<16x128xf32>
    %cst_137 = arith.constant 1.000000e+00 : f32
    %417 = vector.broadcast %cst_137 : f32 to vector<16x128xf32>
    %418 = arith.addf %417, %416 : vector<16x128xf32>
    %419 = arith.divf %417, %418 : vector<16x128xf32>
    %420 = vector.extract_strided_slice %413 {offsets = [0, 128], sizes = [16, 128], strides = [1, 1]} : vector<16x512xf32> to vector<16x128xf32>
    %421 = arith.negf %420 : vector<16x128xf32>
    %422 = math.exp %421 : vector<16x128xf32>
    %cst_138 = arith.constant 1.000000e+00 : f32
    %423 = vector.broadcast %cst_138 : f32 to vector<16x128xf32>
    %424 = arith.addf %423, %422 : vector<16x128xf32>
    %425 = arith.divf %423, %424 : vector<16x128xf32>
    %426 = vector.extract_strided_slice %413 {offsets = [0, 256], sizes = [16, 128], strides = [1, 1]} : vector<16x512xf32> to vector<16x128xf32>
    %427 = math.tanh %426 : vector<16x128xf32>
    %428 = vector.extract_strided_slice %413 {offsets = [0, 384], sizes = [16, 128], strides = [1, 1]} : vector<16x512xf32> to vector<16x128xf32>
    %429 = arith.negf %428 : vector<16x128xf32>
    %430 = math.exp %429 : vector<16x128xf32>
    %cst_139 = arith.constant 1.000000e+00 : f32
    %431 = vector.broadcast %cst_139 : f32 to vector<16x128xf32>
    %432 = arith.addf %431, %430 : vector<16x128xf32>
    %433 = arith.divf %431, %432 : vector<16x128xf32>
    %434 = arith.mulf %425, %401 : vector<16x128xf32>
    %435 = arith.mulf %419, %427 : vector<16x128xf32>
    %436 = arith.addf %434, %435 : vector<16x128xf32>
    %437 = math.tanh %436 : vector<16x128xf32>
    %438 = arith.mulf %433, %437 : vector<16x128xf32>
    %439 = arith.truncf %438 : vector<16x128xf32> to vector<16x128xbf16>
    %440 = arith.index_cast %408 : i32 to index
    %c0_140 = arith.constant 0 : index
    %441 = vector.load %arg9[%440, %c0_140] : memref<112x128xbf16, #tpu.memory_space<vmem>>, vector<16x128xbf16>
    tpu.vector_store %arg9[%440, %c0_140], %439 {strides = array<i32>} : memref<112x128xbf16, #tpu.memory_space<vmem>>, vector<16x128xbf16>,
    %c5_i32_141 = arith.constant 5 : i32
    %c16_i32_142 = arith.constant 16 : i32
    %442 = arith.muli %c5_i32_141, %c16_i32_142 : i32
    %443 = tpu.assume_multiple %442, 16 : i32
    %444 = arith.index_cast %443 : i32 to index
    %c0_143 = arith.constant 0 : index
    %445 = vector.load %arg10[%444, %c0_143] : memref<112x512xf32, #tpu.memory_space<vmem>>, vector<16x512xf32>
    %c0_144 = arith.constant 0 : index
    %c0_145 = arith.constant 0 : index
    %446 = vector.load %arg7[%c0_144, %c0_145] : memref<128x512xbf16, #tpu.memory_space<vmem>>, vector<128x512xbf16>
    %cst_146 = arith.constant dense<0.000000e+00> : vector<16x512xf32>
    %447 = tpu.matmul %439, %446, %cst_146 {dimension_numbers = #tpu.dot_dimension_numbers<[1], [0], [0], [1], [0, 0, 1, 1], [], []>} : vector<16x128xbf16>, vector<128x512xbf16>, vector<16x512xf32> -> vector<16x512xf32>
    %448 = arith.addf %445, %447 : vector<16x512xf32>
    %449 = vector.extract_strided_slice %448 {offsets = [0, 0], sizes = [16, 128], strides = [1, 1]} : vector<16x512xf32> to vector<16x128xf32>
    %450 = arith.negf %449 : vector<16x128xf32>
    %451 = math.exp %450 : vector<16x128xf32>
    %cst_147 = arith.constant 1.000000e+00 : f32
    %452 = vector.broadcast %cst_147 : f32 to vector<16x128xf32>
    %453 = arith.addf %452, %451 : vector<16x128xf32>
    %454 = arith.divf %452, %453 : vector<16x128xf32>
    %455 = vector.extract_strided_slice %448 {offsets = [0, 128], sizes = [16, 128], strides = [1, 1]} : vector<16x512xf32> to vector<16x128xf32>
    %456 = arith.negf %455 : vector<16x128xf32>
    %457 = math.exp %456 : vector<16x128xf32>
    %cst_148 = arith.constant 1.000000e+00 : f32
    %458 = vector.broadcast %cst_148 : f32 to vector<16x128xf32>
    %459 = arith.addf %458, %457 : vector<16x128xf32>
    %460 = arith.divf %458, %459 : vector<16x128xf32>
    %461 = vector.extract_strided_slice %448 {offsets = [0, 256], sizes = [16, 128], strides = [1, 1]} : vector<16x512xf32> to vector<16x128xf32>
    %462 = math.tanh %461 : vector<16x128xf32>
    %463 = vector.extract_strided_slice %448 {offsets = [0, 384], sizes = [16, 128], strides = [1, 1]} : vector<16x512xf32> to vector<16x128xf32>
    %464 = arith.negf %463 : vector<16x128xf32>
    %465 = math.exp %464 : vector<16x128xf32>
    %cst_149 = arith.constant 1.000000e+00 : f32
    %466 = vector.broadcast %cst_149 : f32 to vector<16x128xf32>
    %467 = arith.addf %466, %465 : vector<16x128xf32>
    %468 = arith.divf %466, %467 : vector<16x128xf32>
    %469 = arith.mulf %460, %436 : vector<16x128xf32>
    %470 = arith.mulf %454, %462 : vector<16x128xf32>
    %471 = arith.addf %469, %470 : vector<16x128xf32>
    %472 = math.tanh %471 : vector<16x128xf32>
    %473 = arith.mulf %468, %472 : vector<16x128xf32>
    %474 = arith.truncf %473 : vector<16x128xf32> to vector<16x128xbf16>
    %475 = arith.index_cast %443 : i32 to index
    %c0_150 = arith.constant 0 : index
    %476 = vector.load %arg9[%475, %c0_150] : memref<112x128xbf16, #tpu.memory_space<vmem>>, vector<16x128xbf16>
    tpu.vector_store %arg9[%475, %c0_150], %474 {strides = array<i32>} : memref<112x128xbf16, #tpu.memory_space<vmem>>, vector<16x128xbf16>,
    %c6_i32_151 = arith.constant 6 : i32
    %c16_i32_152 = arith.constant 16 : i32
    %477 = arith.muli %c6_i32_151, %c16_i32_152 : i32
    %478 = tpu.assume_multiple %477, 16 : i32
    %479 = arith.index_cast %478 : i32 to index
    %c0_153 = arith.constant 0 : index
    %480 = vector.load %arg10[%479, %c0_153] : memref<112x512xf32, #tpu.memory_space<vmem>>, vector<16x512xf32>
    %c0_154 = arith.constant 0 : index
    %c0_155 = arith.constant 0 : index
    %481 = vector.load %arg7[%c0_154, %c0_155] : memref<128x512xbf16, #tpu.memory_space<vmem>>, vector<128x512xbf16>
    %cst_156 = arith.constant dense<0.000000e+00> : vector<16x512xf32>
    %482 = tpu.matmul %474, %481, %cst_156 {dimension_numbers = #tpu.dot_dimension_numbers<[1], [0], [0], [1], [0, 0, 1, 1], [], []>} : vector<16x128xbf16>, vector<128x512xbf16>, vector<16x512xf32> -> vector<16x512xf32>
    %483 = arith.addf %480, %482 : vector<16x512xf32>
    %484 = vector.extract_strided_slice %483 {offsets = [0, 0], sizes = [16, 128], strides = [1, 1]} : vector<16x512xf32> to vector<16x128xf32>
    %485 = arith.negf %484 : vector<16x128xf32>
    %486 = math.exp %485 : vector<16x128xf32>
    %cst_157 = arith.constant 1.000000e+00 : f32
    %487 = vector.broadcast %cst_157 : f32 to vector<16x128xf32>
    %488 = arith.addf %487, %486 : vector<16x128xf32>
    %489 = arith.divf %487, %488 : vector<16x128xf32>
    %490 = vector.extract_strided_slice %483 {offsets = [0, 128], sizes = [16, 128], strides = [1, 1]} : vector<16x512xf32> to vector<16x128xf32>
    %491 = arith.negf %490 : vector<16x128xf32>
    %492 = math.exp %491 : vector<16x128xf32>
    %cst_158 = arith.constant 1.000000e+00 : f32
    %493 = vector.broadcast %cst_158 : f32 to vector<16x128xf32>
    %494 = arith.addf %493, %492 : vector<16x128xf32>
    %495 = arith.divf %493, %494 : vector<16x128xf32>
    %496 = vector.extract_strided_slice %483 {offsets = [0, 256], sizes = [16, 128], strides = [1, 1]} : vector<16x512xf32> to vector<16x128xf32>
    %497 = math.tanh %496 : vector<16x128xf32>
    %498 = vector.extract_strided_slice %483 {offsets = [0, 384], sizes = [16, 128], strides = [1, 1]} : vector<16x512xf32> to vector<16x128xf32>
    %499 = arith.negf %498 : vector<16x128xf32>
    %500 = math.exp %499 : vector<16x128xf32>
    %cst_159 = arith.constant 1.000000e+00 : f32
    %501 = vector.broadcast %cst_159 : f32 to vector<16x128xf32>
    %502 = arith.addf %501, %500 : vector<16x128xf32>
    %503 = arith.divf %501, %502 : vector<16x128xf32>
    %504 = arith.mulf %495, %471 : vector<16x128xf32>
    %505 = arith.mulf %489, %497 : vector<16x128xf32>
    %506 = arith.addf %504, %505 : vector<16x128xf32>
    %507 = math.tanh %506 : vector<16x128xf32>
    %508 = arith.mulf %503, %507 : vector<16x128xf32>
    %509 = arith.truncf %508 : vector<16x128xf32> to vector<16x128xbf16>
    %510 = arith.index_cast %478 : i32 to index
    %c0_160 = arith.constant 0 : index
    %511 = vector.load %arg9[%510, %c0_160] : memref<112x128xbf16, #tpu.memory_space<vmem>>, vector<16x128xbf16>
    tpu.vector_store %arg9[%510, %c0_160], %509 {strides = array<i32>} : memref<112x128xbf16, #tpu.memory_space<vmem>>, vector<16x128xbf16>,
    %c7_i32_161 = arith.constant 7 : i32
    return
  }
}

</mosaic_0001>

<llo_original>
// kernel: tpu_custom_call.1
$region0: #{tpu_custom_call.1}
  #allocation0 [shape = 'u32[]', space=smem, size = 0x4, offset = 0x4, fixed_abs, tag = 'smem constant byte address 0x4 - core index']
  #allocation1 [shape = 'u32[144,128]{1,0:T(1,128)}', space=vmem, size = 0x12000, scoped, tag = 'internal scratch']
  #allocation2 [shape = 'f32[112,512]{1,0:T(8,128)}', space=vmem, size = 0x38000, scoped, tag = 'scratch operand']
  #allocation3 [shape = 'bf16[112,128]{1,0:T(8,128)(2,1)}', space=vmem, size = 0x7000, scoped, tag = 'scratch operand']
  %s0 = inlined_call_operand.vmem [shape: bf16[112,16], index: 0, kind: input, shape index: {}]
  %s1 = inlined_call_operand.hbm [shape: bf16[16,16], index: 1, kind: input, shape index: {}]
  %s2 = inlined_call_operand.vmem [shape: bf16[16,512], index: 2, kind: input, shape index: {}]
  %s3 = inlined_call_operand.vmem [shape: bf16[16,512], index: 3, kind: input, shape index: {}]
  %s4 = inlined_call_operand.vmem [shape: f32[1,512], index: 4, kind: input, shape index: {}]
  %s5 = inlined_call_operand.hbm [shape: bf16[128,512], index: 5, kind: input, shape index: {}]
  %s6 = inlined_call_operand.hbm [shape: bf16[128,512], index: 6, kind: input, shape index: {}]
  %s7 = inlined_call_operand.hbm [shape: bf16[128,512], index: 7, kind: input, shape index: {}]
  %s8 = inlined_call_operand.vmem [shape: f32[1,512], index: 8, kind: input, shape index: {}]
  %s9 = inlined_call_operand.hbm [shape: bf16[112,128], index: 9, kind: output, shape index: {}]
  %s10 = sld [smem:[#allocation0]]
  $region69: #{tpu_custom_call.1} parent=0
    _
  %s12 = ssub.s32 1, %s10
  %s13 = scalar_select 0, %s12, %s10
  $region1: #{tpu_custom_call.1} parent=0
    #allocation4 [shape = 'u8[4096]{0}', space=vmem, size = 0x1000, scoped, tag = 'input window, operand 1, single buffered']
    #allocation5 [shape = 's32[1]{0}', space=sflag, size = 0x4, scoped, tag = 'scoped memory for tpu_custom_call.1']
    #allocation6 [shape = 's32[1]{0}', space=sflag, size = 0x4, scoped, tag = 'scoped memory for tpu_custom_call.1']
    #allocation7 [shape = 'u8[131072]{0}', space=vmem, size = 0x20000, scoped, tag = 'input window, operand 5, single buffered']
    #allocation8 [shape = 's32[1]{0}', space=sflag, size = 0x4, scoped, tag = 'scoped memory for tpu_custom_call.1']
    #allocation9 [shape = 'u8[131072]{0}', space=vmem, size = 0x20000, scoped, tag = 'input window, operand 6, single buffered']
    #allocation10 [shape = 'u8[131072]{0}', space=vmem, size = 0x20000, scoped, tag = 'input window, operand 7, single buffered']
    #allocation11 [shape = 's32[1]{0}', space=sflag, size = 0x4, scoped, tag = 'scoped memory for tpu_custom_call.1']
    #allocation12 [shape = 'u8[28672]{0}', space=vmem, size = 0x7000, scoped, tag = 'output window, operand 0, single buffered']
    %14 = vsyncpa [#allocation5], 0
    %15 = vsyncpa [#allocation8], 0
    %16 = vsyncpa [#allocation11], 0
    %17 = vsyncpa [#allocation6], 0
    // Predicated region
    $region2: #{tpu_custom_call.1} parent=1 // pred_check
      _
    $region3: #{tpu_custom_call.1} parent=1 // pred_check_branch
      %19 = sbr.rel (0) target = $region5
    $region4: #{tpu_custom_call.1} parent=1 // pred_region
      _
    $region5: #{tpu_custom_call.1} parent=1 // pred_fallthru
      _
    // Predicated region
    $region6: #{tpu_custom_call.1} parent=1 // pred_check
      _
    $region7: #{tpu_custom_call.1} parent=1 // pred_check_branch
      %21 = sbr.rel (0) target = $region9
    $region8: #{tpu_custom_call.1} parent=1 // pred_region
      %s23 = ssub.s32 128, 128
      %24 = vsyncadd [#allocation5], %s23
      %s25 = sshll.u32 [#allocation4], 4
      %s26 = int_to_ptr.vmem [resolvable:$true] %s25
      %31 = dma.hbm_to_vmem [thread:$0]  %s1, 128, %s26, [#allocation5], 64, 64, 4
    $region9: #{tpu_custom_call.1} parent=1 // pred_fallthru
      _
    // Predicated region
    $region10: #{tpu_custom_call.1} parent=1 // pred_check
      _
    $region11: #{tpu_custom_call.1} parent=1 // pred_check_branch
      %33 = sbr.rel (0) target = $region13
    $region12: #{tpu_custom_call.1} parent=1 // pred_region
      _
    $region13: #{tpu_custom_call.1} parent=1 // pred_fallthru
      _
    // Predicated region
    $region14: #{tpu_custom_call.1} parent=1 // pred_check
      _
    $region15: #{tpu_custom_call.1} parent=1 // pred_check_branch
      %35 = sbr.rel (0) target = $region17
    $region16: #{tpu_custom_call.1} parent=1 // pred_region
      _
    $region17: #{tpu_custom_call.1} parent=1 // pred_fallthru
      _
    // Predicated region
    $region18: #{tpu_custom_call.1} parent=1 // pred_check
      _
    $region19: #{tpu_custom_call.1} parent=1 // pred_check_branch
      %37 = sbr.rel (0) target = $region21
    $region20: #{tpu_custom_call.1} parent=1 // pred_region
      _
    $region21: #{tpu_custom_call.1} parent=1 // pred_fallthru
      _
    // Predicated region
    $region22: #{tpu_custom_call.1} parent=1 // pred_check
      _
    $region23: #{tpu_custom_call.1} parent=1 // pred_check_branch
      %39 = sbr.rel (0) target = $region25
    $region24: #{tpu_custom_call.1} parent=1 // pred_region
      %s41 = ssub.s32 4096, 4096
      %42 = vsyncadd [#allocation8], %s41
      %s43 = sshll.u32 [#allocation7], 4
      %s44 = int_to_ptr.vmem [resolvable:$true] %s43
      %49 = dma.hbm_to_vmem [thread:$0]  %s5, 4096, %s44, [#allocation8], 256, 256, 16
    $region25: #{tpu_custom_call.1} parent=1 // pred_fallthru
      _
    // Predicated region
    $region26: #{tpu_custom_call.1} parent=1 // pred_check
      _
    $region27: #{tpu_custom_call.1} parent=1 // pred_check_branch
      %51 = sbr.rel (0) target = $region29
    $region28: #{tpu_custom_call.1} parent=1 // pred_region
      %s53 = ssub.s32 4096, 4096
      %54 = vsyncadd [#allocation8], %s53
      %s55 = sshll.u32 [#allocation9], 4
      %s56 = int_to_ptr.vmem [resolvable:$true] %s55
      %61 = dma.hbm_to_vmem [thread:$0]  %s6, 4096, %s56, [#allocation8], 256, 256, 16
    $region29: #{tpu_custom_call.1} parent=1 // pred_fallthru
      _
    // Predicated region
    $region30: #{tpu_custom_call.1} parent=1 // pred_check
      _
    $region31: #{tpu_custom_call.1} parent=1 // pred_check_branch
      %63 = sbr.rel (0) target = $region33
    $region32: #{tpu_custom_call.1} parent=1 // pred_region
      %s65 = ssub.s32 4096, 4096
      %66 = vsyncadd [#allocation11], %s65
      %s67 = sshll.u32 [#allocation10], 4
      %s68 = int_to_ptr.vmem [resolvable:$true] %s67
      %73 = dma.hbm_to_vmem [thread:$0]  %s7, 4096, %s68, [#allocation11], 256, 256, 16
    $region33: #{tpu_custom_call.1} parent=1 // pred_fallthru
      _
    // Predicated region
    $region34: #{tpu_custom_call.1} parent=1 // pred_check
      _
    $region35: #{tpu_custom_call.1} parent=1 // pred_check_branch
      %75 = sbr.rel (0) target = $region37
    $region36: #{tpu_custom_call.1} parent=1 // pred_region
      _
    $region37: #{tpu_custom_call.1} parent=1 // pred_fallthru
      _
    // Predicated region
    $region38: #{tpu_custom_call.1} parent=1 // pred_check
      _
    $region39: #{tpu_custom_call.1} parent=1 // pred_check_branch
      %77 = sbr.rel (0) target = $region41
    $region40: #{tpu_custom_call.1} parent=1 // pred_region
      %78 = dma.done [#allocation5], 128
    $region41: #{tpu_custom_call.1} parent=1 // pred_fallthru
      _
    // Predicated region
    $region42: #{tpu_custom_call.1} parent=1 // pred_check
      _
    $region43: #{tpu_custom_call.1} parent=1 // pred_check_branch
      %80 = sbr.rel (0) target = $region45
    $region44: #{tpu_custom_call.1} parent=1 // pred_region
      %81 = dma.done [#allocation8], 4096
    $region45: #{tpu_custom_call.1} parent=1 // pred_fallthru
      _
    // Predicated region
    $region46: #{tpu_custom_call.1} parent=1 // pred_check
      _
    $region47: #{tpu_custom_call.1} parent=1 // pred_check_branch
      %83 = sbr.rel (0) target = $region49
    $region48: #{tpu_custom_call.1} parent=1 // pred_region
      %84 = dma.done [#allocation8], 4096
    $region49: #{tpu_custom_call.1} parent=1 // pred_fallthru
      _
    // Predicated region
    $region50: #{tpu_custom_call.1} parent=1 // pred_check
      _
    $region51: #{tpu_custom_call.1} parent=1 // pred_check_branch
      %86 = sbr.rel (0) target = $region53
    $region52: #{tpu_custom_call.1} parent=1 // pred_region
      %87 = dma.done [#allocation11], 4096
    $region53: #{tpu_custom_call.1} parent=1 // pred_fallthru
      _
    %v89 = vld [vmem:[%s0] sm:$0xf]
    %v90 = vld [vmem:[%s0 + $0x4] sm:$0xf]
    %v91 = vld [vmem:[%s0 + $0x8] sm:$0xf]
    %v92 = vld [vmem:[%s0 + $0xc] sm:$0xf]
    %v93 = vld [vmem:[%s0 + $0x10] sm:$0xf]
    %v94 = vld [vmem:[%s0 + $0x14] sm:$0xf]
    %v95 = vld [vmem:[%s0 + $0x18] sm:$0xf]
    %v96 = vld [vmem:[%s0 + $0x1c] sm:$0xf]
    %v97 = vld [vmem:[%s0 + $0x20] sm:$0xf]
    %v98 = vld [vmem:[%s0 + $0x24] sm:$0xf]
    %v99 = vld [vmem:[%s0 + $0x28] sm:$0xf]
    %v100 = vld [vmem:[%s0 + $0x2c] sm:$0xf]
    %v101 = vld [vmem:[%s0 + $0x30] sm:$0xf]
    %v102 = vld [vmem:[%s0 + $0x34] sm:$0xf]
    %v103 = vld [vmem:[%s3] sm:$0xff]
    %v104 = vld [vmem:[%s3 + $0x8] sm:$0xff]
    %v105 = vld [vmem:[%s3 + $0x10] sm:$0xff]
    %v106 = vld [vmem:[%s3 + $0x18] sm:$0xff]
    %v121 = vunpack.c.l.b16 %v89
    %v122 = vunpack.c.l.b16 %v90
    %v123 = vunpack.c.l.b16 %v91
    %v124 = vunpack.c.l.b16 %v92
    %v125 = vunpack.c.l.b16 %v93
    %v126 = vunpack.c.l.b16 %v94
    %v127 = vunpack.c.l.b16 %v95
    %v128 = vunpack.c.l.b16 %v96
    %v129 = vunpack.c.l.b16 %v97
    %v130 = vunpack.c.l.b16 %v98
    %v131 = vunpack.c.l.b16 %v99
    %v132 = vunpack.c.l.b16 %v100
    %v133 = vunpack.c.l.b16 %v101
    %v134 = vunpack.c.l.b16 %v102
    %v135 = vpack.c.b16 %v122, %v121
    %v136 = vpack.c.b16 %v124, %v123
    %v137 = vpack.c.b16 %v126, %v125
    %v138 = vpack.c.b16 %v128, %v127
    %v139 = vpack.c.b16 %v130, %v129
    %v140 = vpack.c.b16 %v132, %v131
    %v141 = vpack.c.b16 %v134, %v133
    %v146 = vunpack.c.l.b16 %v103
    %v147 = vunpack.c.h.b16 %v103
    %v148 = vunpack.c.l.b16 %v104
    %v149 = vunpack.c.h.b16 %v104
    %v150 = vunpack.c.l.b16 %v105
    %v151 = vunpack.c.h.b16 %v105
    %v152 = vunpack.c.l.b16 %v106
    %v153 = vunpack.c.h.b16 %v106
    %v154 = vpack.c.b16 %v150, %v146
    %v155 = vpack.c.b16 %v151, %v147
    %v156 = vpack.c.b16 %v152, %v148
    %v157 = vpack.c.b16 %v153, %v149
    %vm162 = vcmask 130048
    %v164 = vsel %vm162, %v135, 0
    %v167 = vsel %vm162, %v136, 0
    %v170 = vsel %vm162, %v137, 0
    %v173 = vsel %vm162, %v138, 0
    %v176 = vsel %vm162, %v139, 0
    %v179 = vsel %vm162, %v140, 0
    %v182 = vsel %vm162, %v141, 0
    %184 = vmatprep.subr.bf16.mxu0 0
    %185 = vmatpush1.bf16.msra.mxu0 0
    %186 = vmatprep.subr.bf16.mxu0 0
    %187 = vmatpush1.bf16.msra.mxu0 0
    %188 = vmatprep.subr.bf16.mxu0 0
    %189 = vmatpush1.bf16.msra.mxu0 0
    %190 = vmatprep.subr.bf16.mxu0 0
    %191 = vmatpush1.bf16.msra.mxu0 0
    %192 = vmatprep.subr.bf16.mxu0 0
    %193 = vmatpush1.bf16.msra.mxu0 0
    %194 = vmatprep.subr.bf16.mxu0 0
    %195 = vmatpush1.bf16.msra.mxu0 0
    %196 = vmatprep.subr.bf16.mxu0 0
    %197 = vmatpush1.bf16.msra.mxu0 0
    %198 = vmatprep.subr.bf16.mxu0 %v155
    %199 = vmatpush1.bf16.msra.mxu0 %v154
    %200 = vmatprep.subr.bf16.mxu0 0
    %201 = vmatpush2.bf16.msra.mxu0 0
    %202 = vmatprep.subr.bf16.mxu0 0
    %203 = vmatpush2.bf16.msra.mxu0 0
    %204 = vmatprep.subr.bf16.mxu0 0
    %205 = vmatpush2.bf16.msra.mxu0 0
    %206 = vmatprep.subr.bf16.mxu0 0
    %207 = vmatpush2.bf16.msra.mxu0 0
    %208 = vmatprep.subr.bf16.mxu0 0
    %209 = vmatpush2.bf16.msra.mxu0 0
    %210 = vmatprep.subr.bf16.mxu0 0
    %211 = vmatpush2.bf16.msra.mxu0 0
    %212 = vmatprep.subr.bf16.mxu0 0
    %213 = vmatpush2.bf16.msra.mxu0 0
    %214 = vmatprep.subr.bf16.mxu0 0
    %215 = vmatpush2.bf16.msra.mxu0 0
    %216 = vmatprep.mubr.bf16.mxu0 0
    %217 = vmatmul.mubr.bf16.gmra.mxu0 %v164
    %v218 = vpop.f32.mrf.mxu0
    %v219 = vadd.f32 0.0, %v218
    %v220 = vpop.f32.mrf.mxu0
    %v221 = vadd.f32 0.0, %v220
    %v222 = vpop.f32.mrf.mxu0
    %v223 = vadd.f32 0.0, %v222
    %v224 = vpop.f32.mrf.mxu0
    %v225 = vadd.f32 0.0, %v224
    %226 = vmatprep.mubr.bf16.mxu0 0
    %227 = vmatmul.mubr.bf16.gmra.mxu0 %v167
    %v228 = vpop.f32.mrf.mxu0
    %v229 = vadd.f32 0.0, %v228
    %v230 = vpop.f32.mrf.mxu0
    %v231 = vadd.f32 0.0, %v230
    %v232 = vpop.f32.mrf.mxu0
    %v233 = vadd.f32 0.0, %v232
    %v234 = vpop.f32.mrf.mxu0
    %v235 = vadd.f32 0.0, %v234
    %236 = vmatprep.mubr.bf16.mxu0 0
    %237 = vmatmul.mubr.bf16.gmra.mxu0 %v170
    %v238 = vpop.f32.mrf.mxu0
    %v239 = vadd.f32 0.0, %v238
    %v240 = vpop.f32.mrf.mxu0
    %v241 = vadd.f32 0.0, %v240
    %v242 = vpop.f32.mrf.mxu0
    %v243 = vadd.f32 0.0, %v242
    %v244 = vpop.f32.mrf.mxu0
    %v245 = vadd.f32 0.0, %v244
    %246 = vmatprep.mubr.bf16.mxu0 0
    %247 = vmatmul.mubr.bf16.gmra.mxu0 %v173
    %v248 = vpop.f32.mrf.mxu0
    %v249 = vadd.f32 0.0, %v248
    %v250 = vpop.f32.mrf.mxu0
    %v251 = vadd.f32 0.0, %v250
    %v252 = vpop.f32.mrf.mxu0
    %v253 = vadd.f32 0.0, %v252
    %v254 = vpop.f32.mrf.mxu0
    %v255 = vadd.f32 0.0, %v254
    %256 = vmatprep.mubr.bf16.mxu0 0
    %257 = vmatmul.mubr.bf16.gmra.mxu0 %v176
    %v258 = vpop.f32.mrf.mxu0
    %v259 = vadd.f32 0.0, %v258
    %v260 = vpop.f32.mrf.mxu0
    %v261 = vadd.f32 0.0, %v260
    %v262 = vpop.f32.mrf.mxu0
    %v263 = vadd.f32 0.0, %v262
    %v264 = vpop.f32.mrf.mxu0
    %v265 = vadd.f32 0.0, %v264
    %266 = vmatprep.mubr.bf16.mxu0 0
    %267 = vmatmul.mubr.bf16.gmra.mxu0 %v179
    %v268 = vpop.f32.mrf.mxu0
    %v269 = vadd.f32 0.0, %v268
    %v270 = vpop.f32.mrf.mxu0
    %v271 = vadd.f32 0.0, %v270
    %v272 = vpop.f32.mrf.mxu0
    %v273 = vadd.f32 0.0, %v272
    %v274 = vpop.f32.mrf.mxu0
    %v275 = vadd.f32 0.0, %v274
    %276 = vmatprep.mubr.bf16.mxu0 0
    %277 = vmatmul.mubr.bf16.gmra.mxu0 %v182
    %v278 = vpop.f32.mrf.mxu0
    %v279 = vadd.f32 0.0, %v278
    %v280 = vpop.f32.mrf.mxu0
    %v281 = vadd.f32 0.0, %v280
    %v282 = vpop.f32.mrf.mxu0
    %v283 = vadd.f32 0.0, %v282
    %v284 = vpop.f32.mrf.mxu0
    %v285 = vadd.f32 0.0, %v284
    %286 = vdwg.mxu0
    %287 = vmatprep.subr.bf16.mxu0 0
    %288 = vmatpush1.bf16.msra.mxu0 0
    %289 = vmatprep.subr.bf16.mxu0 0
    %290 = vmatpush1.bf16.msra.mxu0 0
    %291 = vmatprep.subr.bf16.mxu0 0
    %292 = vmatpush1.bf16.msra.mxu0 0
    %293 = vmatprep.subr.bf16.mxu0 0
    %294 = vmatpush1.bf16.msra.mxu0 0
    %295 = vmatprep.subr.bf16.mxu0 0
    %296 = vmatpush1.bf16.msra.mxu0 0
    %297 = vmatprep.subr.bf16.mxu0 0
    %298 = vmatpush1.bf16.msra.mxu0 0
    %299 = vmatprep.subr.bf16.mxu0 0
    %300 = vmatpush1.bf16.msra.mxu0 0
    %301 = vmatprep.subr.bf16.mxu0 %v157
    %302 = vmatpush1.bf16.msra.mxu0 %v156
    %303 = vmatprep.subr.bf16.mxu0 0
    %304 = vmatpush2.bf16.msra.mxu0 0
    %305 = vmatprep.subr.bf16.mxu0 0
    %306 = vmatpush2.bf16.msra.mxu0 0
    %307 = vmatprep.subr.bf16.mxu0 0
    %308 = vmatpush2.bf16.msra.mxu0 0
    %309 = vmatprep.subr.bf16.mxu0 0
    %310 = vmatpush2.bf16.msra.mxu0 0
    %311 = vmatprep.subr.bf16.mxu0 0
    %312 = vmatpush2.bf16.msra.mxu0 0
    %313 = vmatprep.subr.bf16.mxu0 0
    %314 = vmatpush2.bf16.msra.mxu0 0
    %315 = vmatprep.subr.bf16.mxu0 0
    %316 = vmatpush2.bf16.msra.mxu0 0
    %317 = vmatprep.subr.bf16.mxu0 0
    %318 = vmatpush2.bf16.msra.mxu0 0
    %319 = vmatprep.mubr.bf16.mxu0 0
    %320 = vmatmul.mubr.bf16.gmra.mxu0 %v164
    %v321 = vpop.f32.mrf.mxu0
    %v322 = vadd.f32 0.0, %v321
    %v323 = vpop.f32.mrf.mxu0
    %v324 = vadd.f32 0.0, %v323
    %v325 = vpop.f32.mrf.mxu0
    %v326 = vadd.f32 0.0, %v325
    %v327 = vpop.f32.mrf.mxu0
    %v328 = vadd.f32 0.0, %v327
    %329 = vmatprep.mubr.bf16.mxu0 0
    %330 = vmatmul.mubr.bf16.gmra.mxu0 %v167
    %v331 = vpop.f32.mrf.mxu0
    %v332 = vadd.f32 0.0, %v331
    %v333 = vpop.f32.mrf.mxu0
    %v334 = vadd.f32 0.0, %v333
    %v335 = vpop.f32.mrf.mxu0
    %v336 = vadd.f32 0.0, %v335
    %v337 = vpop.f32.mrf.mxu0
    %v338 = vadd.f32 0.0, %v337
    %339 = vmatprep.mubr.bf16.mxu0 0
    %340 = vmatmul.mubr.bf16.gmra.mxu0 %v170
    %v341 = vpop.f32.mrf.mxu0
    %v342 = vadd.f32 0.0, %v341
    %v343 = vpop.f32.mrf.mxu0
    %v344 = vadd.f32 0.0, %v343
    %v345 = vpop.f32.mrf.mxu0
    %v346 = vadd.f32 0.0, %v345
    %v347 = vpop.f32.mrf.mxu0
    %v348 = vadd.f32 0.0, %v347
    %349 = vmatprep.mubr.bf16.mxu0 0
    %350 = vmatmul.mubr.bf16.gmra.mxu0 %v173
    %v351 = vpop.f32.mrf.mxu0
    %v352 = vadd.f32 0.0, %v351
    %v353 = vpop.f32.mrf.mxu0
    %v354 = vadd.f32 0.0, %v353
    %v355 = vpop.f32.mrf.mxu0
    %v356 = vadd.f32 0.0, %v355
    %v357 = vpop.f32.mrf.mxu0
    %v358 = vadd.f32 0.0, %v357
    %359 = vmatprep.mubr.bf16.mxu0 0
    %360 = vmatmul.mubr.bf16.gmra.mxu0 %v176
    %v361 = vpop.f32.mrf.mxu0
    %v362 = vadd.f32 0.0, %v361
    %v363 = vpop.f32.mrf.mxu0
    %v364 = vadd.f32 0.0, %v363
    %v365 = vpop.f32.mrf.mxu0
    %v366 = vadd.f32 0.0, %v365
    %v367 = vpop.f32.mrf.mxu0
    %v368 = vadd.f32 0.0, %v367
    %369 = vmatprep.mubr.bf16.mxu0 0
    %370 = vmatmul.mubr.bf16.gmra.mxu0 %v179
    %v371 = vpop.f32.mrf.mxu0
    %v372 = vadd.f32 0.0, %v371
    %v373 = vpop.f32.mrf.mxu0
    %v374 = vadd.f32 0.0, %v373
    %v375 = vpop.f32.mrf.mxu0
    %v376 = vadd.f32 0.0, %v375
    %v377 = vpop.f32.mrf.mxu0
    %v378 = vadd.f32 0.0, %v377
    %379 = vmatprep.mubr.bf16.mxu0 0
    %380 = vmatmul.mubr.bf16.gmra.mxu0 %v182
    %v381 = vpop.f32.mrf.mxu0
    %v382 = vadd.f32 0.0, %v381
    %v383 = vpop.f32.mrf.mxu0
    %v384 = vadd.f32 0.0, %v383
    %v385 = vpop.f32.mrf.mxu0
    %v386 = vadd.f32 0.0, %v385
    %v387 = vpop.f32.mrf.mxu0
    %v388 = vadd.f32 0.0, %v387
    %389 = vdwg.mxu0
    %390 = vst [vmem:[#allocation2] sm:$0xff] %v219
    %391 = vst [vmem:[#allocation2 + $0x8] sm:$0xff] %v221
    %392 = vst [vmem:[#allocation2 + $0x10] sm:$0xff] %v322
    %393 = vst [vmem:[#allocation2 + $0x18] sm:$0xff] %v324
    %394 = vst [vmem:[#allocation2 + $0x20] sm:$0xff] %v223
    %395 = vst [vmem:[#allocation2 + $0x28] sm:$0xff] %v225
    %396 = vst [vmem:[#allocation2 + $0x30] sm:$0xff] %v326
    %397 = vst [vmem:[#allocation2 + $0x38] sm:$0xff] %v328
    %398 = vst [vmem:[#allocation2 + $0x40] sm:$0xff] %v229
    %399 = vst [vmem:[#allocation2 + $0x48] sm:$0xff] %v231
    %400 = vst [vmem:[#allocation2 + $0x50] sm:$0xff] %v332
    %401 = vst [vmem:[#allocation2 + $0x58] sm:$0xff] %v334
    %402 = vst [vmem:[#allocation2 + $0x60] sm:$0xff] %v233
    %403 = vst [vmem:[#allocation2 + $0x68] sm:$0xff] %v235
    %404 = vst [vmem:[#allocation2 + $0x70] sm:$0xff] %v336
    %405 = vst [vmem:[#allocation2 + $0x78] sm:$0xff] %v338
    %406 = vst [vmem:[#allocation2 + $0x80] sm:$0xff] %v239
    %407 = vst [vmem:[#allocation2 + $0x88] sm:$0xff] %v241
    %408 = vst [vmem:[#allocation2 + $0x90] sm:$0xff] %v342
    %409 = vst [vmem:[#allocation2 + $0x98] sm:$0xff] %v344
    %410 = vst [vmem:[#allocation2 + $0xa0] sm:$0xff] %v243
    %411 = vst [vmem:[#allocation2 + $0xa8] sm:$0xff] %v245
    %412 = vst [vmem:[#allocation2 + $0xb0] sm:$0xff] %v346
    %413 = vst [vmem:[#allocation2 + $0xb8] sm:$0xff] %v348
    %414 = vst [vmem:[#allocation2 + $0xc0] sm:$0xff] %v249
    %415 = vst [vmem:[#allocation2 + $0xc8] sm:$0xff] %v251
    %416 = vst [vmem:[#allocation2 + $0xd0] sm:$0xff] %v352
    %417 = vst [vmem:[#allocation2 + $0xd8] sm:$0xff] %v354
    %418 = vst [vmem:[#allocation2 + $0xe0] sm:$0xff] %v253
    %419 = vst [vmem:[#allocation2 + $0xe8] sm:$0xff] %v255
    %420 = vst [vmem:[#allocation2 + $0xf0] sm:$0xff] %v356
    %421 = vst [vmem:[#allocation2 + $0xf8] sm:$0xff] %v358
    %422 = vst [vmem:[#allocation2 + $0x100] sm:$0xff] %v259
    %423 = vst [vmem:[#allocation2 + $0x108] sm:$0xff] %v261
    %424 = vst [vmem:[#allocation2 + $0x110] sm:$0xff] %v362
    %425 = vst [vmem:[#allocation2 + $0x118] sm:$0xff] %v364
    %426 = vst [vmem:[#allocation2 + $0x120] sm:$0xff] %v263
    %427 = vst [vmem:[#allocation2 + $0x128] sm:$0xff] %v265
    %428 = vst [vmem:[#allocation2 + $0x130] sm:$0xff] %v366
    %429 = vst [vmem:[#allocation2 + $0x138] sm:$0xff] %v368
    %430 = vst [vmem:[#allocation2 + $0x140] sm:$0xff] %v269
    %431 = vst [vmem:[#allocation2 + $0x148] sm:$0xff] %v271
    %432 = vst [vmem:[#allocation2 + $0x150] sm:$0xff] %v372
    %433 = vst [vmem:[#allocation2 + $0x158] sm:$0xff] %v374
    %434 = vst [vmem:[#allocation2 + $0x160] sm:$0xff] %v273
    %435 = vst [vmem:[#allocation2 + $0x168] sm:$0xff] %v275
    %436 = vst [vmem:[#allocation2 + $0x170] sm:$0xff] %v376
    %437 = vst [vmem:[#allocation2 + $0x178] sm:$0xff] %v378
    %438 = vst [vmem:[#allocation2 + $0x180] sm:$0xff] %v279
    %439 = vst [vmem:[#allocation2 + $0x188] sm:$0xff] %v281
    %440 = vst [vmem:[#allocation2 + $0x190] sm:$0xff] %v382
    %441 = vst [vmem:[#allocation2 + $0x198] sm:$0xff] %v384
    %442 = vst [vmem:[#allocation2 + $0x1a0] sm:$0xff] %v283
    %443 = vst [vmem:[#allocation2 + $0x1a8] sm:$0xff] %v285
    %444 = vst [vmem:[#allocation2 + $0x1b0] sm:$0xff] %v386
    %445 = vst [vmem:[#allocation2 + $0x1b8] sm:$0xff] %v388
    %v446 = vld [vmem:[#allocation4] sm:$0xf]
    %v447 = vld [vmem:[#allocation4 + $0x4] sm:$0xf]
    %v448 = vld [vmem:[%s2] sm:$0xff]
    %v449 = vld [vmem:[%s2 + $0x8] sm:$0xff]
    %v450 = vld [vmem:[%s2 + $0x10] sm:$0xff]
    %v451 = vld [vmem:[%s2 + $0x18] sm:$0xff]
    %v452 = vld [vmem:[%s4] sm:$0xf]
    %v454 = vlaneseq
    %v455 = vshrl.u32 %v454, 7
    %v456 = vsub.s32 0, %v455
    %v457 = vrot.slane %v452, %v456
    %v458 = vlaneseq
    %v459 = vshrl.u32 %v458, 7
    %v460 = vsub.s32 1, %v459
    %v461 = vrot.slane %v452, %v460
    %v462 = vlaneseq
    %v463 = vshrl.u32 %v462, 7
    %v464 = vsub.s32 2, %v463
    %v465 = vrot.slane %v452, %v464
    %v466 = vlaneseq
    %v467 = vshrl.u32 %v466, 7
    %v468 = vsub.s32 3, %v467
    %v469 = vrot.slane %v452, %v468
    %v476 = vunpack.c.l.b16 %v446
    %v477 = vunpack.c.l.b16 %v447
    %v478 = vpack.c.b16 %v477, %v476
    %v483 = vunpack.c.l.b16 %v448
    %v484 = vunpack.c.h.b16 %v448
    %v485 = vunpack.c.l.b16 %v449
    %v486 = vunpack.c.h.b16 %v449
    %v487 = vunpack.c.l.b16 %v450
    %v488 = vunpack.c.h.b16 %v450
    %v489 = vunpack.c.l.b16 %v451
    %v490 = vunpack.c.h.b16 %v451
    %v491 = vpack.c.b16 %v487, %v483
    %v492 = vpack.c.b16 %v488, %v484
    %v493 = vpack.c.b16 %v489, %v485
    %v494 = vpack.c.b16 %v490, %v486
    %v500 = vsel %vm162, %v478, 0
    %502 = vmatprep.subr.bf16.mxu0 0
    %503 = vmatpush1.bf16.msra.mxu0 0
    %504 = vmatprep.subr.bf16.mxu0 0
    %505 = vmatpush1.bf16.msra.mxu0 0
    %506 = vmatprep.subr.bf16.mxu0 0
    %507 = vmatpush1.bf16.msra.mxu0 0
    %508 = vmatprep.subr.bf16.mxu0 0
    %509 = vmatpush1.bf16.msra.mxu0 0
    %510 = vmatprep.subr.bf16.mxu0 0
    %511 = vmatpush1.bf16.msra.mxu0 0
    %512 = vmatprep.subr.bf16.mxu0 0
    %513 = vmatpush1.bf16.msra.mxu0 0
    %514 = vmatprep.subr.bf16.mxu0 0
    %515 = vmatpush1.bf16.msra.mxu0 0
    %516 = vmatprep.subr.bf16.mxu0 %v492
    %517 = vmatpush1.bf16.msra.mxu0 %v491
    %518 = vmatprep.subr.bf16.mxu0 0
    %519 = vmatpush2.bf16.msra.mxu0 0
    %520 = vmatprep.subr.bf16.mxu0 0
    %521 = vmatpush2.bf16.msra.mxu0 0
    %522 = vmatprep.subr.bf16.mxu0 0
    %523 = vmatpush2.bf16.msra.mxu0 0
    %524 = vmatprep.subr.bf16.mxu0 0
    %525 = vmatpush2.bf16.msra.mxu0 0
    %526 = vmatprep.subr.bf16.mxu0 0
    %527 = vmatpush2.bf16.msra.mxu0 0
    %528 = vmatprep.subr.bf16.mxu0 0
    %529 = vmatpush2.bf16.msra.mxu0 0
    %530 = vmatprep.subr.bf16.mxu0 0
    %531 = vmatpush2.bf16.msra.mxu0 0
    %532 = vmatprep.subr.bf16.mxu0 0
    %533 = vmatpush2.bf16.msra.mxu0 0
    %534 = vmatprep.mubr.bf16.mxu0 0
    %535 = vmatmul.mubr.bf16.gmra.mxu0 %v500
    %v536 = vpop.f32.mrf.mxu0
    %v537 = vadd.f32 %v457, %v536
    %v538 = vpop.f32.mrf.mxu0
    %v539 = vadd.f32 %v461, %v538
    %v540 = vpop.f32.mrf.mxu0
    %v541 = vadd.f32 %v457, %v540
    %v542 = vpop.f32.mrf.mxu0
    %v543 = vadd.f32 %v461, %v542
    %544 = vdwg.mxu0
    %545 = vmatprep.subr.bf16.mxu0 0
    %546 = vmatpush1.bf16.msra.mxu0 0
    %547 = vmatprep.subr.bf16.mxu0 0
    %548 = vmatpush1.bf16.msra.mxu0 0
    %549 = vmatprep.subr.bf16.mxu0 0
    %550 = vmatpush1.bf16.msra.mxu0 0
    %551 = vmatprep.subr.bf16.mxu0 0
    %552 = vmatpush1.bf16.msra.mxu0 0
    %553 = vmatprep.subr.bf16.mxu0 0
    %554 = vmatpush1.bf16.msra.mxu0 0
    %555 = vmatprep.subr.bf16.mxu0 0
    %556 = vmatpush1.bf16.msra.mxu0 0
    %557 = vmatprep.subr.bf16.mxu0 0
    %558 = vmatpush1.bf16.msra.mxu0 0
    %559 = vmatprep.subr.bf16.mxu0 %v494
    %560 = vmatpush1.bf16.msra.mxu0 %v493
    %561 = vmatprep.subr.bf16.mxu0 0
    %562 = vmatpush2.bf16.msra.mxu0 0
    %563 = vmatprep.subr.bf16.mxu0 0
    %564 = vmatpush2.bf16.msra.mxu0 0
    %565 = vmatprep.subr.bf16.mxu0 0
    %566 = vmatpush2.bf16.msra.mxu0 0
    %567 = vmatprep.subr.bf16.mxu0 0
    %568 = vmatpush2.bf16.msra.mxu0 0
    %569 = vmatprep.subr.bf16.mxu0 0
    %570 = vmatpush2.bf16.msra.mxu0 0
    %571 = vmatprep.subr.bf16.mxu0 0
    %572 = vmatpush2.bf16.msra.mxu0 0
    %573 = vmatprep.subr.bf16.mxu0 0
    %574 = vmatpush2.bf16.msra.mxu0 0
    %575 = vmatprep.subr.bf16.mxu0 0
    %576 = vmatpush2.bf16.msra.mxu0 0
    %577 = vmatprep.mubr.bf16.mxu0 0
    %578 = vmatmul.mubr.bf16.gmra.mxu0 %v500
    %v579 = vpop.f32.mrf.mxu0
    %v580 = vadd.f32 %v465, %v579
    %v581 = vpop.f32.mrf.mxu0
    %v582 = vadd.f32 %v469, %v581
    %v583 = vpop.f32.mrf.mxu0
    %v584 = vadd.f32 %v465, %v583
    %v585 = vpop.f32.mrf.mxu0
    %v586 = vadd.f32 %v469, %v585
    %587 = vdwg.mxu0
    loop: start=0, step=1, limit=7
    $region54: #{tpu_custom_call.1} parent=1 // loop_pre_header
      _
    $region55: #{tpu_custom_call.1} parent=1 // loop_header
      %s589 = sphi 0, %s593
      %p590 = scmp.ge.s32.totalorder %s589, 7
    $region56: #{tpu_custom_call.1} parent=1 // loop_header_branch
      %592 = sbr.rel (%p590) target = $region60
    $region57: #{tpu_custom_call.1} parent=1 // loop_body
      %s594 = smul.u32 %s589, 16
      %s595 = sshra.s32 %s594, 3
      %s596 = sand.u32 %s594, 7
      %s597 = smul.u32 %s595, 4
      %s598 = smul.addr %s597, 8
      %s599 = scalar_lea.vmem [#allocation2], %s598
      %v600 = vld [vmem:[%s599] sm:$0xff]
      %v601 = vld [vmem:[%s599 + $0x8] sm:$0xff]
      %v602 = vld [vmem:[%s599 + $0x10] sm:$0xff]
      %v603 = vld [vmem:[%s599 + $0x18] sm:$0xff]
      %v604 = vld [vmem:[%s599 + $0x20] sm:$0xff]
      %v605 = vld [vmem:[%s599 + $0x28] sm:$0xff]
      %v606 = vld [vmem:[%s599 + $0x30] sm:$0xff]
      %v607 = vld [vmem:[%s599 + $0x38] sm:$0xff]
      %v608 = vadd.f32 %v600, %v537
      %v609 = vadd.f32 %v601, %v539
      %v610 = vadd.f32 %v602, %v580
      %v611 = vadd.f32 %v603, %v582
      %v612 = vadd.f32 %v604, %v541
      %v613 = vadd.f32 %v605, %v543
      %v614 = vadd.f32 %v606, %v584
      %v615 = vadd.f32 %v607, %v586
      %616 = vst [vmem:[%s599] sm:$0xff] %v608
      %617 = vst [vmem:[%s599 + $0x8] sm:$0xff] %v609
      %618 = vst [vmem:[%s599 + $0x10] sm:$0xff] %v610
      %619 = vst [vmem:[%s599 + $0x18] sm:$0xff] %v611
      %620 = vst [vmem:[%s599 + $0x20] sm:$0xff] %v612
      %621 = vst [vmem:[%s599 + $0x28] sm:$0xff] %v613
      %622 = vst [vmem:[%s599 + $0x30] sm:$0xff] %v614
      %623 = vst [vmem:[%s599 + $0x38] sm:$0xff] %v615
    $region58: #{tpu_custom_call.1} parent=1 // loop_footer
      %s593 = sadd.s32 1, %s589
    $region59: #{tpu_custom_call.1} parent=1 // loop_footer_branch
      %588 = sbr.rel target = $region55
    $region60: #{tpu_custom_call.1} parent=1 // loop_exit
      _
    %s624 = smul.u32 0, 4
    %s625 = smul.addr %s624, 8
    %s626 = scalar_lea.vmem [#allocation2], %s625
    %v627 = vld [vmem:[%s626] sm:$0xff]
    %v628 = vld [vmem:[%s626 + $0x8] sm:$0xff]
    %v629 = vld [vmem:[%s626 + $0x10] sm:$0xff]
    %v630 = vld [vmem:[%s626 + $0x18] sm:$0xff]
    %v631 = vld [vmem:[%s626 + $0x20] sm:$0xff]
    %v632 = vld [vmem:[%s626 + $0x28] sm:$0xff]
    %v633 = vld [vmem:[%s626 + $0x30] sm:$0xff]
    %v634 = vld [vmem:[%s626 + $0x38] sm:$0xff]
    %v635 = vld [vmem:[#allocation7] sm:$0xff]
    %v636 = vld [vmem:[#allocation7 + $0x8] sm:$0xff]
    %v637 = vld [vmem:[#allocation7 + $0x10] sm:$0xff]
    %v638 = vld [vmem:[#allocation7 + $0x18] sm:$0xff]
    %v639 = vld [vmem:[#allocation7 + $0x20] sm:$0xff]
    %v640 = vld [vmem:[#allocation7 + $0x28] sm:$0xff]
    %v641 = vld [vmem:[#allocation7 + $0x30] sm:$0xff]
    %v642 = vld [vmem:[#allocation7 + $0x38] sm:$0xff]
    %v643 = vld [vmem:[#allocation7 + $0x40] sm:$0xff]
    %v644 = vld [vmem:[#allocation7 + $0x48] sm:$0xff]
    %v645 = vld [vmem:[#allocation7 + $0x50] sm:$0xff]
    %v646 = vld [vmem:[#allocation7 + $0x58] sm:$0xff]
    %v647 = vld [vmem:[#allocation7 + $0x60] sm:$0xff]
    %v648 = vld [vmem:[#allocation7 + $0x68] sm:$0xff]
    %v649 = vld [vmem:[#allocation7 + $0x70] sm:$0xff]
    %v650 = vld [vmem:[#allocation7 + $0x78] sm:$0xff]
    %v651 = vld [vmem:[#allocation7 + $0x80] sm:$0xff]
    %v652 = vld [vmem:[#allocation7 + $0x88] sm:$0xff]
    %v653 = vld [vmem:[#allocation7 + $0x90] sm:$0xff]
    %v654 = vld [vmem:[#allocation7 + $0x98] sm:$0xff]
    %v655 = vld [vmem:[#allocation7 + $0xa0] sm:$0xff]
    %v656 = vld [vmem:[#allocation7 + $0xa8] sm:$0xff]
    %v657 = vld [vmem:[#allocation7 + $0xb0] sm:$0xff]
    %v658 = vld [vmem:[#allocation7 + $0xb8] sm:$0xff]
    %v659 = vld [vmem:[#allocation7 + $0xc0] sm:$0xff]
    %v660 = vld [vmem:[#allocation7 + $0xc8] sm:$0xff]
    %v661 = vld [vmem:[#allocation7 + $0xd0] sm:$0xff]
    %v662 = vld [vmem:[#allocation7 + $0xd8] sm:$0xff]
    %v663 = vld [vmem:[#allocation7 + $0xe0] sm:$0xff]
    %v664 = vld [vmem:[#allocation7 + $0xe8] sm:$0xff]
    %v665 = vld [vmem:[#allocation7 + $0xf0] sm:$0xff]
    %v666 = vld [vmem:[#allocation7 + $0xf8] sm:$0xff]
    %v699 = vunpack.c.l.b16 %v635
    %v700 = vunpack.c.h.b16 %v635
    %v701 = vunpack.c.l.b16 %v636
    %v702 = vunpack.c.h.b16 %v636
    %v703 = vunpack.c.l.b16 %v637
    %v704 = vunpack.c.h.b16 %v637
    %v705 = vunpack.c.l.b16 %v638
    %v706 = vunpack.c.h.b16 %v638
    %v707 = vunpack.c.l.b16 %v639
    %v708 = vunpack.c.h.b16 %v639
    %v709 = vunpack.c.l.b16 %v640
    %v710 = vunpack.c.h.b16 %v640
    %v711 = vunpack.c.l.b16 %v641
    %v712 = vunpack.c.h.b16 %v641
    %v713 = vunpack.c.l.b16 %v642
    %v714 = vunpack.c.h.b16 %v642
    %v715 = vunpack.c.l.b16 %v643
    %v716 = vunpack.c.h.b16 %v643
    %v717 = vunpack.c.l.b16 %v644
    %v718 = vunpack.c.h.b16 %v644
    %v719 = vunpack.c.l.b16 %v645
    %v720 = vunpack.c.h.b16 %v645
    %v721 = vunpack.c.l.b16 %v646
    %v722 = vunpack.c.h.b16 %v646
    %v723 = vunpack.c.l.b16 %v647
    %v724 = vunpack.c.h.b16 %v647
    %v725 = vunpack.c.l.b16 %v648
    %v726 = vunpack.c.h.b16 %v648
    %v727 = vunpack.c.l.b16 %v649
    %v728 = vunpack.c.h.b16 %v649
    %v729 = vunpack.c.l.b16 %v650
    %v730 = vunpack.c.h.b16 %v650
    %v731 = vunpack.c.l.b16 %v651
    %v732 = vunpack.c.h.b16 %v651
    %v733 = vunpack.c.l.b16 %v652
    %v734 = vunpack.c.h.b16 %v652
    %v735 = vunpack.c.l.b16 %v653
    %v736 = vunpack.c.h.b16 %v653
    %v737 = vunpack.c.l.b16 %v654
    %v738 = vunpack.c.h.b16 %v654
    %v739 = vunpack.c.l.b16 %v655
    %v740 = vunpack.c.h.b16 %v655
    %v741 = vunpack.c.l.b16 %v656
    %v742 = vunpack.c.h.b16 %v656
    %v743 = vunpack.c.l.b16 %v657
    %v744 = vunpack.c.h.b16 %v657
    %v745 = vunpack.c.l.b16 %v658
    %v746 = vunpack.c.h.b16 %v658
    %v747 = vunpack.c.l.b16 %v659
    %v748 = vunpack.c.h.b16 %v659
    %v749 = vunpack.c.l.b16 %v660
    %v750 = vunpack.c.h.b16 %v660
    %v751 = vunpack.c.l.b16 %v661
    %v752 = vunpack.c.h.b16 %v661
    %v753 = vunpack.c.l.b16 %v662
    %v754 = vunpack.c.h.b16 %v662
    %v755 = vunpack.c.l.b16 %v663
    %v756 = vunpack.c.h.b16 %v663
    %v757 = vunpack.c.l.b16 %v664
    %v758 = vunpack.c.h.b16 %v664
    %v759 = vunpack.c.l.b16 %v665
    %v760 = vunpack.c.h.b16 %v665
    %v761 = vunpack.c.l.b16 %v666
    %v762 = vunpack.c.h.b16 %v666
    %v763 = vpack.c.b16 %v703, %v699
    %v764 = vpack.c.b16 %v704, %v700
    %v765 = vpack.c.b16 %v705, %v701
    %v766 = vpack.c.b16 %v706, %v702
    %v767 = vpack.c.b16 %v711, %v707
    %v768 = vpack.c.b16 %v712, %v708
    %v769 = vpack.c.b16 %v713, %v709
    %v770 = vpack.c.b16 %v714, %v710
    %v771 = vpack.c.b16 %v719, %v715
    %v772 = vpack.c.b16 %v720, %v716
    %v773 = vpack.c.b16 %v721, %v717
    %v774 = vpack.c.b16 %v722, %v718
    %v775 = vpack.c.b16 %v727, %v723
    %v776 = vpack.c.b16 %v728, %v724
    %v777 = vpack.c.b16 %v729, %v725
    %v778 = vpack.c.b16 %v730, %v726
    %v779 = vpack.c.b16 %v735, %v731
    %v780 = vpack.c.b16 %v736, %v732
    %v781 = vpack.c.b16 %v737, %v733
    %v782 = vpack.c.b16 %v738, %v734
    %v783 = vpack.c.b16 %v743, %v739
    %v784 = vpack.c.b16 %v744, %v740
    %v785 = vpack.c.b16 %v745, %v741
    %v786 = vpack.c.b16 %v746, %v742
    %v787 = vpack.c.b16 %v751, %v747
    %v788 = vpack.c.b16 %v752, %v748
    %v789 = vpack.c.b16 %v753, %v749
    %v790 = vpack.c.b16 %v754, %v750
    %v791 = vpack.c.b16 %v759, %v755
    %v792 = vpack.c.b16 %v760, %v756
    %v793 = vpack.c.b16 %v761, %v757
    %v794 = vpack.c.b16 %v762, %v758
    %827 = vmatprep.subr.bf16.mxu0 %v792
    %828 = vmatpush1.bf16.msra.mxu0 %v791
    %829 = vmatprep.subr.bf16.mxu0 %v788
    %830 = vmatpush1.bf16.msra.mxu0 %v787
    %831 = vmatprep.subr.bf16.mxu0 %v784
    %832 = vmatpush1.bf16.msra.mxu0 %v783
    %833 = vmatprep.subr.bf16.mxu0 %v780
    %834 = vmatpush1.bf16.msra.mxu0 %v779
    %835 = vmatprep.subr.bf16.mxu0 %v776
    %836 = vmatpush1.bf16.msra.mxu0 %v775
    %837 = vmatprep.subr.bf16.mxu0 %v772
    %838 = vmatpush1.bf16.msra.mxu0 %v771
    %839 = vmatprep.subr.bf16.mxu0 %v768
    %840 = vmatpush1.bf16.msra.mxu0 %v767
    %841 = vmatprep.subr.bf16.mxu0 %v764
    %842 = vmatpush1.bf16.msra.mxu0 %v763
    %843 = vmatprep.subr.bf16.mxu0 0
    %844 = vmatpush2.bf16.msra.mxu0 0
    %845 = vmatprep.subr.bf16.mxu0 0
    %846 = vmatpush2.bf16.msra.mxu0 0
    %847 = vmatprep.subr.bf16.mxu0 0
    %848 = vmatpush2.bf16.msra.mxu0 0
    %849 = vmatprep.subr.bf16.mxu0 0
    %850 = vmatpush2.bf16.msra.mxu0 0
    %851 = vmatprep.subr.bf16.mxu0 0
    %852 = vmatpush2.bf16.msra.mxu0 0
    %853 = vmatprep.subr.bf16.mxu0 0
    %854 = vmatpush2.bf16.msra.mxu0 0
    %855 = vmatprep.subr.bf16.mxu0 0
    %856 = vmatpush2.bf16.msra.mxu0 0
    %857 = vmatprep.subr.bf16.mxu0 0
    %858 = vmatpush2.bf16.msra.mxu0 0
    %859 = vmatprep.mubr.bf16.mxu0 0
    %860 = vmatmul.mubr.bf16.gmra.mxu0 0
    %v861 = vpop.f32.mrf.mxu0
    %v862 = vadd.f32 0.0, %v861
    %v863 = vpop.f32.mrf.mxu0
    %v864 = vadd.f32 0.0, %v863
    %v865 = vpop.f32.mrf.mxu0
    %v866 = vadd.f32 0.0, %v865
    %v867 = vpop.f32.mrf.mxu0
    %v868 = vadd.f32 0.0, %v867
    %869 = vdwg.mxu0
    %870 = vmatprep.subr.bf16.mxu0 %v794
    %871 = vmatpush1.bf16.msra.mxu0 %v793
    %872 = vmatprep.subr.bf16.mxu0 %v790
    %873 = vmatpush1.bf16.msra.mxu0 %v789
    %874 = vmatprep.subr.bf16.mxu0 %v786
    %875 = vmatpush1.bf16.msra.mxu0 %v785
    %876 = vmatprep.subr.bf16.mxu0 %v782
    %877 = vmatpush1.bf16.msra.mxu0 %v781
    %878 = vmatprep.subr.bf16.mxu0 %v778
    %879 = vmatpush1.bf16.msra.mxu0 %v777
    %880 = vmatprep.subr.bf16.mxu0 %v774
    %881 = vmatpush1.bf16.msra.mxu0 %v773
    %882 = vmatprep.subr.bf16.mxu0 %v770
    %883 = vmatpush1.bf16.msra.mxu0 %v769
    %884 = vmatprep.subr.bf16.mxu0 %v766
    %885 = vmatpush1.bf16.msra.mxu0 %v765
    %886 = vmatprep.subr.bf16.mxu0 0
    %887 = vmatpush2.bf16.msra.mxu0 0
    %888 = vmatprep.subr.bf16.mxu0 0
    %889 = vmatpush2.bf16.msra.mxu0 0
    %890 = vmatprep.subr.bf16.mxu0 0
    %891 = vmatpush2.bf16.msra.mxu0 0
    %892 = vmatprep.subr.bf16.mxu0 0
    %893 = vmatpush2.bf16.msra.mxu0 0
    %894 = vmatprep.subr.bf16.mxu0 0
    %895 = vmatpush2.bf16.msra.mxu0 0
    %896 = vmatprep.subr.bf16.mxu0 0
    %897 = vmatpush2.bf16.msra.mxu0 0
    %898 = vmatprep.subr.bf16.mxu0 0
    %899 = vmatpush2.bf16.msra.mxu0 0
    %900 = vmatprep.subr.bf16.mxu0 0
    %901 = vmatpush2.bf16.msra.mxu0 0
    %902 = vmatprep.mubr.bf16.mxu0 0
    %903 = vmatmul.mubr.bf16.gmra.mxu0 0
    %v904 = vpop.f32.mrf.mxu0
    %v905 = vadd.f32 0.0, %v904
    %v906 = vpop.f32.mrf.mxu0
    %v907 = vadd.f32 0.0, %v906
    %v908 = vpop.f32.mrf.mxu0
    %v909 = vadd.f32 0.0, %v908
    %v910 = vpop.f32.mrf.mxu0
    %v911 = vadd.f32 0.0, %v910
    %912 = vdwg.mxu0
    %v913 = vadd.f32 %v627, %v862
    %v914 = vadd.f32 %v628, %v864
    %v915 = vadd.f32 %v629, %v905
    %v916 = vadd.f32 %v630, %v907
    %v917 = vadd.f32 %v631, %v866
    %v918 = vadd.f32 %v632, %v868
    %v919 = vadd.f32 %v633, %v909
    %v920 = vadd.f32 %v634, %v911
    %v921 = vxor.u32 %v913, 2147483648
    %v922 = vxor.u32 %v917, 2147483648
    %v923 = vmul.f32 %v921, 1.442695
    %v924 = vpow.pop %v923
    %v925 = vmul.f32 %v922, 1.442695
    %v926 = vpow.pop %v925
    %v927 = vadd.f32 %v924, 1.0
    %v928 = vadd.f32 %v926, 1.0
    %v929 = vrcp.pop %v927
    %v930 = vmul.f32 1.0, %v929
    %v931 = vrcp.pop %v928
    %v932 = vmul.f32 1.0, %v931
    %v933 = vxor.u32 %v914, 2147483648
    %v934 = vxor.u32 %v918, 2147483648
    %v935 = vmul.f32 %v933, 1.442695
    %v936 = vpow.pop %v935
    %v937 = vmul.f32 %v934, 1.442695
    %v938 = vpow.pop %v937
    %v939 = vadd.f32 %v936, 1.0
    %v940 = vadd.f32 %v938, 1.0
    %v941 = vrcp.pop %v939
    %v942 = vmul.f32 1.0, %v941
    %v943 = vrcp.pop %v940
    %v944 = vmul.f32 1.0, %v943
    %v945 = vtanh.pop %v915
    %v946 = vtanh.pop %v919
    %v947 = vxor.u32 %v916, 2147483648
    %v948 = vxor.u32 %v920, 2147483648
    %v949 = vmul.f32 %v947, 1.442695
    %v950 = vpow.pop %v949
    %v951 = vmul.f32 %v948, 1.442695
    %v952 = vpow.pop %v951
    %v953 = vadd.f32 %v950, 1.0
    %v954 = vadd.f32 %v952, 1.0
    %v955 = vrcp.pop %v953
    %v956 = vmul.f32 1.0, %v955
    %v957 = vrcp.pop %v954
    %v958 = vmul.f32 1.0, %v957
    %v959 = vmul.f32 %v942, 0.0
    %v960 = vmul.f32 %v944, 0.0
    %v961 = vmul.f32 %v930, %v945
    %v962 = vmul.f32 %v932, %v946
    %v963 = vadd.f32 %v959, %v961
    %v964 = vadd.f32 %v960, %v962
    %v965 = vtanh.pop %v963
    %v966 = vtanh.pop %v964
    %v967 = vmul.f32 %v956, %v965
    %v968 = vmul.f32 %v958, %v966
    %v969 = vpack.c.bf16 %v968, %v967
    %v971 = vunpack.c.l.b16 %v969
    %v972 = vunpack.c.h.b16 %v969
    %v973 = vpack.c.b16 %v971, %v971
    %v974 = vpack.c.b16 %v972, %v972
    %977 = vst [vmem:[#allocation3] sm:$0xf] %v973
    %978 = vst [vmem:[#allocation3 + $0x4] sm:$0xf] %v974
    %s979 = smul.u32 2, 4
    %s980 = smul.addr %s979, 8
    %s981 = scalar_lea.vmem [#allocation2], %s980
    %v982 = vld [vmem:[%s981] sm:$0xff]
    %v983 = vld [vmem:[%s981 + $0x8] sm:$0xff]
    %v984 = vld [vmem:[%s981 + $0x10] sm:$0xff]
    %v985 = vld [vmem:[%s981 + $0x18] sm:$0xff]
    %v986 = vld [vmem:[%s981 + $0x20] sm:$0xff]
    %v987 = vld [vmem:[%s981 + $0x28] sm:$0xff]
    %v988 = vld [vmem:[%s981 + $0x30] sm:$0xff]
    %v989 = vld [vmem:[%s981 + $0x38] sm:$0xff]
    %v990 = vld [vmem:[#allocation7] sm:$0xff]
    %v991 = vld [vmem:[#allocation7 + $0x8] sm:$0xff]
    %v992 = vld [vmem:[#allocation7 + $0x10] sm:$0xff]
    %v993 = vld [vmem:[#allocation7 + $0x18] sm:$0xff]
    %v994 = vld [vmem:[#allocation7 + $0x20] sm:$0xff]
    %v995 = vld [vmem:[#allocation7 + $0x28] sm:$0xff]
    %v996 = vld [vmem:[#allocation7 + $0x30] sm:$0xff]
    %v997 = vld [vmem:[#allocation7 + $0x38] sm:$0xff]
    %v998 = vld [vmem:[#allocation7 + $0x40] sm:$0xff]
    %v999 = vld [vmem:[#allocation7 + $0x48] sm:$0xff]
    %v1000 = vld [vmem:[#allocation7 + $0x50] sm:$0xff]
    %v1001 = vld [vmem:[#allocation7 + $0x58] sm:$0xff]
    %v1002 = vld [vmem:[#allocation7 + $0x60] sm:$0xff]
    %v1003 = vld [vmem:[#allocation7 + $0x68] sm:$0xff]
    %v1004 = vld [vmem:[#allocation7 + $0x70] sm:$0xff]
    %v1005 = vld [vmem:[#allocation7 + $0x78] sm:$0xff]
    %v1006 = vld [vmem:[#allocation7 + $0x80] sm:$0xff]
    %v1007 = vld [vmem:[#allocation7 + $0x88] sm:$0xff]
    %v1008 = vld [vmem:[#allocation7 + $0x90] sm:$0xff]
    %v1009 = vld [vmem:[#allocation7 + $0x98] sm:$0xff]
    %v1010 = vld [vmem:[#allocation7 + $0xa0] sm:$0xff]
    %v1011 = vld [vmem:[#allocation7 + $0xa8] sm:$0xff]
    %v1012 = vld [vmem:[#allocation7 + $0xb0] sm:$0xff]
    %v1013 = vld [vmem:[#allocation7 + $0xb8] sm:$0xff]
    %v1014 = vld [vmem:[#allocation7 + $0xc0] sm:$0xff]
    %v1015 = vld [vmem:[#allocation7 + $0xc8] sm:$0xff]
    %v1016 = vld [vmem:[#allocation7 + $0xd0] sm:$0xff]
    %v1017 = vld [vmem:[#allocation7 + $0xd8] sm:$0xff]
    %v1018 = vld [vmem:[#allocation7 + $0xe0] sm:$0xff]
    %v1019 = vld [vmem:[#allocation7 + $0xe8] sm:$0xff]
    %v1020 = vld [vmem:[#allocation7 + $0xf0] sm:$0xff]
    %v1021 = vld [vmem:[#allocation7 + $0xf8] sm:$0xff]
    %v1054 = vunpack.c.l.b16 %v990
    %v1055 = vunpack.c.h.b16 %v990
    %v1056 = vunpack.c.l.b16 %v991
    %v1057 = vunpack.c.h.b16 %v991
    %v1058 = vunpack.c.l.b16 %v992
    %v1059 = vunpack.c.h.b16 %v992
    %v1060 = vunpack.c.l.b16 %v993
    %v1061 = vunpack.c.h.b16 %v993
    %v1062 = vunpack.c.l.b16 %v994
    %v1063 = vunpack.c.h.b16 %v994
    %v1064 = vunpack.c.l.b16 %v995
    %v1065 = vunpack.c.h.b16 %v995
    %v1066 = vunpack.c.l.b16 %v996
    %v1067 = vunpack.c.h.b16 %v996
    %v1068 = vunpack.c.l.b16 %v997
    %v1069 = vunpack.c.h.b16 %v997
    %v1070 = vunpack.c.l.b16 %v998
    %v1071 = vunpack.c.h.b16 %v998
    %v1072 = vunpack.c.l.b16 %v999
    %v1073 = vunpack.c.h.b16 %v999
    %v1074 = vunpack.c.l.b16 %v1000
    %v1075 = vunpack.c.h.b16 %v1000
    %v1076 = vunpack.c.l.b16 %v1001
    %v1077 = vunpack.c.h.b16 %v1001
    %v1078 = vunpack.c.l.b16 %v1002
    %v1079 = vunpack.c.h.b16 %v1002
    %v1080 = vunpack.c.l.b16 %v1003
    %v1081 = vunpack.c.h.b16 %v1003
    %v1082 = vunpack.c.l.b16 %v1004
    %v1083 = vunpack.c.h.b16 %v1004
    %v1084 = vunpack.c.l.b16 %v1005
    %v1085 = vunpack.c.h.b16 %v1005
    %v1086 = vunpack.c.l.b16 %v1006
    %v1087 = vunpack.c.h.b16 %v1006
    %v1088 = vunpack.c.l.b16 %v1007
    %v1089 = vunpack.c.h.b16 %v1007
    %v1090 = vunpack.c.l.b16 %v1008
    %v1091 = vunpack.c.h.b16 %v1008
    %v1092 = vunpack.c.l.b16 %v1009
    %v1093 = vunpack.c.h.b16 %v1009
    %v1094 = vunpack.c.l.b16 %v1010
    %v1095 = vunpack.c.h.b16 %v1010
    %v1096 = vunpack.c.l.b16 %v1011
    %v1097 = vunpack.c.h.b16 %v1011
    %v1098 = vunpack.c.l.b16 %v1012
    %v1099 = vunpack.c.h.b16 %v1012
    %v1100 = vunpack.c.l.b16 %v1013
    %v1101 = vunpack.c.h.b16 %v1013
    %v1102 = vunpack.c.l.b16 %v1014
    %v1103 = vunpack.c.h.b16 %v1014
    %v1104 = vunpack.c.l.b16 %v1015
    %v1105 = vunpack.c.h.b16 %v1015
    %v1106 = vunpack.c.l.b16 %v1016
    %v1107 = vunpack.c.h.b16 %v1016
    %v1108 = vunpack.c.l.b16 %v1017
    %v1109 = vunpack.c.h.b16 %v1017
    %v1110 = vunpack.c.l.b16 %v1018
    %v1111 = vunpack.c.h.b16 %v1018
    %v1112 = vunpack.c.l.b16 %v1019
    %v1113 = vunpack.c.h.b16 %v1019
    %v1114 = vunpack.c.l.b16 %v1020
    %v1115 = vunpack.c.h.b16 %v1020
    %v1116 = vunpack.c.l.b16 %v1021
    %v1117 = vunpack.c.h.b16 %v1021
    %v1118 = vpack.c.b16 %v1058, %v1054
    %v1119 = vpack.c.b16 %v1059, %v1055
    %v1120 = vpack.c.b16 %v1060, %v1056
    %v1121 = vpack.c.b16 %v1061, %v1057
    %v1122 = vpack.c.b16 %v1066, %v1062
    %v1123 = vpack.c.b16 %v1067, %v1063
    %v1124 = vpack.c.b16 %v1068, %v1064
    %v1125 = vpack.c.b16 %v1069, %v1065
    %v1126 = vpack.c.b16 %v1074, %v1070
    %v1127 = vpack.c.b16 %v1075, %v1071
    %v1128 = vpack.c.b16 %v1076, %v1072
    %v1129 = vpack.c.b16 %v1077, %v1073
    %v1130 = vpack.c.b16 %v1082, %v1078
    %v1131 = vpack.c.b16 %v1083, %v1079
    %v1132 = vpack.c.b16 %v1084, %v1080
    %v1133 = vpack.c.b16 %v1085, %v1081
    %v1134 = vpack.c.b16 %v1090, %v1086
    %v1135 = vpack.c.b16 %v1091, %v1087
    %v1136 = vpack.c.b16 %v1092, %v1088
    %v1137 = vpack.c.b16 %v1093, %v1089
    %v1138 = vpack.c.b16 %v1098, %v1094
    %v1139 = vpack.c.b16 %v1099, %v1095
    %v1140 = vpack.c.b16 %v1100, %v1096
    %v1141 = vpack.c.b16 %v1101, %v1097
    %v1142 = vpack.c.b16 %v1106, %v1102
    %v1143 = vpack.c.b16 %v1107, %v1103
    %v1144 = vpack.c.b16 %v1108, %v1104
    %v1145 = vpack.c.b16 %v1109, %v1105
    %v1146 = vpack.c.b16 %v1114, %v1110
    %v1147 = vpack.c.b16 %v1115, %v1111
    %v1148 = vpack.c.b16 %v1116, %v1112
    %v1149 = vpack.c.b16 %v1117, %v1113
    %1182 = vmatprep.subr.bf16.mxu0 %v1147
    %1183 = vmatpush1.bf16.msra.mxu0 %v1146
    %1184 = vmatprep.subr.bf16.mxu0 %v1143
    %1185 = vmatpush1.bf16.msra.mxu0 %v1142
    %1186 = vmatprep.subr.bf16.mxu0 %v1139
    %1187 = vmatpush1.bf16.msra.mxu0 %v1138
    %1188 = vmatprep.subr.bf16.mxu0 %v1135
    %1189 = vmatpush1.bf16.msra.mxu0 %v1134
    %1190 = vmatprep.subr.bf16.mxu0 %v1131
    %1191 = vmatpush1.bf16.msra.mxu0 %v1130
    %1192 = vmatprep.subr.bf16.mxu0 %v1127
    %1193 = vmatpush1.bf16.msra.mxu0 %v1126
    %1194 = vmatprep.subr.bf16.mxu0 %v1123
    %1195 = vmatpush1.bf16.msra.mxu0 %v1122
    %1196 = vmatprep.subr.bf16.mxu0 %v1119
    %1197 = vmatpush1.bf16.msra.mxu0 %v1118
    %1198 = vmatprep.subr.bf16.mxu0 0
    %1199 = vmatpush2.bf16.msra.mxu0 0
    %1200 = vmatprep.subr.bf16.mxu0 0
    %1201 = vmatpush2.bf16.msra.mxu0 0
    %1202 = vmatprep.subr.bf16.mxu0 0
    %1203 = vmatpush2.bf16.msra.mxu0 0
    %1204 = vmatprep.subr.bf16.mxu0 0
    %1205 = vmatpush2.bf16.msra.mxu0 0
    %1206 = vmatprep.subr.bf16.mxu0 0
    %1207 = vmatpush2.bf16.msra.mxu0 0
    %1208 = vmatprep.subr.bf16.mxu0 0
    %1209 = vmatpush2.bf16.msra.mxu0 0
    %1210 = vmatprep.subr.bf16.mxu0 0
    %1211 = vmatpush2.bf16.msra.mxu0 0
    %1212 = vmatprep.subr.bf16.mxu0 0
    %1213 = vmatpush2.bf16.msra.mxu0 0
    %1214 = vmatprep.mubr.bf16.mxu0 0
    %1215 = vmatmul.mubr.bf16.gmra.mxu0 %v969
    %v1216 = vpop.f32.mrf.mxu0
    %v1217 = vadd.f32 0.0, %v1216
    %v1218 = vpop.f32.mrf.mxu0
    %v1219 = vadd.f32 0.0, %v1218
    %v1220 = vpop.f32.mrf.mxu0
    %v1221 = vadd.f32 0.0, %v1220
    %v1222 = vpop.f32.mrf.mxu0
    %v1223 = vadd.f32 0.0, %v1222
    %1224 = vdwg.mxu0
    %1225 = vmatprep.subr.bf16.mxu0 %v1149
    %1226 = vmatpush1.bf16.msra.mxu0 %v1148
    %1227 = vmatprep.subr.bf16.mxu0 %v1145
    %1228 = vmatpush1.bf16.msra.mxu0 %v1144
    %1229 = vmatprep.subr.bf16.mxu0 %v1141
    %1230 = vmatpush1.bf16.msra.mxu0 %v1140
    %1231 = vmatprep.subr.bf16.mxu0 %v1137
    %1232 = vmatpush1.bf16.msra.mxu0 %v1136
    %1233 = vmatprep.subr.bf16.mxu0 %v1133
    %1234 = vmatpush1.bf16.msra.mxu0 %v1132
    %1235 = vmatprep.subr.bf16.mxu0 %v1129
    %1236 = vmatpush1.bf16.msra.mxu0 %v1128
    %1237 = vmatprep.subr.bf16.mxu0 %v1125
    %1238 = vmatpush1.bf16.msra.mxu0 %v1124
    %1239 = vmatprep.subr.bf16.mxu0 %v1121
    %1240 = vmatpush1.bf16.msra.mxu0 %v1120
    %1241 = vmatprep.subr.bf16.mxu0 0
    %1242 = vmatpush2.bf16.msra.mxu0 0
    %1243 = vmatprep.subr.bf16.mxu0 0
    %1244 = vmatpush2.bf16.msra.mxu0 0
    %1245 = vmatprep.subr.bf16.mxu0 0
    %1246 = vmatpush2.bf16.msra.mxu0 0
    %1247 = vmatprep.subr.bf16.mxu0 0
    %1248 = vmatpush2.bf16.msra.mxu0 0
    %1249 = vmatprep.subr.bf16.mxu0 0
    %1250 = vmatpush2.bf16.msra.mxu0 0
    %1251 = vmatprep.subr.bf16.mxu0 0
    %1252 = vmatpush2.bf16.msra.mxu0 0
    %1253 = vmatprep.subr.bf16.mxu0 0
    %1254 = vmatpush2.bf16.msra.mxu0 0
    %1255 = vmatprep.subr.bf16.mxu0 0
    %1256 = vmatpush2.bf16.msra.mxu0 0
    %1257 = vmatprep.mubr.bf16.mxu0 0
    %1258 = vmatmul.mubr.bf16.gmra.mxu0 %v969
    %v1259 = vpop.f32.mrf.mxu0
    %v1260 = vadd.f32 0.0, %v1259
    %v1261 = vpop.f32.mrf.mxu0
    %v1262 = vadd.f32 0.0, %v1261
    %v1263 = vpop.f32.mrf.mxu0
    %v1264 = vadd.f32 0.0, %v1263
    %v1265 = vpop.f32.mrf.mxu0
    %v1266 = vadd.f32 0.0, %v1265
    %1267 = vdwg.mxu0
    %v1268 = vadd.f32 %v982, %v1217
    %v1269 = vadd.f32 %v983, %v1219
    %v1270 = vadd.f32 %v984, %v1260
    %v1271 = vadd.f32 %v985, %v1262
    %v1272 = vadd.f32 %v986, %v1221
    %v1273 = vadd.f32 %v987, %v1223
    %v1274 = vadd.f32 %v988, %v1264
    %v1275 = vadd.f32 %v989, %v1266
    %v1276 = vxor.u32 %v1268, 2147483648
    %v1277 = vxor.u32 %v1272, 2147483648
    %v1278 = vmul.f32 %v1276, 1.442695
    %v1279 = vpow.pop %v1278
    %v1280 = vmul.f32 %v1277, 1.442695
    %v1281 = vpow.pop %v1280
    %v1282 = vadd.f32 %v1279, 1.0
    %v1283 = vadd.f32 %v1281, 1.0
    %v1284 = vrcp.pop %v1282
    %v1285 = vmul.f32 1.0, %v1284
    %v1286 = vrcp.pop %v1283
    %v1287 = vmul.f32 1.0, %v1286
    %v1288 = vxor.u32 %v1269, 2147483648
    %v1289 = vxor.u32 %v1273, 2147483648
    %v1290 = vmul.f32 %v1288, 1.442695
    %v1291 = vpow.pop %v1290
    %v1292 = vmul.f32 %v1289, 1.442695
    %v1293 = vpow.pop %v1292
    %v1294 = vadd.f32 %v1291, 1.0
    %v1295 = vadd.f32 %v1293, 1.0
    %v1296 = vrcp.pop %v1294
    %v1297 = vmul.f32 1.0, %v1296
    %v1298 = vrcp.pop %v1295
    %v1299 = vmul.f32 1.0, %v1298
    %v1300 = vtanh.pop %v1270
    %v1301 = vtanh.pop %v1274
    %v1302 = vxor.u32 %v1271, 2147483648
    %v1303 = vxor.u32 %v1275, 2147483648
    %v1304 = vmul.f32 %v1302, 1.442695
    %v1305 = vpow.pop %v1304
    %v1306 = vmul.f32 %v1303, 1.442695
    %v1307 = vpow.pop %v1306
    %v1308 = vadd.f32 %v1305, 1.0
    %v1309 = vadd.f32 %v1307, 1.0
    %v1310 = vrcp.pop %v1308
    %v1311 = vmul.f32 1.0, %v1310
    %v1312 = vrcp.pop %v1309
    %v1313 = vmul.f32 1.0, %v1312
    %v1314 = vmul.f32 %v1297, %v963
    %v1315 = vmul.f32 %v1299, %v964
    %v1316 = vmul.f32 %v1285, %v1300
    %v1317 = vmul.f32 %v1287, %v1301
    %v1318 = vadd.f32 %v1314, %v1316
    %v1319 = vadd.f32 %v1315, %v1317
    %v1320 = vtanh.pop %v1318
    %v1321 = vtanh.pop %v1319
    %v1322 = vmul.f32 %v1311, %v1320
    %v1323 = vmul.f32 %v1313, %v1321
    %v1324 = vpack.c.bf16 %v1323, %v1322
    %v1326 = vunpack.c.l.b16 %v1324
    %v1327 = vunpack.c.h.b16 %v1324
    %v1328 = vpack.c.b16 %v1326, %v1326
    %v1329 = vpack.c.b16 %v1327, %v1327
    %s1332 = scalar_lea.vmem [#allocation3], 8
    %1333 = vst [vmem:[%s1332] sm:$0xf] %v1328
    %1334 = vst [vmem:[%s1332 + $0x4] sm:$0xf] %v1329
    %s1335 = smul.u32 4, 4
    %s1336 = smul.addr %s1335, 8
    %s1337 = scalar_lea.vmem [#allocation2], %s1336
    %v1338 = vld [vmem:[%s1337] sm:$0xff]
    %v1339 = vld [vmem:[%s1337 + $0x8] sm:$0xff]
    %v1340 = vld [vmem:[%s1337 + $0x10] sm:$0xff]
    %v1341 = vld [vmem:[%s1337 + $0x18] sm:$0xff]
    %v1342 = vld [vmem:[%s1337 + $0x20] sm:$0xff]
    %v1343 = vld [vmem:[%s1337 + $0x28] sm:$0xff]
    %v1344 = vld [vmem:[%s1337 + $0x30] sm:$0xff]
    %v1345 = vld [vmem:[%s1337 + $0x38] sm:$0xff]
    %v1346 = vld [vmem:[#allocation7] sm:$0xff]
    %v1347 = vld [vmem:[#allocation7 + $0x8] sm:$0xff]
    %v1348 = vld [vmem:[#allocation7 + $0x10] sm:$0xff]
    %v1349 = vld [vmem:[#allocation7 + $0x18] sm:$0xff]
    %v1350 = vld [vmem:[#allocation7 + $0x20] sm:$0xff]
    %v1351 = vld [vmem:[#allocation7 + $0x28] sm:$0xff]
    %v1352 = vld [vmem:[#allocation7 + $0x30] sm:$0xff]
    %v1353 = vld [vmem:[#allocation7 + $0x38] sm:$0xff]
    %v1354 = vld [vmem:[#allocation7 + $0x40] sm:$0xff]
    %v1355 = vld [vmem:[#allocation7 + $0x48] sm:$0xff]
    %v1356 = vld [vmem:[#allocation7 + $0x50] sm:$0xff]
    %v1357 = vld [vmem:[#allocation7 + $0x58] sm:$0xff]
    %v1358 = vld [vmem:[#allocation7 + $0x60] sm:$0xff]
    %v1359 = vld [vmem:[#allocation7 + $0x68] sm:$0xff]
    %v1360 = vld [vmem:[#allocation7 + $0x70] sm:$0xff]
    %v1361 = vld [vmem:[#allocation7 + $0x78] sm:$0xff]
    %v1362 = vld [vmem:[#allocation7 + $0x80] sm:$0xff]
    %v1363 = vld [vmem:[#allocation7 + $0x88] sm:$0xff]
    %v1364 = vld [vmem:[#allocation7 + $0x90] sm:$0xff]
    %v1365 = vld [vmem:[#allocation7 + $0x98] sm:$0xff]
    %v1366 = vld [vmem:[#allocation7 + $0xa0] sm:$0xff]
    %v1367 = vld [vmem:[#allocation7 + $0xa8] sm:$0xff]
    %v1368 = vld [vmem:[#allocation7 + $0xb0] sm:$0xff]
    %v1369 = vld [vmem:[#allocation7 + $0xb8] sm:$0xff]
    %v1370 = vld [vmem:[#allocation7 + $0xc0] sm:$0xff]
    %v1371 = vld [vmem:[#allocation7 + $0xc8] sm:$0xff]
    %v1372 = vld [vmem:[#allocation7 + $0xd0] sm:$0xff]
    %v1373 = vld [vmem:[#allocation7 + $0xd8] sm:$0xff]
    %v1374 = vld [vmem:[#allocation7 + $0xe0] sm:$0xff]
    %v1375 = vld [vmem:[#allocation7 + $0xe8] sm:$0xff]
    %v1376 = vld [vmem:[#allocation7 + $0xf0] sm:$0xff]
    %v1377 = vld [vmem:[#allocation7 + $0xf8] sm:$0xff]
    %v1410 = vunpack.c.l.b16 %v1346
    %v1411 = vunpack.c.h.b16 %v1346
    %v1412 = vunpack.c.l.b16 %v1347
    %v1413 = vunpack.c.h.b16 %v1347
    %v1414 = vunpack.c.l.b16 %v1348
    %v1415 = vunpack.c.h.b16 %v1348
    %v1416 = vunpack.c.l.b16 %v1349
    %v1417 = vunpack.c.h.b16 %v1349
    %v1418 = vunpack.c.l.b16 %v1350
    %v1419 = vunpack.c.h.b16 %v1350
    %v1420 = vunpack.c.l.b16 %v1351
    %v1421 = vunpack.c.h.b16 %v1351
    %v1422 = vunpack.c.l.b16 %v1352
    %v1423 = vunpack.c.h.b16 %v1352
    %v1424 = vunpack.c.l.b16 %v1353
    %v1425 = vunpack.c.h.b16 %v1353
    %v1426 = vunpack.c.l.b16 %v1354
    %v1427 = vunpack.c.h.b16 %v1354
    %v1428 = vunpack.c.l.b16 %v1355
    %v1429 = vunpack.c.h.b16 %v1355
    %v1430 = vunpack.c.l.b16 %v1356
    %v1431 = vunpack.c.h.b16 %v1356
    %v1432 = vunpack.c.l.b16 %v1357
    %v1433 = vunpack.c.h.b16 %v1357
    %v1434 = vunpack.c.l.b16 %v1358
    %v1435 = vunpack.c.h.b16 %v1358
    %v1436 = vunpack.c.l.b16 %v1359
    %v1437 = vunpack.c.h.b16 %v1359
    %v1438 = vunpack.c.l.b16 %v1360
    %v1439 = vunpack.c.h.b16 %v1360
    %v1440 = vunpack.c.l.b16 %v1361
    %v1441 = vunpack.c.h.b16 %v1361
    %v1442 = vunpack.c.l.b16 %v1362
    %v1443 = vunpack.c.h.b16 %v1362
    %v1444 = vunpack.c.l.b16 %v1363
    %v1445 = vunpack.c.h.b16 %v1363
    %v1446 = vunpack.c.l.b16 %v1364
    %v1447 = vunpack.c.h.b16 %v1364
    %v1448 = vunpack.c.l.b16 %v1365
    %v1449 = vunpack.c.h.b16 %v1365
    %v1450 = vunpack.c.l.b16 %v1366
    %v1451 = vunpack.c.h.b16 %v1366
    %v1452 = vunpack.c.l.b16 %v1367
    %v1453 = vunpack.c.h.b16 %v1367
    %v1454 = vunpack.c.l.b16 %v1368
    %v1455 = vunpack.c.h.b16 %v1368
    %v1456 = vunpack.c.l.b16 %v1369
    %v1457 = vunpack.c.h.b16 %v1369
    %v1458 = vunpack.c.l.b16 %v1370
    %v1459 = vunpack.c.h.b16 %v1370
    %v1460 = vunpack.c.l.b16 %v1371
    %v1461 = vunpack.c.h.b16 %v1371
    %v1462 = vunpack.c.l.b16 %v1372
    %v1463 = vunpack.c.h.b16 %v1372
    %v1464 = vunpack.c.l.b16 %v1373
    %v1465 = vunpack.c.h.b16 %v1373
    %v1466 = vunpack.c.l.b16 %v1374
    %v1467 = vunpack.c.h.b16 %v1374
    %v1468 = vunpack.c.l.b16 %v1375
    %v1469 = vunpack.c.h.b16 %v1375
    %v1470 = vunpack.c.l.b16 %v1376
    %v1471 = vunpack.c.h.b16 %v1376
    %v1472 = vunpack.c.l.b16 %v1377
    %v1473 = vunpack.c.h.b16 %v1377
    %v1474 = vpack.c.b16 %v1414, %v1410
    %v1475 = vpack.c.b16 %v1415, %v1411
    %v1476 = vpack.c.b16 %v1416, %v1412
    %v1477 = vpack.c.b16 %v1417, %v1413
    %v1478 = vpack.c.b16 %v1422, %v1418
    %v1479 = vpack.c.b16 %v1423, %v1419
    %v1480 = vpack.c.b16 %v1424, %v1420
    %v1481 = vpack.c.b16 %v1425, %v1421
    %v1482 = vpack.c.b16 %v1430, %v1426
    %v1483 = vpack.c.b16 %v1431, %v1427
    %v1484 = vpack.c.b16 %v1432, %v1428
    %v1485 = vpack.c.b16 %v1433, %v1429
    %v1486 = vpack.c.b16 %v1438, %v1434
    %v1487 = vpack.c.b16 %v1439, %v1435
    %v1488 = vpack.c.b16 %v1440, %v1436
    %v1489 = vpack.c.b16 %v1441, %v1437
    %v1490 = vpack.c.b16 %v1446, %v1442
    %v1491 = vpack.c.b16 %v1447, %v1443
    %v1492 = vpack.c.b16 %v1448, %v1444
    %v1493 = vpack.c.b16 %v1449, %v1445
    %v1494 = vpack.c.b16 %v1454, %v1450
    %v1495 = vpack.c.b16 %v1455, %v1451
    %v1496 = vpack.c.b16 %v1456, %v1452
    %v1497 = vpack.c.b16 %v1457, %v1453
    %v1498 = vpack.c.b16 %v1462, %v1458
    %v1499 = vpack.c.b16 %v1463, %v1459
    %v1500 = vpack.c.b16 %v1464, %v1460
    %v1501 = vpack.c.b16 %v1465, %v1461
    %v1502 = vpack.c.b16 %v1470, %v1466
    %v1503 = vpack.c.b16 %v1471, %v1467
    %v1504 = vpack.c.b16 %v1472, %v1468
    %v1505 = vpack.c.b16 %v1473, %v1469
    %1538 = vmatprep.subr.bf16.mxu0 %v1503
    %1539 = vmatpush1.bf16.msra.mxu0 %v1502
    %1540 = vmatprep.subr.bf16.mxu0 %v1499
    %1541 = vmatpush1.bf16.msra.mxu0 %v1498
    %1542 = vmatprep.subr.bf16.mxu0 %v1495
    %1543 = vmatpush1.bf16.msra.mxu0 %v1494
    %1544 = vmatprep.subr.bf16.mxu0 %v1491
    %1545 = vmatpush1.bf16.msra.mxu0 %v1490
    %1546 = vmatprep.subr.bf16.mxu0 %v1487
    %1547 = vmatpush1.bf16.msra.mxu0 %v1486
    %1548 = vmatprep.subr.bf16.mxu0 %v1483
    %1549 = vmatpush1.bf16.msra.mxu0 %v1482
    %1550 = vmatprep.subr.bf16.mxu0 %v1479
    %1551 = vmatpush1.bf16.msra.mxu0 %v1478
    %1552 = vmatprep.subr.bf16.mxu0 %v1475
    %1553 = vmatpush1.bf16.msra.mxu0 %v1474
    %1554 = vmatprep.subr.bf16.mxu0 0
    %1555 = vmatpush2.bf16.msra.mxu0 0
    %1556 = vmatprep.subr.bf16.mxu0 0
    %1557 = vmatpush2.bf16.msra.mxu0 0
    %1558 = vmatprep.subr.bf16.mxu0 0
    %1559 = vmatpush2.bf16.msra.mxu0 0
    %1560 = vmatprep.subr.bf16.mxu0 0
    %1561 = vmatpush2.bf16.msra.mxu0 0
    %1562 = vmatprep.subr.bf16.mxu0 0
    %1563 = vmatpush2.bf16.msra.mxu0 0
    %1564 = vmatprep.subr.bf16.mxu0 0
    %1565 = vmatpush2.bf16.msra.mxu0 0
    %1566 = vmatprep.subr.bf16.mxu0 0
    %1567 = vmatpush2.bf16.msra.mxu0 0
    %1568 = vmatprep.subr.bf16.mxu0 0
    %1569 = vmatpush2.bf16.msra.mxu0 0
    %1570 = vmatprep.mubr.bf16.mxu0 0
    %1571 = vmatmul.mubr.bf16.gmra.mxu0 %v1324
    %v1572 = vpop.f32.mrf.mxu0
    %v1573 = vadd.f32 0.0, %v1572
    %v1574 = vpop.f32.mrf.mxu0
    %v1575 = vadd.f32 0.0, %v1574
    %v1576 = vpop.f32.mrf.mxu0
    %v1577 = vadd.f32 0.0, %v1576
    %v1578 = vpop.f32.mrf.mxu0
    %v1579 = vadd.f32 0.0, %v1578
    %1580 = vdwg.mxu0
    %1581 = vmatprep.subr.bf16.mxu0 %v1505
    %1582 = vmatpush1.bf16.msra.mxu0 %v1504
    %1583 = vmatprep.subr.bf16.mxu0 %v1501
    %1584 = vmatpush1.bf16.msra.mxu0 %v1500
    %1585 = vmatprep.subr.bf16.mxu0 %v1497
    %1586 = vmatpush1.bf16.msra.mxu0 %v1496
    %1587 = vmatprep.subr.bf16.mxu0 %v1493
    %1588 = vmatpush1.bf16.msra.mxu0 %v1492
    %1589 = vmatprep.subr.bf16.mxu0 %v1489
    %1590 = vmatpush1.bf16.msra.mxu0 %v1488
    %1591 = vmatprep.subr.bf16.mxu0 %v1485
    %1592 = vmatpush1.bf16.msra.mxu0 %v1484
    %1593 = vmatprep.subr.bf16.mxu0 %v1481
    %1594 = vmatpush1.bf16.msra.mxu0 %v1480
    %1595 = vmatprep.subr.bf16.mxu0 %v1477
    %1596 = vmatpush1.bf16.msra.mxu0 %v1476
    %1597 = vmatprep.subr.bf16.mxu0 0
    %1598 = vmatpush2.bf16.msra.mxu0 0
    %1599 = vmatprep.subr.bf16.mxu0 0
    %1600 = vmatpush2.bf16.msra.mxu0 0
    %1601 = vmatprep.subr.bf16.mxu0 0
    %1602 = vmatpush2.bf16.msra.mxu0 0
    %1603 = vmatprep.subr.bf16.mxu0 0
    %1604 = vmatpush2.bf16.msra.mxu0 0
    %1605 = vmatprep.subr.bf16.mxu0 0
    %1606 = vmatpush2.bf16.msra.mxu0 0
    %1607 = vmatprep.subr.bf16.mxu0 0
    %1608 = vmatpush2.bf16.msra.mxu0 0
    %1609 = vmatprep.subr.bf16.mxu0 0
    %1610 = vmatpush2.bf16.msra.mxu0 0
    %1611 = vmatprep.subr.bf16.mxu0 0
    %1612 = vmatpush2.bf16.msra.mxu0 0
    %1613 = vmatprep.mubr.bf16.mxu0 0
    %1614 = vmatmul.mubr.bf16.gmra.mxu0 %v1324
    %v1615 = vpop.f32.mrf.mxu0
    %v1616 = vadd.f32 0.0, %v1615
    %v1617 = vpop.f32.mrf.mxu0
    %v1618 = vadd.f32 0.0, %v1617
    %v1619 = vpop.f32.mrf.mxu0
    %v1620 = vadd.f32 0.0, %v1619
    %v1621 = vpop.f32.mrf.mxu0
    %v1622 = vadd.f32 0.0, %v1621
    %1623 = vdwg.mxu0
    %v1624 = vadd.f32 %v1338, %v1573
    %v1625 = vadd.f32 %v1339, %v1575
    %v1626 = vadd.f32 %v1340, %v1616
    %v1627 = vadd.f32 %v1341, %v1618
    %v1628 = vadd.f32 %v1342, %v1577
    %v1629 = vadd.f32 %v1343, %v1579
    %v1630 = vadd.f32 %v1344, %v1620
    %v1631 = vadd.f32 %v1345, %v1622
    %v1632 = vxor.u32 %v1624, 2147483648
    %v1633 = vxor.u32 %v1628, 2147483648
    %v1634 = vmul.f32 %v1632, 1.442695
    %v1635 = vpow.pop %v1634
    %v1636 = vmul.f32 %v1633, 1.442695
    %v1637 = vpow.pop %v1636
    %v1638 = vadd.f32 %v1635, 1.0
    %v1639 = vadd.f32 %v1637, 1.0
    %v1640 = vrcp.pop %v1638
    %v1641 = vmul.f32 1.0, %v1640
    %v1642 = vrcp.pop %v1639
    %v1643 = vmul.f32 1.0, %v1642
    %v1644 = vxor.u32 %v1625, 2147483648
    %v1645 = vxor.u32 %v1629, 2147483648
    %v1646 = vmul.f32 %v1644, 1.442695
    %v1647 = vpow.pop %v1646
    %v1648 = vmul.f32 %v1645, 1.442695
    %v1649 = vpow.pop %v1648
    %v1650 = vadd.f32 %v1647, 1.0
    %v1651 = vadd.f32 %v1649, 1.0
    %v1652 = vrcp.pop %v1650
    %v1653 = vmul.f32 1.0, %v1652
    %v1654 = vrcp.pop %v1651
    %v1655 = vmul.f32 1.0, %v1654
    %v1656 = vtanh.pop %v1626
    %v1657 = vtanh.pop %v1630
    %v1658 = vxor.u32 %v1627, 2147483648
    %v1659 = vxor.u32 %v1631, 2147483648
    %v1660 = vmul.f32 %v1658, 1.442695
    %v1661 = vpow.pop %v1660
    %v1662 = vmul.f32 %v1659, 1.442695
    %v1663 = vpow.pop %v1662
    %v1664 = vadd.f32 %v1661, 1.0
    %v1665 = vadd.f32 %v1663, 1.0
    %v1666 = vrcp.pop %v1664
    %v1667 = vmul.f32 1.0, %v1666
    %v1668 = vrcp.pop %v1665
    %v1669 = vmul.f32 1.0, %v1668
    %v1670 = vmul.f32 %v1653, %v1318
    %v1671 = vmul.f32 %v1655, %v1319
    %v1672 = vmul.f32 %v1641, %v1656
    %v1673 = vmul.f32 %v1643, %v1657
    %v1674 = vadd.f32 %v1670, %v1672
    %v1675 = vadd.f32 %v1671, %v1673
    %v1676 = vtanh.pop %v1674
    %v1677 = vtanh.pop %v1675
    %v1678 = vmul.f32 %v1667, %v1676
    %v1679 = vmul.f32 %v1669, %v1677
    %v1680 = vpack.c.bf16 %v1679, %v1678
    %v1682 = vunpack.c.l.b16 %v1680
    %v1683 = vunpack.c.h.b16 %v1680
    %v1684 = vpack.c.b16 %v1682, %v1682
    %v1685 = vpack.c.b16 %v1683, %v1683
    %s1688 = scalar_lea.vmem [#allocation3], 16
    %1689 = vst [vmem:[%s1688] sm:$0xf] %v1684
    %1690 = vst [vmem:[%s1688 + $0x4] sm:$0xf] %v1685
    %s1691 = smul.u32 6, 4
    %s1692 = smul.addr %s1691, 8
    %s1693 = scalar_lea.vmem [#allocation2], %s1692
    %v1694 = vld [vmem:[%s1693] sm:$0xff]
    %v1695 = vld [vmem:[%s1693 + $0x8] sm:$0xff]
    %v1696 = vld [vmem:[%s1693 + $0x10] sm:$0xff]
    %v1697 = vld [vmem:[%s1693 + $0x18] sm:$0xff]
    %v1698 = vld [vmem:[%s1693 + $0x20] sm:$0xff]
    %v1699 = vld [vmem:[%s1693 + $0x28] sm:$0xff]
    %v1700 = vld [vmem:[%s1693 + $0x30] sm:$0xff]
    %v1701 = vld [vmem:[%s1693 + $0x38] sm:$0xff]
    %v1702 = vld [vmem:[#allocation7] sm:$0xff]
    %v1703 = vld [vmem:[#allocation7 + $0x8] sm:$0xff]
    %v1704 = vld [vmem:[#allocation7 + $0x10] sm:$0xff]
    %v1705 = vld [vmem:[#allocation7 + $0x18] sm:$0xff]
    %v1706 = vld [vmem:[#allocation7 + $0x20] sm:$0xff]
    %v1707 = vld [vmem:[#allocation7 + $0x28] sm:$0xff]
    %v1708 = vld [vmem:[#allocation7 + $0x30] sm:$0xff]
    %v1709 = vld [vmem:[#allocation7 + $0x38] sm:$0xff]
    %v1710 = vld [vmem:[#allocation7 + $0x40] sm:$0xff]
    %v1711 = vld [vmem:[#allocation7 + $0x48] sm:$0xff]
    %v1712 = vld [vmem:[#allocation7 + $0x50] sm:$0xff]
    %v1713 = vld [vmem:[#allocation7 + $0x58] sm:$0xff]
    %v1714 = vld [vmem:[#allocation7 + $0x60] sm:$0xff]
    %v1715 = vld [vmem:[#allocation7 + $0x68] sm:$0xff]
    %v1716 = vld [vmem:[#allocation7 + $0x70] sm:$0xff]
    %v1717 = vld [vmem:[#allocation7 + $0x78] sm:$0xff]
    %v1718 = vld [vmem:[#allocation7 + $0x80] sm:$0xff]
    %v1719 = vld [vmem:[#allocation7 + $0x88] sm:$0xff]
    %v1720 = vld [vmem:[#allocation7 + $0x90] sm:$0xff]
    %v1721 = vld [vmem:[#allocation7 + $0x98] sm:$0xff]
    %v1722 = vld [vmem:[#allocation7 + $0xa0] sm:$0xff]
    %v1723 = vld [vmem:[#allocation7 + $0xa8] sm:$0xff]
    %v1724 = vld [vmem:[#allocation7 + $0xb0] sm:$0xff]
    %v1725 = vld [vmem:[#allocation7 + $0xb8] sm:$0xff]
    %v1726 = vld [vmem:[#allocation7 + $0xc0] sm:$0xff]
    %v1727 = vld [vmem:[#allocation7 + $0xc8] sm:$0xff]
    %v1728 = vld [vmem:[#allocation7 + $0xd0] sm:$0xff]
    %v1729 = vld [vmem:[#allocation7 + $0xd8] sm:$0xff]
    %v1730 = vld [vmem:[#allocation7 + $0xe0] sm:$0xff]
    %v1731 = vld [vmem:[#allocation7 + $0xe8] sm:$0xff]
    %v1732 = vld [vmem:[#allocation7 + $0xf0] sm:$0xff]
    %v1733 = vld [vmem:[#allocation7 + $0xf8] sm:$0xff]
    %v1766 = vunpack.c.l.b16 %v1702
    %v1767 = vunpack.c.h.b16 %v1702
    %v1768 = vunpack.c.l.b16 %v1703
    %v1769 = vunpack.c.h.b16 %v1703
    %v1770 = vunpack.c.l.b16 %v1704
    %v1771 = vunpack.c.h.b16 %v1704
    %v1772 = vunpack.c.l.b16 %v1705
    %v1773 = vunpack.c.h.b16 %v1705
    %v1774 = vunpack.c.l.b16 %v1706
    %v1775 = vunpack.c.h.b16 %v1706
    %v1776 = vunpack.c.l.b16 %v1707
    %v1777 = vunpack.c.h.b16 %v1707
    %v1778 = vunpack.c.l.b16 %v1708
    %v1779 = vunpack.c.h.b16 %v1708
    %v1780 = vunpack.c.l.b16 %v1709
    %v1781 = vunpack.c.h.b16 %v1709
    %v1782 = vunpack.c.l.b16 %v1710
    %v1783 = vunpack.c.h.b16 %v1710
    %v1784 = vunpack.c.l.b16 %v1711
    %v1785 = vunpack.c.h.b16 %v1711
    %v1786 = vunpack.c.l.b16 %v1712
    %v1787 = vunpack.c.h.b16 %v1712
    %v1788 = vunpack.c.l.b16 %v1713
    %v1789 = vunpack.c.h.b16 %v1713
    %v1790 = vunpack.c.l.b16 %v1714
    %v1791 = vunpack.c.h.b16 %v1714
    %v1792 = vunpack.c.l.b16 %v1715
    %v1793 = vunpack.c.h.b16 %v1715
    %v1794 = vunpack.c.l.b16 %v1716
    %v1795 = vunpack.c.h.b16 %v1716
    %v1796 = vunpack.c.l.b16 %v1717
    %v1797 = vunpack.c.h.b16 %v1717
    %v1798 = vunpack.c.l.b16 %v1718
    %v1799 = vunpack.c.h.b16 %v1718
    %v1800 = vunpack.c.l.b16 %v1719
    %v1801 = vunpack.c.h.b16 %v1719
    %v1802 = vunpack.c.l.b16 %v1720
    %v1803 = vunpack.c.h.b16 %v1720
    %v1804 = vunpack.c.l.b16 %v1721
    %v1805 = vunpack.c.h.b16 %v1721
    %v1806 = vunpack.c.l.b16 %v1722
    %v1807 = vunpack.c.h.b16 %v1722
    %v1808 = vunpack.c.l.b16 %v1723
    %v1809 = vunpack.c.h.b16 %v1723
    %v1810 = vunpack.c.l.b16 %v1724
    %v1811 = vunpack.c.h.b16 %v1724
    %v1812 = vunpack.c.l.b16 %v1725
    %v1813 = vunpack.c.h.b16 %v1725
    %v1814 = vunpack.c.l.b16 %v1726
    %v1815 = vunpack.c.h.b16 %v1726
    %v1816 = vunpack.c.l.b16 %v1727
    %v1817 = vunpack.c.h.b16 %v1727
    %v1818 = vunpack.c.l.b16 %v1728
    %v1819 = vunpack.c.h.b16 %v1728
    %v1820 = vunpack.c.l.b16 %v1729
    %v1821 = vunpack.c.h.b16 %v1729
    %v1822 = vunpack.c.l.b16 %v1730
    %v1823 = vunpack.c.h.b16 %v1730
    %v1824 = vunpack.c.l.b16 %v1731
    %v1825 = vunpack.c.h.b16 %v1731
    %v1826 = vunpack.c.l.b16 %v1732
    %v1827 = vunpack.c.h.b16 %v1732
    %v1828 = vunpack.c.l.b16 %v1733
    %v1829 = vunpack.c.h.b16 %v1733
    %v1830 = vpack.c.b16 %v1770, %v1766
    %v1831 = vpack.c.b16 %v1771, %v1767
    %v1832 = vpack.c.b16 %v1772, %v1768
    %v1833 = vpack.c.b16 %v1773, %v1769
    %v1834 = vpack.c.b16 %v1778, %v1774
    %v1835 = vpack.c.b16 %v1779, %v1775
    %v1836 = vpack.c.b16 %v1780, %v1776
    %v1837 = vpack.c.b16 %v1781, %v1777
    %v1838 = vpack.c.b16 %v1786, %v1782
    %v1839 = vpack.c.b16 %v1787, %v1783
    %v1840 = vpack.c.b16 %v1788, %v1784
    %v1841 = vpack.c.b16 %v1789, %v1785
    %v1842 = vpack.c.b16 %v1794, %v1790
    %v1843 = vpack.c.b16 %v1795, %v1791
    %v1844 = vpack.c.b16 %v1796, %v1792
    %v1845 = vpack.c.b16 %v1797, %v1793
    %v1846 = vpack.c.b16 %v1802, %v1798
    %v1847 = vpack.c.b16 %v1803, %v1799
    %v1848 = vpack.c.b16 %v1804, %v1800
    %v1849 = vpack.c.b16 %v1805, %v1801
    %v1850 = vpack.c.b16 %v1810, %v1806
    %v1851 = vpack.c.b16 %v1811, %v1807
    %v1852 = vpack.c.b16 %v1812, %v1808
    %v1853 = vpack.c.b16 %v1813, %v1809
    %v1854 = vpack.c.b16 %v1818, %v1814
    %v1855 = vpack.c.b16 %v1819, %v1815
    %v1856 = vpack.c.b16 %v1820, %v1816
    %v1857 = vpack.c.b16 %v1821, %v1817
    %v1858 = vpack.c.b16 %v1826, %v1822
    %v1859 = vpack.c.b16 %v1827, %v1823
    %v1860 = vpack.c.b16 %v1828, %v1824
    %v1861 = vpack.c.b16 %v1829, %v1825
    %1894 = vmatprep.subr.bf16.mxu0 %v1859
    %1895 = vmatpush1.bf16.msra.mxu0 %v1858
    %1896 = vmatprep.subr.bf16.mxu0 %v1855
    %1897 = vmatpush1.bf16.msra.mxu0 %v1854
    %1898 = vmatprep.subr.bf16.mxu0 %v1851
    %1899 = vmatpush1.bf16.msra.mxu0 %v1850
    %1900 = vmatprep.subr.bf16.mxu0 %v1847
    %1901 = vmatpush1.bf16.msra.mxu0 %v1846
    %1902 = vmatprep.subr.bf16.mxu0 %v1843
    %1903 = vmatpush1.bf16.msra.mxu0 %v1842
    %1904 = vmatprep.subr.bf16.mxu0 %v1839
    %1905 = vmatpush1.bf16.msra.mxu0 %v1838
    %1906 = vmatprep.subr.bf16.mxu0 %v1835
    %1907 = vmatpush1.bf16.msra.mxu0 %v1834
    %1908 = vmatprep.subr.bf16.mxu0 %v1831
    %1909 = vmatpush1.bf16.msra.mxu0 %v1830
    %1910 = vmatprep.subr.bf16.mxu0 0
    %1911 = vmatpush2.bf16.msra.mxu0 0
    %1912 = vmatprep.subr.bf16.mxu0 0
    %1913 = vmatpush2.bf16.msra.mxu0 0
    %1914 = vmatprep.subr.bf16.mxu0 0
    %1915 = vmatpush2.bf16.msra.mxu0 0
    %1916 = vmatprep.subr.bf16.mxu0 0
    %1917 = vmatpush2.bf16.msra.mxu0 0
    %1918 = vmatprep.subr.bf16.mxu0 0
    %1919 = vmatpush2.bf16.msra.mxu0 0
    %1920 = vmatprep.subr.bf16.mxu0 0
    %1921 = vmatpush2.bf16.msra.mxu0 0
    %1922 = vmatprep.subr.bf16.mxu0 0
    %1923 = vmatpush2.bf16.msra.mxu0 0
    %1924 = vmatprep.subr.bf16.mxu0 0
    %1925 = vmatpush2.bf16.msra.mxu0 0
    %1926 = vmatprep.mubr.bf16.mxu0 0
    %1927 = vmatmul.mubr.bf16.gmra.mxu0 %v1680
    %v1928 = vpop.f32.mrf.mxu0
    %v1929 = vadd.f32 0.0, %v1928
    %v1930 = vpop.f32.mrf.mxu0
    %v1931 = vadd.f32 0.0, %v1930
    %v1932 = vpop.f32.mrf.mxu0
    %v1933 = vadd.f32 0.0, %v1932
    %v1934 = vpop.f32.mrf.mxu0
    %v1935 = vadd.f32 0.0, %v1934
    %1936 = vdwg.mxu0
    %1937 = vmatprep.subr.bf16.mxu0 %v1861
    %1938 = vmatpush1.bf16.msra.mxu0 %v1860
    %1939 = vmatprep.subr.bf16.mxu0 %v1857
    %1940 = vmatpush1.bf16.msra.mxu0 %v1856
    %1941 = vmatprep.subr.bf16.mxu0 %v1853
    %1942 = vmatpush1.bf16.msra.mxu0 %v1852
    %1943 = vmatprep.subr.bf16.mxu0 %v1849
    %1944 = vmatpush1.bf16.msra.mxu0 %v1848
    %1945 = vmatprep.subr.bf16.mxu0 %v1845
    %1946 = vmatpush1.bf16.msra.mxu0 %v1844
    %1947 = vmatprep.subr.bf16.mxu0 %v1841
    %1948 = vmatpush1.bf16.msra.mxu0 %v1840
    %1949 = vmatprep.subr.bf16.mxu0 %v1837
    %1950 = vmatpush1.bf16.msra.mxu0 %v1836
    %1951 = vmatprep.subr.bf16.mxu0 %v1833
    %1952 = vmatpush1.bf16.msra.mxu0 %v1832
    %1953 = vmatprep.subr.bf16.mxu0 0
    %1954 = vmatpush2.bf16.msra.mxu0 0
    %1955 = vmatprep.subr.bf16.mxu0 0
    %1956 = vmatpush2.bf16.msra.mxu0 0
    %1957 = vmatprep.subr.bf16.mxu0 0
    %1958 = vmatpush2.bf16.msra.mxu0 0
    %1959 = vmatprep.subr.bf16.mxu0 0
    %1960 = vmatpush2.bf16.msra.mxu0 0
    %1961 = vmatprep.subr.bf16.mxu0 0
    %1962 = vmatpush2.bf16.msra.mxu0 0
    %1963 = vmatprep.subr.bf16.mxu0 0
    %1964 = vmatpush2.bf16.msra.mxu0 0
    %1965 = vmatprep.subr.bf16.mxu0 0
    %1966 = vmatpush2.bf16.msra.mxu0 0
    %1967 = vmatprep.subr.bf16.mxu0 0
    %1968 = vmatpush2.bf16.msra.mxu0 0
    %1969 = vmatprep.mubr.bf16.mxu0 0
    %1970 = vmatmul.mubr.bf16.gmra.mxu0 %v1680
    %v1971 = vpop.f32.mrf.mxu0
    %v1972 = vadd.f32 0.0, %v1971
    %v1973 = vpop.f32.mrf.mxu0
    %v1974 = vadd.f32 0.0, %v1973
    %v1975 = vpop.f32.mrf.mxu0
    %v1976 = vadd.f32 0.0, %v1975
    %v1977 = vpop.f32.mrf.mxu0
    %v1978 = vadd.f32 0.0, %v1977
    %1979 = vdwg.mxu0
    %v1980 = vadd.f32 %v1694, %v1929
    %v1981 = vadd.f32 %v1695, %v1931
    %v1982 = vadd.f32 %v1696, %v1972
    %v1983 = vadd.f32 %v1697, %v1974
    %v1984 = vadd.f32 %v1698, %v1933
    %v1985 = vadd.f32 %v1699, %v1935
    %v1986 = vadd.f32 %v1700, %v1976
    %v1987 = vadd.f32 %v1701, %v1978
    %v1988 = vxor.u32 %v1980, 2147483648
    %v1989 = vxor.u32 %v1984, 2147483648
    %v1990 = vmul.f32 %v1988, 1.442695
    %v1991 = vpow.pop %v1990
    %v1992 = vmul.f32 %v1989, 1.442695
    %v1993 = vpow.pop %v1992
    %v1994 = vadd.f32 %v1991, 1.0
    %v1995 = vadd.f32 %v1993, 1.0
    %v1996 = vrcp.pop %v1994
    %v1997 = vmul.f32 1.0, %v1996
    %v1998 = vrcp.pop %v1995
    %v1999 = vmul.f32 1.0, %v1998
    %v2000 = vxor.u32 %v1981, 2147483648
    %v2001 = vxor.u32 %v1985, 2147483648
    %v2002 = vmul.f32 %v2000, 1.442695
    %v2003 = vpow.pop %v2002
    %v2004 = vmul.f32 %v2001, 1.442695
    %v2005 = vpow.pop %v2004
    %v2006 = vadd.f32 %v2003, 1.0
    %v2007 = vadd.f32 %v2005, 1.0
    %v2008 = vrcp.pop %v2006
    %v2009 = vmul.f32 1.0, %v2008
    %v2010 = vrcp.pop %v2007
    %v2011 = vmul.f32 1.0, %v2010
    %v2012 = vtanh.pop %v1982
    %v2013 = vtanh.pop %v1986
    %v2014 = vxor.u32 %v1983, 2147483648
    %v2015 = vxor.u32 %v1987, 2147483648
    %v2016 = vmul.f32 %v2014, 1.442695
    %v2017 = vpow.pop %v2016
    %v2018 = vmul.f32 %v2015, 1.442695
    %v2019 = vpow.pop %v2018
    %v2020 = vadd.f32 %v2017, 1.0
    %v2021 = vadd.f32 %v2019, 1.0
    %v2022 = vrcp.pop %v2020
    %v2023 = vmul.f32 1.0, %v2022
    %v2024 = vrcp.pop %v2021
    %v2025 = vmul.f32 1.0, %v2024
    %v2026 = vmul.f32 %v2009, %v1674
    %v2027 = vmul.f32 %v2011, %v1675
    %v2028 = vmul.f32 %v1997, %v2012
    %v2029 = vmul.f32 %v1999, %v2013
    %v2030 = vadd.f32 %v2026, %v2028
    %v2031 = vadd.f32 %v2027, %v2029
    %v2032 = vtanh.pop %v2030
    %v2033 = vtanh.pop %v2031
    %v2034 = vmul.f32 %v2023, %v2032
    %v2035 = vmul.f32 %v2025, %v2033
    %v2036 = vpack.c.bf16 %v2035, %v2034
    %v2038 = vunpack.c.l.b16 %v2036
    %v2039 = vunpack.c.h.b16 %v2036
    %v2040 = vpack.c.b16 %v2038, %v2038
    %v2041 = vpack.c.b16 %v2039, %v2039
    %s2044 = scalar_lea.vmem [#allocation3], 24
    %2045 = vst [vmem:[%s2044] sm:$0xf] %v2040
    %2046 = vst [vmem:[%s2044 + $0x4] sm:$0xf] %v2041
    %s2047 = smul.u32 8, 4
    %s2048 = smul.addr %s2047, 8
    %s2049 = scalar_lea.vmem [#allocation2], %s2048
    %v2050 = vld [vmem:[%s2049] sm:$0xff]
    %v2051 = vld [vmem:[%s2049 + $0x8] sm:$0xff]
    %v2052 = vld [vmem:[%s2049 + $0x10] sm:$0xff]
    %v2053 = vld [vmem:[%s2049 + $0x18] sm:$0xff]
    %v2054 = vld [vmem:[%s2049 + $0x20] sm:$0xff]
    %v2055 = vld [vmem:[%s2049 + $0x28] sm:$0xff]
    %v2056 = vld [vmem:[%s2049 + $0x30] sm:$0xff]
    %v2057 = vld [vmem:[%s2049 + $0x38] sm:$0xff]
    %v2058 = vld [vmem:[#allocation7] sm:$0xff]
    %v2059 = vld [vmem:[#allocation7 + $0x8] sm:$0xff]
    %v2060 = vld [vmem:[#allocation7 + $0x10] sm:$0xff]
    %v2061 = vld [vmem:[#allocation7 + $0x18] sm:$0xff]
    %v2062 = vld [vmem:[#allocation7 + $0x20] sm:$0xff]
    %v2063 = vld [vmem:[#allocation7 + $0x28] sm:$0xff]
    %v2064 = vld [vmem:[#allocation7 + $0x30] sm:$0xff]
    %v2065 = vld [vmem:[#allocation7 + $0x38] sm:$0xff]
    %v2066 = vld [vmem:[#allocation7 + $0x40] sm:$0xff]
    %v2067 = vld [vmem:[#allocation7 + $0x48] sm:$0xff]
    %v2068 = vld [vmem:[#allocation7 + $0x50] sm:$0xff]
    %v2069 = vld [vmem:[#allocation7 + $0x58] sm:$0xff]
    %v2070 = vld [vmem:[#allocation7 + $0x60] sm:$0xff]
    %v2071 = vld [vmem:[#allocation7 + $0x68] sm:$0xff]
    %v2072 = vld [vmem:[#allocation7 + $0x70] sm:$0xff]
    %v2073 = vld [vmem:[#allocation7 + $0x78] sm:$0xff]
    %v2074 = vld [vmem:[#allocation7 + $0x80] sm:$0xff]
    %v2075 = vld [vmem:[#allocation7 + $0x88] sm:$0xff]
    %v2076 = vld [vmem:[#allocation7 + $0x90] sm:$0xff]
    %v2077 = vld [vmem:[#allocation7 + $0x98] sm:$0xff]
    %v2078 = vld [vmem:[#allocation7 + $0xa0] sm:$0xff]
    %v2079 = vld [vmem:[#allocation7 + $0xa8] sm:$0xff]
    %v2080 = vld [vmem:[#allocation7 + $0xb0] sm:$0xff]
    %v2081 = vld [vmem:[#allocation7 + $0xb8] sm:$0xff]
    %v2082 = vld [vmem:[#allocation7 + $0xc0] sm:$0xff]
    %v2083 = vld [vmem:[#allocation7 + $0xc8] sm:$0xff]
    %v2084 = vld [vmem:[#allocation7 + $0xd0] sm:$0xff]
    %v2085 = vld [vmem:[#allocation7 + $0xd8] sm:$0xff]
    %v2086 = vld [vmem:[#allocation7 + $0xe0] sm:$0xff]
    %v2087 = vld [vmem:[#allocation7 + $0xe8] sm:$0xff]
    %v2088 = vld [vmem:[#allocation7 + $0xf0] sm:$0xff]
    %v2089 = vld [vmem:[#allocation7 + $0xf8] sm:$0xff]
    %v2122 = vunpack.c.l.b16 %v2058
    %v2123 = vunpack.c.h.b16 %v2058
    %v2124 = vunpack.c.l.b16 %v2059
    %v2125 = vunpack.c.h.b16 %v2059
    %v2126 = vunpack.c.l.b16 %v2060
    %v2127 = vunpack.c.h.b16 %v2060
    %v2128 = vunpack.c.l.b16 %v2061
    %v2129 = vunpack.c.h.b16 %v2061
    %v2130 = vunpack.c.l.b16 %v2062
    %v2131 = vunpack.c.h.b16 %v2062
    %v2132 = vunpack.c.l.b16 %v2063
    %v2133 = vunpack.c.h.b16 %v2063
    %v2134 = vunpack.c.l.b16 %v2064
    %v2135 = vunpack.c.h.b16 %v2064
    %v2136 = vunpack.c.l.b16 %v2065
    %v2137 = vunpack.c.h.b16 %v2065
    %v2138 = vunpack.c.l.b16 %v2066
    %v2139 = vunpack.c.h.b16 %v2066
    %v2140 = vunpack.c.l.b16 %v2067
    %v2141 = vunpack.c.h.b16 %v2067
    %v2142 = vunpack.c.l.b16 %v2068
    %v2143 = vunpack.c.h.b16 %v2068
    %v2144 = vunpack.c.l.b16 %v2069
    %v2145 = vunpack.c.h.b16 %v2069
    %v2146 = vunpack.c.l.b16 %v2070
    %v2147 = vunpack.c.h.b16 %v2070
    %v2148 = vunpack.c.l.b16 %v2071
    %v2149 = vunpack.c.h.b16 %v2071
    %v2150 = vunpack.c.l.b16 %v2072
    %v2151 = vunpack.c.h.b16 %v2072
    %v2152 = vunpack.c.l.b16 %v2073
    %v2153 = vunpack.c.h.b16 %v2073
    %v2154 = vunpack.c.l.b16 %v2074
    %v2155 = vunpack.c.h.b16 %v2074
    %v2156 = vunpack.c.l.b16 %v2075
    %v2157 = vunpack.c.h.b16 %v2075
    %v2158 = vunpack.c.l.b16 %v2076
    %v2159 = vunpack.c.h.b16 %v2076
    %v2160 = vunpack.c.l.b16 %v2077
    %v2161 = vunpack.c.h.b16 %v2077
    %v2162 = vunpack.c.l.b16 %v2078
    %v2163 = vunpack.c.h.b16 %v2078
    %v2164 = vunpack.c.l.b16 %v2079
    %v2165 = vunpack.c.h.b16 %v2079
    %v2166 = vunpack.c.l.b16 %v2080
    %v2167 = vunpack.c.h.b16 %v2080
    %v2168 = vunpack.c.l.b16 %v2081
    %v2169 = vunpack.c.h.b16 %v2081
    %v2170 = vunpack.c.l.b16 %v2082
    %v2171 = vunpack.c.h.b16 %v2082
    %v2172 = vunpack.c.l.b16 %v2083
    %v2173 = vunpack.c.h.b16 %v2083
    %v2174 = vunpack.c.l.b16 %v2084
    %v2175 = vunpack.c.h.b16 %v2084
    %v2176 = vunpack.c.l.b16 %v2085
    %v2177 = vunpack.c.h.b16 %v2085
    %v2178 = vunpack.c.l.b16 %v2086
    %v2179 = vunpack.c.h.b16 %v2086
    %v2180 = vunpack.c.l.b16 %v2087
    %v2181 = vunpack.c.h.b16 %v2087
    %v2182 = vunpack.c.l.b16 %v2088
    %v2183 = vunpack.c.h.b16 %v2088
    %v2184 = vunpack.c.l.b16 %v2089
    %v2185 = vunpack.c.h.b16 %v2089
    %v2186 = vpack.c.b16 %v2126, %v2122
    %v2187 = vpack.c.b16 %v2127, %v2123
    %v2188 = vpack.c.b16 %v2128, %v2124
    %v2189 = vpack.c.b16 %v2129, %v2125
    %v2190 = vpack.c.b16 %v2134, %v2130
    %v2191 = vpack.c.b16 %v2135, %v2131
    %v2192 = vpack.c.b16 %v2136, %v2132
    %v2193 = vpack.c.b16 %v2137, %v2133
    %v2194 = vpack.c.b16 %v2142, %v2138
    %v2195 = vpack.c.b16 %v2143, %v2139
    %v2196 = vpack.c.b16 %v2144, %v2140
    %v2197 = vpack.c.b16 %v2145, %v2141
    %v2198 = vpack.c.b16 %v2150, %v2146
    %v2199 = vpack.c.b16 %v2151, %v2147
    %v2200 = vpack.c.b16 %v2152, %v2148
    %v2201 = vpack.c.b16 %v2153, %v2149
    %v2202 = vpack.c.b16 %v2158, %v2154
    %v2203 = vpack.c.b16 %v2159, %v2155
    %v2204 = vpack.c.b16 %v2160, %v2156
    %v2205 = vpack.c.b16 %v2161, %v2157
    %v2206 = vpack.c.b16 %v2166, %v2162
    %v2207 = vpack.c.b16 %v2167, %v2163
    %v2208 = vpack.c.b16 %v2168, %v2164
    %v2209 = vpack.c.b16 %v2169, %v2165
    %v2210 = vpack.c.b16 %v2174, %v2170
    %v2211 = vpack.c.b16 %v2175, %v2171
    %v2212 = vpack.c.b16 %v2176, %v2172
    %v2213 = vpack.c.b16 %v2177, %v2173
    %v2214 = vpack.c.b16 %v2182, %v2178
    %v2215 = vpack.c.b16 %v2183, %v2179
    %v2216 = vpack.c.b16 %v2184, %v2180
    %v2217 = vpack.c.b16 %v2185, %v2181
    %2250 = vmatprep.subr.bf16.mxu0 %v2215
    %2251 = vmatpush1.bf16.msra.mxu0 %v2214
    %2252 = vmatprep.subr.bf16.mxu0 %v2211
    %2253 = vmatpush1.bf16.msra.mxu0 %v2210
    %2254 = vmatprep.subr.bf16.mxu0 %v2207
    %2255 = vmatpush1.bf16.msra.mxu0 %v2206
    %2256 = vmatprep.subr.bf16.mxu0 %v2203
    %2257 = vmatpush1.bf16.msra.mxu0 %v2202
    %2258 = vmatprep.subr.bf16.mxu0 %v2199
    %2259 = vmatpush1.bf16.msra.mxu0 %v2198
    %2260 = vmatprep.subr.bf16.mxu0 %v2195
    %2261 = vmatpush1.bf16.msra.mxu0 %v2194
    %2262 = vmatprep.subr.bf16.mxu0 %v2191
    %2263 = vmatpush1.bf16.msra.mxu0 %v2190
    %2264 = vmatprep.subr.bf16.mxu0 %v2187
    %2265 = vmatpush1.bf16.msra.mxu0 %v2186
    %2266 = vmatprep.subr.bf16.mxu0 0
    %2267 = vmatpush2.bf16.msra.mxu0 0
    %2268 = vmatprep.subr.bf16.mxu0 0
    %2269 = vmatpush2.bf16.msra.mxu0 0
    %2270 = vmatprep.subr.bf16.mxu0 0
    %2271 = vmatpush2.bf16.msra.mxu0 0
    %2272 = vmatprep.subr.bf16.mxu0 0
    %2273 = vmatpush2.bf16.msra.mxu0 0
    %2274 = vmatprep.subr.bf16.mxu0 0
    %2275 = vmatpush2.bf16.msra.mxu0 0
    %2276 = vmatprep.subr.bf16.mxu0 0
    %2277 = vmatpush2.bf16.msra.mxu0 0
    %2278 = vmatprep.subr.bf16.mxu0 0
    %2279 = vmatpush2.bf16.msra.mxu0 0
    %2280 = vmatprep.subr.bf16.mxu0 0
    %2281 = vmatpush2.bf16.msra.mxu0 0
    %2282 = vmatprep.mubr.bf16.mxu0 0
    %2283 = vmatmul.mubr.bf16.gmra.mxu0 %v2036
    %v2284 = vpop.f32.mrf.mxu0
    %v2285 = vadd.f32 0.0, %v2284
    %v2286 = vpop.f32.mrf.mxu0
    %v2287 = vadd.f32 0.0, %v2286
    %v2288 = vpop.f32.mrf.mxu0
    %v2289 = vadd.f32 0.0, %v2288
    %v2290 = vpop.f32.mrf.mxu0
    %v2291 = vadd.f32 0.0, %v2290
    %2292 = vdwg.mxu0
    %2293 = vmatprep.subr.bf16.mxu0 %v2217
    %2294 = vmatpush1.bf16.msra.mxu0 %v2216
    %2295 = vmatprep.subr.bf16.mxu0 %v2213
    %2296 = vmatpush1.bf16.msra.mxu0 %v2212
    %2297 = vmatprep.subr.bf16.mxu0 %v2209
    %2298 = vmatpush1.bf16.msra.mxu0 %v2208
    %2299 = vmatprep.subr.bf16.mxu0 %v2205
    %2300 = vmatpush1.bf16.msra.mxu0 %v2204
    %2301 = vmatprep.subr.bf16.mxu0 %v2201
    %2302 = vmatpush1.bf16.msra.mxu0 %v2200
    %2303 = vmatprep.subr.bf16.mxu0 %v2197
    %2304 = vmatpush1.bf16.msra.mxu0 %v2196
    %2305 = vmatprep.subr.bf16.mxu0 %v2193
    %2306 = vmatpush1.bf16.msra.mxu0 %v2192
    %2307 = vmatprep.subr.bf16.mxu0 %v2189
    %2308 = vmatpush1.bf16.msra.mxu0 %v2188
    %2309 = vmatprep.subr.bf16.mxu0 0
    %2310 = vmatpush2.bf16.msra.mxu0 0
    %2311 = vmatprep.subr.bf16.mxu0 0
    %2312 = vmatpush2.bf16.msra.mxu0 0
    %2313 = vmatprep.subr.bf16.mxu0 0
    %2314 = vmatpush2.bf16.msra.mxu0 0
    %2315 = vmatprep.subr.bf16.mxu0 0
    %2316 = vmatpush2.bf16.msra.mxu0 0
    %2317 = vmatprep.subr.bf16.mxu0 0
    %2318 = vmatpush2.bf16.msra.mxu0 0
    %2319 = vmatprep.subr.bf16.mxu0 0
    %2320 = vmatpush2.bf16.msra.mxu0 0
    %2321 = vmatprep.subr.bf16.mxu0 0
    %2322 = vmatpush2.bf16.msra.mxu0 0
    %2323 = vmatprep.subr.bf16.mxu0 0
    %2324 = vmatpush2.bf16.msra.mxu0 0
    %2325 = vmatprep.mubr.bf16.mxu0 0
    %2326 = vmatmul.mubr.bf16.gmra.mxu0 %v2036
    %v2327 = vpop.f32.mrf.mxu0
    %v2328 = vadd.f32 0.0, %v2327
    %v2329 = vpop.f32.mrf.mxu0
    %v2330 = vadd.f32 0.0, %v2329
    %v2331 = vpop.f32.mrf.mxu0
    %v2332 = vadd.f32 0.0, %v2331
    %v2333 = vpop.f32.mrf.mxu0
    %v2334 = vadd.f32 0.0, %v2333
    %2335 = vdwg.mxu0
    %v2336 = vadd.f32 %v2050, %v2285
    %v2337 = vadd.f32 %v2051, %v2287
    %v2338 = vadd.f32 %v2052, %v2328
    %v2339 = vadd.f32 %v2053, %v2330
    %v2340 = vadd.f32 %v2054, %v2289
    %v2341 = vadd.f32 %v2055, %v2291
    %v2342 = vadd.f32 %v2056, %v2332
    %v2343 = vadd.f32 %v2057, %v2334
    %v2344 = vxor.u32 %v2336, 2147483648
    %v2345 = vxor.u32 %v2340, 2147483648
    %v2346 = vmul.f32 %v2344, 1.442695
    %v2347 = vpow.pop %v2346
    %v2348 = vmul.f32 %v2345, 1.442695
    %v2349 = vpow.pop %v2348
    %v2350 = vadd.f32 %v2347, 1.0
    %v2351 = vadd.f32 %v2349, 1.0
    %v2352 = vrcp.pop %v2350
    %v2353 = vmul.f32 1.0, %v2352
    %v2354 = vrcp.pop %v2351
    %v2355 = vmul.f32 1.0, %v2354
    %v2356 = vxor.u32 %v2337, 2147483648
    %v2357 = vxor.u32 %v2341, 2147483648
    %v2358 = vmul.f32 %v2356, 1.442695
    %v2359 = vpow.pop %v2358
    %v2360 = vmul.f32 %v2357, 1.442695
    %v2361 = vpow.pop %v2360
    %v2362 = vadd.f32 %v2359, 1.0
    %v2363 = vadd.f32 %v2361, 1.0
    %v2364 = vrcp.pop %v2362
    %v2365 = vmul.f32 1.0, %v2364
    %v2366 = vrcp.pop %v2363
    %v2367 = vmul.f32 1.0, %v2366
    %v2368 = vtanh.pop %v2338
    %v2369 = vtanh.pop %v2342
    %v2370 = vxor.u32 %v2339, 2147483648
    %v2371 = vxor.u32 %v2343, 2147483648
    %v2372 = vmul.f32 %v2370, 1.442695
    %v2373 = vpow.pop %v2372
    %v2374 = vmul.f32 %v2371, 1.442695
    %v2375 = vpow.pop %v2374
    %v2376 = vadd.f32 %v2373, 1.0
    %v2377 = vadd.f32 %v2375, 1.0
    %v2378 = vrcp.pop %v2376
    %v2379 = vmul.f32 1.0, %v2378
    %v2380 = vrcp.pop %v2377
    %v2381 = vmul.f32 1.0, %v2380
    %v2382 = vmul.f32 %v2365, %v2030
    %v2383 = vmul.f32 %v2367, %v2031
    %v2384 = vmul.f32 %v2353, %v2368
    %v2385 = vmul.f32 %v2355, %v2369
    %v2386 = vadd.f32 %v2382, %v2384
    %v2387 = vadd.f32 %v2383, %v2385
    %v2388 = vtanh.pop %v2386
    %v2389 = vtanh.pop %v2387
    %v2390 = vmul.f32 %v2379, %v2388
    %v2391 = vmul.f32 %v2381, %v2389
    %v2392 = vpack.c.bf16 %v2391, %v2390
    %v2394 = vunpack.c.l.b16 %v2392
    %v2395 = vunpack.c.h.b16 %v2392
    %v2396 = vpack.c.b16 %v2394, %v2394
    %v2397 = vpack.c.b16 %v2395, %v2395
    %s2400 = scalar_lea.vmem [#allocation3], 32
    %2401 = vst [vmem:[%s2400] sm:$0xf] %v2396
    %2402 = vst [vmem:[%s2400 + $0x4] sm:$0xf] %v2397
    %s2403 = smul.u32 10, 4
    %s2404 = smul.addr %s2403, 8
    %s2405 = scalar_lea.vmem [#allocation2], %s2404
    %v2406 = vld [vmem:[%s2405] sm:$0xff]
    %v2407 = vld [vmem:[%s2405 + $0x8] sm:$0xff]
    %v2408 = vld [vmem:[%s2405 + $0x10] sm:$0xff]
    %v2409 = vld [vmem:[%s2405 + $0x18] sm:$0xff]
    %v2410 = vld [vmem:[%s2405 + $0x20] sm:$0xff]
    %v2411 = vld [vmem:[%s2405 + $0x28] sm:$0xff]
    %v2412 = vld [vmem:[%s2405 + $0x30] sm:$0xff]
    %v2413 = vld [vmem:[%s2405 + $0x38] sm:$0xff]
    %v2414 = vld [vmem:[#allocation7] sm:$0xff]
    %v2415 = vld [vmem:[#allocation7 + $0x8] sm:$0xff]
    %v2416 = vld [vmem:[#allocation7 + $0x10] sm:$0xff]
    %v2417 = vld [vmem:[#allocation7 + $0x18] sm:$0xff]
    %v2418 = vld [vmem:[#allocation7 + $0x20] sm:$0xff]
    %v2419 = vld [vmem:[#allocation7 + $0x28] sm:$0xff]
    %v2420 = vld [vmem:[#allocation7 + $0x30] sm:$0xff]
    %v2421 = vld [vmem:[#allocation7 + $0x38] sm:$0xff]
    %v2422 = vld [vmem:[#allocation7 + $0x40] sm:$0xff]
    %v2423 = vld [vmem:[#allocation7 + $0x48] sm:$0xff]
    %v2424 = vld [vmem:[#allocation7 + $0x50] sm:$0xff]
    %v2425 = vld [vmem:[#allocation7 + $0x58] sm:$0xff]
    %v2426 = vld [vmem:[#allocation7 + $0x60] sm:$0xff]
    %v2427 = vld [vmem:[#allocation7 + $0x68] sm:$0xff]
    %v2428 = vld [vmem:[#allocation7 + $0x70] sm:$0xff]
    %v2429 = vld [vmem:[#allocation7 + $0x78] sm:$0xff]
    %v2430 = vld [vmem:[#allocation7 + $0x80] sm:$0xff]
    %v2431 = vld [vmem:[#allocation7 + $0x88] sm:$0xff]
    %v2432 = vld [vmem:[#allocation7 + $0x90] sm:$0xff]
    %v2433 = vld [vmem:[#allocation7 + $0x98] sm:$0xff]
    %v2434 = vld [vmem:[#allocation7 + $0xa0] sm:$0xff]
    %v2435 = vld [vmem:[#allocation7 + $0xa8] sm:$0xff]
    %v2436 = vld [vmem:[#allocation7 + $0xb0] sm:$0xff]
    %v2437 = vld [vmem:[#allocation7 + $0xb8] sm:$0xff]
    %v2438 = vld [vmem:[#allocation7 + $0xc0] sm:$0xff]
    %v2439 = vld [vmem:[#allocation7 + $0xc8] sm:$0xff]
    %v2440 = vld [vmem:[#allocation7 + $0xd0] sm:$0xff]
    %v2441 = vld [vmem:[#allocation7 + $0xd8] sm:$0xff]
    %v2442 = vld [vmem:[#allocation7 + $0xe0] sm:$0xff]
    %v2443 = vld [vmem:[#allocation7 + $0xe8] sm:$0xff]
    %v2444 = vld [vmem:[#allocation7 + $0xf0] sm:$0xff]
    %v2445 = vld [vmem:[#allocation7 + $0xf8] sm:$0xff]
    %v2478 = vunpack.c.l.b16 %v2414
    %v2479 = vunpack.c.h.b16 %v2414
    %v2480 = vunpack.c.l.b16 %v2415
    %v2481 = vunpack.c.h.b16 %v2415
    %v2482 = vunpack.c.l.b16 %v2416
    %v2483 = vunpack.c.h.b16 %v2416
    %v2484 = vunpack.c.l.b16 %v2417
    %v2485 = vunpack.c.h.b16 %v2417
    %v2486 = vunpack.c.l.b16 %v2418
    %v2487 = vunpack.c.h.b16 %v2418
    %v2488 = vunpack.c.l.b16 %v2419
    %v2489 = vunpack.c.h.b16 %v2419
    %v2490 = vunpack.c.l.b16 %v2420
    %v2491 = vunpack.c.h.b16 %v2420
    %v2492 = vunpack.c.l.b16 %v2421
    %v2493 = vunpack.c.h.b16 %v2421
    %v2494 = vunpack.c.l.b16 %v2422
    %v2495 = vunpack.c.h.b16 %v2422
    %v2496 = vunpack.c.l.b16 %v2423
    %v2497 = vunpack.c.h.b16 %v2423
    %v2498 = vunpack.c.l.b16 %v2424
    %v2499 = vunpack.c.h.b16 %v2424
    %v2500 = vunpack.c.l.b16 %v2425
    %v2501 = vunpack.c.h.b16 %v2425
    %v2502 = vunpack.c.l.b16 %v2426
    %v2503 = vunpack.c.h.b16 %v2426
    %v2504 = vunpack.c.l.b16 %v2427
    %v2505 = vunpack.c.h.b16 %v2427
    %v2506 = vunpack.c.l.b16 %v2428
    %v2507 = vunpack.c.h.b16 %v2428
    %v2508 = vunpack.c.l.b16 %v2429
    %v2509 = vunpack.c.h.b16 %v2429
    %v2510 = vunpack.c.l.b16 %v2430
    %v2511 = vunpack.c.h.b16 %v2430
    %v2512 = vunpack.c.l.b16 %v2431
    %v2513 = vunpack.c.h.b16 %v2431
    %v2514 = vunpack.c.l.b16 %v2432
    %v2515 = vunpack.c.h.b16 %v2432
    %v2516 = vunpack.c.l.b16 %v2433
    %v2517 = vunpack.c.h.b16 %v2433
    %v2518 = vunpack.c.l.b16 %v2434
    %v2519 = vunpack.c.h.b16 %v2434
    %v2520 = vunpack.c.l.b16 %v2435
    %v2521 = vunpack.c.h.b16 %v2435
    %v2522 = vunpack.c.l.b16 %v2436
    %v2523 = vunpack.c.h.b16 %v2436
    %v2524 = vunpack.c.l.b16 %v2437
    %v2525 = vunpack.c.h.b16 %v2437
    %v2526 = vunpack.c.l.b16 %v2438
    %v2527 = vunpack.c.h.b16 %v2438
    %v2528 = vunpack.c.l.b16 %v2439
    %v2529 = vunpack.c.h.b16 %v2439
    %v2530 = vunpack.c.l.b16 %v2440
    %v2531 = vunpack.c.h.b16 %v2440
    %v2532 = vunpack.c.l.b16 %v2441
    %v2533 = vunpack.c.h.b16 %v2441
    %v2534 = vunpack.c.l.b16 %v2442
    %v2535 = vunpack.c.h.b16 %v2442
    %v2536 = vunpack.c.l.b16 %v2443
    %v2537 = vunpack.c.h.b16 %v2443
    %v2538 = vunpack.c.l.b16 %v2444
    %v2539 = vunpack.c.h.b16 %v2444
    %v2540 = vunpack.c.l.b16 %v2445
    %v2541 = vunpack.c.h.b16 %v2445
    %v2542 = vpack.c.b16 %v2482, %v2478
    %v2543 = vpack.c.b16 %v2483, %v2479
    %v2544 = vpack.c.b16 %v2484, %v2480
    %v2545 = vpack.c.b16 %v2485, %v2481
    %v2546 = vpack.c.b16 %v2490, %v2486
    %v2547 = vpack.c.b16 %v2491, %v2487
    %v2548 = vpack.c.b16 %v2492, %v2488
    %v2549 = vpack.c.b16 %v2493, %v2489
    %v2550 = vpack.c.b16 %v2498, %v2494
    %v2551 = vpack.c.b16 %v2499, %v2495
    %v2552 = vpack.c.b16 %v2500, %v2496
    %v2553 = vpack.c.b16 %v2501, %v2497
    %v2554 = vpack.c.b16 %v2506, %v2502
    %v2555 = vpack.c.b16 %v2507, %v2503
    %v2556 = vpack.c.b16 %v2508, %v2504
    %v2557 = vpack.c.b16 %v2509, %v2505
    %v2558 = vpack.c.b16 %v2514, %v2510
    %v2559 = vpack.c.b16 %v2515, %v2511
    %v2560 = vpack.c.b16 %v2516, %v2512
    %v2561 = vpack.c.b16 %v2517, %v2513
    %v2562 = vpack.c.b16 %v2522, %v2518
    %v2563 = vpack.c.b16 %v2523, %v2519
    %v2564 = vpack.c.b16 %v2524, %v2520
    %v2565 = vpack.c.b16 %v2525, %v2521
    %v2566 = vpack.c.b16 %v2530, %v2526
    %v2567 = vpack.c.b16 %v2531, %v2527
    %v2568 = vpack.c.b16 %v2532, %v2528
    %v2569 = vpack.c.b16 %v2533, %v2529
    %v2570 = vpack.c.b16 %v2538, %v2534
    %v2571 = vpack.c.b16 %v2539, %v2535
    %v2572 = vpack.c.b16 %v2540, %v2536
    %v2573 = vpack.c.b16 %v2541, %v2537
    %2606 = vmatprep.subr.bf16.mxu0 %v2571
    %2607 = vmatpush1.bf16.msra.mxu0 %v2570
    %2608 = vmatprep.subr.bf16.mxu0 %v2567
    %2609 = vmatpush1.bf16.msra.mxu0 %v2566
    %2610 = vmatprep.subr.bf16.mxu0 %v2563
    %2611 = vmatpush1.bf16.msra.mxu0 %v2562
    %2612 = vmatprep.subr.bf16.mxu0 %v2559
    %2613 = vmatpush1.bf16.msra.mxu0 %v2558
    %2614 = vmatprep.subr.bf16.mxu0 %v2555
    %2615 = vmatpush1.bf16.msra.mxu0 %v2554
    %2616 = vmatprep.subr.bf16.mxu0 %v2551
    %2617 = vmatpush1.bf16.msra.mxu0 %v2550
    %2618 = vmatprep.subr.bf16.mxu0 %v2547
    %2619 = vmatpush1.bf16.msra.mxu0 %v2546
    %2620 = vmatprep.subr.bf16.mxu0 %v2543
    %2621 = vmatpush1.bf16.msra.mxu0 %v2542
    %2622 = vmatprep.subr.bf16.mxu0 0
    %2623 = vmatpush2.bf16.msra.mxu0 0
    %2624 = vmatprep.subr.bf16.mxu0 0
    %2625 = vmatpush2.bf16.msra.mxu0 0
    %2626 = vmatprep.subr.bf16.mxu0 0
    %2627 = vmatpush2.bf16.msra.mxu0 0
    %2628 = vmatprep.subr.bf16.mxu0 0
    %2629 = vmatpush2.bf16.msra.mxu0 0
    %2630 = vmatprep.subr.bf16.mxu0 0
    %2631 = vmatpush2.bf16.msra.mxu0 0
    %2632 = vmatprep.subr.bf16.mxu0 0
    %2633 = vmatpush2.bf16.msra.mxu0 0
    %2634 = vmatprep.subr.bf16.mxu0 0
    %2635 = vmatpush2.bf16.msra.mxu0 0
    %2636 = vmatprep.subr.bf16.mxu0 0
    %2637 = vmatpush2.bf16.msra.mxu0 0
    %2638 = vmatprep.mubr.bf16.mxu0 0
    %2639 = vmatmul.mubr.bf16.gmra.mxu0 %v2392
    %v2640 = vpop.f32.mrf.mxu0
    %v2641 = vadd.f32 0.0, %v2640
    %v2642 = vpop.f32.mrf.mxu0
    %v2643 = vadd.f32 0.0, %v2642
    %v2644 = vpop.f32.mrf.mxu0
    %v2645 = vadd.f32 0.0, %v2644
    %v2646 = vpop.f32.mrf.mxu0
    %v2647 = vadd.f32 0.0, %v2646
    %2648 = vdwg.mxu0
    %2649 = vmatprep.subr.bf16.mxu0 %v2573
    %2650 = vmatpush1.bf16.msra.mxu0 %v2572
    %2651 = vmatprep.subr.bf16.mxu0 %v2569
    %2652 = vmatpush1.bf16.msra.mxu0 %v2568
    %2653 = vmatprep.subr.bf16.mxu0 %v2565
    %2654 = vmatpush1.bf16.msra.mxu0 %v2564
    %2655 = vmatprep.subr.bf16.mxu0 %v2561
    %2656 = vmatpush1.bf16.msra.mxu0 %v2560
    %2657 = vmatprep.subr.bf16.mxu0 %v2557
    %2658 = vmatpush1.bf16.msra.mxu0 %v2556
    %2659 = vmatprep.subr.bf16.mxu0 %v2553
    %2660 = vmatpush1.bf16.msra.mxu0 %v2552
    %2661 = vmatprep.subr.bf16.mxu0 %v2549
    %2662 = vmatpush1.bf16.msra.mxu0 %v2548
    %2663 = vmatprep.subr.bf16.mxu0 %v2545
    %2664 = vmatpush1.bf16.msra.mxu0 %v2544
    %2665 = vmatprep.subr.bf16.mxu0 0
    %2666 = vmatpush2.bf16.msra.mxu0 0
    %2667 = vmatprep.subr.bf16.mxu0 0
    %2668 = vmatpush2.bf16.msra.mxu0 0
    %2669 = vmatprep.subr.bf16.mxu0 0
    %2670 = vmatpush2.bf16.msra.mxu0 0
    %2671 = vmatprep.subr.bf16.mxu0 0
    %2672 = vmatpush2.bf16.msra.mxu0 0
    %2673 = vmatprep.subr.bf16.mxu0 0
    %2674 = vmatpush2.bf16.msra.mxu0 0
    %2675 = vmatprep.subr.bf16.mxu0 0
    %2676 = vmatpush2.bf16.msra.mxu0 0
    %2677 = vmatprep.subr.bf16.mxu0 0
    %2678 = vmatpush2.bf16.msra.mxu0 0
    %2679 = vmatprep.subr.bf16.mxu0 0
    %2680 = vmatpush2.bf16.msra.mxu0 0
    %2681 = vmatprep.mubr.bf16.mxu0 0
    %2682 = vmatmul.mubr.bf16.gmra.mxu0 %v2392
    %v2683 = vpop.f32.mrf.mxu0
    %v2684 = vadd.f32 0.0, %v2683
    %v2685 = vpop.f32.mrf.mxu0
    %v2686 = vadd.f32 0.0, %v2685
    %v2687 = vpop.f32.mrf.mxu0
    %v2688 = vadd.f32 0.0, %v2687
    %v2689 = vpop.f32.mrf.mxu0
    %v2690 = vadd.f32 0.0, %v2689
    %2691 = vdwg.mxu0
    %v2692 = vadd.f32 %v2406, %v2641
    %v2693 = vadd.f32 %v2407, %v2643
    %v2694 = vadd.f32 %v2408, %v2684
    %v2695 = vadd.f32 %v2409, %v2686
    %v2696 = vadd.f32 %v2410, %v2645
    %v2697 = vadd.f32 %v2411, %v2647
    %v2698 = vadd.f32 %v2412, %v2688
    %v2699 = vadd.f32 %v2413, %v2690
    %v2700 = vxor.u32 %v2692, 2147483648
    %v2701 = vxor.u32 %v2696, 2147483648
    %v2702 = vmul.f32 %v2700, 1.442695
    %v2703 = vpow.pop %v2702
    %v2704 = vmul.f32 %v2701, 1.442695
    %v2705 = vpow.pop %v2704
    %v2706 = vadd.f32 %v2703, 1.0
    %v2707 = vadd.f32 %v2705, 1.0
    %v2708 = vrcp.pop %v2706
    %v2709 = vmul.f32 1.0, %v2708
    %v2710 = vrcp.pop %v2707
    %v2711 = vmul.f32 1.0, %v2710
    %v2712 = vxor.u32 %v2693, 2147483648
    %v2713 = vxor.u32 %v2697, 2147483648
    %v2714 = vmul.f32 %v2712, 1.442695
    %v2715 = vpow.pop %v2714
    %v2716 = vmul.f32 %v2713, 1.442695
    %v2717 = vpow.pop %v2716
    %v2718 = vadd.f32 %v2715, 1.0
    %v2719 = vadd.f32 %v2717, 1.0
    %v2720 = vrcp.pop %v2718
    %v2721 = vmul.f32 1.0, %v2720
    %v2722 = vrcp.pop %v2719
    %v2723 = vmul.f32 1.0, %v2722
    %v2724 = vtanh.pop %v2694
    %v2725 = vtanh.pop %v2698
    %v2726 = vxor.u32 %v2695, 2147483648
    %v2727 = vxor.u32 %v2699, 2147483648
    %v2728 = vmul.f32 %v2726, 1.442695
    %v2729 = vpow.pop %v2728
    %v2730 = vmul.f32 %v2727, 1.442695
    %v2731 = vpow.pop %v2730
    %v2732 = vadd.f32 %v2729, 1.0
    %v2733 = vadd.f32 %v2731, 1.0
    %v2734 = vrcp.pop %v2732
    %v2735 = vmul.f32 1.0, %v2734
    %v2736 = vrcp.pop %v2733
    %v2737 = vmul.f32 1.0, %v2736
    %v2738 = vmul.f32 %v2721, %v2386
    %v2739 = vmul.f32 %v2723, %v2387
    %v2740 = vmul.f32 %v2709, %v2724
    %v2741 = vmul.f32 %v2711, %v2725
    %v2742 = vadd.f32 %v2738, %v2740
    %v2743 = vadd.f32 %v2739, %v2741
    %v2744 = vtanh.pop %v2742
    %v2745 = vtanh.pop %v2743
    %v2746 = vmul.f32 %v2735, %v2744
    %v2747 = vmul.f32 %v2737, %v2745
    %v2748 = vpack.c.bf16 %v2747, %v2746
    %v2750 = vunpack.c.l.b16 %v2748
    %v2751 = vunpack.c.h.b16 %v2748
    %v2752 = vpack.c.b16 %v2750, %v2750
    %v2753 = vpack.c.b16 %v2751, %v2751
    %s2756 = scalar_lea.vmem [#allocation3], 40
    %2757 = vst [vmem:[%s2756] sm:$0xf] %v2752
    %2758 = vst [vmem:[%s2756 + $0x4] sm:$0xf] %v2753
    %s2759 = smul.u32 12, 4
    %s2760 = smul.addr %s2759, 8
    %s2761 = scalar_lea.vmem [#allocation2], %s2760
    %v2762 = vld [vmem:[%s2761] sm:$0xff]
    %v2763 = vld [vmem:[%s2761 + $0x8] sm:$0xff]
    %v2764 = vld [vmem:[%s2761 + $0x10] sm:$0xff]
    %v2765 = vld [vmem:[%s2761 + $0x18] sm:$0xff]
    %v2766 = vld [vmem:[%s2761 + $0x20] sm:$0xff]
    %v2767 = vld [vmem:[%s2761 + $0x28] sm:$0xff]
    %v2768 = vld [vmem:[%s2761 + $0x30] sm:$0xff]
    %v2769 = vld [vmem:[%s2761 + $0x38] sm:$0xff]
    %v2770 = vld [vmem:[#allocation7] sm:$0xff]
    %v2771 = vld [vmem:[#allocation7 + $0x8] sm:$0xff]
    %v2772 = vld [vmem:[#allocation7 + $0x10] sm:$0xff]
    %v2773 = vld [vmem:[#allocation7 + $0x18] sm:$0xff]
    %v2774 = vld [vmem:[#allocation7 + $0x20] sm:$0xff]
    %v2775 = vld [vmem:[#allocation7 + $0x28] sm:$0xff]
    %v2776 = vld [vmem:[#allocation7 + $0x30] sm:$0xff]
    %v2777 = vld [vmem:[#allocation7 + $0x38] sm:$0xff]
    %v2778 = vld [vmem:[#allocation7 + $0x40] sm:$0xff]
    %v2779 = vld [vmem:[#allocation7 + $0x48] sm:$0xff]
    %v2780 = vld [vmem:[#allocation7 + $0x50] sm:$0xff]
    %v2781 = vld [vmem:[#allocation7 + $0x58] sm:$0xff]
    %v2782 = vld [vmem:[#allocation7 + $0x60] sm:$0xff]
    %v2783 = vld [vmem:[#allocation7 + $0x68] sm:$0xff]
    %v2784 = vld [vmem:[#allocation7 + $0x70] sm:$0xff]
    %v2785 = vld [vmem:[#allocation7 + $0x78] sm:$0xff]
    %v2786 = vld [vmem:[#allocation7 + $0x80] sm:$0xff]
    %v2787 = vld [vmem:[#allocation7 + $0x88] sm:$0xff]
    %v2788 = vld [vmem:[#allocation7 + $0x90] sm:$0xff]
    %v2789 = vld [vmem:[#allocation7 + $0x98] sm:$0xff]
    %v2790 = vld [vmem:[#allocation7 + $0xa0] sm:$0xff]
    %v2791 = vld [vmem:[#allocation7 + $0xa8] sm:$0xff]
    %v2792 = vld [vmem:[#allocation7 + $0xb0] sm:$0xff]
    %v2793 = vld [vmem:[#allocation7 + $0xb8] sm:$0xff]
    %v2794 = vld [vmem:[#allocation7 + $0xc0] sm:$0xff]
    %v2795 = vld [vmem:[#allocation7 + $0xc8] sm:$0xff]
    %v2796 = vld [vmem:[#allocation7 + $0xd0] sm:$0xff]
    %v2797 = vld [vmem:[#allocation7 + $0xd8] sm:$0xff]
    %v2798 = vld [vmem:[#allocation7 + $0xe0] sm:$0xff]
    %v2799 = vld [vmem:[#allocation7 + $0xe8] sm:$0xff]
    %v2800 = vld [vmem:[#allocation7 + $0xf0] sm:$0xff]
    %v2801 = vld [vmem:[#allocation7 + $0xf8] sm:$0xff]
    %v2834 = vunpack.c.l.b16 %v2770
    %v2835 = vunpack.c.h.b16 %v2770
    %v2836 = vunpack.c.l.b16 %v2771
    %v2837 = vunpack.c.h.b16 %v2771
    %v2838 = vunpack.c.l.b16 %v2772
    %v2839 = vunpack.c.h.b16 %v2772
    %v2840 = vunpack.c.l.b16 %v2773
    %v2841 = vunpack.c.h.b16 %v2773
    %v2842 = vunpack.c.l.b16 %v2774
    %v2843 = vunpack.c.h.b16 %v2774
    %v2844 = vunpack.c.l.b16 %v2775
    %v2845 = vunpack.c.h.b16 %v2775
    %v2846 = vunpack.c.l.b16 %v2776
    %v2847 = vunpack.c.h.b16 %v2776
    %v2848 = vunpack.c.l.b16 %v2777
    %v2849 = vunpack.c.h.b16 %v2777
    %v2850 = vunpack.c.l.b16 %v2778
    %v2851 = vunpack.c.h.b16 %v2778
    %v2852 = vunpack.c.l.b16 %v2779
    %v2853 = vunpack.c.h.b16 %v2779
    %v2854 = vunpack.c.l.b16 %v2780
    %v2855 = vunpack.c.h.b16 %v2780
    %v2856 = vunpack.c.l.b16 %v2781
    %v2857 = vunpack.c.h.b16 %v2781
    %v2858 = vunpack.c.l.b16 %v2782
    %v2859 = vunpack.c.h.b16 %v2782
    %v2860 = vunpack.c.l.b16 %v2783
    %v2861 = vunpack.c.h.b16 %v2783
    %v2862 = vunpack.c.l.b16 %v2784
    %v2863 = vunpack.c.h.b16 %v2784
    %v2864 = vunpack.c.l.b16 %v2785
    %v2865 = vunpack.c.h.b16 %v2785
    %v2866 = vunpack.c.l.b16 %v2786
    %v2867 = vunpack.c.h.b16 %v2786
    %v2868 = vunpack.c.l.b16 %v2787
    %v2869 = vunpack.c.h.b16 %v2787
    %v2870 = vunpack.c.l.b16 %v2788
    %v2871 = vunpack.c.h.b16 %v2788
    %v2872 = vunpack.c.l.b16 %v2789
    %v2873 = vunpack.c.h.b16 %v2789
    %v2874 = vunpack.c.l.b16 %v2790
    %v2875 = vunpack.c.h.b16 %v2790
    %v2876 = vunpack.c.l.b16 %v2791
    %v2877 = vunpack.c.h.b16 %v2791
    %v2878 = vunpack.c.l.b16 %v2792
    %v2879 = vunpack.c.h.b16 %v2792
    %v2880 = vunpack.c.l.b16 %v2793
    %v2881 = vunpack.c.h.b16 %v2793
    %v2882 = vunpack.c.l.b16 %v2794
    %v2883 = vunpack.c.h.b16 %v2794
    %v2884 = vunpack.c.l.b16 %v2795
    %v2885 = vunpack.c.h.b16 %v2795
    %v2886 = vunpack.c.l.b16 %v2796
    %v2887 = vunpack.c.h.b16 %v2796
    %v2888 = vunpack.c.l.b16 %v2797
    %v2889 = vunpack.c.h.b16 %v2797
    %v2890 = vunpack.c.l.b16 %v2798
    %v2891 = vunpack.c.h.b16 %v2798
    %v2892 = vunpack.c.l.b16 %v2799
    %v2893 = vunpack.c.h.b16 %v2799
    %v2894 = vunpack.c.l.b16 %v2800
    %v2895 = vunpack.c.h.b16 %v2800
    %v2896 = vunpack.c.l.b16 %v2801
    %v2897 = vunpack.c.h.b16 %v2801
    %v2898 = vpack.c.b16 %v2838, %v2834
    %v2899 = vpack.c.b16 %v2839, %v2835
    %v2900 = vpack.c.b16 %v2840, %v2836
    %v2901 = vpack.c.b16 %v2841, %v2837
    %v2902 = vpack.c.b16 %v2846, %v2842
    %v2903 = vpack.c.b16 %v2847, %v2843
    %v2904 = vpack.c.b16 %v2848, %v2844
    %v2905 = vpack.c.b16 %v2849, %v2845
    %v2906 = vpack.c.b16 %v2854, %v2850
    %v2907 = vpack.c.b16 %v2855, %v2851
    %v2908 = vpack.c.b16 %v2856, %v2852
    %v2909 = vpack.c.b16 %v2857, %v2853
    %v2910 = vpack.c.b16 %v2862, %v2858
    %v2911 = vpack.c.b16 %v2863, %v2859
    %v2912 = vpack.c.b16 %v2864, %v2860
    %v2913 = vpack.c.b16 %v2865, %v2861
    %v2914 = vpack.c.b16 %v2870, %v2866
    %v2915 = vpack.c.b16 %v2871, %v2867
    %v2916 = vpack.c.b16 %v2872, %v2868
    %v2917 = vpack.c.b16 %v2873, %v2869
    %v2918 = vpack.c.b16 %v2878, %v2874
    %v2919 = vpack.c.b16 %v2879, %v2875
    %v2920 = vpack.c.b16 %v2880, %v2876
    %v2921 = vpack.c.b16 %v2881, %v2877
    %v2922 = vpack.c.b16 %v2886, %v2882
    %v2923 = vpack.c.b16 %v2887, %v2883
    %v2924 = vpack.c.b16 %v2888, %v2884
    %v2925 = vpack.c.b16 %v2889, %v2885
    %v2926 = vpack.c.b16 %v2894, %v2890
    %v2927 = vpack.c.b16 %v2895, %v2891
    %v2928 = vpack.c.b16 %v2896, %v2892
    %v2929 = vpack.c.b16 %v2897, %v2893
    %2962 = vmatprep.subr.bf16.mxu0 %v2927
    %2963 = vmatpush1.bf16.msra.mxu0 %v2926
    %2964 = vmatprep.subr.bf16.mxu0 %v2923
    %2965 = vmatpush1.bf16.msra.mxu0 %v2922
    %2966 = vmatprep.subr.bf16.mxu0 %v2919
    %2967 = vmatpush1.bf16.msra.mxu0 %v2918
    %2968 = vmatprep.subr.bf16.mxu0 %v2915
    %2969 = vmatpush1.bf16.msra.mxu0 %v2914
    %2970 = vmatprep.subr.bf16.mxu0 %v2911
    %2971 = vmatpush1.bf16.msra.mxu0 %v2910
    %2972 = vmatprep.subr.bf16.mxu0 %v2907
    %2973 = vmatpush1.bf16.msra.mxu0 %v2906
    %2974 = vmatprep.subr.bf16.mxu0 %v2903
    %2975 = vmatpush1.bf16.msra.mxu0 %v2902
    %2976 = vmatprep.subr.bf16.mxu0 %v2899
    %2977 = vmatpush1.bf16.msra.mxu0 %v2898
    %2978 = vmatprep.subr.bf16.mxu0 0
    %2979 = vmatpush2.bf16.msra.mxu0 0
    %2980 = vmatprep.subr.bf16.mxu0 0
    %2981 = vmatpush2.bf16.msra.mxu0 0
    %2982 = vmatprep.subr.bf16.mxu0 0
    %2983 = vmatpush2.bf16.msra.mxu0 0
    %2984 = vmatprep.subr.bf16.mxu0 0
    %2985 = vmatpush2.bf16.msra.mxu0 0
    %2986 = vmatprep.subr.bf16.mxu0 0
    %2987 = vmatpush2.bf16.msra.mxu0 0
    %2988 = vmatprep.subr.bf16.mxu0 0
    %2989 = vmatpush2.bf16.msra.mxu0 0
    %2990 = vmatprep.subr.bf16.mxu0 0
    %2991 = vmatpush2.bf16.msra.mxu0 0
    %2992 = vmatprep.subr.bf16.mxu0 0
    %2993 = vmatpush2.bf16.msra.mxu0 0
    %2994 = vmatprep.mubr.bf16.mxu0 0
    %2995 = vmatmul.mubr.bf16.gmra.mxu0 %v2748
    %v2996 = vpop.f32.mrf.mxu0
    %v2997 = vadd.f32 0.0, %v2996
    %v2998 = vpop.f32.mrf.mxu0
    %v2999 = vadd.f32 0.0, %v2998
    %v3000 = vpop.f32.mrf.mxu0
    %v3001 = vadd.f32 0.0, %v3000
    %v3002 = vpop.f32.mrf.mxu0
    %v3003 = vadd.f32 0.0, %v3002
    %3004 = vdwg.mxu0
    %3005 = vmatprep.subr.bf16.mxu0 %v2929
    %3006 = vmatpush1.bf16.msra.mxu0 %v2928
    %3007 = vmatprep.subr.bf16.mxu0 %v2925
    %3008 = vmatpush1.bf16.msra.mxu0 %v2924
    %3009 = vmatprep.subr.bf16.mxu0 %v2921
    %3010 = vmatpush1.bf16.msra.mxu0 %v2920
    %3011 = vmatprep.subr.bf16.mxu0 %v2917
    %3012 = vmatpush1.bf16.msra.mxu0 %v2916
    %3013 = vmatprep.subr.bf16.mxu0 %v2913
    %3014 = vmatpush1.bf16.msra.mxu0 %v2912
    %3015 = vmatprep.subr.bf16.mxu0 %v2909
    %3016 = vmatpush1.bf16.msra.mxu0 %v2908
    %3017 = vmatprep.subr.bf16.mxu0 %v2905
    %3018 = vmatpush1.bf16.msra.mxu0 %v2904
    %3019 = vmatprep.subr.bf16.mxu0 %v2901
    %3020 = vmatpush1.bf16.msra.mxu0 %v2900
    %3021 = vmatprep.subr.bf16.mxu0 0
    %3022 = vmatpush2.bf16.msra.mxu0 0
    %3023 = vmatprep.subr.bf16.mxu0 0
    %3024 = vmatpush2.bf16.msra.mxu0 0
    %3025 = vmatprep.subr.bf16.mxu0 0
    %3026 = vmatpush2.bf16.msra.mxu0 0
    %3027 = vmatprep.subr.bf16.mxu0 0
    %3028 = vmatpush2.bf16.msra.mxu0 0
    %3029 = vmatprep.subr.bf16.mxu0 0
    %3030 = vmatpush2.bf16.msra.mxu0 0
    %3031 = vmatprep.subr.bf16.mxu0 0
    %3032 = vmatpush2.bf16.msra.mxu0 0
    %3033 = vmatprep.subr.bf16.mxu0 0
    %3034 = vmatpush2.bf16.msra.mxu0 0
    %3035 = vmatprep.subr.bf16.mxu0 0
    %3036 = vmatpush2.bf16.msra.mxu0 0
    %3037 = vmatprep.mubr.bf16.mxu0 0
    %3038 = vmatmul.mubr.bf16.gmra.mxu0 %v2748
    %v3039 = vpop.f32.mrf.mxu0
    %v3040 = vadd.f32 0.0, %v3039
    %v3041 = vpop.f32.mrf.mxu0
    %v3042 = vadd.f32 0.0, %v3041
    %v3043 = vpop.f32.mrf.mxu0
    %v3044 = vadd.f32 0.0, %v3043
    %v3045 = vpop.f32.mrf.mxu0
    %v3046 = vadd.f32 0.0, %v3045
    %3047 = vdwg.mxu0
    %v3048 = vadd.f32 %v2762, %v2997
    %v3049 = vadd.f32 %v2763, %v2999
    %v3050 = vadd.f32 %v2764, %v3040
    %v3051 = vadd.f32 %v2765, %v3042
    %v3052 = vadd.f32 %v2766, %v3001
    %v3053 = vadd.f32 %v2767, %v3003
    %v3054 = vadd.f32 %v2768, %v3044
    %v3055 = vadd.f32 %v2769, %v3046
    %v3056 = vxor.u32 %v3048, 2147483648
    %v3057 = vxor.u32 %v3052, 2147483648
    %v3058 = vmul.f32 %v3056, 1.442695
    %v3059 = vpow.pop %v3058
    %v3060 = vmul.f32 %v3057, 1.442695
    %v3061 = vpow.pop %v3060
    %v3062 = vadd.f32 %v3059, 1.0
    %v3063 = vadd.f32 %v3061, 1.0
    %v3064 = vrcp.pop %v3062
    %v3065 = vmul.f32 1.0, %v3064
    %v3066 = vrcp.pop %v3063
    %v3067 = vmul.f32 1.0, %v3066
    %v3068 = vxor.u32 %v3049, 2147483648
    %v3069 = vxor.u32 %v3053, 2147483648
    %v3070 = vmul.f32 %v3068, 1.442695
    %v3071 = vpow.pop %v3070
    %v3072 = vmul.f32 %v3069, 1.442695
    %v3073 = vpow.pop %v3072
    %v3074 = vadd.f32 %v3071, 1.0
    %v3075 = vadd.f32 %v3073, 1.0
    %v3076 = vrcp.pop %v3074
    %v3077 = vmul.f32 1.0, %v3076
    %v3078 = vrcp.pop %v3075
    %v3079 = vmul.f32 1.0, %v3078
    %v3080 = vtanh.pop %v3050
    %v3081 = vtanh.pop %v3054
    %v3082 = vxor.u32 %v3051, 2147483648
    %v3083 = vxor.u32 %v3055, 2147483648
    %v3084 = vmul.f32 %v3082, 1.442695
    %v3085 = vpow.pop %v3084
    %v3086 = vmul.f32 %v3083, 1.442695
    %v3087 = vpow.pop %v3086
    %v3088 = vadd.f32 %v3085, 1.0
    %v3089 = vadd.f32 %v3087, 1.0
    %v3090 = vrcp.pop %v3088
    %v3091 = vmul.f32 1.0, %v3090
    %v3092 = vrcp.pop %v3089
    %v3093 = vmul.f32 1.0, %v3092
    %v3094 = vmul.f32 %v3077, %v2742
    %v3095 = vmul.f32 %v3079, %v2743
    %v3096 = vmul.f32 %v3065, %v3080
    %v3097 = vmul.f32 %v3067, %v3081
    %v3098 = vadd.f32 %v3094, %v3096
    %v3099 = vadd.f32 %v3095, %v3097
    %v3100 = vtanh.pop %v3098
    %v3101 = vtanh.pop %v3099
    %v3102 = vmul.f32 %v3091, %v3100
    %v3103 = vmul.f32 %v3093, %v3101
    %v3104 = vpack.c.bf16 %v3103, %v3102
    %v3106 = vunpack.c.l.b16 %v3104
    %v3107 = vunpack.c.h.b16 %v3104
    %v3108 = vpack.c.b16 %v3106, %v3106
    %v3109 = vpack.c.b16 %v3107, %v3107
    %s3112 = scalar_lea.vmem [#allocation3], 48
    %3113 = vst [vmem:[%s3112] sm:$0xf] %v3108
    %3114 = vst [vmem:[%s3112 + $0x4] sm:$0xf] %v3109
    %v3115 = vld [vmem:[#allocation3] sm:$0xf]
    %v3116 = vld [vmem:[#allocation3 + $0x4] sm:$0xf]
    %v3117 = vld [vmem:[#allocation3 + $0x8] sm:$0xf]
    %v3118 = vld [vmem:[#allocation3 + $0xc] sm:$0xf]
    %v3119 = vld [vmem:[#allocation3 + $0x10] sm:$0xf]
    %v3120 = vld [vmem:[#allocation3 + $0x14] sm:$0xf]
    %v3121 = vld [vmem:[#allocation3 + $0x18] sm:$0xf]
    %v3122 = vld [vmem:[#allocation3 + $0x1c] sm:$0xf]
    %v3123 = vld [vmem:[#allocation3 + $0x20] sm:$0xf]
    %v3124 = vld [vmem:[#allocation3 + $0x24] sm:$0xf]
    %v3125 = vld [vmem:[#allocation3 + $0x28] sm:$0xf]
    %v3126 = vld [vmem:[#allocation3 + $0x2c] sm:$0xf]
    %v3127 = vld [vmem:[#allocation3 + $0x30] sm:$0xf]
    %v3128 = vld [vmem:[#allocation3 + $0x34] sm:$0xf]
    %v3129 = vld [vmem:[#allocation9] sm:$0xff]
    %v3130 = vld [vmem:[#allocation9 + $0x8] sm:$0xff]
    %v3131 = vld [vmem:[#allocation9 + $0x10] sm:$0xff]
    %v3132 = vld [vmem:[#allocation9 + $0x18] sm:$0xff]
    %v3133 = vld [vmem:[#allocation9 + $0x20] sm:$0xff]
    %v3134 = vld [vmem:[#allocation9 + $0x28] sm:$0xff]
    %v3135 = vld [vmem:[#allocation9 + $0x30] sm:$0xff]
    %v3136 = vld [vmem:[#allocation9 + $0x38] sm:$0xff]
    %v3137 = vld [vmem:[#allocation9 + $0x40] sm:$0xff]
    %v3138 = vld [vmem:[#allocation9 + $0x48] sm:$0xff]
    %v3139 = vld [vmem:[#allocation9 + $0x50] sm:$0xff]
    %v3140 = vld [vmem:[#allocation9 + $0x58] sm:$0xff]
    %v3141 = vld [vmem:[#allocation9 + $0x60] sm:$0xff]
    %v3142 = vld [vmem:[#allocation9 + $0x68] sm:$0xff]
    %v3143 = vld [vmem:[#allocation9 + $0x70] sm:$0xff]
    %v3144 = vld [vmem:[#allocation9 + $0x78] sm:$0xff]
    %v3145 = vld [vmem:[#allocation9 + $0x80] sm:$0xff]
    %v3146 = vld [vmem:[#allocation9 + $0x88] sm:$0xff]
    %v3147 = vld [vmem:[#allocation9 + $0x90] sm:$0xff]
    %v3148 = vld [vmem:[#allocation9 + $0x98] sm:$0xff]
    %v3149 = vld [vmem:[#allocation9 + $0xa0] sm:$0xff]
    %v3150 = vld [vmem:[#allocation9 + $0xa8] sm:$0xff]
    %v3151 = vld [vmem:[#allocation9 + $0xb0] sm:$0xff]
    %v3152 = vld [vmem:[#allocation9 + $0xb8] sm:$0xff]
    %v3153 = vld [vmem:[#allocation9 + $0xc0] sm:$0xff]
    %v3154 = vld [vmem:[#allocation9 + $0xc8] sm:$0xff]
    %v3155 = vld [vmem:[#allocation9 + $0xd0] sm:$0xff]
    %v3156 = vld [vmem:[#allocation9 + $0xd8] sm:$0xff]
    %v3157 = vld [vmem:[#allocation9 + $0xe0] sm:$0xff]
    %v3158 = vld [vmem:[#allocation9 + $0xe8] sm:$0xff]
    %v3159 = vld [vmem:[#allocation9 + $0xf0] sm:$0xff]
    %v3160 = vld [vmem:[#allocation9 + $0xf8] sm:$0xff]
    %v3161 = vld [vmem:[%s8] sm:$0xf]
    %v3163 = vlaneseq
    %v3164 = vshrl.u32 %v3163, 7
    %v3165 = vsub.s32 0, %v3164
    %v3166 = vrot.slane %v3161, %v3165
    %v3167 = vlaneseq
    %v3168 = vshrl.u32 %v3167, 7
    %v3169 = vsub.s32 1, %v3168
    %v3170 = vrot.slane %v3161, %v3169
    %v3171 = vlaneseq
    %v3172 = vshrl.u32 %v3171, 7
    %v3173 = vsub.s32 2, %v3172
    %v3174 = vrot.slane %v3161, %v3173
    %v3175 = vlaneseq
    %v3176 = vshrl.u32 %v3175, 7
    %v3177 = vsub.s32 3, %v3176
    %v3178 = vrot.slane %v3161, %v3177
    %v3197 = vunpack.c.l.b16 %v3115
    %v3198 = vunpack.c.l.b16 %v3116
    %v3199 = vunpack.c.l.b16 %v3117
    %v3200 = vunpack.c.l.b16 %v3118
    %v3201 = vunpack.c.l.b16 %v3119
    %v3202 = vunpack.c.l.b16 %v3120
    %v3203 = vunpack.c.l.b16 %v3121
    %v3204 = vunpack.c.l.b16 %v3122
    %v3205 = vunpack.c.l.b16 %v3123
    %v3206 = vunpack.c.l.b16 %v3124
    %v3207 = vunpack.c.l.b16 %v3125
    %v3208 = vunpack.c.l.b16 %v3126
    %v3209 = vunpack.c.l.b16 %v3127
    %v3210 = vunpack.c.l.b16 %v3128
    %v3211 = vpack.c.b16 %v3198, %v3197
    %v3212 = vpack.c.b16 %v3200, %v3199
    %v3213 = vpack.c.b16 %v3202, %v3201
    %v3214 = vpack.c.b16 %v3204, %v3203
    %v3215 = vpack.c.b16 %v3206, %v3205
    %v3216 = vpack.c.b16 %v3208, %v3207
    %v3217 = vpack.c.b16 %v3210, %v3209
    %v3257 = vunpack.c.l.b16 %v3129
    %v3258 = vunpack.c.h.b16 %v3129
    %v3259 = vunpack.c.l.b16 %v3130
    %v3260 = vunpack.c.h.b16 %v3130
    %v3261 = vunpack.c.l.b16 %v3131
    %v3262 = vunpack.c.h.b16 %v3131
    %v3263 = vunpack.c.l.b16 %v3132
    %v3264 = vunpack.c.h.b16 %v3132
    %v3265 = vunpack.c.l.b16 %v3133
    %v3266 = vunpack.c.h.b16 %v3133
    %v3267 = vunpack.c.l.b16 %v3134
    %v3268 = vunpack.c.h.b16 %v3134
    %v3269 = vunpack.c.l.b16 %v3135
    %v3270 = vunpack.c.h.b16 %v3135
    %v3271 = vunpack.c.l.b16 %v3136
    %v3272 = vunpack.c.h.b16 %v3136
    %v3273 = vunpack.c.l.b16 %v3137
    %v3274 = vunpack.c.h.b16 %v3137
    %v3275 = vunpack.c.l.b16 %v3138
    %v3276 = vunpack.c.h.b16 %v3138
    %v3277 = vunpack.c.l.b16 %v3139
    %v3278 = vunpack.c.h.b16 %v3139
    %v3279 = vunpack.c.l.b16 %v3140
    %v3280 = vunpack.c.h.b16 %v3140
    %v3281 = vunpack.c.l.b16 %v3141
    %v3282 = vunpack.c.h.b16 %v3141
    %v3283 = vunpack.c.l.b16 %v3142
    %v3284 = vunpack.c.h.b16 %v3142
    %v3285 = vunpack.c.l.b16 %v3143
    %v3286 = vunpack.c.h.b16 %v3143
    %v3287 = vunpack.c.l.b16 %v3144
    %v3288 = vunpack.c.h.b16 %v3144
    %v3289 = vunpack.c.l.b16 %v3145
    %v3290 = vunpack.c.h.b16 %v3145
    %v3291 = vunpack.c.l.b16 %v3146
    %v3292 = vunpack.c.h.b16 %v3146
    %v3293 = vunpack.c.l.b16 %v3147
    %v3294 = vunpack.c.h.b16 %v3147
    %v3295 = vunpack.c.l.b16 %v3148
    %v3296 = vunpack.c.h.b16 %v3148
    %v3297 = vunpack.c.l.b16 %v3149
    %v3298 = vunpack.c.h.b16 %v3149
    %v3299 = vunpack.c.l.b16 %v3150
    %v3300 = vunpack.c.h.b16 %v3150
    %v3301 = vunpack.c.l.b16 %v3151
    %v3302 = vunpack.c.h.b16 %v3151
    %v3303 = vunpack.c.l.b16 %v3152
    %v3304 = vunpack.c.h.b16 %v3152
    %v3305 = vunpack.c.l.b16 %v3153
    %v3306 = vunpack.c.h.b16 %v3153
    %v3307 = vunpack.c.l.b16 %v3154
    %v3308 = vunpack.c.h.b16 %v3154
    %v3309 = vunpack.c.l.b16 %v3155
    %v3310 = vunpack.c.h.b16 %v3155
    %v3311 = vunpack.c.l.b16 %v3156
    %v3312 = vunpack.c.h.b16 %v3156
    %v3313 = vunpack.c.l.b16 %v3157
    %v3314 = vunpack.c.h.b16 %v3157
    %v3315 = vunpack.c.l.b16 %v3158
    %v3316 = vunpack.c.h.b16 %v3158
    %v3317 = vunpack.c.l.b16 %v3159
    %v3318 = vunpack.c.h.b16 %v3159
    %v3319 = vunpack.c.l.b16 %v3160
    %v3320 = vunpack.c.h.b16 %v3160
    %v3321 = vpack.c.b16 %v3261, %v3257
    %v3322 = vpack.c.b16 %v3262, %v3258
    %v3323 = vpack.c.b16 %v3263, %v3259
    %v3324 = vpack.c.b16 %v3264, %v3260
    %v3325 = vpack.c.b16 %v3269, %v3265
    %v3326 = vpack.c.b16 %v3270, %v3266
    %v3327 = vpack.c.b16 %v3271, %v3267
    %v3328 = vpack.c.b16 %v3272, %v3268
    %v3329 = vpack.c.b16 %v3277, %v3273
    %v3330 = vpack.c.b16 %v3278, %v3274
    %v3331 = vpack.c.b16 %v3279, %v3275
    %v3332 = vpack.c.b16 %v3280, %v3276
    %v3333 = vpack.c.b16 %v3285, %v3281
    %v3334 = vpack.c.b16 %v3286, %v3282
    %v3335 = vpack.c.b16 %v3287, %v3283
    %v3336 = vpack.c.b16 %v3288, %v3284
    %v3337 = vpack.c.b16 %v3293, %v3289
    %v3338 = vpack.c.b16 %v3294, %v3290
    %v3339 = vpack.c.b16 %v3295, %v3291
    %v3340 = vpack.c.b16 %v3296, %v3292
    %v3341 = vpack.c.b16 %v3301, %v3297
    %v3342 = vpack.c.b16 %v3302, %v3298
    %v3343 = vpack.c.b16 %v3303, %v3299
    %v3344 = vpack.c.b16 %v3304, %v3300
    %v3345 = vpack.c.b16 %v3309, %v3305
    %v3346 = vpack.c.b16 %v3310, %v3306
    %v3347 = vpack.c.b16 %v3311, %v3307
    %v3348 = vpack.c.b16 %v3312, %v3308
    %v3349 = vpack.c.b16 %v3317, %v3313
    %v3350 = vpack.c.b16 %v3318, %v3314
    %v3351 = vpack.c.b16 %v3319, %v3315
    %v3352 = vpack.c.b16 %v3320, %v3316
    %3385 = vmatprep.subr.bf16.mxu0 %v3350
    %3386 = vmatpush1.bf16.msra.mxu0 %v3349
    %3387 = vmatprep.subr.bf16.mxu0 %v3346
    %3388 = vmatpush1.bf16.msra.mxu0 %v3345
    %3389 = vmatprep.subr.bf16.mxu0 %v3342
    %3390 = vmatpush1.bf16.msra.mxu0 %v3341
    %3391 = vmatprep.subr.bf16.mxu0 %v3338
    %3392 = vmatpush1.bf16.msra.mxu0 %v3337
    %3393 = vmatprep.subr.bf16.mxu0 %v3334
    %3394 = vmatpush1.bf16.msra.mxu0 %v3333
    %3395 = vmatprep.subr.bf16.mxu0 %v3330
    %3396 = vmatpush1.bf16.msra.mxu0 %v3329
    %3397 = vmatprep.subr.bf16.mxu0 %v3326
    %3398 = vmatpush1.bf16.msra.mxu0 %v3325
    %3399 = vmatprep.subr.bf16.mxu0 %v3322
    %3400 = vmatpush1.bf16.msra.mxu0 %v3321
    %3401 = vmatprep.subr.bf16.mxu0 0
    %3402 = vmatpush2.bf16.msra.mxu0 0
    %3403 = vmatprep.subr.bf16.mxu0 0
    %3404 = vmatpush2.bf16.msra.mxu0 0
    %3405 = vmatprep.subr.bf16.mxu0 0
    %3406 = vmatpush2.bf16.msra.mxu0 0
    %3407 = vmatprep.subr.bf16.mxu0 0
    %3408 = vmatpush2.bf16.msra.mxu0 0
    %3409 = vmatprep.subr.bf16.mxu0 0
    %3410 = vmatpush2.bf16.msra.mxu0 0
    %3411 = vmatprep.subr.bf16.mxu0 0
    %3412 = vmatpush2.bf16.msra.mxu0 0
    %3413 = vmatprep.subr.bf16.mxu0 0
    %3414 = vmatpush2.bf16.msra.mxu0 0
    %3415 = vmatprep.subr.bf16.mxu0 0
    %3416 = vmatpush2.bf16.msra.mxu0 0
    %3417 = vmatprep.mubr.bf16.mxu0 0
    %3418 = vmatmul.mubr.bf16.gmra.mxu0 %v3211
    %v3419 = vpop.f32.mrf.mxu0
    %v3420 = vadd.f32 %v3166, %v3419
    %v3421 = vpop.f32.mrf.mxu0
    %v3422 = vadd.f32 %v3170, %v3421
    %v3423 = vpop.f32.mrf.mxu0
    %v3424 = vadd.f32 %v3166, %v3423
    %v3425 = vpop.f32.mrf.mxu0
    %v3426 = vadd.f32 %v3170, %v3425
    %3427 = vmatprep.mubr.bf16.mxu0 0
    %3428 = vmatmul.mubr.bf16.gmra.mxu0 %v3212
    %v3429 = vpop.f32.mrf.mxu0
    %v3430 = vadd.f32 %v3166, %v3429
    %v3431 = vpop.f32.mrf.mxu0
    %v3432 = vadd.f32 %v3170, %v3431
    %v3433 = vpop.f32.mrf.mxu0
    %v3434 = vadd.f32 %v3166, %v3433
    %v3435 = vpop.f32.mrf.mxu0
    %v3436 = vadd.f32 %v3170, %v3435
    %3437 = vmatprep.mubr.bf16.mxu0 0
    %3438 = vmatmul.mubr.bf16.gmra.mxu0 %v3213
    %v3439 = vpop.f32.mrf.mxu0
    %v3440 = vadd.f32 %v3166, %v3439
    %v3441 = vpop.f32.mrf.mxu0
    %v3442 = vadd.f32 %v3170, %v3441
    %v3443 = vpop.f32.mrf.mxu0
    %v3444 = vadd.f32 %v3166, %v3443
    %v3445 = vpop.f32.mrf.mxu0
    %v3446 = vadd.f32 %v3170, %v3445
    %3447 = vmatprep.mubr.bf16.mxu0 0
    %3448 = vmatmul.mubr.bf16.gmra.mxu0 %v3214
    %v3449 = vpop.f32.mrf.mxu0
    %v3450 = vadd.f32 %v3166, %v3449
    %v3451 = vpop.f32.mrf.mxu0
    %v3452 = vadd.f32 %v3170, %v3451
    %v3453 = vpop.f32.mrf.mxu0
    %v3454 = vadd.f32 %v3166, %v3453
    %v3455 = vpop.f32.mrf.mxu0
    %v3456 = vadd.f32 %v3170, %v3455
    %3457 = vmatprep.mubr.bf16.mxu0 0
    %3458 = vmatmul.mubr.bf16.gmra.mxu0 %v3215
    %v3459 = vpop.f32.mrf.mxu0
    %v3460 = vadd.f32 %v3166, %v3459
    %v3461 = vpop.f32.mrf.mxu0
    %v3462 = vadd.f32 %v3170, %v3461
    %v3463 = vpop.f32.mrf.mxu0
    %v3464 = vadd.f32 %v3166, %v3463
    %v3465 = vpop.f32.mrf.mxu0
    %v3466 = vadd.f32 %v3170, %v3465
    %3467 = vmatprep.mubr.bf16.mxu0 0
    %3468 = vmatmul.mubr.bf16.gmra.mxu0 %v3216
    %v3469 = vpop.f32.mrf.mxu0
    %v3470 = vadd.f32 %v3166, %v3469
    %v3471 = vpop.f32.mrf.mxu0
    %v3472 = vadd.f32 %v3170, %v3471
    %v3473 = vpop.f32.mrf.mxu0
    %v3474 = vadd.f32 %v3166, %v3473
    %v3475 = vpop.f32.mrf.mxu0
    %v3476 = vadd.f32 %v3170, %v3475
    %3477 = vmatprep.mubr.bf16.mxu0 0
    %3478 = vmatmul.mubr.bf16.gmra.mxu0 %v3217
    %v3479 = vpop.f32.mrf.mxu0
    %v3480 = vadd.f32 %v3166, %v3479
    %v3481 = vpop.f32.mrf.mxu0
    %v3482 = vadd.f32 %v3170, %v3481
    %v3483 = vpop.f32.mrf.mxu0
    %v3484 = vadd.f32 %v3166, %v3483
    %v3485 = vpop.f32.mrf.mxu0
    %v3486 = vadd.f32 %v3170, %v3485
    %3487 = vdwg.mxu0
    %3488 = vmatprep.subr.bf16.mxu0 %v3352
    %3489 = vmatpush1.bf16.msra.mxu0 %v3351
    %3490 = vmatprep.subr.bf16.mxu0 %v3348
    %3491 = vmatpush1.bf16.msra.mxu0 %v3347
    %3492 = vmatprep.subr.bf16.mxu0 %v3344
    %3493 = vmatpush1.bf16.msra.mxu0 %v3343
    %3494 = vmatprep.subr.bf16.mxu0 %v3340
    %3495 = vmatpush1.bf16.msra.mxu0 %v3339
    %3496 = vmatprep.subr.bf16.mxu0 %v3336
    %3497 = vmatpush1.bf16.msra.mxu0 %v3335
    %3498 = vmatprep.subr.bf16.mxu0 %v3332
    %3499 = vmatpush1.bf16.msra.mxu0 %v3331
    %3500 = vmatprep.subr.bf16.mxu0 %v3328
    %3501 = vmatpush1.bf16.msra.mxu0 %v3327
    %3502 = vmatprep.subr.bf16.mxu0 %v3324
    %3503 = vmatpush1.bf16.msra.mxu0 %v3323
    %3504 = vmatprep.subr.bf16.mxu0 0
    %3505 = vmatpush2.bf16.msra.mxu0 0
    %3506 = vmatprep.subr.bf16.mxu0 0
    %3507 = vmatpush2.bf16.msra.mxu0 0
    %3508 = vmatprep.subr.bf16.mxu0 0
    %3509 = vmatpush2.bf16.msra.mxu0 0
    %3510 = vmatprep.subr.bf16.mxu0 0
    %3511 = vmatpush2.bf16.msra.mxu0 0
    %3512 = vmatprep.subr.bf16.mxu0 0
    %3513 = vmatpush2.bf16.msra.mxu0 0
    %3514 = vmatprep.subr.bf16.mxu0 0
    %3515 = vmatpush2.bf16.msra.mxu0 0
    %3516 = vmatprep.subr.bf16.mxu0 0
    %3517 = vmatpush2.bf16.msra.mxu0 0
    %3518 = vmatprep.subr.bf16.mxu0 0
    %3519 = vmatpush2.bf16.msra.mxu0 0
    %3520 = vmatprep.mubr.bf16.mxu0 0
    %3521 = vmatmul.mubr.bf16.gmra.mxu0 %v3211
    %v3522 = vpop.f32.mrf.mxu0
    %v3523 = vadd.f32 %v3174, %v3522
    %v3524 = vpop.f32.mrf.mxu0
    %v3525 = vadd.f32 %v3178, %v3524
    %v3526 = vpop.f32.mrf.mxu0
    %v3527 = vadd.f32 %v3174, %v3526
    %v3528 = vpop.f32.mrf.mxu0
    %v3529 = vadd.f32 %v3178, %v3528
    %3530 = vmatprep.mubr.bf16.mxu0 0
    %3531 = vmatmul.mubr.bf16.gmra.mxu0 %v3212
    %v3532 = vpop.f32.mrf.mxu0
    %v3533 = vadd.f32 %v3174, %v3532
    %v3534 = vpop.f32.mrf.mxu0
    %v3535 = vadd.f32 %v3178, %v3534
    %v3536 = vpop.f32.mrf.mxu0
    %v3537 = vadd.f32 %v3174, %v3536
    %v3538 = vpop.f32.mrf.mxu0
    %v3539 = vadd.f32 %v3178, %v3538
    %3540 = vmatprep.mubr.bf16.mxu0 0
    %3541 = vmatmul.mubr.bf16.gmra.mxu0 %v3213
    %v3542 = vpop.f32.mrf.mxu0
    %v3543 = vadd.f32 %v3174, %v3542
    %v3544 = vpop.f32.mrf.mxu0
    %v3545 = vadd.f32 %v3178, %v3544
    %v3546 = vpop.f32.mrf.mxu0
    %v3547 = vadd.f32 %v3174, %v3546
    %v3548 = vpop.f32.mrf.mxu0
    %v3549 = vadd.f32 %v3178, %v3548
    %3550 = vmatprep.mubr.bf16.mxu0 0
    %3551 = vmatmul.mubr.bf16.gmra.mxu0 %v3214
    %v3552 = vpop.f32.mrf.mxu0
    %v3553 = vadd.f32 %v3174, %v3552
    %v3554 = vpop.f32.mrf.mxu0
    %v3555 = vadd.f32 %v3178, %v3554
    %v3556 = vpop.f32.mrf.mxu0
    %v3557 = vadd.f32 %v3174, %v3556
    %v3558 = vpop.f32.mrf.mxu0
    %v3559 = vadd.f32 %v3178, %v3558
    %3560 = vmatprep.mubr.bf16.mxu0 0
    %3561 = vmatmul.mubr.bf16.gmra.mxu0 %v3215
    %v3562 = vpop.f32.mrf.mxu0
    %v3563 = vadd.f32 %v3174, %v3562
    %v3564 = vpop.f32.mrf.mxu0
    %v3565 = vadd.f32 %v3178, %v3564
    %v3566 = vpop.f32.mrf.mxu0
    %v3567 = vadd.f32 %v3174, %v3566
    %v3568 = vpop.f32.mrf.mxu0
    %v3569 = vadd.f32 %v3178, %v3568
    %3570 = vmatprep.mubr.bf16.mxu0 0
    %3571 = vmatmul.mubr.bf16.gmra.mxu0 %v3216
    %v3572 = vpop.f32.mrf.mxu0
    %v3573 = vadd.f32 %v3174, %v3572
    %v3574 = vpop.f32.mrf.mxu0
    %v3575 = vadd.f32 %v3178, %v3574
    %v3576 = vpop.f32.mrf.mxu0
    %v3577 = vadd.f32 %v3174, %v3576
    %v3578 = vpop.f32.mrf.mxu0
    %v3579 = vadd.f32 %v3178, %v3578
    %3580 = vmatprep.mubr.bf16.mxu0 0
    %3581 = vmatmul.mubr.bf16.gmra.mxu0 %v3217
    %v3582 = vpop.f32.mrf.mxu0
    %v3583 = vadd.f32 %v3174, %v3582
    %v3584 = vpop.f32.mrf.mxu0
    %v3585 = vadd.f32 %v3178, %v3584
    %v3586 = vpop.f32.mrf.mxu0
    %v3587 = vadd.f32 %v3174, %v3586
    %v3588 = vpop.f32.mrf.mxu0
    %v3589 = vadd.f32 %v3178, %v3588
    %3590 = vdwg.mxu0
    %3591 = vst [vmem:[#allocation2] sm:$0xff] %v3420
    %3592 = vst [vmem:[#allocation2 + $0x8] sm:$0xff] %v3422
    %3593 = vst [vmem:[#allocation2 + $0x10] sm:$0xff] %v3523
    %3594 = vst [vmem:[#allocation2 + $0x18] sm:$0xff] %v3525
    %3595 = vst [vmem:[#allocation2 + $0x20] sm:$0xff] %v3424
    %3596 = vst [vmem:[#allocation2 + $0x28] sm:$0xff] %v3426
    %3597 = vst [vmem:[#allocation2 + $0x30] sm:$0xff] %v3527
    %3598 = vst [vmem:[#allocation2 + $0x38] sm:$0xff] %v3529
    %3599 = vst [vmem:[#allocation2 + $0x40] sm:$0xff] %v3430
    %3600 = vst [vmem:[#allocation2 + $0x48] sm:$0xff] %v3432
    %3601 = vst [vmem:[#allocation2 + $0x50] sm:$0xff] %v3533
    %3602 = vst [vmem:[#allocation2 + $0x58] sm:$0xff] %v3535
    %3603 = vst [vmem:[#allocation2 + $0x60] sm:$0xff] %v3434
    %3604 = vst [vmem:[#allocation2 + $0x68] sm:$0xff] %v3436
    %3605 = vst [vmem:[#allocation2 + $0x70] sm:$0xff] %v3537
    %3606 = vst [vmem:[#allocation2 + $0x78] sm:$0xff] %v3539
    %3607 = vst [vmem:[#allocation2 + $0x80] sm:$0xff] %v3440
    %3608 = vst [vmem:[#allocation2 + $0x88] sm:$0xff] %v3442
    %3609 = vst [vmem:[#allocation2 + $0x90] sm:$0xff] %v3543
    %3610 = vst [vmem:[#allocation2 + $0x98] sm:$0xff] %v3545
    %3611 = vst [vmem:[#allocation2 + $0xa0] sm:$0xff] %v3444
    %3612 = vst [vmem:[#allocation2 + $0xa8] sm:$0xff] %v3446
    %3613 = vst [vmem:[#allocation2 + $0xb0] sm:$0xff] %v3547
    %3614 = vst [vmem:[#allocation2 + $0xb8] sm:$0xff] %v3549
    %3615 = vst [vmem:[#allocation2 + $0xc0] sm:$0xff] %v3450
    %3616 = vst [vmem:[#allocation2 + $0xc8] sm:$0xff] %v3452
    %3617 = vst [vmem:[#allocation2 + $0xd0] sm:$0xff] %v3553
    %3618 = vst [vmem:[#allocation2 + $0xd8] sm:$0xff] %v3555
    %3619 = vst [vmem:[#allocation2 + $0xe0] sm:$0xff] %v3454
    %3620 = vst [vmem:[#allocation2 + $0xe8] sm:$0xff] %v3456
    %3621 = vst [vmem:[#allocation2 + $0xf0] sm:$0xff] %v3557
    %3622 = vst [vmem:[#allocation2 + $0xf8] sm:$0xff] %v3559
    %3623 = vst [vmem:[#allocation2 + $0x100] sm:$0xff] %v3460
    %3624 = vst [vmem:[#allocation2 + $0x108] sm:$0xff] %v3462
    %3625 = vst [vmem:[#allocation2 + $0x110] sm:$0xff] %v3563
    %3626 = vst [vmem:[#allocation2 + $0x118] sm:$0xff] %v3565
    %3627 = vst [vmem:[#allocation2 + $0x120] sm:$0xff] %v3464
    %3628 = vst [vmem:[#allocation2 + $0x128] sm:$0xff] %v3466
    %3629 = vst [vmem:[#allocation2 + $0x130] sm:$0xff] %v3567
    %3630 = vst [vmem:[#allocation2 + $0x138] sm:$0xff] %v3569
    %3631 = vst [vmem:[#allocation2 + $0x140] sm:$0xff] %v3470
    %3632 = vst [vmem:[#allocation2 + $0x148] sm:$0xff] %v3472
    %3633 = vst [vmem:[#allocation2 + $0x150] sm:$0xff] %v3573
    %3634 = vst [vmem:[#allocation2 + $0x158] sm:$0xff] %v3575
    %3635 = vst [vmem:[#allocation2 + $0x160] sm:$0xff] %v3474
    %3636 = vst [vmem:[#allocation2 + $0x168] sm:$0xff] %v3476
    %3637 = vst [vmem:[#allocation2 + $0x170] sm:$0xff] %v3577
    %3638 = vst [vmem:[#allocation2 + $0x178] sm:$0xff] %v3579
    %3639 = vst [vmem:[#allocation2 + $0x180] sm:$0xff] %v3480
    %3640 = vst [vmem:[#allocation2 + $0x188] sm:$0xff] %v3482
    %3641 = vst [vmem:[#allocation2 + $0x190] sm:$0xff] %v3583
    %3642 = vst [vmem:[#allocation2 + $0x198] sm:$0xff] %v3585
    %3643 = vst [vmem:[#allocation2 + $0x1a0] sm:$0xff] %v3484
    %3644 = vst [vmem:[#allocation2 + $0x1a8] sm:$0xff] %v3486
    %3645 = vst [vmem:[#allocation2 + $0x1b0] sm:$0xff] %v3587
    %3646 = vst [vmem:[#allocation2 + $0x1b8] sm:$0xff] %v3589
    %v3647 = vld [vmem:[%s626] sm:$0xff]
    %v3648 = vld [vmem:[%s626 + $0x8] sm:$0xff]
    %v3649 = vld [vmem:[%s626 + $0x10] sm:$0xff]
    %v3650 = vld [vmem:[%s626 + $0x18] sm:$0xff]
    %v3651 = vld [vmem:[%s626 + $0x20] sm:$0xff]
    %v3652 = vld [vmem:[%s626 + $0x28] sm:$0xff]
    %v3653 = vld [vmem:[%s626 + $0x30] sm:$0xff]
    %v3654 = vld [vmem:[%s626 + $0x38] sm:$0xff]
    %v3655 = vld [vmem:[#allocation10] sm:$0xff]
    %v3656 = vld [vmem:[#allocation10 + $0x8] sm:$0xff]
    %v3657 = vld [vmem:[#allocation10 + $0x10] sm:$0xff]
    %v3658 = vld [vmem:[#allocation10 + $0x18] sm:$0xff]
    %v3659 = vld [vmem:[#allocation10 + $0x20] sm:$0xff]
    %v3660 = vld [vmem:[#allocation10 + $0x28] sm:$0xff]
    %v3661 = vld [vmem:[#allocation10 + $0x30] sm:$0xff]
    %v3662 = vld [vmem:[#allocation10 + $0x38] sm:$0xff]
    %v3663 = vld [vmem:[#allocation10 + $0x40] sm:$0xff]
    %v3664 = vld [vmem:[#allocation10 + $0x48] sm:$0xff]
    %v3665 = vld [vmem:[#allocation10 + $0x50] sm:$0xff]
    %v3666 = vld [vmem:[#allocation10 + $0x58] sm:$0xff]
    %v3667 = vld [vmem:[#allocation10 + $0x60] sm:$0xff]
    %v3668 = vld [vmem:[#allocation10 + $0x68] sm:$0xff]
    %v3669 = vld [vmem:[#allocation10 + $0x70] sm:$0xff]
    %v3670 = vld [vmem:[#allocation10 + $0x78] sm:$0xff]
    %v3671 = vld [vmem:[#allocation10 + $0x80] sm:$0xff]
    %v3672 = vld [vmem:[#allocation10 + $0x88] sm:$0xff]
    %v3673 = vld [vmem:[#allocation10 + $0x90] sm:$0xff]
    %v3674 = vld [vmem:[#allocation10 + $0x98] sm:$0xff]
    %v3675 = vld [vmem:[#allocation10 + $0xa0] sm:$0xff]
    %v3676 = vld [vmem:[#allocation10 + $0xa8] sm:$0xff]
    %v3677 = vld [vmem:[#allocation10 + $0xb0] sm:$0xff]
    %v3678 = vld [vmem:[#allocation10 + $0xb8] sm:$0xff]
    %v3679 = vld [vmem:[#allocation10 + $0xc0] sm:$0xff]
    %v3680 = vld [vmem:[#allocation10 + $0xc8] sm:$0xff]
    %v3681 = vld [vmem:[#allocation10 + $0xd0] sm:$0xff]
    %v3682 = vld [vmem:[#allocation10 + $0xd8] sm:$0xff]
    %v3683 = vld [vmem:[#allocation10 + $0xe0] sm:$0xff]
    %v3684 = vld [vmem:[#allocation10 + $0xe8] sm:$0xff]
    %v3685 = vld [vmem:[#allocation10 + $0xf0] sm:$0xff]
    %v3686 = vld [vmem:[#allocation10 + $0xf8] sm:$0xff]
    %v3719 = vunpack.c.l.b16 %v3655
    %v3720 = vunpack.c.h.b16 %v3655
    %v3721 = vunpack.c.l.b16 %v3656
    %v3722 = vunpack.c.h.b16 %v3656
    %v3723 = vunpack.c.l.b16 %v3657
    %v3724 = vunpack.c.h.b16 %v3657
    %v3725 = vunpack.c.l.b16 %v3658
    %v3726 = vunpack.c.h.b16 %v3658
    %v3727 = vunpack.c.l.b16 %v3659
    %v3728 = vunpack.c.h.b16 %v3659
    %v3729 = vunpack.c.l.b16 %v3660
    %v3730 = vunpack.c.h.b16 %v3660
    %v3731 = vunpack.c.l.b16 %v3661
    %v3732 = vunpack.c.h.b16 %v3661
    %v3733 = vunpack.c.l.b16 %v3662
    %v3734 = vunpack.c.h.b16 %v3662
    %v3735 = vunpack.c.l.b16 %v3663
    %v3736 = vunpack.c.h.b16 %v3663
    %v3737 = vunpack.c.l.b16 %v3664
    %v3738 = vunpack.c.h.b16 %v3664
    %v3739 = vunpack.c.l.b16 %v3665
    %v3740 = vunpack.c.h.b16 %v3665
    %v3741 = vunpack.c.l.b16 %v3666
    %v3742 = vunpack.c.h.b16 %v3666
    %v3743 = vunpack.c.l.b16 %v3667
    %v3744 = vunpack.c.h.b16 %v3667
    %v3745 = vunpack.c.l.b16 %v3668
    %v3746 = vunpack.c.h.b16 %v3668
    %v3747 = vunpack.c.l.b16 %v3669
    %v3748 = vunpack.c.h.b16 %v3669
    %v3749 = vunpack.c.l.b16 %v3670
    %v3750 = vunpack.c.h.b16 %v3670
    %v3751 = vunpack.c.l.b16 %v3671
    %v3752 = vunpack.c.h.b16 %v3671
    %v3753 = vunpack.c.l.b16 %v3672
    %v3754 = vunpack.c.h.b16 %v3672
    %v3755 = vunpack.c.l.b16 %v3673
    %v3756 = vunpack.c.h.b16 %v3673
    %v3757 = vunpack.c.l.b16 %v3674
    %v3758 = vunpack.c.h.b16 %v3674
    %v3759 = vunpack.c.l.b16 %v3675
    %v3760 = vunpack.c.h.b16 %v3675
    %v3761 = vunpack.c.l.b16 %v3676
    %v3762 = vunpack.c.h.b16 %v3676
    %v3763 = vunpack.c.l.b16 %v3677
    %v3764 = vunpack.c.h.b16 %v3677
    %v3765 = vunpack.c.l.b16 %v3678
    %v3766 = vunpack.c.h.b16 %v3678
    %v3767 = vunpack.c.l.b16 %v3679
    %v3768 = vunpack.c.h.b16 %v3679
    %v3769 = vunpack.c.l.b16 %v3680
    %v3770 = vunpack.c.h.b16 %v3680
    %v3771 = vunpack.c.l.b16 %v3681
    %v3772 = vunpack.c.h.b16 %v3681
    %v3773 = vunpack.c.l.b16 %v3682
    %v3774 = vunpack.c.h.b16 %v3682
    %v3775 = vunpack.c.l.b16 %v3683
    %v3776 = vunpack.c.h.b16 %v3683
    %v3777 = vunpack.c.l.b16 %v3684
    %v3778 = vunpack.c.h.b16 %v3684
    %v3779 = vunpack.c.l.b16 %v3685
    %v3780 = vunpack.c.h.b16 %v3685
    %v3781 = vunpack.c.l.b16 %v3686
    %v3782 = vunpack.c.h.b16 %v3686
    %v3783 = vpack.c.b16 %v3723, %v3719
    %v3784 = vpack.c.b16 %v3724, %v3720
    %v3785 = vpack.c.b16 %v3725, %v3721
    %v3786 = vpack.c.b16 %v3726, %v3722
    %v3787 = vpack.c.b16 %v3731, %v3727
    %v3788 = vpack.c.b16 %v3732, %v3728
    %v3789 = vpack.c.b16 %v3733, %v3729
    %v3790 = vpack.c.b16 %v3734, %v3730
    %v3791 = vpack.c.b16 %v3739, %v3735
    %v3792 = vpack.c.b16 %v3740, %v3736
    %v3793 = vpack.c.b16 %v3741, %v3737
    %v3794 = vpack.c.b16 %v3742, %v3738
    %v3795 = vpack.c.b16 %v3747, %v3743
    %v3796 = vpack.c.b16 %v3748, %v3744
    %v3797 = vpack.c.b16 %v3749, %v3745
    %v3798 = vpack.c.b16 %v3750, %v3746
    %v3799 = vpack.c.b16 %v3755, %v3751
    %v3800 = vpack.c.b16 %v3756, %v3752
    %v3801 = vpack.c.b16 %v3757, %v3753
    %v3802 = vpack.c.b16 %v3758, %v3754
    %v3803 = vpack.c.b16 %v3763, %v3759
    %v3804 = vpack.c.b16 %v3764, %v3760
    %v3805 = vpack.c.b16 %v3765, %v3761
    %v3806 = vpack.c.b16 %v3766, %v3762
    %v3807 = vpack.c.b16 %v3771, %v3767
    %v3808 = vpack.c.b16 %v3772, %v3768
    %v3809 = vpack.c.b16 %v3773, %v3769
    %v3810 = vpack.c.b16 %v3774, %v3770
    %v3811 = vpack.c.b16 %v3779, %v3775
    %v3812 = vpack.c.b16 %v3780, %v3776
    %v3813 = vpack.c.b16 %v3781, %v3777
    %v3814 = vpack.c.b16 %v3782, %v3778
    %3847 = vmatprep.subr.bf16.mxu0 %v3812
    %3848 = vmatpush1.bf16.msra.mxu0 %v3811
    %3849 = vmatprep.subr.bf16.mxu0 %v3808
    %3850 = vmatpush1.bf16.msra.mxu0 %v3807
    %3851 = vmatprep.subr.bf16.mxu0 %v3804
    %3852 = vmatpush1.bf16.msra.mxu0 %v3803
    %3853 = vmatprep.subr.bf16.mxu0 %v3800
    %3854 = vmatpush1.bf16.msra.mxu0 %v3799
    %3855 = vmatprep.subr.bf16.mxu0 %v3796
    %3856 = vmatpush1.bf16.msra.mxu0 %v3795
    %3857 = vmatprep.subr.bf16.mxu0 %v3792
    %3858 = vmatpush1.bf16.msra.mxu0 %v3791
    %3859 = vmatprep.subr.bf16.mxu0 %v3788
    %3860 = vmatpush1.bf16.msra.mxu0 %v3787
    %3861 = vmatprep.subr.bf16.mxu0 %v3784
    %3862 = vmatpush1.bf16.msra.mxu0 %v3783
    %3863 = vmatprep.subr.bf16.mxu0 0
    %3864 = vmatpush2.bf16.msra.mxu0 0
    %3865 = vmatprep.subr.bf16.mxu0 0
    %3866 = vmatpush2.bf16.msra.mxu0 0
    %3867 = vmatprep.subr.bf16.mxu0 0
    %3868 = vmatpush2.bf16.msra.mxu0 0
    %3869 = vmatprep.subr.bf16.mxu0 0
    %3870 = vmatpush2.bf16.msra.mxu0 0
    %3871 = vmatprep.subr.bf16.mxu0 0
    %3872 = vmatpush2.bf16.msra.mxu0 0
    %3873 = vmatprep.subr.bf16.mxu0 0
    %3874 = vmatpush2.bf16.msra.mxu0 0
    %3875 = vmatprep.subr.bf16.mxu0 0
    %3876 = vmatpush2.bf16.msra.mxu0 0
    %3877 = vmatprep.subr.bf16.mxu0 0
    %3878 = vmatpush2.bf16.msra.mxu0 0
    %3879 = vmatprep.mubr.bf16.mxu0 0
    %3880 = vmatmul.mubr.bf16.gmra.mxu0 0
    %v3881 = vpop.f32.mrf.mxu0
    %v3882 = vadd.f32 0.0, %v3881
    %v3883 = vpop.f32.mrf.mxu0
    %v3884 = vadd.f32 0.0, %v3883
    %v3885 = vpop.f32.mrf.mxu0
    %v3886 = vadd.f32 0.0, %v3885
    %v3887 = vpop.f32.mrf.mxu0
    %v3888 = vadd.f32 0.0, %v3887
    %3889 = vdwg.mxu0
    %3890 = vmatprep.subr.bf16.mxu0 %v3814
    %3891 = vmatpush1.bf16.msra.mxu0 %v3813
    %3892 = vmatprep.subr.bf16.mxu0 %v3810
    %3893 = vmatpush1.bf16.msra.mxu0 %v3809
    %3894 = vmatprep.subr.bf16.mxu0 %v3806
    %3895 = vmatpush1.bf16.msra.mxu0 %v3805
    %3896 = vmatprep.subr.bf16.mxu0 %v3802
    %3897 = vmatpush1.bf16.msra.mxu0 %v3801
    %3898 = vmatprep.subr.bf16.mxu0 %v3798
    %3899 = vmatpush1.bf16.msra.mxu0 %v3797
    %3900 = vmatprep.subr.bf16.mxu0 %v3794
    %3901 = vmatpush1.bf16.msra.mxu0 %v3793
    %3902 = vmatprep.subr.bf16.mxu0 %v3790
    %3903 = vmatpush1.bf16.msra.mxu0 %v3789
    %3904 = vmatprep.subr.bf16.mxu0 %v3786
    %3905 = vmatpush1.bf16.msra.mxu0 %v3785
    %3906 = vmatprep.subr.bf16.mxu0 0
    %3907 = vmatpush2.bf16.msra.mxu0 0
    %3908 = vmatprep.subr.bf16.mxu0 0
    %3909 = vmatpush2.bf16.msra.mxu0 0
    %3910 = vmatprep.subr.bf16.mxu0 0
    %3911 = vmatpush2.bf16.msra.mxu0 0
    %3912 = vmatprep.subr.bf16.mxu0 0
    %3913 = vmatpush2.bf16.msra.mxu0 0
    %3914 = vmatprep.subr.bf16.mxu0 0
    %3915 = vmatpush2.bf16.msra.mxu0 0
    %3916 = vmatprep.subr.bf16.mxu0 0
    %3917 = vmatpush2.bf16.msra.mxu0 0
    %3918 = vmatprep.subr.bf16.mxu0 0
    %3919 = vmatpush2.bf16.msra.mxu0 0
    %3920 = vmatprep.subr.bf16.mxu0 0
    %3921 = vmatpush2.bf16.msra.mxu0 0
    %3922 = vmatprep.mubr.bf16.mxu0 0
    %3923 = vmatmul.mubr.bf16.gmra.mxu0 0
    %v3924 = vpop.f32.mrf.mxu0
    %v3925 = vadd.f32 0.0, %v3924
    %v3926 = vpop.f32.mrf.mxu0
    %v3927 = vadd.f32 0.0, %v3926
    %v3928 = vpop.f32.mrf.mxu0
    %v3929 = vadd.f32 0.0, %v3928
    %v3930 = vpop.f32.mrf.mxu0
    %v3931 = vadd.f32 0.0, %v3930
    %3932 = vdwg.mxu0
    %v3933 = vadd.f32 %v3647, %v3882
    %v3934 = vadd.f32 %v3648, %v3884
    %v3935 = vadd.f32 %v3649, %v3925
    %v3936 = vadd.f32 %v3650, %v3927
    %v3937 = vadd.f32 %v3651, %v3886
    %v3938 = vadd.f32 %v3652, %v3888
    %v3939 = vadd.f32 %v3653, %v3929
    %v3940 = vadd.f32 %v3654, %v3931
    %v3941 = vxor.u32 %v3933, 2147483648
    %v3942 = vxor.u32 %v3937, 2147483648
    %v3943 = vmul.f32 %v3941, 1.442695
    %v3944 = vpow.pop %v3943
    %v3945 = vmul.f32 %v3942, 1.442695
    %v3946 = vpow.pop %v3945
    %v3947 = vadd.f32 %v3944, 1.0
    %v3948 = vadd.f32 %v3946, 1.0
    %v3949 = vrcp.pop %v3947
    %v3950 = vmul.f32 1.0, %v3949
    %v3951 = vrcp.pop %v3948
    %v3952 = vmul.f32 1.0, %v3951
    %v3953 = vxor.u32 %v3934, 2147483648
    %v3954 = vxor.u32 %v3938, 2147483648
    %v3955 = vmul.f32 %v3953, 1.442695
    %v3956 = vpow.pop %v3955
    %v3957 = vmul.f32 %v3954, 1.442695
    %v3958 = vpow.pop %v3957
    %v3959 = vadd.f32 %v3956, 1.0
    %v3960 = vadd.f32 %v3958, 1.0
    %v3961 = vrcp.pop %v3959
    %v3962 = vmul.f32 1.0, %v3961
    %v3963 = vrcp.pop %v3960
    %v3964 = vmul.f32 1.0, %v3963
    %v3965 = vtanh.pop %v3935
    %v3966 = vtanh.pop %v3939
    %v3967 = vxor.u32 %v3936, 2147483648
    %v3968 = vxor.u32 %v3940, 2147483648
    %v3969 = vmul.f32 %v3967, 1.442695
    %v3970 = vpow.pop %v3969
    %v3971 = vmul.f32 %v3968, 1.442695
    %v3972 = vpow.pop %v3971
    %v3973 = vadd.f32 %v3970, 1.0
    %v3974 = vadd.f32 %v3972, 1.0
    %v3975 = vrcp.pop %v3973
    %v3976 = vmul.f32 1.0, %v3975
    %v3977 = vrcp.pop %v3974
    %v3978 = vmul.f32 1.0, %v3977
    %v3979 = vmul.f32 %v3962, 0.0
    %v3980 = vmul.f32 %v3964, 0.0
    %v3981 = vmul.f32 %v3950, %v3965
    %v3982 = vmul.f32 %v3952, %v3966
    %v3983 = vadd.f32 %v3979, %v3981
    %v3984 = vadd.f32 %v3980, %v3982
    %v3985 = vtanh.pop %v3983
    %v3986 = vtanh.pop %v3984
    %v3987 = vmul.f32 %v3976, %v3985
    %v3988 = vmul.f32 %v3978, %v3986
    %v3989 = vpack.c.bf16 %v3988, %v3987
    %v3991 = vunpack.c.l.b16 %v3989
    %v3992 = vunpack.c.h.b16 %v3989
    %v3993 = vpack.c.b16 %v3991, %v3991
    %v3994 = vpack.c.b16 %v3992, %v3992
    %3997 = vst [vmem:[#allocation12] sm:$0xf] %v3993
    %3998 = vst [vmem:[#allocation12 + $0x4] sm:$0xf] %v3994
    %v3999 = vld [vmem:[%s981] sm:$0xff]
    %v4000 = vld [vmem:[%s981 + $0x8] sm:$0xff]
    %v4001 = vld [vmem:[%s981 + $0x10] sm:$0xff]
    %v4002 = vld [vmem:[%s981 + $0x18] sm:$0xff]
    %v4003 = vld [vmem:[%s981 + $0x20] sm:$0xff]
    %v4004 = vld [vmem:[%s981 + $0x28] sm:$0xff]
    %v4005 = vld [vmem:[%s981 + $0x30] sm:$0xff]
    %v4006 = vld [vmem:[%s981 + $0x38] sm:$0xff]
    %v4007 = vld [vmem:[#allocation10] sm:$0xff]
    %v4008 = vld [vmem:[#allocation10 + $0x8] sm:$0xff]
    %v4009 = vld [vmem:[#allocation10 + $0x10] sm:$0xff]
    %v4010 = vld [vmem:[#allocation10 + $0x18] sm:$0xff]
    %v4011 = vld [vmem:[#allocation10 + $0x20] sm:$0xff]
    %v4012 = vld [vmem:[#allocation10 + $0x28] sm:$0xff]
    %v4013 = vld [vmem:[#allocation10 + $0x30] sm:$0xff]
    %v4014 = vld [vmem:[#allocation10 + $0x38] sm:$0xff]
    %v4015 = vld [vmem:[#allocation10 + $0x40] sm:$0xff]
    %v4016 = vld [vmem:[#allocation10 + $0x48] sm:$0xff]
    %v4017 = vld [vmem:[#allocation10 + $0x50] sm:$0xff]
    %v4018 = vld [vmem:[#allocation10 + $0x58] sm:$0xff]
    %v4019 = vld [vmem:[#allocation10 + $0x60] sm:$0xff]
    %v4020 = vld [vmem:[#allocation10 + $0x68] sm:$0xff]
    %v4021 = vld [vmem:[#allocation10 + $0x70] sm:$0xff]
    %v4022 = vld [vmem:[#allocation10 + $0x78] sm:$0xff]
    %v4023 = vld [vmem:[#allocation10 + $0x80] sm:$0xff]
    %v4024 = vld [vmem:[#allocation10 + $0x88] sm:$0xff]
    %v4025 = vld [vmem:[#allocation10 + $0x90] sm:$0xff]
    %v4026 = vld [vmem:[#allocation10 + $0x98] sm:$0xff]
    %v4027 = vld [vmem:[#allocation10 + $0xa0] sm:$0xff]
    %v4028 = vld [vmem:[#allocation10 + $0xa8] sm:$0xff]
    %v4029 = vld [vmem:[#allocation10 + $0xb0] sm:$0xff]
    %v4030 = vld [vmem:[#allocation10 + $0xb8] sm:$0xff]
    %v4031 = vld [vmem:[#allocation10 + $0xc0] sm:$0xff]
    %v4032 = vld [vmem:[#allocation10 + $0xc8] sm:$0xff]
    %v4033 = vld [vmem:[#allocation10 + $0xd0] sm:$0xff]
    %v4034 = vld [vmem:[#allocation10 + $0xd8] sm:$0xff]
    %v4035 = vld [vmem:[#allocation10 + $0xe0] sm:$0xff]
    %v4036 = vld [vmem:[#allocation10 + $0xe8] sm:$0xff]
    %v4037 = vld [vmem:[#allocation10 + $0xf0] sm:$0xff]
    %v4038 = vld [vmem:[#allocation10 + $0xf8] sm:$0xff]
    %v4071 = vunpack.c.l.b16 %v4007
    %v4072 = vunpack.c.h.b16 %v4007
    %v4073 = vunpack.c.l.b16 %v4008
    %v4074 = vunpack.c.h.b16 %v4008
    %v4075 = vunpack.c.l.b16 %v4009
    %v4076 = vunpack.c.h.b16 %v4009
    %v4077 = vunpack.c.l.b16 %v4010
    %v4078 = vunpack.c.h.b16 %v4010
    %v4079 = vunpack.c.l.b16 %v4011
    %v4080 = vunpack.c.h.b16 %v4011
    %v4081 = vunpack.c.l.b16 %v4012
    %v4082 = vunpack.c.h.b16 %v4012
    %v4083 = vunpack.c.l.b16 %v4013
    %v4084 = vunpack.c.h.b16 %v4013
    %v4085 = vunpack.c.l.b16 %v4014
    %v4086 = vunpack.c.h.b16 %v4014
    %v4087 = vunpack.c.l.b16 %v4015
    %v4088 = vunpack.c.h.b16 %v4015
    %v4089 = vunpack.c.l.b16 %v4016
    %v4090 = vunpack.c.h.b16 %v4016
    %v4091 = vunpack.c.l.b16 %v4017
    %v4092 = vunpack.c.h.b16 %v4017
    %v4093 = vunpack.c.l.b16 %v4018
    %v4094 = vunpack.c.h.b16 %v4018
    %v4095 = vunpack.c.l.b16 %v4019
    %v4096 = vunpack.c.h.b16 %v4019
    %v4097 = vunpack.c.l.b16 %v4020
    %v4098 = vunpack.c.h.b16 %v4020
    %v4099 = vunpack.c.l.b16 %v4021
    %v4100 = vunpack.c.h.b16 %v4021
    %v4101 = vunpack.c.l.b16 %v4022
    %v4102 = vunpack.c.h.b16 %v4022
    %v4103 = vunpack.c.l.b16 %v4023
    %v4104 = vunpack.c.h.b16 %v4023
    %v4105 = vunpack.c.l.b16 %v4024
    %v4106 = vunpack.c.h.b16 %v4024
    %v4107 = vunpack.c.l.b16 %v4025
    %v4108 = vunpack.c.h.b16 %v4025
    %v4109 = vunpack.c.l.b16 %v4026
    %v4110 = vunpack.c.h.b16 %v4026
    %v4111 = vunpack.c.l.b16 %v4027
    %v4112 = vunpack.c.h.b16 %v4027
    %v4113 = vunpack.c.l.b16 %v4028
    %v4114 = vunpack.c.h.b16 %v4028
    %v4115 = vunpack.c.l.b16 %v4029
    %v4116 = vunpack.c.h.b16 %v4029
    %v4117 = vunpack.c.l.b16 %v4030
    %v4118 = vunpack.c.h.b16 %v4030
    %v4119 = vunpack.c.l.b16 %v4031
    %v4120 = vunpack.c.h.b16 %v4031
    %v4121 = vunpack.c.l.b16 %v4032
    %v4122 = vunpack.c.h.b16 %v4032
    %v4123 = vunpack.c.l.b16 %v4033
    %v4124 = vunpack.c.h.b16 %v4033
    %v4125 = vunpack.c.l.b16 %v4034
    %v4126 = vunpack.c.h.b16 %v4034
    %v4127 = vunpack.c.l.b16 %v4035
    %v4128 = vunpack.c.h.b16 %v4035
    %v4129 = vunpack.c.l.b16 %v4036
    %v4130 = vunpack.c.h.b16 %v4036
    %v4131 = vunpack.c.l.b16 %v4037
    %v4132 = vunpack.c.h.b16 %v4037
    %v4133 = vunpack.c.l.b16 %v4038
    %v4134 = vunpack.c.h.b16 %v4038
    %v4135 = vpack.c.b16 %v4075, %v4071
    %v4136 = vpack.c.b16 %v4076, %v4072
    %v4137 = vpack.c.b16 %v4077, %v4073
    %v4138 = vpack.c.b16 %v4078, %v4074
    %v4139 = vpack.c.b16 %v4083, %v4079
    %v4140 = vpack.c.b16 %v4084, %v4080
    %v4141 = vpack.c.b16 %v4085, %v4081
    %v4142 = vpack.c.b16 %v4086, %v4082
    %v4143 = vpack.c.b16 %v4091, %v4087
    %v4144 = vpack.c.b16 %v4092, %v4088
    %v4145 = vpack.c.b16 %v4093, %v4089
    %v4146 = vpack.c.b16 %v4094, %v4090
    %v4147 = vpack.c.b16 %v4099, %v4095
    %v4148 = vpack.c.b16 %v4100, %v4096
    %v4149 = vpack.c.b16 %v4101, %v4097
    %v4150 = vpack.c.b16 %v4102, %v4098
    %v4151 = vpack.c.b16 %v4107, %v4103
    %v4152 = vpack.c.b16 %v4108, %v4104
    %v4153 = vpack.c.b16 %v4109, %v4105
    %v4154 = vpack.c.b16 %v4110, %v4106
    %v4155 = vpack.c.b16 %v4115, %v4111
    %v4156 = vpack.c.b16 %v4116, %v4112
    %v4157 = vpack.c.b16 %v4117, %v4113
    %v4158 = vpack.c.b16 %v4118, %v4114
    %v4159 = vpack.c.b16 %v4123, %v4119
    %v4160 = vpack.c.b16 %v4124, %v4120
    %v4161 = vpack.c.b16 %v4125, %v4121
    %v4162 = vpack.c.b16 %v4126, %v4122
    %v4163 = vpack.c.b16 %v4131, %v4127
    %v4164 = vpack.c.b16 %v4132, %v4128
    %v4165 = vpack.c.b16 %v4133, %v4129
    %v4166 = vpack.c.b16 %v4134, %v4130
    %4199 = vmatprep.subr.bf16.mxu0 %v4164
    %4200 = vmatpush1.bf16.msra.mxu0 %v4163
    %4201 = vmatprep.subr.bf16.mxu0 %v4160
    %4202 = vmatpush1.bf16.msra.mxu0 %v4159
    %4203 = vmatprep.subr.bf16.mxu0 %v4156
    %4204 = vmatpush1.bf16.msra.mxu0 %v4155
    %4205 = vmatprep.subr.bf16.mxu0 %v4152
    %4206 = vmatpush1.bf16.msra.mxu0 %v4151
    %4207 = vmatprep.subr.bf16.mxu0 %v4148
    %4208 = vmatpush1.bf16.msra.mxu0 %v4147
    %4209 = vmatprep.subr.bf16.mxu0 %v4144
    %4210 = vmatpush1.bf16.msra.mxu0 %v4143
    %4211 = vmatprep.subr.bf16.mxu0 %v4140
    %4212 = vmatpush1.bf16.msra.mxu0 %v4139
    %4213 = vmatprep.subr.bf16.mxu0 %v4136
    %4214 = vmatpush1.bf16.msra.mxu0 %v4135
    %4215 = vmatprep.subr.bf16.mxu0 0
    %4216 = vmatpush2.bf16.msra.mxu0 0
    %4217 = vmatprep.subr.bf16.mxu0 0
    %4218 = vmatpush2.bf16.msra.mxu0 0
    %4219 = vmatprep.subr.bf16.mxu0 0
    %4220 = vmatpush2.bf16.msra.mxu0 0
    %4221 = vmatprep.subr.bf16.mxu0 0
    %4222 = vmatpush2.bf16.msra.mxu0 0
    %4223 = vmatprep.subr.bf16.mxu0 0
    %4224 = vmatpush2.bf16.msra.mxu0 0
    %4225 = vmatprep.subr.bf16.mxu0 0
    %4226 = vmatpush2.bf16.msra.mxu0 0
    %4227 = vmatprep.subr.bf16.mxu0 0
    %4228 = vmatpush2.bf16.msra.mxu0 0
    %4229 = vmatprep.subr.bf16.mxu0 0
    %4230 = vmatpush2.bf16.msra.mxu0 0
    %4231 = vmatprep.mubr.bf16.mxu0 0
    %4232 = vmatmul.mubr.bf16.gmra.mxu0 %v3989
    %v4233 = vpop.f32.mrf.mxu0
    %v4234 = vadd.f32 0.0, %v4233
    %v4235 = vpop.f32.mrf.mxu0
    %v4236 = vadd.f32 0.0, %v4235
    %v4237 = vpop.f32.mrf.mxu0
    %v4238 = vadd.f32 0.0, %v4237
    %v4239 = vpop.f32.mrf.mxu0
    %v4240 = vadd.f32 0.0, %v4239
    %4241 = vdwg.mxu0
    %4242 = vmatprep.subr.bf16.mxu0 %v4166
    %4243 = vmatpush1.bf16.msra.mxu0 %v4165
    %4244 = vmatprep.subr.bf16.mxu0 %v4162
    %4245 = vmatpush1.bf16.msra.mxu0 %v4161
    %4246 = vmatprep.subr.bf16.mxu0 %v4158
    %4247 = vmatpush1.bf16.msra.mxu0 %v4157
    %4248 = vmatprep.subr.bf16.mxu0 %v4154
    %4249 = vmatpush1.bf16.msra.mxu0 %v4153
    %4250 = vmatprep.subr.bf16.mxu0 %v4150
    %4251 = vmatpush1.bf16.msra.mxu0 %v4149
    %4252 = vmatprep.subr.bf16.mxu0 %v4146
    %4253 = vmatpush1.bf16.msra.mxu0 %v4145
    %4254 = vmatprep.subr.bf16.mxu0 %v4142
    %4255 = vmatpush1.bf16.msra.mxu0 %v4141
    %4256 = vmatprep.subr.bf16.mxu0 %v4138
    %4257 = vmatpush1.bf16.msra.mxu0 %v4137
    %4258 = vmatprep.subr.bf16.mxu0 0
    %4259 = vmatpush2.bf16.msra.mxu0 0
    %4260 = vmatprep.subr.bf16.mxu0 0
    %4261 = vmatpush2.bf16.msra.mxu0 0
    %4262 = vmatprep.subr.bf16.mxu0 0
    %4263 = vmatpush2.bf16.msra.mxu0 0
    %4264 = vmatprep.subr.bf16.mxu0 0
    %4265 = vmatpush2.bf16.msra.mxu0 0
    %4266 = vmatprep.subr.bf16.mxu0 0
    %4267 = vmatpush2.bf16.msra.mxu0 0
    %4268 = vmatprep.subr.bf16.mxu0 0
    %4269 = vmatpush2.bf16.msra.mxu0 0
    %4270 = vmatprep.subr.bf16.mxu0 0
    %4271 = vmatpush2.bf16.msra.mxu0 0
    %4272 = vmatprep.subr.bf16.mxu0 0
    %4273 = vmatpush2.bf16.msra.mxu0 0
    %4274 = vmatprep.mubr.bf16.mxu0 0
    %4275 = vmatmul.mubr.bf16.gmra.mxu0 %v3989
    %v4276 = vpop.f32.mrf.mxu0
    %v4277 = vadd.f32 0.0, %v4276
    %v4278 = vpop.f32.mrf.mxu0
    %v4279 = vadd.f32 0.0, %v4278
    %v4280 = vpop.f32.mrf.mxu0
    %v4281 = vadd.f32 0.0, %v4280
    %v4282 = vpop.f32.mrf.mxu0
    %v4283 = vadd.f32 0.0, %v4282
    %4284 = vdwg.mxu0
    %v4285 = vadd.f32 %v3999, %v4234
    %v4286 = vadd.f32 %v4000, %v4236
    %v4287 = vadd.f32 %v4001, %v4277
    %v4288 = vadd.f32 %v4002, %v4279
    %v4289 = vadd.f32 %v4003, %v4238
    %v4290 = vadd.f32 %v4004, %v4240
    %v4291 = vadd.f32 %v4005, %v4281
    %v4292 = vadd.f32 %v4006, %v4283
    %v4293 = vxor.u32 %v4285, 2147483648
    %v4294 = vxor.u32 %v4289, 2147483648
    %v4295 = vmul.f32 %v4293, 1.442695
    %v4296 = vpow.pop %v4295
    %v4297 = vmul.f32 %v4294, 1.442695
    %v4298 = vpow.pop %v4297
    %v4299 = vadd.f32 %v4296, 1.0
    %v4300 = vadd.f32 %v4298, 1.0
    %v4301 = vrcp.pop %v4299
    %v4302 = vmul.f32 1.0, %v4301
    %v4303 = vrcp.pop %v4300
    %v4304 = vmul.f32 1.0, %v4303
    %v4305 = vxor.u32 %v4286, 2147483648
    %v4306 = vxor.u32 %v4290, 2147483648
    %v4307 = vmul.f32 %v4305, 1.442695
    %v4308 = vpow.pop %v4307
    %v4309 = vmul.f32 %v4306, 1.442695
    %v4310 = vpow.pop %v4309
    %v4311 = vadd.f32 %v4308, 1.0
    %v4312 = vadd.f32 %v4310, 1.0
    %v4313 = vrcp.pop %v4311
    %v4314 = vmul.f32 1.0, %v4313
    %v4315 = vrcp.pop %v4312
    %v4316 = vmul.f32 1.0, %v4315
    %v4317 = vtanh.pop %v4287
    %v4318 = vtanh.pop %v4291
    %v4319 = vxor.u32 %v4288, 2147483648
    %v4320 = vxor.u32 %v4292, 2147483648
    %v4321 = vmul.f32 %v4319, 1.442695
    %v4322 = vpow.pop %v4321
    %v4323 = vmul.f32 %v4320, 1.442695
    %v4324 = vpow.pop %v4323
    %v4325 = vadd.f32 %v4322, 1.0
    %v4326 = vadd.f32 %v4324, 1.0
    %v4327 = vrcp.pop %v4325
    %v4328 = vmul.f32 1.0, %v4327
    %v4329 = vrcp.pop %v4326
    %v4330 = vmul.f32 1.0, %v4329
    %v4331 = vmul.f32 %v4314, %v3983
    %v4332 = vmul.f32 %v4316, %v3984
    %v4333 = vmul.f32 %v4302, %v4317
    %v4334 = vmul.f32 %v4304, %v4318
    %v4335 = vadd.f32 %v4331, %v4333
    %v4336 = vadd.f32 %v4332, %v4334
    %v4337 = vtanh.pop %v4335
    %v4338 = vtanh.pop %v4336
    %v4339 = vmul.f32 %v4328, %v4337
    %v4340 = vmul.f32 %v4330, %v4338
    %v4341 = vpack.c.bf16 %v4340, %v4339
    %v4343 = vunpack.c.l.b16 %v4341
    %v4344 = vunpack.c.h.b16 %v4341
    %v4345 = vpack.c.b16 %v4343, %v4343
    %v4346 = vpack.c.b16 %v4344, %v4344
    %s4349 = scalar_lea.vmem [#allocation12], 8
    %4350 = vst [vmem:[%s4349] sm:$0xf] %v4345
    %4351 = vst [vmem:[%s4349 + $0x4] sm:$0xf] %v4346
    %v4352 = vld [vmem:[%s1337] sm:$0xff]
    %v4353 = vld [vmem:[%s1337 + $0x8] sm:$0xff]
    %v4354 = vld [vmem:[%s1337 + $0x10] sm:$0xff]
    %v4355 = vld [vmem:[%s1337 + $0x18] sm:$0xff]
    %v4356 = vld [vmem:[%s1337 + $0x20] sm:$0xff]
    %v4357 = vld [vmem:[%s1337 + $0x28] sm:$0xff]
    %v4358 = vld [vmem:[%s1337 + $0x30] sm:$0xff]
    %v4359 = vld [vmem:[%s1337 + $0x38] sm:$0xff]
    %v4360 = vld [vmem:[#allocation10] sm:$0xff]
    %v4361 = vld [vmem:[#allocation10 + $0x8] sm:$0xff]
    %v4362 = vld [vmem:[#allocation10 + $0x10] sm:$0xff]
    %v4363 = vld [vmem:[#allocation10 + $0x18] sm:$0xff]
    %v4364 = vld [vmem:[#allocation10 + $0x20] sm:$0xff]
    %v4365 = vld [vmem:[#allocation10 + $0x28] sm:$0xff]
    %v4366 = vld [vmem:[#allocation10 + $0x30] sm:$0xff]
    %v4367 = vld [vmem:[#allocation10 + $0x38] sm:$0xff]
    %v4368 = vld [vmem:[#allocation10 + $0x40] sm:$0xff]
    %v4369 = vld [vmem:[#allocation10 + $0x48] sm:$0xff]
    %v4370 = vld [vmem:[#allocation10 + $0x50] sm:$0xff]
    %v4371 = vld [vmem:[#allocation10 + $0x58] sm:$0xff]
    %v4372 = vld [vmem:[#allocation10 + $0x60] sm:$0xff]
    %v4373 = vld [vmem:[#allocation10 + $0x68] sm:$0xff]
    %v4374 = vld [vmem:[#allocation10 + $0x70] sm:$0xff]
    %v4375 = vld [vmem:[#allocation10 + $0x78] sm:$0xff]
    %v4376 = vld [vmem:[#allocation10 + $0x80] sm:$0xff]
    %v4377 = vld [vmem:[#allocation10 + $0x88] sm:$0xff]
    %v4378 = vld [vmem:[#allocation10 + $0x90] sm:$0xff]
    %v4379 = vld [vmem:[#allocation10 + $0x98] sm:$0xff]
    %v4380 = vld [vmem:[#allocation10 + $0xa0] sm:$0xff]
    %v4381 = vld [vmem:[#allocation10 + $0xa8] sm:$0xff]
    %v4382 = vld [vmem:[#allocation10 + $0xb0] sm:$0xff]
    %v4383 = vld [vmem:[#allocation10 + $0xb8] sm:$0xff]
    %v4384 = vld [vmem:[#allocation10 + $0xc0] sm:$0xff]
    %v4385 = vld [vmem:[#allocation10 + $0xc8] sm:$0xff]
    %v4386 = vld [vmem:[#allocation10 + $0xd0] sm:$0xff]
    %v4387 = vld [vmem:[#allocation10 + $0xd8] sm:$0xff]
    %v4388 = vld [vmem:[#allocation10 + $0xe0] sm:$0xff]
    %v4389 = vld [vmem:[#allocation10 + $0xe8] sm:$0xff]
    %v4390 = vld [vmem:[#allocation10 + $0xf0] sm:$0xff]
    %v4391 = vld [vmem:[#allocation10 + $0xf8] sm:$0xff]
    %v4424 = vunpack.c.l.b16 %v4360
    %v4425 = vunpack.c.h.b16 %v4360
    %v4426 = vunpack.c.l.b16 %v4361
    %v4427 = vunpack.c.h.b16 %v4361
    %v4428 = vunpack.c.l.b16 %v4362
    %v4429 = vunpack.c.h.b16 %v4362
    %v4430 = vunpack.c.l.b16 %v4363
    %v4431 = vunpack.c.h.b16 %v4363
    %v4432 = vunpack.c.l.b16 %v4364
    %v4433 = vunpack.c.h.b16 %v4364
    %v4434 = vunpack.c.l.b16 %v4365
    %v4435 = vunpack.c.h.b16 %v4365
    %v4436 = vunpack.c.l.b16 %v4366
    %v4437 = vunpack.c.h.b16 %v4366
    %v4438 = vunpack.c.l.b16 %v4367
    %v4439 = vunpack.c.h.b16 %v4367
    %v4440 = vunpack.c.l.b16 %v4368
    %v4441 = vunpack.c.h.b16 %v4368
    %v4442 = vunpack.c.l.b16 %v4369
    %v4443 = vunpack.c.h.b16 %v4369
    %v4444 = vunpack.c.l.b16 %v4370
    %v4445 = vunpack.c.h.b16 %v4370
    %v4446 = vunpack.c.l.b16 %v4371
    %v4447 = vunpack.c.h.b16 %v4371
    %v4448 = vunpack.c.l.b16 %v4372
    %v4449 = vunpack.c.h.b16 %v4372
    %v4450 = vunpack.c.l.b16 %v4373
    %v4451 = vunpack.c.h.b16 %v4373
    %v4452 = vunpack.c.l.b16 %v4374
    %v4453 = vunpack.c.h.b16 %v4374
    %v4454 = vunpack.c.l.b16 %v4375
    %v4455 = vunpack.c.h.b16 %v4375
    %v4456 = vunpack.c.l.b16 %v4376
    %v4457 = vunpack.c.h.b16 %v4376
    %v4458 = vunpack.c.l.b16 %v4377
    %v4459 = vunpack.c.h.b16 %v4377
    %v4460 = vunpack.c.l.b16 %v4378
    %v4461 = vunpack.c.h.b16 %v4378
    %v4462 = vunpack.c.l.b16 %v4379
    %v4463 = vunpack.c.h.b16 %v4379
    %v4464 = vunpack.c.l.b16 %v4380
    %v4465 = vunpack.c.h.b16 %v4380
    %v4466 = vunpack.c.l.b16 %v4381
    %v4467 = vunpack.c.h.b16 %v4381
    %v4468 = vunpack.c.l.b16 %v4382
    %v4469 = vunpack.c.h.b16 %v4382
    %v4470 = vunpack.c.l.b16 %v4383
    %v4471 = vunpack.c.h.b16 %v4383
    %v4472 = vunpack.c.l.b16 %v4384
    %v4473 = vunpack.c.h.b16 %v4384
    %v4474 = vunpack.c.l.b16 %v4385
    %v4475 = vunpack.c.h.b16 %v4385
    %v4476 = vunpack.c.l.b16 %v4386
    %v4477 = vunpack.c.h.b16 %v4386
    %v4478 = vunpack.c.l.b16 %v4387
    %v4479 = vunpack.c.h.b16 %v4387
    %v4480 = vunpack.c.l.b16 %v4388
    %v4481 = vunpack.c.h.b16 %v4388
    %v4482 = vunpack.c.l.b16 %v4389
    %v4483 = vunpack.c.h.b16 %v4389
    %v4484 = vunpack.c.l.b16 %v4390
    %v4485 = vunpack.c.h.b16 %v4390
    %v4486 = vunpack.c.l.b16 %v4391
    %v4487 = vunpack.c.h.b16 %v4391
    %v4488 = vpack.c.b16 %v4428, %v4424
    %v4489 = vpack.c.b16 %v4429, %v4425
    %v4490 = vpack.c.b16 %v4430, %v4426
    %v4491 = vpack.c.b16 %v4431, %v4427
    %v4492 = vpack.c.b16 %v4436, %v4432
    %v4493 = vpack.c.b16 %v4437, %v4433
    %v4494 = vpack.c.b16 %v4438, %v4434
    %v4495 = vpack.c.b16 %v4439, %v4435
    %v4496 = vpack.c.b16 %v4444, %v4440
    %v4497 = vpack.c.b16 %v4445, %v4441
    %v4498 = vpack.c.b16 %v4446, %v4442
    %v4499 = vpack.c.b16 %v4447, %v4443
    %v4500 = vpack.c.b16 %v4452, %v4448
    %v4501 = vpack.c.b16 %v4453, %v4449
    %v4502 = vpack.c.b16 %v4454, %v4450
    %v4503 = vpack.c.b16 %v4455, %v4451
    %v4504 = vpack.c.b16 %v4460, %v4456
    %v4505 = vpack.c.b16 %v4461, %v4457
    %v4506 = vpack.c.b16 %v4462, %v4458
    %v4507 = vpack.c.b16 %v4463, %v4459
    %v4508 = vpack.c.b16 %v4468, %v4464
    %v4509 = vpack.c.b16 %v4469, %v4465
    %v4510 = vpack.c.b16 %v4470, %v4466
    %v4511 = vpack.c.b16 %v4471, %v4467
    %v4512 = vpack.c.b16 %v4476, %v4472
    %v4513 = vpack.c.b16 %v4477, %v4473
    %v4514 = vpack.c.b16 %v4478, %v4474
    %v4515 = vpack.c.b16 %v4479, %v4475
    %v4516 = vpack.c.b16 %v4484, %v4480
    %v4517 = vpack.c.b16 %v4485, %v4481
    %v4518 = vpack.c.b16 %v4486, %v4482
    %v4519 = vpack.c.b16 %v4487, %v4483
    %4552 = vmatprep.subr.bf16.mxu0 %v4517
    %4553 = vmatpush1.bf16.msra.mxu0 %v4516
    %4554 = vmatprep.subr.bf16.mxu0 %v4513
    %4555 = vmatpush1.bf16.msra.mxu0 %v4512
    %4556 = vmatprep.subr.bf16.mxu0 %v4509
    %4557 = vmatpush1.bf16.msra.mxu0 %v4508
    %4558 = vmatprep.subr.bf16.mxu0 %v4505
    %4559 = vmatpush1.bf16.msra.mxu0 %v4504
    %4560 = vmatprep.subr.bf16.mxu0 %v4501
    %4561 = vmatpush1.bf16.msra.mxu0 %v4500
    %4562 = vmatprep.subr.bf16.mxu0 %v4497
    %4563 = vmatpush1.bf16.msra.mxu0 %v4496
    %4564 = vmatprep.subr.bf16.mxu0 %v4493
    %4565 = vmatpush1.bf16.msra.mxu0 %v4492
    %4566 = vmatprep.subr.bf16.mxu0 %v4489
    %4567 = vmatpush1.bf16.msra.mxu0 %v4488
    %4568 = vmatprep.subr.bf16.mxu0 0
    %4569 = vmatpush2.bf16.msra.mxu0 0
    %4570 = vmatprep.subr.bf16.mxu0 0
    %4571 = vmatpush2.bf16.msra.mxu0 0
    %4572 = vmatprep.subr.bf16.mxu0 0
    %4573 = vmatpush2.bf16.msra.mxu0 0
    %4574 = vmatprep.subr.bf16.mxu0 0
    %4575 = vmatpush2.bf16.msra.mxu0 0
    %4576 = vmatprep.subr.bf16.mxu0 0
    %4577 = vmatpush2.bf16.msra.mxu0 0
    %4578 = vmatprep.subr.bf16.mxu0 0
    %4579 = vmatpush2.bf16.msra.mxu0 0
    %4580 = vmatprep.subr.bf16.mxu0 0
    %4581 = vmatpush2.bf16.msra.mxu0 0
    %4582 = vmatprep.subr.bf16.mxu0 0
    %4583 = vmatpush2.bf16.msra.mxu0 0
    %4584 = vmatprep.mubr.bf16.mxu0 0
    %4585 = vmatmul.mubr.bf16.gmra.mxu0 %v4341
    %v4586 = vpop.f32.mrf.mxu0
    %v4587 = vadd.f32 0.0, %v4586
    %v4588 = vpop.f32.mrf.mxu0
    %v4589 = vadd.f32 0.0, %v4588
    %v4590 = vpop.f32.mrf.mxu0
    %v4591 = vadd.f32 0.0, %v4590
    %v4592 = vpop.f32.mrf.mxu0
    %v4593 = vadd.f32 0.0, %v4592
    %4594 = vdwg.mxu0
    %4595 = vmatprep.subr.bf16.mxu0 %v4519
    %4596 = vmatpush1.bf16.msra.mxu0 %v4518
    %4597 = vmatprep.subr.bf16.mxu0 %v4515
    %4598 = vmatpush1.bf16.msra.mxu0 %v4514
    %4599 = vmatprep.subr.bf16.mxu0 %v4511
    %4600 = vmatpush1.bf16.msra.mxu0 %v4510
    %4601 = vmatprep.subr.bf16.mxu0 %v4507
    %4602 = vmatpush1.bf16.msra.mxu0 %v4506
    %4603 = vmatprep.subr.bf16.mxu0 %v4503
    %4604 = vmatpush1.bf16.msra.mxu0 %v4502
    %4605 = vmatprep.subr.bf16.mxu0 %v4499
    %4606 = vmatpush1.bf16.msra.mxu0 %v4498
    %4607 = vmatprep.subr.bf16.mxu0 %v4495
    %4608 = vmatpush1.bf16.msra.mxu0 %v4494
    %4609 = vmatprep.subr.bf16.mxu0 %v4491
    %4610 = vmatpush1.bf16.msra.mxu0 %v4490
    %4611 = vmatprep.subr.bf16.mxu0 0
    %4612 = vmatpush2.bf16.msra.mxu0 0
    %4613 = vmatprep.subr.bf16.mxu0 0
    %4614 = vmatpush2.bf16.msra.mxu0 0
    %4615 = vmatprep.subr.bf16.mxu0 0
    %4616 = vmatpush2.bf16.msra.mxu0 0
    %4617 = vmatprep.subr.bf16.mxu0 0
    %4618 = vmatpush2.bf16.msra.mxu0 0
    %4619 = vmatprep.subr.bf16.mxu0 0
    %4620 = vmatpush2.bf16.msra.mxu0 0
    %4621 = vmatprep.subr.bf16.mxu0 0
    %4622 = vmatpush2.bf16.msra.mxu0 0
    %4623 = vmatprep.subr.bf16.mxu0 0
    %4624 = vmatpush2.bf16.msra.mxu0 0
    %4625 = vmatprep.subr.bf16.mxu0 0
    %4626 = vmatpush2.bf16.msra.mxu0 0
    %4627 = vmatprep.mubr.bf16.mxu0 0
    %4628 = vmatmul.mubr.bf16.gmra.mxu0 %v4341
    %v4629 = vpop.f32.mrf.mxu0
    %v4630 = vadd.f32 0.0, %v4629
    %v4631 = vpop.f32.mrf.mxu0
    %v4632 = vadd.f32 0.0, %v4631
    %v4633 = vpop.f32.mrf.mxu0
    %v4634 = vadd.f32 0.0, %v4633
    %v4635 = vpop.f32.mrf.mxu0
    %v4636 = vadd.f32 0.0, %v4635
    %4637 = vdwg.mxu0
    %v4638 = vadd.f32 %v4352, %v4587
    %v4639 = vadd.f32 %v4353, %v4589
    %v4640 = vadd.f32 %v4354, %v4630
    %v4641 = vadd.f32 %v4355, %v4632
    %v4642 = vadd.f32 %v4356, %v4591
    %v4643 = vadd.f32 %v4357, %v4593
    %v4644 = vadd.f32 %v4358, %v4634
    %v4645 = vadd.f32 %v4359, %v4636
    %v4646 = vxor.u32 %v4638, 2147483648
    %v4647 = vxor.u32 %v4642, 2147483648
    %v4648 = vmul.f32 %v4646, 1.442695
    %v4649 = vpow.pop %v4648
    %v4650 = vmul.f32 %v4647, 1.442695
    %v4651 = vpow.pop %v4650
    %v4652 = vadd.f32 %v4649, 1.0
    %v4653 = vadd.f32 %v4651, 1.0
    %v4654 = vrcp.pop %v4652
    %v4655 = vmul.f32 1.0, %v4654
    %v4656 = vrcp.pop %v4653
    %v4657 = vmul.f32 1.0, %v4656
    %v4658 = vxor.u32 %v4639, 2147483648
    %v4659 = vxor.u32 %v4643, 2147483648
    %v4660 = vmul.f32 %v4658, 1.442695
    %v4661 = vpow.pop %v4660
    %v4662 = vmul.f32 %v4659, 1.442695
    %v4663 = vpow.pop %v4662
    %v4664 = vadd.f32 %v4661, 1.0
    %v4665 = vadd.f32 %v4663, 1.0
    %v4666 = vrcp.pop %v4664
    %v4667 = vmul.f32 1.0, %v4666
    %v4668 = vrcp.pop %v4665
    %v4669 = vmul.f32 1.0, %v4668
    %v4670 = vtanh.pop %v4640
    %v4671 = vtanh.pop %v4644
    %v4672 = vxor.u32 %v4641, 2147483648
    %v4673 = vxor.u32 %v4645, 2147483648
    %v4674 = vmul.f32 %v4672, 1.442695
    %v4675 = vpow.pop %v4674
    %v4676 = vmul.f32 %v4673, 1.442695
    %v4677 = vpow.pop %v4676
    %v4678 = vadd.f32 %v4675, 1.0
    %v4679 = vadd.f32 %v4677, 1.0
    %v4680 = vrcp.pop %v4678
    %v4681 = vmul.f32 1.0, %v4680
    %v4682 = vrcp.pop %v4679
    %v4683 = vmul.f32 1.0, %v4682
    %v4684 = vmul.f32 %v4667, %v4335
    %v4685 = vmul.f32 %v4669, %v4336
    %v4686 = vmul.f32 %v4655, %v4670
    %v4687 = vmul.f32 %v4657, %v4671
    %v4688 = vadd.f32 %v4684, %v4686
    %v4689 = vadd.f32 %v4685, %v4687
    %v4690 = vtanh.pop %v4688
    %v4691 = vtanh.pop %v4689
    %v4692 = vmul.f32 %v4681, %v4690
    %v4693 = vmul.f32 %v4683, %v4691
    %v4694 = vpack.c.bf16 %v4693, %v4692
    %v4696 = vunpack.c.l.b16 %v4694
    %v4697 = vunpack.c.h.b16 %v4694
    %v4698 = vpack.c.b16 %v4696, %v4696
    %v4699 = vpack.c.b16 %v4697, %v4697
    %s4702 = scalar_lea.vmem [#allocation12], 16
    %4703 = vst [vmem:[%s4702] sm:$0xf] %v4698
    %4704 = vst [vmem:[%s4702 + $0x4] sm:$0xf] %v4699
    %v4705 = vld [vmem:[%s1693] sm:$0xff]
    %v4706 = vld [vmem:[%s1693 + $0x8] sm:$0xff]
    %v4707 = vld [vmem:[%s1693 + $0x10] sm:$0xff]
    %v4708 = vld [vmem:[%s1693 + $0x18] sm:$0xff]
    %v4709 = vld [vmem:[%s1693 + $0x20] sm:$0xff]
    %v4710 = vld [vmem:[%s1693 + $0x28] sm:$0xff]
    %v4711 = vld [vmem:[%s1693 + $0x30] sm:$0xff]
    %v4712 = vld [vmem:[%s1693 + $0x38] sm:$0xff]
    %v4713 = vld [vmem:[#allocation10] sm:$0xff]
    %v4714 = vld [vmem:[#allocation10 + $0x8] sm:$0xff]
    %v4715 = vld [vmem:[#allocation10 + $0x10] sm:$0xff]
    %v4716 = vld [vmem:[#allocation10 + $0x18] sm:$0xff]
    %v4717 = vld [vmem:[#allocation10 + $0x20] sm:$0xff]
    %v4718 = vld [vmem:[#allocation10 + $0x28] sm:$0xff]
    %v4719 = vld [vmem:[#allocation10 + $0x30] sm:$0xff]
    %v4720 = vld [vmem:[#allocation10 + $0x38] sm:$0xff]
    %v4721 = vld [vmem:[#allocation10 + $0x40] sm:$0xff]
    %v4722 = vld [vmem:[#allocation10 + $0x48] sm:$0xff]
    %v4723 = vld [vmem:[#allocation10 + $0x50] sm:$0xff]
    %v4724 = vld [vmem:[#allocation10 + $0x58] sm:$0xff]
    %v4725 = vld [vmem:[#allocation10 + $0x60] sm:$0xff]
    %v4726 = vld [vmem:[#allocation10 + $0x68] sm:$0xff]
    %v4727 = vld [vmem:[#allocation10 + $0x70] sm:$0xff]
    %v4728 = vld [vmem:[#allocation10 + $0x78] sm:$0xff]
    %v4729 = vld [vmem:[#allocation10 + $0x80] sm:$0xff]
    %v4730 = vld [vmem:[#allocation10 + $0x88] sm:$0xff]
    %v4731 = vld [vmem:[#allocation10 + $0x90] sm:$0xff]
    %v4732 = vld [vmem:[#allocation10 + $0x98] sm:$0xff]
    %v4733 = vld [vmem:[#allocation10 + $0xa0] sm:$0xff]
    %v4734 = vld [vmem:[#allocation10 + $0xa8] sm:$0xff]
    %v4735 = vld [vmem:[#allocation10 + $0xb0] sm:$0xff]
    %v4736 = vld [vmem:[#allocation10 + $0xb8] sm:$0xff]
    %v4737 = vld [vmem:[#allocation10 + $0xc0] sm:$0xff]
    %v4738 = vld [vmem:[#allocation10 + $0xc8] sm:$0xff]
    %v4739 = vld [vmem:[#allocation10 + $0xd0] sm:$0xff]
    %v4740 = vld [vmem:[#allocation10 + $0xd8] sm:$0xff]
    %v4741 = vld [vmem:[#allocation10 + $0xe0] sm:$0xff]
    %v4742 = vld [vmem:[#allocation10 + $0xe8] sm:$0xff]
    %v4743 = vld [vmem:[#allocation10 + $0xf0] sm:$0xff]
    %v4744 = vld [vmem:[#allocation10 + $0xf8] sm:$0xff]
    %v4777 = vunpack.c.l.b16 %v4713
    %v4778 = vunpack.c.h.b16 %v4713
    %v4779 = vunpack.c.l.b16 %v4714
    %v4780 = vunpack.c.h.b16 %v4714
    %v4781 = vunpack.c.l.b16 %v4715
    %v4782 = vunpack.c.h.b16 %v4715
    %v4783 = vunpack.c.l.b16 %v4716
    %v4784 = vunpack.c.h.b16 %v4716
    %v4785 = vunpack.c.l.b16 %v4717
    %v4786 = vunpack.c.h.b16 %v4717
    %v4787 = vunpack.c.l.b16 %v4718
    %v4788 = vunpack.c.h.b16 %v4718
    %v4789 = vunpack.c.l.b16 %v4719
    %v4790 = vunpack.c.h.b16 %v4719
    %v4791 = vunpack.c.l.b16 %v4720
    %v4792 = vunpack.c.h.b16 %v4720
    %v4793 = vunpack.c.l.b16 %v4721
    %v4794 = vunpack.c.h.b16 %v4721
    %v4795 = vunpack.c.l.b16 %v4722
    %v4796 = vunpack.c.h.b16 %v4722
    %v4797 = vunpack.c.l.b16 %v4723
    %v4798 = vunpack.c.h.b16 %v4723
    %v4799 = vunpack.c.l.b16 %v4724
    %v4800 = vunpack.c.h.b16 %v4724
    %v4801 = vunpack.c.l.b16 %v4725
    %v4802 = vunpack.c.h.b16 %v4725
    %v4803 = vunpack.c.l.b16 %v4726
    %v4804 = vunpack.c.h.b16 %v4726
    %v4805 = vunpack.c.l.b16 %v4727
    %v4806 = vunpack.c.h.b16 %v4727
    %v4807 = vunpack.c.l.b16 %v4728
    %v4808 = vunpack.c.h.b16 %v4728
    %v4809 = vunpack.c.l.b16 %v4729
    %v4810 = vunpack.c.h.b16 %v4729
    %v4811 = vunpack.c.l.b16 %v4730
    %v4812 = vunpack.c.h.b16 %v4730
    %v4813 = vunpack.c.l.b16 %v4731
    %v4814 = vunpack.c.h.b16 %v4731
    %v4815 = vunpack.c.l.b16 %v4732
    %v4816 = vunpack.c.h.b16 %v4732
    %v4817 = vunpack.c.l.b16 %v4733
    %v4818 = vunpack.c.h.b16 %v4733
    %v4819 = vunpack.c.l.b16 %v4734
    %v4820 = vunpack.c.h.b16 %v4734
    %v4821 = vunpack.c.l.b16 %v4735
    %v4822 = vunpack.c.h.b16 %v4735
    %v4823 = vunpack.c.l.b16 %v4736
    %v4824 = vunpack.c.h.b16 %v4736
    %v4825 = vunpack.c.l.b16 %v4737
    %v4826 = vunpack.c.h.b16 %v4737
    %v4827 = vunpack.c.l.b16 %v4738
    %v4828 = vunpack.c.h.b16 %v4738
    %v4829 = vunpack.c.l.b16 %v4739
    %v4830 = vunpack.c.h.b16 %v4739
    %v4831 = vunpack.c.l.b16 %v4740
    %v4832 = vunpack.c.h.b16 %v4740
    %v4833 = vunpack.c.l.b16 %v4741
    %v4834 = vunpack.c.h.b16 %v4741
    %v4835 = vunpack.c.l.b16 %v4742
    %v4836 = vunpack.c.h.b16 %v4742
    %v4837 = vunpack.c.l.b16 %v4743
    %v4838 = vunpack.c.h.b16 %v4743
    %v4839 = vunpack.c.l.b16 %v4744
    %v4840 = vunpack.c.h.b16 %v4744
    %v4841 = vpack.c.b16 %v4781, %v4777
    %v4842 = vpack.c.b16 %v4782, %v4778
    %v4843 = vpack.c.b16 %v4783, %v4779
    %v4844 = vpack.c.b16 %v4784, %v4780
    %v4845 = vpack.c.b16 %v4789, %v4785
    %v4846 = vpack.c.b16 %v4790, %v4786
    %v4847 = vpack.c.b16 %v4791, %v4787
    %v4848 = vpack.c.b16 %v4792, %v4788
    %v4849 = vpack.c.b16 %v4797, %v4793
    %v4850 = vpack.c.b16 %v4798, %v4794
    %v4851 = vpack.c.b16 %v4799, %v4795
    %v4852 = vpack.c.b16 %v4800, %v4796
    %v4853 = vpack.c.b16 %v4805, %v4801
    %v4854 = vpack.c.b16 %v4806, %v4802
    %v4855 = vpack.c.b16 %v4807, %v4803
    %v4856 = vpack.c.b16 %v4808, %v4804
    %v4857 = vpack.c.b16 %v4813, %v4809
    %v4858 = vpack.c.b16 %v4814, %v4810
    %v4859 = vpack.c.b16 %v4815, %v4811
    %v4860 = vpack.c.b16 %v4816, %v4812
    %v4861 = vpack.c.b16 %v4821, %v4817
    %v4862 = vpack.c.b16 %v4822, %v4818
    %v4863 = vpack.c.b16 %v4823, %v4819
    %v4864 = vpack.c.b16 %v4824, %v4820
    %v4865 = vpack.c.b16 %v4829, %v4825
    %v4866 = vpack.c.b16 %v4830, %v4826
    %v4867 = vpack.c.b16 %v4831, %v4827
    %v4868 = vpack.c.b16 %v4832, %v4828
    %v4869 = vpack.c.b16 %v4837, %v4833
    %v4870 = vpack.c.b16 %v4838, %v4834
    %v4871 = vpack.c.b16 %v4839, %v4835
    %v4872 = vpack.c.b16 %v4840, %v4836
    %4905 = vmatprep.subr.bf16.mxu0 %v4870
    %4906 = vmatpush1.bf16.msra.mxu0 %v4869
    %4907 = vmatprep.subr.bf16.mxu0 %v4866
    %4908 = vmatpush1.bf16.msra.mxu0 %v4865
    %4909 = vmatprep.subr.bf16.mxu0 %v4862
    %4910 = vmatpush1.bf16.msra.mxu0 %v4861
    %4911 = vmatprep.subr.bf16.mxu0 %v4858
    %4912 = vmatpush1.bf16.msra.mxu0 %v4857
    %4913 = vmatprep.subr.bf16.mxu0 %v4854
    %4914 = vmatpush1.bf16.msra.mxu0 %v4853
    %4915 = vmatprep.subr.bf16.mxu0 %v4850
    %4916 = vmatpush1.bf16.msra.mxu0 %v4849
    %4917 = vmatprep.subr.bf16.mxu0 %v4846
    %4918 = vmatpush1.bf16.msra.mxu0 %v4845
    %4919 = vmatprep.subr.bf16.mxu0 %v4842
    %4920 = vmatpush1.bf16.msra.mxu0 %v4841
    %4921 = vmatprep.subr.bf16.mxu0 0
    %4922 = vmatpush2.bf16.msra.mxu0 0
    %4923 = vmatprep.subr.bf16.mxu0 0
    %4924 = vmatpush2.bf16.msra.mxu0 0
    %4925 = vmatprep.subr.bf16.mxu0 0
    %4926 = vmatpush2.bf16.msra.mxu0 0
    %4927 = vmatprep.subr.bf16.mxu0 0
    %4928 = vmatpush2.bf16.msra.mxu0 0
    %4929 = vmatprep.subr.bf16.mxu0 0
    %4930 = vmatpush2.bf16.msra.mxu0 0
    %4931 = vmatprep.subr.bf16.mxu0 0
    %4932 = vmatpush2.bf16.msra.mxu0 0
    %4933 = vmatprep.subr.bf16.mxu0 0
    %4934 = vmatpush2.bf16.msra.mxu0 0
    %4935 = vmatprep.subr.bf16.mxu0 0
    %4936 = vmatpush2.bf16.msra.mxu0 0
    %4937 = vmatprep.mubr.bf16.mxu0 0
    %4938 = vmatmul.mubr.bf16.gmra.mxu0 %v4694
    %v4939 = vpop.f32.mrf.mxu0
    %v4940 = vadd.f32 0.0, %v4939
    %v4941 = vpop.f32.mrf.mxu0
    %v4942 = vadd.f32 0.0, %v4941
    %v4943 = vpop.f32.mrf.mxu0
    %v4944 = vadd.f32 0.0, %v4943
    %v4945 = vpop.f32.mrf.mxu0
    %v4946 = vadd.f32 0.0, %v4945
    %4947 = vdwg.mxu0
    %4948 = vmatprep.subr.bf16.mxu0 %v4872
    %4949 = vmatpush1.bf16.msra.mxu0 %v4871
    %4950 = vmatprep.subr.bf16.mxu0 %v4868
    %4951 = vmatpush1.bf16.msra.mxu0 %v4867
    %4952 = vmatprep.subr.bf16.mxu0 %v4864
    %4953 = vmatpush1.bf16.msra.mxu0 %v4863
    %4954 = vmatprep.subr.bf16.mxu0 %v4860
    %4955 = vmatpush1.bf16.msra.mxu0 %v4859
    %4956 = vmatprep.subr.bf16.mxu0 %v4856
    %4957 = vmatpush1.bf16.msra.mxu0 %v4855
    %4958 = vmatprep.subr.bf16.mxu0 %v4852
    %4959 = vmatpush1.bf16.msra.mxu0 %v4851
    %4960 = vmatprep.subr.bf16.mxu0 %v4848
    %4961 = vmatpush1.bf16.msra.mxu0 %v4847
    %4962 = vmatprep.subr.bf16.mxu0 %v4844
    %4963 = vmatpush1.bf16.msra.mxu0 %v4843
    %4964 = vmatprep.subr.bf16.mxu0 0
    %4965 = vmatpush2.bf16.msra.mxu0 0
    %4966 = vmatprep.subr.bf16.mxu0 0
    %4967 = vmatpush2.bf16.msra.mxu0 0
    %4968 = vmatprep.subr.bf16.mxu0 0
    %4969 = vmatpush2.bf16.msra.mxu0 0
    %4970 = vmatprep.subr.bf16.mxu0 0
    %4971 = vmatpush2.bf16.msra.mxu0 0
    %4972 = vmatprep.subr.bf16.mxu0 0
    %4973 = vmatpush2.bf16.msra.mxu0 0
    %4974 = vmatprep.subr.bf16.mxu0 0
    %4975 = vmatpush2.bf16.msra.mxu0 0
    %4976 = vmatprep.subr.bf16.mxu0 0
    %4977 = vmatpush2.bf16.msra.mxu0 0
    %4978 = vmatprep.subr.bf16.mxu0 0
    %4979 = vmatpush2.bf16.msra.mxu0 0
    %4980 = vmatprep.mubr.bf16.mxu0 0
    %4981 = vmatmul.mubr.bf16.gmra.mxu0 %v4694
    %v4982 = vpop.f32.mrf.mxu0
    %v4983 = vadd.f32 0.0, %v4982
    %v4984 = vpop.f32.mrf.mxu0
    %v4985 = vadd.f32 0.0, %v4984
    %v4986 = vpop.f32.mrf.mxu0
    %v4987 = vadd.f32 0.0, %v4986
    %v4988 = vpop.f32.mrf.mxu0
    %v4989 = vadd.f32 0.0, %v4988
    %4990 = vdwg.mxu0
    %v4991 = vadd.f32 %v4705, %v4940
    %v4992 = vadd.f32 %v4706, %v4942
    %v4993 = vadd.f32 %v4707, %v4983
    %v4994 = vadd.f32 %v4708, %v4985
    %v4995 = vadd.f32 %v4709, %v4944
    %v4996 = vadd.f32 %v4710, %v4946
    %v4997 = vadd.f32 %v4711, %v4987
    %v4998 = vadd.f32 %v4712, %v4989
    %v4999 = vxor.u32 %v4991, 2147483648
    %v5000 = vxor.u32 %v4995, 2147483648
    %v5001 = vmul.f32 %v4999, 1.442695
    %v5002 = vpow.pop %v5001
    %v5003 = vmul.f32 %v5000, 1.442695
    %v5004 = vpow.pop %v5003
    %v5005 = vadd.f32 %v5002, 1.0
    %v5006 = vadd.f32 %v5004, 1.0
    %v5007 = vrcp.pop %v5005
    %v5008 = vmul.f32 1.0, %v5007
    %v5009 = vrcp.pop %v5006
    %v5010 = vmul.f32 1.0, %v5009
    %v5011 = vxor.u32 %v4992, 2147483648
    %v5012 = vxor.u32 %v4996, 2147483648
    %v5013 = vmul.f32 %v5011, 1.442695
    %v5014 = vpow.pop %v5013
    %v5015 = vmul.f32 %v5012, 1.442695
    %v5016 = vpow.pop %v5015
    %v5017 = vadd.f32 %v5014, 1.0
    %v5018 = vadd.f32 %v5016, 1.0
    %v5019 = vrcp.pop %v5017
    %v5020 = vmul.f32 1.0, %v5019
    %v5021 = vrcp.pop %v5018
    %v5022 = vmul.f32 1.0, %v5021
    %v5023 = vtanh.pop %v4993
    %v5024 = vtanh.pop %v4997
    %v5025 = vxor.u32 %v4994, 2147483648
    %v5026 = vxor.u32 %v4998, 2147483648
    %v5027 = vmul.f32 %v5025, 1.442695
    %v5028 = vpow.pop %v5027
    %v5029 = vmul.f32 %v5026, 1.442695
    %v5030 = vpow.pop %v5029
    %v5031 = vadd.f32 %v5028, 1.0
    %v5032 = vadd.f32 %v5030, 1.0
    %v5033 = vrcp.pop %v5031
    %v5034 = vmul.f32 1.0, %v5033
    %v5035 = vrcp.pop %v5032
    %v5036 = vmul.f32 1.0, %v5035
    %v5037 = vmul.f32 %v5020, %v4688
    %v5038 = vmul.f32 %v5022, %v4689
    %v5039 = vmul.f32 %v5008, %v5023
    %v5040 = vmul.f32 %v5010, %v5024
    %v5041 = vadd.f32 %v5037, %v5039
    %v5042 = vadd.f32 %v5038, %v5040
    %v5043 = vtanh.pop %v5041
    %v5044 = vtanh.pop %v5042
    %v5045 = vmul.f32 %v5034, %v5043
    %v5046 = vmul.f32 %v5036, %v5044
    %v5047 = vpack.c.bf16 %v5046, %v5045
    %v5049 = vunpack.c.l.b16 %v5047
    %v5050 = vunpack.c.h.b16 %v5047
    %v5051 = vpack.c.b16 %v5049, %v5049
    %v5052 = vpack.c.b16 %v5050, %v5050
    %s5055 = scalar_lea.vmem [#allocation12], 24
    %5056 = vst [vmem:[%s5055] sm:$0xf] %v5051
    %5057 = vst [vmem:[%s5055 + $0x4] sm:$0xf] %v5052
    %v5058 = vld [vmem:[%s2049] sm:$0xff]
    %v5059 = vld [vmem:[%s2049 + $0x8] sm:$0xff]
    %v5060 = vld [vmem:[%s2049 + $0x10] sm:$0xff]
    %v5061 = vld [vmem:[%s2049 + $0x18] sm:$0xff]
    %v5062 = vld [vmem:[%s2049 + $0x20] sm:$0xff]
    %v5063 = vld [vmem:[%s2049 + $0x28] sm:$0xff]
    %v5064 = vld [vmem:[%s2049 + $0x30] sm:$0xff]
    %v5065 = vld [vmem:[%s2049 + $0x38] sm:$0xff]
    %v5066 = vld [vmem:[#allocation10] sm:$0xff]
    %v5067 = vld [vmem:[#allocation10 + $0x8] sm:$0xff]
    %v5068 = vld [vmem:[#allocation10 + $0x10] sm:$0xff]
    %v5069 = vld [vmem:[#allocation10 + $0x18] sm:$0xff]
    %v5070 = vld [vmem:[#allocation10 + $0x20] sm:$0xff]
    %v5071 = vld [vmem:[#allocation10 + $0x28] sm:$0xff]
    %v5072 = vld [vmem:[#allocation10 + $0x30] sm:$0xff]
    %v5073 = vld [vmem:[#allocation10 + $0x38] sm:$0xff]
    %v5074 = vld [vmem:[#allocation10 + $0x40] sm:$0xff]
    %v5075 = vld [vmem:[#allocation10 + $0x48] sm:$0xff]
    %v5076 = vld [vmem:[#allocation10 + $0x50] sm:$0xff]
    %v5077 = vld [vmem:[#allocation10 + $0x58] sm:$0xff]
    %v5078 = vld [vmem:[#allocation10 + $0x60] sm:$0xff]
    %v5079 = vld [vmem:[#allocation10 + $0x68] sm:$0xff]
    %v5080 = vld [vmem:[#allocation10 + $0x70] sm:$0xff]
    %v5081 = vld [vmem:[#allocation10 + $0x78] sm:$0xff]
    %v5082 = vld [vmem:[#allocation10 + $0x80] sm:$0xff]
    %v5083 = vld [vmem:[#allocation10 + $0x88] sm:$0xff]
    %v5084 = vld [vmem:[#allocation10 + $0x90] sm:$0xff]
    %v5085 = vld [vmem:[#allocation10 + $0x98] sm:$0xff]
    %v5086 = vld [vmem:[#allocation10 + $0xa0] sm:$0xff]
    %v5087 = vld [vmem:[#allocation10 + $0xa8] sm:$0xff]
    %v5088 = vld [vmem:[#allocation10 + $0xb0] sm:$0xff]
    %v5089 = vld [vmem:[#allocation10 + $0xb8] sm:$0xff]
    %v5090 = vld [vmem:[#allocation10 + $0xc0] sm:$0xff]
    %v5091 = vld [vmem:[#allocation10 + $0xc8] sm:$0xff]
    %v5092 = vld [vmem:[#allocation10 + $0xd0] sm:$0xff]
    %v5093 = vld [vmem:[#allocation10 + $0xd8] sm:$0xff]
    %v5094 = vld [vmem:[#allocation10 + $0xe0] sm:$0xff]
    %v5095 = vld [vmem:[#allocation10 + $0xe8] sm:$0xff]
    %v5096 = vld [vmem:[#allocation10 + $0xf0] sm:$0xff]
    %v5097 = vld [vmem:[#allocation10 + $0xf8] sm:$0xff]
    %v5130 = vunpack.c.l.b16 %v5066
    %v5131 = vunpack.c.h.b16 %v5066
    %v5132 = vunpack.c.l.b16 %v5067
    %v5133 = vunpack.c.h.b16 %v5067
    %v5134 = vunpack.c.l.b16 %v5068
    %v5135 = vunpack.c.h.b16 %v5068
    %v5136 = vunpack.c.l.b16 %v5069
    %v5137 = vunpack.c.h.b16 %v5069
    %v5138 = vunpack.c.l.b16 %v5070
    %v5139 = vunpack.c.h.b16 %v5070
    %v5140 = vunpack.c.l.b16 %v5071
    %v5141 = vunpack.c.h.b16 %v5071
    %v5142 = vunpack.c.l.b16 %v5072
    %v5143 = vunpack.c.h.b16 %v5072
    %v5144 = vunpack.c.l.b16 %v5073
    %v5145 = vunpack.c.h.b16 %v5073
    %v5146 = vunpack.c.l.b16 %v5074
    %v5147 = vunpack.c.h.b16 %v5074
    %v5148 = vunpack.c.l.b16 %v5075
    %v5149 = vunpack.c.h.b16 %v5075
    %v5150 = vunpack.c.l.b16 %v5076
    %v5151 = vunpack.c.h.b16 %v5076
    %v5152 = vunpack.c.l.b16 %v5077
    %v5153 = vunpack.c.h.b16 %v5077
    %v5154 = vunpack.c.l.b16 %v5078
    %v5155 = vunpack.c.h.b16 %v5078
    %v5156 = vunpack.c.l.b16 %v5079
    %v5157 = vunpack.c.h.b16 %v5079
    %v5158 = vunpack.c.l.b16 %v5080
    %v5159 = vunpack.c.h.b16 %v5080
    %v5160 = vunpack.c.l.b16 %v5081
    %v5161 = vunpack.c.h.b16 %v5081
    %v5162 = vunpack.c.l.b16 %v5082
    %v5163 = vunpack.c.h.b16 %v5082
    %v5164 = vunpack.c.l.b16 %v5083
    %v5165 = vunpack.c.h.b16 %v5083
    %v5166 = vunpack.c.l.b16 %v5084
    %v5167 = vunpack.c.h.b16 %v5084
    %v5168 = vunpack.c.l.b16 %v5085
    %v5169 = vunpack.c.h.b16 %v5085
    %v5170 = vunpack.c.l.b16 %v5086
    %v5171 = vunpack.c.h.b16 %v5086
    %v5172 = vunpack.c.l.b16 %v5087
    %v5173 = vunpack.c.h.b16 %v5087
    %v5174 = vunpack.c.l.b16 %v5088
    %v5175 = vunpack.c.h.b16 %v5088
    %v5176 = vunpack.c.l.b16 %v5089
    %v5177 = vunpack.c.h.b16 %v5089
    %v5178 = vunpack.c.l.b16 %v5090
    %v5179 = vunpack.c.h.b16 %v5090
    %v5180 = vunpack.c.l.b16 %v5091
    %v5181 = vunpack.c.h.b16 %v5091
    %v5182 = vunpack.c.l.b16 %v5092
    %v5183 = vunpack.c.h.b16 %v5092
    %v5184 = vunpack.c.l.b16 %v5093
    %v5185 = vunpack.c.h.b16 %v5093
    %v5186 = vunpack.c.l.b16 %v5094
    %v5187 = vunpack.c.h.b16 %v5094
    %v5188 = vunpack.c.l.b16 %v5095
    %v5189 = vunpack.c.h.b16 %v5095
    %v5190 = vunpack.c.l.b16 %v5096
    %v5191 = vunpack.c.h.b16 %v5096
    %v5192 = vunpack.c.l.b16 %v5097
    %v5193 = vunpack.c.h.b16 %v5097
    %v5194 = vpack.c.b16 %v5134, %v5130
    %v5195 = vpack.c.b16 %v5135, %v5131
    %v5196 = vpack.c.b16 %v5136, %v5132
    %v5197 = vpack.c.b16 %v5137, %v5133
    %v5198 = vpack.c.b16 %v5142, %v5138
    %v5199 = vpack.c.b16 %v5143, %v5139
    %v5200 = vpack.c.b16 %v5144, %v5140
    %v5201 = vpack.c.b16 %v5145, %v5141
    %v5202 = vpack.c.b16 %v5150, %v5146
    %v5203 = vpack.c.b16 %v5151, %v5147
    %v5204 = vpack.c.b16 %v5152, %v5148
    %v5205 = vpack.c.b16 %v5153, %v5149
    %v5206 = vpack.c.b16 %v5158, %v5154
    %v5207 = vpack.c.b16 %v5159, %v5155
    %v5208 = vpack.c.b16 %v5160, %v5156
    %v5209 = vpack.c.b16 %v5161, %v5157
    %v5210 = vpack.c.b16 %v5166, %v5162
    %v5211 = vpack.c.b16 %v5167, %v5163
    %v5212 = vpack.c.b16 %v5168, %v5164
    %v5213 = vpack.c.b16 %v5169, %v5165
    %v5214 = vpack.c.b16 %v5174, %v5170
    %v5215 = vpack.c.b16 %v5175, %v5171
    %v5216 = vpack.c.b16 %v5176, %v5172
    %v5217 = vpack.c.b16 %v5177, %v5173
    %v5218 = vpack.c.b16 %v5182, %v5178
    %v5219 = vpack.c.b16 %v5183, %v5179
    %v5220 = vpack.c.b16 %v5184, %v5180
    %v5221 = vpack.c.b16 %v5185, %v5181
    %v5222 = vpack.c.b16 %v5190, %v5186
    %v5223 = vpack.c.b16 %v5191, %v5187
    %v5224 = vpack.c.b16 %v5192, %v5188
    %v5225 = vpack.c.b16 %v5193, %v5189
    %5258 = vmatprep.subr.bf16.mxu0 %v5223
    %5259 = vmatpush1.bf16.msra.mxu0 %v5222
    %5260 = vmatprep.subr.bf16.mxu0 %v5219
    %5261 = vmatpush1.bf16.msra.mxu0 %v5218
    %5262 = vmatprep.subr.bf16.mxu0 %v5215
    %5263 = vmatpush1.bf16.msra.mxu0 %v5214
    %5264 = vmatprep.subr.bf16.mxu0 %v5211
    %5265 = vmatpush1.bf16.msra.mxu0 %v5210
    %5266 = vmatprep.subr.bf16.mxu0 %v5207
    %5267 = vmatpush1.bf16.msra.mxu0 %v5206
    %5268 = vmatprep.subr.bf16.mxu0 %v5203
    %5269 = vmatpush1.bf16.msra.mxu0 %v5202
    %5270 = vmatprep.subr.bf16.mxu0 %v5199
    %5271 = vmatpush1.bf16.msra.mxu0 %v5198
    %5272 = vmatprep.subr.bf16.mxu0 %v5195
    %5273 = vmatpush1.bf16.msra.mxu0 %v5194
    %5274 = vmatprep.subr.bf16.mxu0 0
    %5275 = vmatpush2.bf16.msra.mxu0 0
    %5276 = vmatprep.subr.bf16.mxu0 0
    %5277 = vmatpush2.bf16.msra.mxu0 0
    %5278 = vmatprep.subr.bf16.mxu0 0
    %5279 = vmatpush2.bf16.msra.mxu0 0
    %5280 = vmatprep.subr.bf16.mxu0 0
    %5281 = vmatpush2.bf16.msra.mxu0 0
    %5282 = vmatprep.subr.bf16.mxu0 0
    %5283 = vmatpush2.bf16.msra.mxu0 0
    %5284 = vmatprep.subr.bf16.mxu0 0
    %5285 = vmatpush2.bf16.msra.mxu0 0
    %5286 = vmatprep.subr.bf16.mxu0 0
    %5287 = vmatpush2.bf16.msra.mxu0 0
    %5288 = vmatprep.subr.bf16.mxu0 0
    %5289 = vmatpush2.bf16.msra.mxu0 0
    %5290 = vmatprep.mubr.bf16.mxu0 0
    %5291 = vmatmul.mubr.bf16.gmra.mxu0 %v5047
    %v5292 = vpop.f32.mrf.mxu0
    %v5293 = vadd.f32 0.0, %v5292
    %v5294 = vpop.f32.mrf.mxu0
    %v5295 = vadd.f32 0.0, %v5294
    %v5296 = vpop.f32.mrf.mxu0
    %v5297 = vadd.f32 0.0, %v5296
    %v5298 = vpop.f32.mrf.mxu0
    %v5299 = vadd.f32 0.0, %v5298
    %5300 = vdwg.mxu0
    %5301 = vmatprep.subr.bf16.mxu0 %v5225
    %5302 = vmatpush1.bf16.msra.mxu0 %v5224
    %5303 = vmatprep.subr.bf16.mxu0 %v5221
    %5304 = vmatpush1.bf16.msra.mxu0 %v5220
    %5305 = vmatprep.subr.bf16.mxu0 %v5217
    %5306 = vmatpush1.bf16.msra.mxu0 %v5216
    %5307 = vmatprep.subr.bf16.mxu0 %v5213
    %5308 = vmatpush1.bf16.msra.mxu0 %v5212
    %5309 = vmatprep.subr.bf16.mxu0 %v5209
    %5310 = vmatpush1.bf16.msra.mxu0 %v5208
    %5311 = vmatprep.subr.bf16.mxu0 %v5205
    %5312 = vmatpush1.bf16.msra.mxu0 %v5204
    %5313 = vmatprep.subr.bf16.mxu0 %v5201
    %5314 = vmatpush1.bf16.msra.mxu0 %v5200
    %5315 = vmatprep.subr.bf16.mxu0 %v5197
    %5316 = vmatpush1.bf16.msra.mxu0 %v5196
    %5317 = vmatprep.subr.bf16.mxu0 0
    %5318 = vmatpush2.bf16.msra.mxu0 0
    %5319 = vmatprep.subr.bf16.mxu0 0
    %5320 = vmatpush2.bf16.msra.mxu0 0
    %5321 = vmatprep.subr.bf16.mxu0 0
    %5322 = vmatpush2.bf16.msra.mxu0 0
    %5323 = vmatprep.subr.bf16.mxu0 0
    %5324 = vmatpush2.bf16.msra.mxu0 0
    %5325 = vmatprep.subr.bf16.mxu0 0
    %5326 = vmatpush2.bf16.msra.mxu0 0
    %5327 = vmatprep.subr.bf16.mxu0 0
    %5328 = vmatpush2.bf16.msra.mxu0 0
    %5329 = vmatprep.subr.bf16.mxu0 0
    %5330 = vmatpush2.bf16.msra.mxu0 0
    %5331 = vmatprep.subr.bf16.mxu0 0
    %5332 = vmatpush2.bf16.msra.mxu0 0
    %5333 = vmatprep.mubr.bf16.mxu0 0
    %5334 = vmatmul.mubr.bf16.gmra.mxu0 %v5047
    %v5335 = vpop.f32.mrf.mxu0
    %v5336 = vadd.f32 0.0, %v5335
    %v5337 = vpop.f32.mrf.mxu0
    %v5338 = vadd.f32 0.0, %v5337
    %v5339 = vpop.f32.mrf.mxu0
    %v5340 = vadd.f32 0.0, %v5339
    %v5341 = vpop.f32.mrf.mxu0
    %v5342 = vadd.f32 0.0, %v5341
    %5343 = vdwg.mxu0
    %v5344 = vadd.f32 %v5058, %v5293
    %v5345 = vadd.f32 %v5059, %v5295
    %v5346 = vadd.f32 %v5060, %v5336
    %v5347 = vadd.f32 %v5061, %v5338
    %v5348 = vadd.f32 %v5062, %v5297
    %v5349 = vadd.f32 %v5063, %v5299
    %v5350 = vadd.f32 %v5064, %v5340
    %v5351 = vadd.f32 %v5065, %v5342
    %v5352 = vxor.u32 %v5344, 2147483648
    %v5353 = vxor.u32 %v5348, 2147483648
    %v5354 = vmul.f32 %v5352, 1.442695
    %v5355 = vpow.pop %v5354
    %v5356 = vmul.f32 %v5353, 1.442695
    %v5357 = vpow.pop %v5356
    %v5358 = vadd.f32 %v5355, 1.0
    %v5359 = vadd.f32 %v5357, 1.0
    %v5360 = vrcp.pop %v5358
    %v5361 = vmul.f32 1.0, %v5360
    %v5362 = vrcp.pop %v5359
    %v5363 = vmul.f32 1.0, %v5362
    %v5364 = vxor.u32 %v5345, 2147483648
    %v5365 = vxor.u32 %v5349, 2147483648
    %v5366 = vmul.f32 %v5364, 1.442695
    %v5367 = vpow.pop %v5366
    %v5368 = vmul.f32 %v5365, 1.442695
    %v5369 = vpow.pop %v5368
    %v5370 = vadd.f32 %v5367, 1.0
    %v5371 = vadd.f32 %v5369, 1.0
    %v5372 = vrcp.pop %v5370
    %v5373 = vmul.f32 1.0, %v5372
    %v5374 = vrcp.pop %v5371
    %v5375 = vmul.f32 1.0, %v5374
    %v5376 = vtanh.pop %v5346
    %v5377 = vtanh.pop %v5350
    %v5378 = vxor.u32 %v5347, 2147483648
    %v5379 = vxor.u32 %v5351, 2147483648
    %v5380 = vmul.f32 %v5378, 1.442695
    %v5381 = vpow.pop %v5380
    %v5382 = vmul.f32 %v5379, 1.442695
    %v5383 = vpow.pop %v5382
    %v5384 = vadd.f32 %v5381, 1.0
    %v5385 = vadd.f32 %v5383, 1.0
    %v5386 = vrcp.pop %v5384
    %v5387 = vmul.f32 1.0, %v5386
    %v5388 = vrcp.pop %v5385
    %v5389 = vmul.f32 1.0, %v5388
    %v5390 = vmul.f32 %v5373, %v5041
    %v5391 = vmul.f32 %v5375, %v5042
    %v5392 = vmul.f32 %v5361, %v5376
    %v5393 = vmul.f32 %v5363, %v5377
    %v5394 = vadd.f32 %v5390, %v5392
    %v5395 = vadd.f32 %v5391, %v5393
    %v5396 = vtanh.pop %v5394
    %v5397 = vtanh.pop %v5395
    %v5398 = vmul.f32 %v5387, %v5396
    %v5399 = vmul.f32 %v5389, %v5397
    %v5400 = vpack.c.bf16 %v5399, %v5398
    %v5402 = vunpack.c.l.b16 %v5400
    %v5403 = vunpack.c.h.b16 %v5400
    %v5404 = vpack.c.b16 %v5402, %v5402
    %v5405 = vpack.c.b16 %v5403, %v5403
    %s5408 = scalar_lea.vmem [#allocation12], 32
    %5409 = vst [vmem:[%s5408] sm:$0xf] %v5404
    %5410 = vst [vmem:[%s5408 + $0x4] sm:$0xf] %v5405
    %v5411 = vld [vmem:[%s2405] sm:$0xff]
    %v5412 = vld [vmem:[%s2405 + $0x8] sm:$0xff]
    %v5413 = vld [vmem:[%s2405 + $0x10] sm:$0xff]
    %v5414 = vld [vmem:[%s2405 + $0x18] sm:$0xff]
    %v5415 = vld [vmem:[%s2405 + $0x20] sm:$0xff]
    %v5416 = vld [vmem:[%s2405 + $0x28] sm:$0xff]
    %v5417 = vld [vmem:[%s2405 + $0x30] sm:$0xff]
    %v5418 = vld [vmem:[%s2405 + $0x38] sm:$0xff]
    %v5419 = vld [vmem:[#allocation10] sm:$0xff]
    %v5420 = vld [vmem:[#allocation10 + $0x8] sm:$0xff]
    %v5421 = vld [vmem:[#allocation10 + $0x10] sm:$0xff]
    %v5422 = vld [vmem:[#allocation10 + $0x18] sm:$0xff]
    %v5423 = vld [vmem:[#allocation10 + $0x20] sm:$0xff]
    %v5424 = vld [vmem:[#allocation10 + $0x28] sm:$0xff]
    %v5425 = vld [vmem:[#allocation10 + $0x30] sm:$0xff]
    %v5426 = vld [vmem:[#allocation10 + $0x38] sm:$0xff]
    %v5427 = vld [vmem:[#allocation10 + $0x40] sm:$0xff]
    %v5428 = vld [vmem:[#allocation10 + $0x48] sm:$0xff]
    %v5429 = vld [vmem:[#allocation10 + $0x50] sm:$0xff]
    %v5430 = vld [vmem:[#allocation10 + $0x58] sm:$0xff]
    %v5431 = vld [vmem:[#allocation10 + $0x60] sm:$0xff]
    %v5432 = vld [vmem:[#allocation10 + $0x68] sm:$0xff]
    %v5433 = vld [vmem:[#allocation10 + $0x70] sm:$0xff]
    %v5434 = vld [vmem:[#allocation10 + $0x78] sm:$0xff]
    %v5435 = vld [vmem:[#allocation10 + $0x80] sm:$0xff]
    %v5436 = vld [vmem:[#allocation10 + $0x88] sm:$0xff]
    %v5437 = vld [vmem:[#allocation10 + $0x90] sm:$0xff]
    %v5438 = vld [vmem:[#allocation10 + $0x98] sm:$0xff]
    %v5439 = vld [vmem:[#allocation10 + $0xa0] sm:$0xff]
    %v5440 = vld [vmem:[#allocation10 + $0xa8] sm:$0xff]
    %v5441 = vld [vmem:[#allocation10 + $0xb0] sm:$0xff]
    %v5442 = vld [vmem:[#allocation10 + $0xb8] sm:$0xff]
    %v5443 = vld [vmem:[#allocation10 + $0xc0] sm:$0xff]
    %v5444 = vld [vmem:[#allocation10 + $0xc8] sm:$0xff]
    %v5445 = vld [vmem:[#allocation10 + $0xd0] sm:$0xff]
    %v5446 = vld [vmem:[#allocation10 + $0xd8] sm:$0xff]
    %v5447 = vld [vmem:[#allocation10 + $0xe0] sm:$0xff]
    %v5448 = vld [vmem:[#allocation10 + $0xe8] sm:$0xff]
    %v5449 = vld [vmem:[#allocation10 + $0xf0] sm:$0xff]
    %v5450 = vld [vmem:[#allocation10 + $0xf8] sm:$0xff]
    %v5483 = vunpack.c.l.b16 %v5419
    %v5484 = vunpack.c.h.b16 %v5419
    %v5485 = vunpack.c.l.b16 %v5420
    %v5486 = vunpack.c.h.b16 %v5420
    %v5487 = vunpack.c.l.b16 %v5421
    %v5488 = vunpack.c.h.b16 %v5421
    %v5489 = vunpack.c.l.b16 %v5422
    %v5490 = vunpack.c.h.b16 %v5422
    %v5491 = vunpack.c.l.b16 %v5423
    %v5492 = vunpack.c.h.b16 %v5423
    %v5493 = vunpack.c.l.b16 %v5424
    %v5494 = vunpack.c.h.b16 %v5424
    %v5495 = vunpack.c.l.b16 %v5425
    %v5496 = vunpack.c.h.b16 %v5425
    %v5497 = vunpack.c.l.b16 %v5426
    %v5498 = vunpack.c.h.b16 %v5426
    %v5499 = vunpack.c.l.b16 %v5427
    %v5500 = vunpack.c.h.b16 %v5427
    %v5501 = vunpack.c.l.b16 %v5428
    %v5502 = vunpack.c.h.b16 %v5428
    %v5503 = vunpack.c.l.b16 %v5429
    %v5504 = vunpack.c.h.b16 %v5429
    %v5505 = vunpack.c.l.b16 %v5430
    %v5506 = vunpack.c.h.b16 %v5430
    %v5507 = vunpack.c.l.b16 %v5431
    %v5508 = vunpack.c.h.b16 %v5431
    %v5509 = vunpack.c.l.b16 %v5432
    %v5510 = vunpack.c.h.b16 %v5432
    %v5511 = vunpack.c.l.b16 %v5433
    %v5512 = vunpack.c.h.b16 %v5433
    %v5513 = vunpack.c.l.b16 %v5434
    %v5514 = vunpack.c.h.b16 %v5434
    %v5515 = vunpack.c.l.b16 %v5435
    %v5516 = vunpack.c.h.b16 %v5435
    %v5517 = vunpack.c.l.b16 %v5436
    %v5518 = vunpack.c.h.b16 %v5436
    %v5519 = vunpack.c.l.b16 %v5437
    %v5520 = vunpack.c.h.b16 %v5437
    %v5521 = vunpack.c.l.b16 %v5438
    %v5522 = vunpack.c.h.b16 %v5438
    %v5523 = vunpack.c.l.b16 %v5439
    %v5524 = vunpack.c.h.b16 %v5439
    %v5525 = vunpack.c.l.b16 %v5440
    %v5526 = vunpack.c.h.b16 %v5440
    %v5527 = vunpack.c.l.b16 %v5441
    %v5528 = vunpack.c.h.b16 %v5441
    %v5529 = vunpack.c.l.b16 %v5442
    %v5530 = vunpack.c.h.b16 %v5442
    %v5531 = vunpack.c.l.b16 %v5443
    %v5532 = vunpack.c.h.b16 %v5443
    %v5533 = vunpack.c.l.b16 %v5444
    %v5534 = vunpack.c.h.b16 %v5444
    %v5535 = vunpack.c.l.b16 %v5445
    %v5536 = vunpack.c.h.b16 %v5445
    %v5537 = vunpack.c.l.b16 %v5446
    %v5538 = vunpack.c.h.b16 %v5446
    %v5539 = vunpack.c.l.b16 %v5447
    %v5540 = vunpack.c.h.b16 %v5447
    %v5541 = vunpack.c.l.b16 %v5448
    %v5542 = vunpack.c.h.b16 %v5448
    %v5543 = vunpack.c.l.b16 %v5449
    %v5544 = vunpack.c.h.b16 %v5449
    %v5545 = vunpack.c.l.b16 %v5450
    %v5546 = vunpack.c.h.b16 %v5450
    %v5547 = vpack.c.b16 %v5487, %v5483
    %v5548 = vpack.c.b16 %v5488, %v5484
    %v5549 = vpack.c.b16 %v5489, %v5485
    %v5550 = vpack.c.b16 %v5490, %v5486
    %v5551 = vpack.c.b16 %v5495, %v5491
    %v5552 = vpack.c.b16 %v5496, %v5492
    %v5553 = vpack.c.b16 %v5497, %v5493
    %v5554 = vpack.c.b16 %v5498, %v5494
    %v5555 = vpack.c.b16 %v5503, %v5499
    %v5556 = vpack.c.b16 %v5504, %v5500
    %v5557 = vpack.c.b16 %v5505, %v5501
    %v5558 = vpack.c.b16 %v5506, %v5502
    %v5559 = vpack.c.b16 %v5511, %v5507
    %v5560 = vpack.c.b16 %v5512, %v5508
    %v5561 = vpack.c.b16 %v5513, %v5509
    %v5562 = vpack.c.b16 %v5514, %v5510
    %v5563 = vpack.c.b16 %v5519, %v5515
    %v5564 = vpack.c.b16 %v5520, %v5516
    %v5565 = vpack.c.b16 %v5521, %v5517
    %v5566 = vpack.c.b16 %v5522, %v5518
    %v5567 = vpack.c.b16 %v5527, %v5523
    %v5568 = vpack.c.b16 %v5528, %v5524
    %v5569 = vpack.c.b16 %v5529, %v5525
    %v5570 = vpack.c.b16 %v5530, %v5526
    %v5571 = vpack.c.b16 %v5535, %v5531
    %v5572 = vpack.c.b16 %v5536, %v5532
    %v5573 = vpack.c.b16 %v5537, %v5533
    %v5574 = vpack.c.b16 %v5538, %v5534
    %v5575 = vpack.c.b16 %v5543, %v5539
    %v5576 = vpack.c.b16 %v5544, %v5540
    %v5577 = vpack.c.b16 %v5545, %v5541
    %v5578 = vpack.c.b16 %v5546, %v5542
    %5611 = vmatprep.subr.bf16.mxu0 %v5576
    %5612 = vmatpush1.bf16.msra.mxu0 %v5575
    %5613 = vmatprep.subr.bf16.mxu0 %v5572
    %5614 = vmatpush1.bf16.msra.mxu0 %v5571
    %5615 = vmatprep.subr.bf16.mxu0 %v5568
    %5616 = vmatpush1.bf16.msra.mxu0 %v5567
    %5617 = vmatprep.subr.bf16.mxu0 %v5564
    %5618 = vmatpush1.bf16.msra.mxu0 %v5563
    %5619 = vmatprep.subr.bf16.mxu0 %v5560
    %5620 = vmatpush1.bf16.msra.mxu0 %v5559
    %5621 = vmatprep.subr.bf16.mxu0 %v5556
    %5622 = vmatpush1.bf16.msra.mxu0 %v5555
    %5623 = vmatprep.subr.bf16.mxu0 %v5552
    %5624 = vmatpush1.bf16.msra.mxu0 %v5551
    %5625 = vmatprep.subr.bf16.mxu0 %v5548
    %5626 = vmatpush1.bf16.msra.mxu0 %v5547
    %5627 = vmatprep.subr.bf16.mxu0 0
    %5628 = vmatpush2.bf16.msra.mxu0 0
    %5629 = vmatprep.subr.bf16.mxu0 0
    %5630 = vmatpush2.bf16.msra.mxu0 0
    %5631 = vmatprep.subr.bf16.mxu0 0
    %5632 = vmatpush2.bf16.msra.mxu0 0
    %5633 = vmatprep.subr.bf16.mxu0 0
    %5634 = vmatpush2.bf16.msra.mxu0 0
    %5635 = vmatprep.subr.bf16.mxu0 0
    %5636 = vmatpush2.bf16.msra.mxu0 0
    %5637 = vmatprep.subr.bf16.mxu0 0
    %5638 = vmatpush2.bf16.msra.mxu0 0
    %5639 = vmatprep.subr.bf16.mxu0 0
    %5640 = vmatpush2.bf16.msra.mxu0 0
    %5641 = vmatprep.subr.bf16.mxu0 0
    %5642 = vmatpush2.bf16.msra.mxu0 0
    %5643 = vmatprep.mubr.bf16.mxu0 0
    %5644 = vmatmul.mubr.bf16.gmra.mxu0 %v5400
    %v5645 = vpop.f32.mrf.mxu0
    %v5646 = vadd.f32 0.0, %v5645
    %v5647 = vpop.f32.mrf.mxu0
    %v5648 = vadd.f32 0.0, %v5647
    %v5649 = vpop.f32.mrf.mxu0
    %v5650 = vadd.f32 0.0, %v5649
    %v5651 = vpop.f32.mrf.mxu0
    %v5652 = vadd.f32 0.0, %v5651
    %5653 = vdwg.mxu0
    %5654 = vmatprep.subr.bf16.mxu0 %v5578
    %5655 = vmatpush1.bf16.msra.mxu0 %v5577
    %5656 = vmatprep.subr.bf16.mxu0 %v5574
    %5657 = vmatpush1.bf16.msra.mxu0 %v5573
    %5658 = vmatprep.subr.bf16.mxu0 %v5570
    %5659 = vmatpush1.bf16.msra.mxu0 %v5569
    %5660 = vmatprep.subr.bf16.mxu0 %v5566
    %5661 = vmatpush1.bf16.msra.mxu0 %v5565
    %5662 = vmatprep.subr.bf16.mxu0 %v5562
    %5663 = vmatpush1.bf16.msra.mxu0 %v5561
    %5664 = vmatprep.subr.bf16.mxu0 %v5558
    %5665 = vmatpush1.bf16.msra.mxu0 %v5557
    %5666 = vmatprep.subr.bf16.mxu0 %v5554
    %5667 = vmatpush1.bf16.msra.mxu0 %v5553
    %5668 = vmatprep.subr.bf16.mxu0 %v5550
    %5669 = vmatpush1.bf16.msra.mxu0 %v5549
    %5670 = vmatprep.subr.bf16.mxu0 0
    %5671 = vmatpush2.bf16.msra.mxu0 0
    %5672 = vmatprep.subr.bf16.mxu0 0
    %5673 = vmatpush2.bf16.msra.mxu0 0
    %5674 = vmatprep.subr.bf16.mxu0 0
    %5675 = vmatpush2.bf16.msra.mxu0 0
    %5676 = vmatprep.subr.bf16.mxu0 0
    %5677 = vmatpush2.bf16.msra.mxu0 0
    %5678 = vmatprep.subr.bf16.mxu0 0
    %5679 = vmatpush2.bf16.msra.mxu0 0
    %5680 = vmatprep.subr.bf16.mxu0 0
    %5681 = vmatpush2.bf16.msra.mxu0 0
    %5682 = vmatprep.subr.bf16.mxu0 0
    %5683 = vmatpush2.bf16.msra.mxu0 0
    %5684 = vmatprep.subr.bf16.mxu0 0
    %5685 = vmatpush2.bf16.msra.mxu0 0
    %5686 = vmatprep.mubr.bf16.mxu0 0
    %5687 = vmatmul.mubr.bf16.gmra.mxu0 %v5400
    %v5688 = vpop.f32.mrf.mxu0
    %v5689 = vadd.f32 0.0, %v5688
    %v5690 = vpop.f32.mrf.mxu0
    %v5691 = vadd.f32 0.0, %v5690
    %v5692 = vpop.f32.mrf.mxu0
    %v5693 = vadd.f32 0.0, %v5692
    %v5694 = vpop.f32.mrf.mxu0
    %v5695 = vadd.f32 0.0, %v5694
    %5696 = vdwg.mxu0
    %v5697 = vadd.f32 %v5411, %v5646
    %v5698 = vadd.f32 %v5412, %v5648
    %v5699 = vadd.f32 %v5413, %v5689
    %v5700 = vadd.f32 %v5414, %v5691
    %v5701 = vadd.f32 %v5415, %v5650
    %v5702 = vadd.f32 %v5416, %v5652
    %v5703 = vadd.f32 %v5417, %v5693
    %v5704 = vadd.f32 %v5418, %v5695
    %v5705 = vxor.u32 %v5697, 2147483648
    %v5706 = vxor.u32 %v5701, 2147483648
    %v5707 = vmul.f32 %v5705, 1.442695
    %v5708 = vpow.pop %v5707
    %v5709 = vmul.f32 %v5706, 1.442695
    %v5710 = vpow.pop %v5709
    %v5711 = vadd.f32 %v5708, 1.0
    %v5712 = vadd.f32 %v5710, 1.0
    %v5713 = vrcp.pop %v5711
    %v5714 = vmul.f32 1.0, %v5713
    %v5715 = vrcp.pop %v5712
    %v5716 = vmul.f32 1.0, %v5715
    %v5717 = vxor.u32 %v5698, 2147483648
    %v5718 = vxor.u32 %v5702, 2147483648
    %v5719 = vmul.f32 %v5717, 1.442695
    %v5720 = vpow.pop %v5719
    %v5721 = vmul.f32 %v5718, 1.442695
    %v5722 = vpow.pop %v5721
    %v5723 = vadd.f32 %v5720, 1.0
    %v5724 = vadd.f32 %v5722, 1.0
    %v5725 = vrcp.pop %v5723
    %v5726 = vmul.f32 1.0, %v5725
    %v5727 = vrcp.pop %v5724
    %v5728 = vmul.f32 1.0, %v5727
    %v5729 = vtanh.pop %v5699
    %v5730 = vtanh.pop %v5703
    %v5731 = vxor.u32 %v5700, 2147483648
    %v5732 = vxor.u32 %v5704, 2147483648
    %v5733 = vmul.f32 %v5731, 1.442695
    %v5734 = vpow.pop %v5733
    %v5735 = vmul.f32 %v5732, 1.442695
    %v5736 = vpow.pop %v5735
    %v5737 = vadd.f32 %v5734, 1.0
    %v5738 = vadd.f32 %v5736, 1.0
    %v5739 = vrcp.pop %v5737
    %v5740 = vmul.f32 1.0, %v5739
    %v5741 = vrcp.pop %v5738
    %v5742 = vmul.f32 1.0, %v5741
    %v5743 = vmul.f32 %v5726, %v5394
    %v5744 = vmul.f32 %v5728, %v5395
    %v5745 = vmul.f32 %v5714, %v5729
    %v5746 = vmul.f32 %v5716, %v5730
    %v5747 = vadd.f32 %v5743, %v5745
    %v5748 = vadd.f32 %v5744, %v5746
    %v5749 = vtanh.pop %v5747
    %v5750 = vtanh.pop %v5748
    %v5751 = vmul.f32 %v5740, %v5749
    %v5752 = vmul.f32 %v5742, %v5750
    %v5753 = vpack.c.bf16 %v5752, %v5751
    %v5755 = vunpack.c.l.b16 %v5753
    %v5756 = vunpack.c.h.b16 %v5753
    %v5757 = vpack.c.b16 %v5755, %v5755
    %v5758 = vpack.c.b16 %v5756, %v5756
    %s5761 = scalar_lea.vmem [#allocation12], 40
    %5762 = vst [vmem:[%s5761] sm:$0xf] %v5757
    %5763 = vst [vmem:[%s5761 + $0x4] sm:$0xf] %v5758
    %v5764 = vld [vmem:[%s2761] sm:$0xff]
    %v5765 = vld [vmem:[%s2761 + $0x8] sm:$0xff]
    %v5766 = vld [vmem:[%s2761 + $0x10] sm:$0xff]
    %v5767 = vld [vmem:[%s2761 + $0x18] sm:$0xff]
    %v5768 = vld [vmem:[%s2761 + $0x20] sm:$0xff]
    %v5769 = vld [vmem:[%s2761 + $0x28] sm:$0xff]
    %v5770 = vld [vmem:[%s2761 + $0x30] sm:$0xff]
    %v5771 = vld [vmem:[%s2761 + $0x38] sm:$0xff]
    %v5772 = vld [vmem:[#allocation10] sm:$0xff]
    %v5773 = vld [vmem:[#allocation10 + $0x8] sm:$0xff]
    %v5774 = vld [vmem:[#allocation10 + $0x10] sm:$0xff]
    %v5775 = vld [vmem:[#allocation10 + $0x18] sm:$0xff]
    %v5776 = vld [vmem:[#allocation10 + $0x20] sm:$0xff]
    %v5777 = vld [vmem:[#allocation10 + $0x28] sm:$0xff]
    %v5778 = vld [vmem:[#allocation10 + $0x30] sm:$0xff]
    %v5779 = vld [vmem:[#allocation10 + $0x38] sm:$0xff]
    %v5780 = vld [vmem:[#allocation10 + $0x40] sm:$0xff]
    %v5781 = vld [vmem:[#allocation10 + $0x48] sm:$0xff]
    %v5782 = vld [vmem:[#allocation10 + $0x50] sm:$0xff]
    %v5783 = vld [vmem:[#allocation10 + $0x58] sm:$0xff]
    %v5784 = vld [vmem:[#allocation10 + $0x60] sm:$0xff]
    %v5785 = vld [vmem:[#allocation10 + $0x68] sm:$0xff]
    %v5786 = vld [vmem:[#allocation10 + $0x70] sm:$0xff]
    %v5787 = vld [vmem:[#allocation10 + $0x78] sm:$0xff]
    %v5788 = vld [vmem:[#allocation10 + $0x80] sm:$0xff]
    %v5789 = vld [vmem:[#allocation10 + $0x88] sm:$0xff]
    %v5790 = vld [vmem:[#allocation10 + $0x90] sm:$0xff]
    %v5791 = vld [vmem:[#allocation10 + $0x98] sm:$0xff]
    %v5792 = vld [vmem:[#allocation10 + $0xa0] sm:$0xff]
    %v5793 = vld [vmem:[#allocation10 + $0xa8] sm:$0xff]
    %v5794 = vld [vmem:[#allocation10 + $0xb0] sm:$0xff]
    %v5795 = vld [vmem:[#allocation10 + $0xb8] sm:$0xff]
    %v5796 = vld [vmem:[#allocation10 + $0xc0] sm:$0xff]
    %v5797 = vld [vmem:[#allocation10 + $0xc8] sm:$0xff]
    %v5798 = vld [vmem:[#allocation10 + $0xd0] sm:$0xff]
    %v5799 = vld [vmem:[#allocation10 + $0xd8] sm:$0xff]
    %v5800 = vld [vmem:[#allocation10 + $0xe0] sm:$0xff]
    %v5801 = vld [vmem:[#allocation10 + $0xe8] sm:$0xff]
    %v5802 = vld [vmem:[#allocation10 + $0xf0] sm:$0xff]
    %v5803 = vld [vmem:[#allocation10 + $0xf8] sm:$0xff]
    %v5836 = vunpack.c.l.b16 %v5772
    %v5837 = vunpack.c.h.b16 %v5772
    %v5838 = vunpack.c.l.b16 %v5773
    %v5839 = vunpack.c.h.b16 %v5773
    %v5840 = vunpack.c.l.b16 %v5774
    %v5841 = vunpack.c.h.b16 %v5774
    %v5842 = vunpack.c.l.b16 %v5775
    %v5843 = vunpack.c.h.b16 %v5775
    %v5844 = vunpack.c.l.b16 %v5776
    %v5845 = vunpack.c.h.b16 %v5776
    %v5846 = vunpack.c.l.b16 %v5777
    %v5847 = vunpack.c.h.b16 %v5777
    %v5848 = vunpack.c.l.b16 %v5778
    %v5849 = vunpack.c.h.b16 %v5778
    %v5850 = vunpack.c.l.b16 %v5779
    %v5851 = vunpack.c.h.b16 %v5779
    %v5852 = vunpack.c.l.b16 %v5780
    %v5853 = vunpack.c.h.b16 %v5780
    %v5854 = vunpack.c.l.b16 %v5781
    %v5855 = vunpack.c.h.b16 %v5781
    %v5856 = vunpack.c.l.b16 %v5782
    %v5857 = vunpack.c.h.b16 %v5782
    %v5858 = vunpack.c.l.b16 %v5783
    %v5859 = vunpack.c.h.b16 %v5783
    %v5860 = vunpack.c.l.b16 %v5784
    %v5861 = vunpack.c.h.b16 %v5784
    %v5862 = vunpack.c.l.b16 %v5785
    %v5863 = vunpack.c.h.b16 %v5785
    %v5864 = vunpack.c.l.b16 %v5786
    %v5865 = vunpack.c.h.b16 %v5786
    %v5866 = vunpack.c.l.b16 %v5787
    %v5867 = vunpack.c.h.b16 %v5787
    %v5868 = vunpack.c.l.b16 %v5788
    %v5869 = vunpack.c.h.b16 %v5788
    %v5870 = vunpack.c.l.b16 %v5789
    %v5871 = vunpack.c.h.b16 %v5789
    %v5872 = vunpack.c.l.b16 %v5790
    %v5873 = vunpack.c.h.b16 %v5790
    %v5874 = vunpack.c.l.b16 %v5791
    %v5875 = vunpack.c.h.b16 %v5791
    %v5876 = vunpack.c.l.b16 %v5792
    %v5877 = vunpack.c.h.b16 %v5792
    %v5878 = vunpack.c.l.b16 %v5793
    %v5879 = vunpack.c.h.b16 %v5793
    %v5880 = vunpack.c.l.b16 %v5794
    %v5881 = vunpack.c.h.b16 %v5794
    %v5882 = vunpack.c.l.b16 %v5795
    %v5883 = vunpack.c.h.b16 %v5795
    %v5884 = vunpack.c.l.b16 %v5796
    %v5885 = vunpack.c.h.b16 %v5796
    %v5886 = vunpack.c.l.b16 %v5797
    %v5887 = vunpack.c.h.b16 %v5797
    %v5888 = vunpack.c.l.b16 %v5798
    %v5889 = vunpack.c.h.b16 %v5798
    %v5890 = vunpack.c.l.b16 %v5799
    %v5891 = vunpack.c.h.b16 %v5799
    %v5892 = vunpack.c.l.b16 %v5800
    %v5893 = vunpack.c.h.b16 %v5800
    %v5894 = vunpack.c.l.b16 %v5801
    %v5895 = vunpack.c.h.b16 %v5801
    %v5896 = vunpack.c.l.b16 %v5802
    %v5897 = vunpack.c.h.b16 %v5802
    %v5898 = vunpack.c.l.b16 %v5803
    %v5899 = vunpack.c.h.b16 %v5803
    %v5900 = vpack.c.b16 %v5840, %v5836
    %v5901 = vpack.c.b16 %v5841, %v5837
    %v5902 = vpack.c.b16 %v5842, %v5838
    %v5903 = vpack.c.b16 %v5843, %v5839
    %v5904 = vpack.c.b16 %v5848, %v5844
    %v5905 = vpack.c.b16 %v5849, %v5845
    %v5906 = vpack.c.b16 %v5850, %v5846
    %v5907 = vpack.c.b16 %v5851, %v5847
    %v5908 = vpack.c.b16 %v5856, %v5852
    %v5909 = vpack.c.b16 %v5857, %v5853
    %v5910 = vpack.c.b16 %v5858, %v5854
    %v5911 = vpack.c.b16 %v5859, %v5855
    %v5912 = vpack.c.b16 %v5864, %v5860
    %v5913 = vpack.c.b16 %v5865, %v5861
    %v5914 = vpack.c.b16 %v5866, %v5862
    %v5915 = vpack.c.b16 %v5867, %v5863
    %v5916 = vpack.c.b16 %v5872, %v5868
    %v5917 = vpack.c.b16 %v5873, %v5869
    %v5918 = vpack.c.b16 %v5874, %v5870
    %v5919 = vpack.c.b16 %v5875, %v5871
    %v5920 = vpack.c.b16 %v5880, %v5876
    %v5921 = vpack.c.b16 %v5881, %v5877
    %v5922 = vpack.c.b16 %v5882, %v5878
    %v5923 = vpack.c.b16 %v5883, %v5879
    %v5924 = vpack.c.b16 %v5888, %v5884
    %v5925 = vpack.c.b16 %v5889, %v5885
    %v5926 = vpack.c.b16 %v5890, %v5886
    %v5927 = vpack.c.b16 %v5891, %v5887
    %v5928 = vpack.c.b16 %v5896, %v5892
    %v5929 = vpack.c.b16 %v5897, %v5893
    %v5930 = vpack.c.b16 %v5898, %v5894
    %v5931 = vpack.c.b16 %v5899, %v5895
    %5964 = vmatprep.subr.bf16.mxu0 %v5929
    %5965 = vmatpush1.bf16.msra.mxu0 %v5928
    %5966 = vmatprep.subr.bf16.mxu0 %v5925
    %5967 = vmatpush1.bf16.msra.mxu0 %v5924
    %5968 = vmatprep.subr.bf16.mxu0 %v5921
    %5969 = vmatpush1.bf16.msra.mxu0 %v5920
    %5970 = vmatprep.subr.bf16.mxu0 %v5917
    %5971 = vmatpush1.bf16.msra.mxu0 %v5916
    %5972 = vmatprep.subr.bf16.mxu0 %v5913
    %5973 = vmatpush1.bf16.msra.mxu0 %v5912
    %5974 = vmatprep.subr.bf16.mxu0 %v5909
    %5975 = vmatpush1.bf16.msra.mxu0 %v5908
    %5976 = vmatprep.subr.bf16.mxu0 %v5905
    %5977 = vmatpush1.bf16.msra.mxu0 %v5904
    %5978 = vmatprep.subr.bf16.mxu0 %v5901
    %5979 = vmatpush1.bf16.msra.mxu0 %v5900
    %5980 = vmatprep.subr.bf16.mxu0 0
    %5981 = vmatpush2.bf16.msra.mxu0 0
    %5982 = vmatprep.subr.bf16.mxu0 0
    %5983 = vmatpush2.bf16.msra.mxu0 0
    %5984 = vmatprep.subr.bf16.mxu0 0
    %5985 = vmatpush2.bf16.msra.mxu0 0
    %5986 = vmatprep.subr.bf16.mxu0 0
    %5987 = vmatpush2.bf16.msra.mxu0 0
    %5988 = vmatprep.subr.bf16.mxu0 0
    %5989 = vmatpush2.bf16.msra.mxu0 0
    %5990 = vmatprep.subr.bf16.mxu0 0
    %5991 = vmatpush2.bf16.msra.mxu0 0
    %5992 = vmatprep.subr.bf16.mxu0 0
    %5993 = vmatpush2.bf16.msra.mxu0 0
    %5994 = vmatprep.subr.bf16.mxu0 0
    %5995 = vmatpush2.bf16.msra.mxu0 0
    %5996 = vmatprep.mubr.bf16.mxu0 0
    %5997 = vmatmul.mubr.bf16.gmra.mxu0 %v5753
    %v5998 = vpop.f32.mrf.mxu0
    %v5999 = vadd.f32 0.0, %v5998
    %v6000 = vpop.f32.mrf.mxu0
    %v6001 = vadd.f32 0.0, %v6000
    %v6002 = vpop.f32.mrf.mxu0
    %v6003 = vadd.f32 0.0, %v6002
    %v6004 = vpop.f32.mrf.mxu0
    %v6005 = vadd.f32 0.0, %v6004
    %6006 = vdwg.mxu0
    %6007 = vmatprep.subr.bf16.mxu0 %v5931
    %6008 = vmatpush1.bf16.msra.mxu0 %v5930
    %6009 = vmatprep.subr.bf16.mxu0 %v5927
    %6010 = vmatpush1.bf16.msra.mxu0 %v5926
    %6011 = vmatprep.subr.bf16.mxu0 %v5923
    %6012 = vmatpush1.bf16.msra.mxu0 %v5922
    %6013 = vmatprep.subr.bf16.mxu0 %v5919
    %6014 = vmatpush1.bf16.msra.mxu0 %v5918
    %6015 = vmatprep.subr.bf16.mxu0 %v5915
    %6016 = vmatpush1.bf16.msra.mxu0 %v5914
    %6017 = vmatprep.subr.bf16.mxu0 %v5911
    %6018 = vmatpush1.bf16.msra.mxu0 %v5910
    %6019 = vmatprep.subr.bf16.mxu0 %v5907
    %6020 = vmatpush1.bf16.msra.mxu0 %v5906
    %6021 = vmatprep.subr.bf16.mxu0 %v5903
    %6022 = vmatpush1.bf16.msra.mxu0 %v5902
    %6023 = vmatprep.subr.bf16.mxu0 0
    %6024 = vmatpush2.bf16.msra.mxu0 0
    %6025 = vmatprep.subr.bf16.mxu0 0
    %6026 = vmatpush2.bf16.msra.mxu0 0
    %6027 = vmatprep.subr.bf16.mxu0 0
    %6028 = vmatpush2.bf16.msra.mxu0 0
    %6029 = vmatprep.subr.bf16.mxu0 0
    %6030 = vmatpush2.bf16.msra.mxu0 0
    %6031 = vmatprep.subr.bf16.mxu0 0
    %6032 = vmatpush2.bf16.msra.mxu0 0
    %6033 = vmatprep.subr.bf16.mxu0 0
    %6034 = vmatpush2.bf16.msra.mxu0 0
    %6035 = vmatprep.subr.bf16.mxu0 0
    %6036 = vmatpush2.bf16.msra.mxu0 0
    %6037 = vmatprep.subr.bf16.mxu0 0
    %6038 = vmatpush2.bf16.msra.mxu0 0
    %6039 = vmatprep.mubr.bf16.mxu0 0
    %6040 = vmatmul.mubr.bf16.gmra.mxu0 %v5753
    %v6041 = vpop.f32.mrf.mxu0
    %v6042 = vadd.f32 0.0, %v6041
    %v6043 = vpop.f32.mrf.mxu0
    %v6044 = vadd.f32 0.0, %v6043
    %v6045 = vpop.f32.mrf.mxu0
    %v6046 = vadd.f32 0.0, %v6045
    %v6047 = vpop.f32.mrf.mxu0
    %v6048 = vadd.f32 0.0, %v6047
    %6049 = vdwg.mxu0
    %v6050 = vadd.f32 %v5764, %v5999
    %v6051 = vadd.f32 %v5765, %v6001
    %v6052 = vadd.f32 %v5766, %v6042
    %v6053 = vadd.f32 %v5767, %v6044
    %v6054 = vadd.f32 %v5768, %v6003
    %v6055 = vadd.f32 %v5769, %v6005
    %v6056 = vadd.f32 %v5770, %v6046
    %v6057 = vadd.f32 %v5771, %v6048
    %v6058 = vxor.u32 %v6050, 2147483648
    %v6059 = vxor.u32 %v6054, 2147483648
    %v6060 = vmul.f32 %v6058, 1.442695
    %v6061 = vpow.pop %v6060
    %v6062 = vmul.f32 %v6059, 1.442695
    %v6063 = vpow.pop %v6062
    %v6064 = vadd.f32 %v6061, 1.0
    %v6065 = vadd.f32 %v6063, 1.0
    %v6066 = vrcp.pop %v6064
    %v6067 = vmul.f32 1.0, %v6066
    %v6068 = vrcp.pop %v6065
    %v6069 = vmul.f32 1.0, %v6068
    %v6070 = vxor.u32 %v6051, 2147483648
    %v6071 = vxor.u32 %v6055, 2147483648
    %v6072 = vmul.f32 %v6070, 1.442695
    %v6073 = vpow.pop %v6072
    %v6074 = vmul.f32 %v6071, 1.442695
    %v6075 = vpow.pop %v6074
    %v6076 = vadd.f32 %v6073, 1.0
    %v6077 = vadd.f32 %v6075, 1.0
    %v6078 = vrcp.pop %v6076
    %v6079 = vmul.f32 1.0, %v6078
    %v6080 = vrcp.pop %v6077
    %v6081 = vmul.f32 1.0, %v6080
    %v6082 = vtanh.pop %v6052
    %v6083 = vtanh.pop %v6056
    %v6084 = vxor.u32 %v6053, 2147483648
    %v6085 = vxor.u32 %v6057, 2147483648
    %v6086 = vmul.f32 %v6084, 1.442695
    %v6087 = vpow.pop %v6086
    %v6088 = vmul.f32 %v6085, 1.442695
    %v6089 = vpow.pop %v6088
    %v6090 = vadd.f32 %v6087, 1.0
    %v6091 = vadd.f32 %v6089, 1.0
    %v6092 = vrcp.pop %v6090
    %v6093 = vmul.f32 1.0, %v6092
    %v6094 = vrcp.pop %v6091
    %v6095 = vmul.f32 1.0, %v6094
    %v6096 = vmul.f32 %v6079, %v5747
    %v6097 = vmul.f32 %v6081, %v5748
    %v6098 = vmul.f32 %v6067, %v6082
    %v6099 = vmul.f32 %v6069, %v6083
    %v6100 = vadd.f32 %v6096, %v6098
    %v6101 = vadd.f32 %v6097, %v6099
    %v6102 = vtanh.pop %v6100
    %v6103 = vtanh.pop %v6101
    %v6104 = vmul.f32 %v6093, %v6102
    %v6105 = vmul.f32 %v6095, %v6103
    %v6106 = vpack.c.bf16 %v6105, %v6104
    %v6108 = vunpack.c.l.b16 %v6106
    %v6109 = vunpack.c.h.b16 %v6106
    %v6110 = vpack.c.b16 %v6108, %v6108
    %v6111 = vpack.c.b16 %v6109, %v6109
    %s6114 = scalar_lea.vmem [#allocation12], 48
    %6115 = vst [vmem:[%s6114] sm:$0xf] %v6110
    %6116 = vst [vmem:[%s6114 + $0x4] sm:$0xf] %v6111
    // Predicated region
    $region61: #{tpu_custom_call.1} parent=1 // pred_check
      _
    $region62: #{tpu_custom_call.1} parent=1 // pred_check_branch
      %6118 = sbr.rel (0) target = $region64
    $region63: #{tpu_custom_call.1} parent=1 // pred_region
      %s6120 = ssub.s32 896, 896
      %6121 = vsyncadd [#allocation6], %s6120
      %s6122 = sshll.u32 [#allocation12], 4
      %s6123 = int_to_ptr.vmem [resolvable:$true] %s6122
      %6128 = dma.vmem_to_hbm [thread:$0]  %s6123, 896, %s9, [#allocation6], 64, 64, 4
    $region64: #{tpu_custom_call.1} parent=1 // pred_fallthru
      _
    // Predicated region
    $region65: #{tpu_custom_call.1} parent=1 // pred_check
      _
    $region66: #{tpu_custom_call.1} parent=1 // pred_check_branch
      %6130 = sbr.rel (0) target = $region68
    $region67: #{tpu_custom_call.1} parent=1 // pred_region
      %6131 = dma.done [#allocation6], 896
    $region68: #{tpu_custom_call.1} parent=1 // pred_fallthru
      _
    %6132 = vsyncpa [#allocation5], 1
    %6133 = vsyncpa [#allocation8], 1
    %6134 = vsyncpa [#allocation11], 1
    %6135 = vsyncpa [#allocation6], 1

</llo_original>
